<compile_context>
chip_gen: v7x
topology: tpu7x:2x2x1
jax: 0.10.0
libtpu: 0.0.40
codegen_flags: <defaults>
</compile_context>

<pallas_src>
import functools

import jax
import jax.numpy as jnp
import numpy as np
from jax.experimental import pallas as pl
from jax.experimental.pallas import tpu as pltpu


def _round_up(x, m):
    return ((x + m - 1) // m) * m


def _basic_block_kernel(x_ref, mask_ref, w1_ref, b1_ref, w2_ref, b2_ref,
                        o_ref, out1_scr, *, wp, pad, s_len):
    """One image: out = relu(bn2(conv2(relu(bn1(conv1(x))))) + x).

    x_ref    : (1, S_ext, Cp) bf16   row-extended, spatially zero-padded input
    mask_ref : (S, Cp)        bf16   1 on interior rows, 0 on the 1-px border
    w1_ref/w2_ref : (9*Cp, Cp) bf16  im2col-ordered conv weights (BN scale folded)
    b1_ref/b2_ref : (1, Cp)    f32   folded BN biases
    o_ref    : (1, S, Cp)     bf16   padded-grid output (cropped in the wrapper)
    out1_scr : (S_ext, Cp)    bf16   VMEM staging of the conv1->conv2 intermediate
    """
    cp = o_ref.shape[-1]
    shifts = [(ky - 1) * wp + (kx - 1) for ky in range(3) for kx in range(3)]

    # --- conv1: 9 window loads straight from the row-extended input, 1 matmul ---
    taps = [x_ref[0, pl.ds(pad + s, s_len), :] for s in shifts]
    x0 = taps[4]                                       # center tap == residual
    acc1 = jnp.dot(jnp.concatenate(taps, axis=-1), w1_ref[...],
                   preferred_element_type=jnp.float32)

    # bn1 bias + relu; zero the 1-px border (it becomes conv2's zero padding);
    # single f32->bf16 downcast fused with the lane-dense mask multiply.
    out1 = jnp.maximum(acc1 + b1_ref[...], 0.0).astype(jnp.bfloat16) * mask_ref[...]

    # --- stage out1 in a row-extended VMEM scratch; conv2 taps are window loads ---
    zrows = jnp.zeros((pad, cp), jnp.bfloat16)
    out1_scr[pl.ds(0, pad), :] = zrows
    out1_scr[pl.ds(pad + s_len, pad), :] = zrows
    out1_scr[pl.ds(pad, s_len), :] = out1

    taps2 = [out1_scr[pl.ds(pad + s, s_len), :] for s in shifts]
    acc2 = jnp.dot(jnp.concatenate(taps2, axis=-1), w2_ref[...],
                   preferred_element_type=jnp.float32)

    # bn2 bias + residual + relu; contiguous lane-dense padded-slab store.
    y = jnp.maximum(acc2 + b2_ref[...] + x0.astype(jnp.float32), 0.0)
    o_ref[0] = y.astype(o_ref.dtype)


@jax.jit
def basic_block_pallas(x_nchw, w1_oihw, bn1, w2_oihw, bn2):
    """BasicBlock forward. x_nchw: (N, C, H, W); weights in PyTorch OIHW layout."""
    eps = 1e-5
    g1, beta1, m1, v1 = bn1
    g2, beta2, m2, v2 = bn2

    # fold eval-mode BN: scale into the conv weights, bias stays separate
    s1 = g1 * jax.lax.rsqrt(v1 + eps)
    b1 = beta1 - m1 * s1
    s2 = g2 * jax.lax.rsqrt(v2 + eps)
    b2 = beta2 - m2 * s2

    n, c, h, w = x_nchw.shape
    planes = w1_oihw.shape[0]
    assert planes == c, "no-downsample BasicBlock requires inplanes == planes"
    cp = _round_up(c, 128)                 # lane-dense channel count
    hp, wp = h + 2, w + 2
    s_len = hp * wp
    pad = _round_up(wp + 1, 8)             # covers the max tap shift, 8-aligned
    s_ext = s_len + 2 * pad

    # ---- layout glue (outside the hot loop) ----
    x = jnp.transpose(x_nchw, (0, 2, 3, 1))                     # NCHW -> NHWC
    xpad = jnp.pad(x, ((0, 0), (1, 1), (1, 1), (0, cp - c)))    # 1-px + channel pad
    xflat = xpad.reshape(n, s_len, cp)
    xext = jnp.pad(xflat, ((0, 0), (pad, pad), (0, 0))).astype(jnp.bfloat16)

    def prep_w(w_oihw, scale):
        w_ = jnp.transpose(w_oihw, (2, 3, 1, 0)) * scale[None, None, None, :]
        w_ = jnp.pad(w_, ((0, 0), (0, 0),
                          (0, cp - w_.shape[2]), (0, cp - w_.shape[3])))
        return w_.reshape(9 * cp, cp).astype(jnp.bfloat16)      # im2col row order

    w1p = prep_w(w1_oihw, s1)
    w2p = prep_w(w2_oihw, s2)
    b1p = jnp.pad(b1, (0, cp - planes)).reshape(1, cp).astype(jnp.float32)
    b2p = jnp.pad(b2, (0, cp - planes)).reshape(1, cp).astype(jnp.float32)

    # lane-dense border mask for the conv1 -> conv2 intermediate (DMA'd once)
    mask2d = jnp.zeros((hp, wp), jnp.bfloat16).at[1:1 + h, 1:1 + w].set(1.0)
    mask = jnp.broadcast_to(mask2d.reshape(s_len, 1), (s_len, cp))

    # per-step VMEM working set: double-buffered IO + weights + scratch +
    # im2col slabs + f32 accumulators; 2x headroom, clamped to [16 MiB, 64 MiB].
    est = (2 * s_ext * cp * 2 + 2 * s_len * cp * 2 + 2 * 2 * 9 * cp * cp * 2
           + 2 * s_len * cp * 2 + s_ext * cp * 2
           + 2 * s_len * 9 * cp * 2 + 4 * s_len * cp * 4)
    vmem_limit = int(min(max(2 * est, 16 * 2 ** 20), 64 * 2 ** 20))

    kernel = functools.partial(_basic_block_kernel, wp=wp, pad=pad, s_len=s_len)

    out = pl.pallas_call(
        kernel,
        grid=(n,),
        in_specs=[
            pl.BlockSpec((1, s_ext, cp), lambda i: (i, 0, 0)),    # activations
            pl.BlockSpec((s_len, cp), lambda i: (0, 0)),          # border mask
            pl.BlockSpec((9 * cp, cp), lambda i: (0, 0)),         # w1 (resident)
            pl.BlockSpec((1, cp), lambda i: (0, 0)),              # b1
            pl.BlockSpec((9 * cp, cp), lambda i: (0, 0)),         # w2 (resident)
            pl.BlockSpec((1, cp), lambda i: (0, 0)),              # b2
        ],
        out_specs=pl.BlockSpec((1, s_len, cp), lambda i: (i, 0, 0)),
        out_shape=jax.ShapeDtypeStruct((n, s_len, cp), jnp.bfloat16),
        scratch_shapes=[pltpu.VMEM((s_ext, cp), jnp.bfloat16)],
        compiler_params=pltpu.CompilerParams(
            dimension_semantics=("parallel",),       # megacore over batch
            vmem_limit_bytes=vmem_limit,
        ),
    )(xext, mask, w1p, b1p, w2p, b2p)

    # crop the 1-px border + channel padding outside the kernel (cheap XLA glue)
    out = out.reshape(n, hp, wp, cp)[:, 1:1 + h, 1:1 + w, :planes]
    return jnp.transpose(out.astype(x_nchw.dtype), (0, 3, 1, 2))   # NHWC -> NCHW


def _reference(x_nchw, w1_oihw, bn1, w2_oihw, bn2):
    """Pure-JAX f32 reference (lax.conv) with identical semantics."""
    eps = 1e-5
    g1, beta1, m1, v1 = bn1
    g2, beta2, m2, v2 = bn2
    dn = jax.lax.conv_dimension_numbers(x_nchw.shape, w1_oihw.shape,
                                        ("NCHW", "OIHW", "NCHW"))
    out = jax.lax.conv_general_dilated(x_nchw, w1_oihw, (1, 1),
                                       ((1, 1), (1, 1)), dimension_numbers=dn)
    out = (out - m1[None, :, None, None]) / jnp.sqrt(v1 + eps)[None, :, None, None]
    out = out * g1[None, :, None, None] + beta1[None, :, None, None]
    out = jnp.maximum(out, 0.0)
    out = jax.lax.conv_general_dilated(out, w2_oihw, (1, 1),
                                       ((1, 1), (1, 1)), dimension_numbers=dn)
    out = (out - m2[None, :, None, None]) / jnp.sqrt(v2 + eps)[None, :, None, None]
    out = out * g2[None, :, None, None] + beta2[None, :, None, None]
    return jnp.maximum(out + x_nchw, 0.0)


if __name__ == "__main__":
    key = jax.random.PRNGKey(0)
    k_x, k_w1, k_w2, k_g1, k_b1, k_m1, k_v1, k_g2, k_b2, k_m2, k_v2 = \
        jax.random.split(key, 11)

    N, C, H, W = 2, 4, 16, 16          # inplanes == planes, stride=1, no downsample
    planes = C

    x = jax.random.normal(k_x, (N, C, H, W), jnp.float32)
    w1 = jax.random.normal(k_w1, (planes, C, 3, 3), jnp.float32) * 0.1
    w2 = jax.random.normal(k_w2, (planes, planes, 3, 3), jnp.float32) * 0.1
    bn1 = (1.0 + 0.1 * jax.random.normal(k_g1, (planes,), jnp.float32),
           0.1 * jax.random.normal(k_b1, (planes,), jnp.float32),
           0.1 * jax.random.normal(k_m1, (planes,), jnp.float32),
           1.0 + 0.1 * jnp.abs(jax.random.normal(k_v1, (planes,), jnp.float32)))
    bn2 = (1.0 + 0.1 * jax.random.normal(k_g2, (planes,), jnp.float32),
           0.1 * jax.random.normal(k_b2, (planes,), jnp.float32),
           0.1 * jax.random.normal(k_m2, (planes,), jnp.float32),
           1.0 + 0.1 * jnp.abs(jax.random.normal(k_v2, (planes,), jnp.float32)))

    out = basic_block_pallas(x, w1, bn1, w2, bn2)
    out = jax.block_until_ready(out)

    ref = jax.block_until_ready(_reference(x, w1, bn1, w2, bn2))
    # bf16 matmul inputs / bf16 feature-map + residual storage -> loosened tolerance
    np.testing.assert_allclose(np.asarray(out), np.asarray(ref),
                               rtol=5e-2, atol=5e-2)

    print("KERNEL_OK")
</pallas_src>

<mosaic_0001>
module attributes {stable_mosaic.version = 11 : i64} {
  func.func @_basic_block_kernel(%arg0: i32, %arg1: memref<1x372x128xbf16, #tpu.memory_space<vmem>>, %arg2: memref<324x128xbf16, #tpu.memory_space<vmem>>, %arg3: memref<1152x128xbf16, #tpu.memory_space<vmem>>, %arg4: memref<1x128xf32, #tpu.memory_space<vmem>>, %arg5: memref<1152x128xbf16, #tpu.memory_space<vmem>>, %arg6: memref<1x128xf32, #tpu.memory_space<vmem>>, %arg7: memref<1x324x128xbf16, #tpu.memory_space<vmem>>, %arg8: memref<372x128xbf16, #tpu.memory_space<vmem>>) attributes {dimension_semantics = [#tpu.dimension_semantics<parallel>], iteration_bounds = array<i64: 2>, scalar_prefetch = 0 : i64, scratch_operands = 1 : i64, tpu.core_type = #tpu.core_type<tc>, window_params = [{transform_indices = @transform_0, window_bounds = array<i64: 1, 372, 128>}, {pipeline_mode = #tpu.pipeline_mode<synchronous>, transform_indices = @transform_1, window_bounds = array<i64: 324, 128>}, {pipeline_mode = #tpu.pipeline_mode<synchronous>, transform_indices = @transform_2, window_bounds = array<i64: 1152, 128>}, {pipeline_mode = #tpu.pipeline_mode<synchronous>, transform_indices = @transform_3, window_bounds = array<i64: 1, 128>}, {pipeline_mode = #tpu.pipeline_mode<synchronous>, transform_indices = @transform_4, window_bounds = array<i64: 1152, 128>}, {pipeline_mode = #tpu.pipeline_mode<synchronous>, transform_indices = @transform_5, window_bounds = array<i64: 1, 128>}, {transform_indices = @transform_6, window_bounds = array<i64: 1, 324, 128>}]} {
    %c0 = arith.constant 0 : index
    %c5 = arith.constant 5 : index
    %c0_0 = arith.constant 0 : index
    %0 = vector.load %arg1[%c0, %c5, %c0_0] : memref<1x372x128xbf16, #tpu.memory_space<vmem>>, vector<1x324x128xbf16>
    %1 = vector.shape_cast %0 : vector<1x324x128xbf16> to vector<324x128xbf16>
    %c0_1 = arith.constant 0 : index
    %c6 = arith.constant 6 : index
    %c0_2 = arith.constant 0 : index
    %2 = vector.load %arg1[%c0_1, %c6, %c0_2] : memref<1x372x128xbf16, #tpu.memory_space<vmem>>, vector<1x324x128xbf16>
    %3 = vector.shape_cast %2 : vector<1x324x128xbf16> to vector<324x128xbf16>
    %c0_3 = arith.constant 0 : index
    %c7 = arith.constant 7 : index
    %c0_4 = arith.constant 0 : index
    %4 = vector.load %arg1[%c0_3, %c7, %c0_4] : memref<1x372x128xbf16, #tpu.memory_space<vmem>>, vector<1x324x128xbf16>
    %5 = vector.shape_cast %4 : vector<1x324x128xbf16> to vector<324x128xbf16>
    %c0_5 = arith.constant 0 : index
    %c23 = arith.constant 23 : index
    %c0_6 = arith.constant 0 : index
    %6 = vector.load %arg1[%c0_5, %c23, %c0_6] : memref<1x372x128xbf16, #tpu.memory_space<vmem>>, vector<1x324x128xbf16>
    %7 = vector.shape_cast %6 : vector<1x324x128xbf16> to vector<324x128xbf16>
    %c0_7 = arith.constant 0 : index
    %c24 = arith.constant 24 : index
    %c0_8 = arith.constant 0 : index
    %8 = vector.load %arg1[%c0_7, %c24, %c0_8] : memref<1x372x128xbf16, #tpu.memory_space<vmem>>, vector<1x324x128xbf16>
    %9 = vector.shape_cast %8 : vector<1x324x128xbf16> to vector<324x128xbf16>
    %c0_9 = arith.constant 0 : index
    %c25 = arith.constant 25 : index
    %c0_10 = arith.constant 0 : index
    %10 = vector.load %arg1[%c0_9, %c25, %c0_10] : memref<1x372x128xbf16, #tpu.memory_space<vmem>>, vector<1x324x128xbf16>
    %11 = vector.shape_cast %10 : vector<1x324x128xbf16> to vector<324x128xbf16>
    %c0_11 = arith.constant 0 : index
    %c41 = arith.constant 41 : index
    %c0_12 = arith.constant 0 : index
    %12 = vector.load %arg1[%c0_11, %c41, %c0_12] : memref<1x372x128xbf16, #tpu.memory_space<vmem>>, vector<1x324x128xbf16>
    %13 = vector.shape_cast %12 : vector<1x324x128xbf16> to vector<324x128xbf16>
    %c0_13 = arith.constant 0 : index
    %c42 = arith.constant 42 : index
    %c0_14 = arith.constant 0 : index
    %14 = vector.load %arg1[%c0_13, %c42, %c0_14] : memref<1x372x128xbf16, #tpu.memory_space<vmem>>, vector<1x324x128xbf16>
    %15 = vector.shape_cast %14 : vector<1x324x128xbf16> to vector<324x128xbf16>
    %c0_15 = arith.constant 0 : index
    %c43 = arith.constant 43 : index
    %c0_16 = arith.constant 0 : index
    %16 = vector.load %arg1[%c0_15, %c43, %c0_16] : memref<1x372x128xbf16, #tpu.memory_space<vmem>>, vector<1x324x128xbf16>
    %17 = vector.shape_cast %16 : vector<1x324x128xbf16> to vector<324x128xbf16>
    %18 = tpu.concatenate %1, %3, %5, %7, %9, %11, %13, %15, %17 in 1 : vector<324x128xbf16>, vector<324x128xbf16>, vector<324x128xbf16>, vector<324x128xbf16>, vector<324x128xbf16>, vector<324x128xbf16>, vector<324x128xbf16>, vector<324x128xbf16>, vector<324x128xbf16> -> vector<324x1152xbf16>
    %c0_17 = arith.constant 0 : index
    %c0_18 = arith.constant 0 : index
    %19 = vector.load %arg3[%c0_17, %c0_18] : memref<1152x128xbf16, #tpu.memory_space<vmem>>, vector<1152x128xbf16>
    %cst = arith.constant dense<0.000000e+00> : vector<324x128xf32>
    %20 = tpu.matmul %18, %19, %cst {dimension_numbers = #tpu.dot_dimension_numbers<[1], [0], [0], [1], [0, 0, 1, 1], [], []>} : vector<324x1152xbf16>, vector<1152x128xbf16>, vector<324x128xf32> -> vector<324x128xf32>
    %c0_19 = arith.constant 0 : index
    %c0_20 = arith.constant 0 : index
    %21 = vector.load %arg4[%c0_19, %c0_20] : memref<1x128xf32, #tpu.memory_space<vmem>>, vector<1x128xf32>
    %22 = vector.broadcast %21 : vector<1x128xf32> to vector<324x128xf32>
    %23 = arith.addf %20, %22 : vector<324x128xf32>
    %cst_21 = arith.constant 0.000000e+00 : f32
    %24 = vector.broadcast %cst_21 : f32 to vector<324x128xf32>
    %25 = arith.maximumf %23, %24 : vector<324x128xf32>
    %26 = arith.truncf %25 : vector<324x128xf32> to vector<324x128xbf16>
    %c0_22 = arith.constant 0 : index
    %c0_23 = arith.constant 0 : index
    %27 = vector.load %arg2[%c0_22, %c0_23] : memref<324x128xbf16, #tpu.memory_space<vmem>>, vector<324x128xbf16>
    %28 = arith.mulf %26, %27 : vector<324x128xbf16>
    %cst_24 = arith.constant 0.000000e+00 : bf16
    %29 = vector.broadcast %cst_24 : bf16 to vector<24x128xbf16>
    %c0_25 = arith.constant 0 : index
    %c0_26 = arith.constant 0 : index
    %30 = vector.load %arg8[%c0_25, %c0_26] : memref<372x128xbf16, #tpu.memory_space<vmem>>, vector<24x128xbf16>
    tpu.vector_store %arg8[%c0_25, %c0_26], %29 {strides = array<i32>} : memref<372x128xbf16, #tpu.memory_space<vmem>>, vector<24x128xbf16>,
    %c348 = arith.constant 348 : index
    %c0_27 = arith.constant 0 : index
    %31 = vector.load %arg8[%c348, %c0_27] : memref<372x128xbf16, #tpu.memory_space<vmem>>, vector<24x128xbf16>
    tpu.vector_store %arg8[%c348, %c0_27], %29 {strides = array<i32>} : memref<372x128xbf16, #tpu.memory_space<vmem>>, vector<24x128xbf16>,
    %c24_28 = arith.constant 24 : index
    %c0_29 = arith.constant 0 : index
    %32 = vector.load %arg8[%c24_28, %c0_29] : memref<372x128xbf16, #tpu.memory_space<vmem>>, vector<324x128xbf16>
    tpu.vector_store %arg8[%c24_28, %c0_29], %28 {strides = array<i32>} : memref<372x128xbf16, #tpu.memory_space<vmem>>, vector<324x128xbf16>,
    %c5_30 = arith.constant 5 : index
    %c0_31 = arith.constant 0 : index
    %33 = vector.load %arg8[%c5_30, %c0_31] : memref<372x128xbf16, #tpu.memory_space<vmem>>, vector<324x128xbf16>
    %c6_32 = arith.constant 6 : index
    %c0_33 = arith.constant 0 : index
    %34 = vector.load %arg8[%c6_32, %c0_33] : memref<372x128xbf16, #tpu.memory_space<vmem>>, vector<324x128xbf16>
    %c7_34 = arith.constant 7 : index
    %c0_35 = arith.constant 0 : index
    %35 = vector.load %arg8[%c7_34, %c0_35] : memref<372x128xbf16, #tpu.memory_space<vmem>>, vector<324x128xbf16>
    %c23_36 = arith.constant 23 : index
    %c0_37 = arith.constant 0 : index
    %36 = vector.load %arg8[%c23_36, %c0_37] : memref<372x128xbf16, #tpu.memory_space<vmem>>, vector<324x128xbf16>
    %c24_38 = arith.constant 24 : index
    %c0_39 = arith.constant 0 : index
    %37 = vector.load %arg8[%c24_38, %c0_39] : memref<372x128xbf16, #tpu.memory_space<vmem>>, vector<324x128xbf16>
    %c25_40 = arith.constant 25 : index
    %c0_41 = arith.constant 0 : index
    %38 = vector.load %arg8[%c25_40, %c0_41] : memref<372x128xbf16, #tpu.memory_space<vmem>>, vector<324x128xbf16>
    %c41_42 = arith.constant 41 : index
    %c0_43 = arith.constant 0 : index
    %39 = vector.load %arg8[%c41_42, %c0_43] : memref<372x128xbf16, #tpu.memory_space<vmem>>, vector<324x128xbf16>
    %c42_44 = arith.constant 42 : index
    %c0_45 = arith.constant 0 : index
    %40 = vector.load %arg8[%c42_44, %c0_45] : memref<372x128xbf16, #tpu.memory_space<vmem>>, vector<324x128xbf16>
    %c43_46 = arith.constant 43 : index
    %c0_47 = arith.constant 0 : index
    %41 = vector.load %arg8[%c43_46, %c0_47] : memref<372x128xbf16, #tpu.memory_space<vmem>>, vector<324x128xbf16>
    %42 = tpu.concatenate %33, %34, %35, %36, %37, %38, %39, %40, %41 in 1 : vector<324x128xbf16>, vector<324x128xbf16>, vector<324x128xbf16>, vector<324x128xbf16>, vector<324x128xbf16>, vector<324x128xbf16>, vector<324x128xbf16>, vector<324x128xbf16>, vector<324x128xbf16> -> vector<324x1152xbf16>
    %c0_48 = arith.constant 0 : index
    %c0_49 = arith.constant 0 : index
    %43 = vector.load %arg5[%c0_48, %c0_49] : memref<1152x128xbf16, #tpu.memory_space<vmem>>, vector<1152x128xbf16>
    %cst_50 = arith.constant dense<0.000000e+00> : vector<324x128xf32>
    %44 = tpu.matmul %42, %43, %cst_50 {dimension_numbers = #tpu.dot_dimension_numbers<[1], [0], [0], [1], [0, 0, 1, 1], [], []>} : vector<324x1152xbf16>, vector<1152x128xbf16>, vector<324x128xf32> -> vector<324x128xf32>
    %c0_51 = arith.constant 0 : index
    %c0_52 = arith.constant 0 : index
    %45 = vector.load %arg6[%c0_51, %c0_52] : memref<1x128xf32, #tpu.memory_space<vmem>>, vector<1x128xf32>
    %46 = vector.broadcast %45 : vector<1x128xf32> to vector<324x128xf32>
    %47 = arith.addf %44, %46 : vector<324x128xf32>
    %48 = arith.extf %9 : vector<324x128xbf16> to vector<324x128xf32>
    %49 = arith.addf %47, %48 : vector<324x128xf32>
    %cst_53 = arith.constant 0.000000e+00 : f32
    %50 = vector.broadcast %cst_53 : f32 to vector<324x128xf32>
    %51 = arith.maximumf %49, %50 : vector<324x128xf32>
    %52 = arith.truncf %51 : vector<324x128xf32> to vector<324x128xbf16>
    %c0_54 = arith.constant 0 : index
    %c0_55 = arith.constant 0 : index
    %c0_56 = arith.constant 0 : index
    %53 = vector.load %arg7[%c0_54, %c0_55, %c0_56] : memref<1x324x128xbf16, #tpu.memory_space<vmem>>, vector<1x324x128xbf16>
    %54 = vector.shape_cast %53 : vector<1x324x128xbf16> to vector<324x128xbf16>
    %55 = vector.shape_cast %52 : vector<324x128xbf16> to vector<1x324x128xbf16>
    tpu.vector_store %arg7[%c0_54, %c0_55, %c0_56], %55 {strides = array<i32>} : memref<1x324x128xbf16, #tpu.memory_space<vmem>>, vector<1x324x128xbf16>,
    return
  }
  func.func @transform_0(%arg0: i32) -> (i32, i32, i32) {
    %c0_i32 = arith.constant 0 : i32
    %c0_i32_0 = arith.constant 0 : i32
    %c0_i32_1 = arith.constant 0 : i32
    return %arg0, %c0_i32, %c0_i32_0 : i32, i32, i32
  }
  func.func @transform_1(%arg0: i32) -> (i32, i32) {
    %c0_i32 = arith.constant 0 : i32
    %c0_i32_0 = arith.constant 0 : i32
    %c0_i32_1 = arith.constant 0 : i32
    return %c0_i32, %c0_i32_0 : i32, i32
  }
  func.func @transform_2(%arg0: i32) -> (i32, i32) {
    %c0_i32 = arith.constant 0 : i32
    %c0_i32_0 = arith.constant 0 : i32
    %c0_i32_1 = arith.constant 0 : i32
    return %c0_i32, %c0_i32_0 : i32, i32
  }
  func.func @transform_3(%arg0: i32) -> (i32, i32) {
    %c0_i32 = arith.constant 0 : i32
    %c0_i32_0 = arith.constant 0 : i32
    %c0_i32_1 = arith.constant 0 : i32
    return %c0_i32, %c0_i32_0 : i32, i32
  }
  func.func @transform_4(%arg0: i32) -> (i32, i32) {
    %c0_i32 = arith.constant 0 : i32
    %c0_i32_0 = arith.constant 0 : i32
    %c0_i32_1 = arith.constant 0 : i32
    return %c0_i32, %c0_i32_0 : i32, i32
  }
  func.func @transform_5(%arg0: i32) -> (i32, i32) {
    %c0_i32 = arith.constant 0 : i32
    %c0_i32_0 = arith.constant 0 : i32
    %c0_i32_1 = arith.constant 0 : i32
    return %c0_i32, %c0_i32_0 : i32, i32
  }
  func.func @transform_6(%arg0: i32) -> (i32, i32, i32) {
    %c0_i32 = arith.constant 0 : i32
    %c0_i32_0 = arith.constant 0 : i32
    %c0_i32_1 = arith.constant 0 : i32
    return %arg0, %c0_i32, %c0_i32_0 : i32, i32, i32
  }
}

</mosaic_0001>

<llo_original>
// kernel: basic_block_pallas.1
$region0: #{basic_block_pallas.1}
  #allocation0 [shape = 'u32[]', space=smem, size = 0x4, offset = 0x4, fixed_abs, tag = 'smem constant byte address 0x4 - core index']
  #allocation1 [shape = 'u32[144,128]{1,0:T(1,128)}', space=vmem, size = 0x12000, scoped, tag = 'internal scratch']
  #allocation2 [shape = 'bf16[372,128]{1,0:T(8,128)(2,1)}', space=vmem, size = 0x17800, scoped, tag = 'scratch operand']
  %s0 = inlined_call_operand.vmem [shape: bf16[2,372,128], index: 0, kind: input, shape index: {}]
  %s1 = inlined_call_operand.vmem [shape: bf16[324,128], index: 1, kind: input, shape index: {}]
  %s2 = inlined_call_operand.vmem [shape: bf16[1152,128], index: 2, kind: input, shape index: {}]
  %s3 = inlined_call_operand.vmem [shape: f32[1,128], index: 3, kind: input, shape index: {}]
  %s4 = inlined_call_operand.vmem [shape: bf16[1152,128], index: 4, kind: input, shape index: {}]
  %s5 = inlined_call_operand.vmem [shape: f32[1,128], index: 5, kind: input, shape index: {}]
  %s6 = inlined_call_operand.vmem [shape: bf16[2,324,128], index: 6, kind: output, shape index: {}]
  %s7 = sld [smem:[#allocation0]]
  $region57: #{basic_block_pallas.1} parent=0
    _
  %s9 = ssub.s32 1, %s7
  %s10 = scalar_select 0, %s9, %s7
  loop: start=0, step=1, limit=4
  $region2: #{basic_block_pallas.1} parent=0 // loop_pre_header
    _
  $region3: #{basic_block_pallas.1} parent=0 // loop_header
    %s12 = sphi 0, %s16
    %p13 = scmp.ge.s32.totalorder %s12, 4
    %s22 = sphi 0, %s24
    %s25 = sphi 0, %s22
    %s26 = sphi 0, %s25
    %s42 = sphi 0, %s26
    %s46 = sphi 0, %s46
    %s48 = sphi 0, %s46
    %s49 = sphi 0, %s48
    %s63 = sphi 0, %s49
    %s67 = sphi 0, %s67
    %s69 = sphi 0, %s67
    %s70 = sphi 0, %s69
    %s84 = sphi 0, %s70
    %s88 = sphi 0, %s88
    %s90 = sphi 0, %s88
    %s91 = sphi 0, %s90
    %s105 = sphi 0, %s91
    %s109 = sphi 0, %s109
    %s111 = sphi 0, %s109
    %s112 = sphi 0, %s111
    %s126 = sphi 0, %s112
    %s130 = sphi 0, %s130
    %s132 = sphi 0, %s130
    %s133 = sphi 0, %s132
    %s147 = sphi 0, %s133
    %s153 = sphi 0, %s155
    %s156 = sphi 0, %s153
    %s157 = sphi 0, %s156
    %s173 = sphi 0, %s157
  $region4: #{basic_block_pallas.1} parent=0 // loop_header_branch
    %15 = sbr.rel (%p13) target = $region8
  $region5: #{basic_block_pallas.1} parent=0 // loop_body
    %s17 = ssub.s32 %s12, 1
    %s18 = ssub.s32 %s12, 2
    %s19 = sadd.s32 %s12, 1
    %s20 = ssub.s32 %s12, %s19
    %p21 = scmp.eq.s32.totalorder %s20, 0
    %s23 = sadd.s32 %s22, 1
    %s24 = scalar_select %p21, %s22, %s23
    %p27 = pneg %p21
    %p28 = scmp.eq.s32.totalorder %s12, 1
    %p29 = por %p27, %p28
    %p30 = scmp.ne.s32.totalorder %s22, %s25
    %p31 = scmp.eq.s32.totalorder %s12, 0
    %p32 = por %p30, %p31
    %p33 = scmp.ne.s32.totalorder %s22, %s25
    %p34 = scmp.eq.s32.totalorder %s17, 1
    %p35 = por %p33, %p34
    %p36 = scmp.ne.s32.totalorder %s25, %s26
    %p37 = scmp.eq.s32.totalorder %s17, 0
    %p38 = por %p36, %p37
    %p39 = scmp.ne.s32.totalorder %s25, %s26
    %p40 = scmp.eq.s32.totalorder %s18, 1
    %p41 = por %p39, %p40
    %p43 = scmp.ne.s32.totalorder %s26, %s42
    %p44 = scmp.eq.s32.totalorder %s18, 0
    %p45 = por %p43, %p44
    %s47 = sadd.s32 %s46, 1
    %p50 = scmp.eq.s32.totalorder %s12, 1
    %p51 = scmp.ne.s32.totalorder %s46, %s48
    %p52 = scmp.eq.s32.totalorder %s12, 0
    %p53 = por %p51, %p52
    %p54 = scmp.ne.s32.totalorder %s46, %s48
    %p55 = scmp.eq.s32.totalorder %s17, 1
    %p56 = por %p54, %p55
    %p57 = scmp.ne.s32.totalorder %s48, %s49
    %p58 = scmp.eq.s32.totalorder %s17, 0
    %p59 = por %p57, %p58
    %p60 = scmp.ne.s32.totalorder %s48, %s49
    %p61 = scmp.eq.s32.totalorder %s18, 1
    %p62 = por %p60, %p61
    %p64 = scmp.ne.s32.totalorder %s49, %s63
    %p65 = scmp.eq.s32.totalorder %s18, 0
    %p66 = por %p64, %p65
    %s68 = sadd.s32 %s67, 1
    %p71 = scmp.eq.s32.totalorder %s12, 1
    %p72 = scmp.ne.s32.totalorder %s67, %s69
    %p73 = scmp.eq.s32.totalorder %s12, 0
    %p74 = por %p72, %p73
    %p75 = scmp.ne.s32.totalorder %s67, %s69
    %p76 = scmp.eq.s32.totalorder %s17, 1
    %p77 = por %p75, %p76
    %p78 = scmp.ne.s32.totalorder %s69, %s70
    %p79 = scmp.eq.s32.totalorder %s17, 0
    %p80 = por %p78, %p79
    %p81 = scmp.ne.s32.totalorder %s69, %s70
    %p82 = scmp.eq.s32.totalorder %s18, 1
    %p83 = por %p81, %p82
    %p85 = scmp.ne.s32.totalorder %s70, %s84
    %p86 = scmp.eq.s32.totalorder %s18, 0
    %p87 = por %p85, %p86
    %s89 = sadd.s32 %s88, 1
    %p92 = scmp.eq.s32.totalorder %s12, 1
    %p93 = scmp.ne.s32.totalorder %s88, %s90
    %p94 = scmp.eq.s32.totalorder %s12, 0
    %p95 = por %p93, %p94
    %p96 = scmp.ne.s32.totalorder %s88, %s90
    %p97 = scmp.eq.s32.totalorder %s17, 1
    %p98 = por %p96, %p97
    %p99 = scmp.ne.s32.totalorder %s90, %s91
    %p100 = scmp.eq.s32.totalorder %s17, 0
    %p101 = por %p99, %p100
    %p102 = scmp.ne.s32.totalorder %s90, %s91
    %p103 = scmp.eq.s32.totalorder %s18, 1
    %p104 = por %p102, %p103
    %p106 = scmp.ne.s32.totalorder %s91, %s105
    %p107 = scmp.eq.s32.totalorder %s18, 0
    %p108 = por %p106, %p107
    %s110 = sadd.s32 %s109, 1
    %p113 = scmp.eq.s32.totalorder %s12, 1
    %p114 = scmp.ne.s32.totalorder %s109, %s111
    %p115 = scmp.eq.s32.totalorder %s12, 0
    %p116 = por %p114, %p115
    %p117 = scmp.ne.s32.totalorder %s109, %s111
    %p118 = scmp.eq.s32.totalorder %s17, 1
    %p119 = por %p117, %p118
    %p120 = scmp.ne.s32.totalorder %s111, %s112
    %p121 = scmp.eq.s32.totalorder %s17, 0
    %p122 = por %p120, %p121
    %p123 = scmp.ne.s32.totalorder %s111, %s112
    %p124 = scmp.eq.s32.totalorder %s18, 1
    %p125 = por %p123, %p124
    %p127 = scmp.ne.s32.totalorder %s112, %s126
    %p128 = scmp.eq.s32.totalorder %s18, 0
    %p129 = por %p127, %p128
    %s131 = sadd.s32 %s130, 1
    %p134 = scmp.eq.s32.totalorder %s12, 1
    %p135 = scmp.ne.s32.totalorder %s130, %s132
    %p136 = scmp.eq.s32.totalorder %s12, 0
    %p137 = por %p135, %p136
    %p138 = scmp.ne.s32.totalorder %s130, %s132
    %p139 = scmp.eq.s32.totalorder %s17, 1
    %p140 = por %p138, %p139
    %p141 = scmp.ne.s32.totalorder %s132, %s133
    %p142 = scmp.eq.s32.totalorder %s17, 0
    %p143 = por %p141, %p142
    %p144 = scmp.ne.s32.totalorder %s132, %s133
    %p145 = scmp.eq.s32.totalorder %s18, 1
    %p146 = por %p144, %p145
    %p148 = scmp.ne.s32.totalorder %s133, %s147
    %p149 = scmp.eq.s32.totalorder %s18, 0
    %p150 = por %p148, %p149
    %s151 = ssub.s32 %s12, %s19
    %p152 = scmp.eq.s32.totalorder %s151, 0
    %s154 = sadd.s32 %s153, 1
    %s155 = scalar_select %p152, %s153, %s154
    %p158 = pneg %p152
    %p159 = scmp.eq.s32.totalorder %s12, 1
    %p160 = por %p158, %p159
    %p161 = scmp.ne.s32.totalorder %s153, %s156
    %p162 = scmp.eq.s32.totalorder %s12, 0
    %p163 = por %p161, %p162
    %p164 = scmp.ne.s32.totalorder %s153, %s156
    %p165 = scmp.eq.s32.totalorder %s17, 1
    %p166 = por %p164, %p165
    %p167 = scmp.ne.s32.totalorder %s156, %s157
    %p168 = scmp.eq.s32.totalorder %s17, 0
    %p169 = por %p167, %p168
    %p170 = scmp.ne.s32.totalorder %s156, %s157
    %p171 = scmp.eq.s32.totalorder %s18, 1
    %p172 = por %p170, %p171
    %p174 = scmp.ne.s32.totalorder %s157, %s173
    %p175 = scmp.eq.s32.totalorder %s18, 0
    %p176 = por %p174, %p175
    %p177 = scmp.le.s32.totalorder 1, %s12
    %p178 = scmp.lt.s32.totalorder %s12, 3
    %p179 = pnand %p177, %p178
    %p180 = pneg %p179
    // Predicated region
    $region9: #{basic_block_pallas.1} parent=5 // pred_check
      _
    $region10: #{basic_block_pallas.1} parent=5 // pred_check_branch
      %182 = sbr.rel (%p179) target = $region12
    $region11: #{basic_block_pallas.1} parent=5 // pred_region
      %s183 = ssub.s32 %s12, 1
      // Predicated region
      $region13: #{basic_block_pallas.1} parent=11 // pred_check
        %p184 = pneg %p59
      $region14: #{basic_block_pallas.1} parent=11 // pred_check_branch
        %186 = sbr.rel (%p184) target = $region16
      $region15: #{basic_block_pallas.1} parent=11 // pred_region
        _
      $region16: #{basic_block_pallas.1} parent=11 // pred_fallthru
        _
      // Predicated region
      $region17: #{basic_block_pallas.1} parent=11 // pred_check
        %p187 = pneg %p80
      $region18: #{basic_block_pallas.1} parent=11 // pred_check_branch
        %189 = sbr.rel (%p187) target = $region20
      $region19: #{basic_block_pallas.1} parent=11 // pred_region
        _
      $region20: #{basic_block_pallas.1} parent=11 // pred_fallthru
        _
      // Predicated region
      $region21: #{basic_block_pallas.1} parent=11 // pred_check
        %p190 = pneg %p101
      $region22: #{basic_block_pallas.1} parent=11 // pred_check_branch
        %192 = sbr.rel (%p190) target = $region24
      $region23: #{basic_block_pallas.1} parent=11 // pred_region
        _
      $region24: #{basic_block_pallas.1} parent=11 // pred_fallthru
        _
      // Predicated region
      $region25: #{basic_block_pallas.1} parent=11 // pred_check
        %p193 = pneg %p122
      $region26: #{basic_block_pallas.1} parent=11 // pred_check_branch
        %195 = sbr.rel (%p193) target = $region28
      $region27: #{basic_block_pallas.1} parent=11 // pred_region
        _
      $region28: #{basic_block_pallas.1} parent=11 // pred_fallthru
        _
      // Predicated region
      $region29: #{basic_block_pallas.1} parent=11 // pred_check
        %p196 = pneg %p143
      $region30: #{basic_block_pallas.1} parent=11 // pred_check_branch
        %198 = sbr.rel (%p196) target = $region32
      $region31: #{basic_block_pallas.1} parent=11 // pred_region
        _
      $region32: #{basic_block_pallas.1} parent=11 // pred_fallthru
        _
    $region12: #{basic_block_pallas.1} parent=5 // pred_fallthru
      _
    %p199 = scmp.lt.s32.totalorder %s12, 2
    // Predicated region
    $region33: #{basic_block_pallas.1} parent=5 // pred_check
      %p200 = pneg %p199
    $region34: #{basic_block_pallas.1} parent=5 // pred_check_branch
      %202 = sbr.rel (%p200) target = $region36
    $region35: #{basic_block_pallas.1} parent=5 // pred_region
      // Predicated region
      $region37: #{basic_block_pallas.1} parent=35 // pred_check
        %p203 = pneg %p32
      $region38: #{basic_block_pallas.1} parent=35 // pred_check_branch
        %205 = sbr.rel (%p203) target = $region40
      $region39: #{basic_block_pallas.1} parent=35 // pred_region
        %p206 = scmp.lt.s32.totalorder %s12, 1
        %s207 = scalar_select %p206, %s12, 1
        %s208 = smul.addr %s207, 47
        %s209 = smul.addr %s208, 4
        %s210 = scalar_lea.vmem %s0, %s209
      $region40: #{basic_block_pallas.1} parent=35 // pred_fallthru
        _
    $region36: #{basic_block_pallas.1} parent=5 // pred_fallthru
      _
    %p211 = scmp.le.s32.totalorder 1, %s12
    %p212 = scmp.lt.s32.totalorder %s12, 3
    %p213 = pnand %p211, %p212
    %p214 = pneg %p213
    // Predicated region
    $region41: #{basic_block_pallas.1} parent=5 // pred_check
      _
    $region42: #{basic_block_pallas.1} parent=5 // pred_check_branch
      %216 = sbr.rel (%p213) target = $region44
    $region43: #{basic_block_pallas.1} parent=5 // pred_region
      %s217 = ssub.s32 %s12, 1
      %p218 = scmp.lt.s32.totalorder %s17, 1
      %s219 = scalar_select %p218, %s17, 1
      %s220 = smul.addr %s219, 47
      %s221 = smul.addr %s220, 4
      %s222 = scalar_lea.vmem %s0, %s221
      %p223 = pneg %p38
      %p224 = pneg %p35
      %p225 = pneg %p59
      %p226 = pneg %p56
      %p227 = pneg %p80
      %p228 = pneg %p77
      %p229 = pneg %p101
      %p230 = pneg %p98
      %p231 = pneg %p122
      %p232 = pneg %p119
      %p233 = pneg %p143
      %p234 = pneg %p140
      %p235 = pneg %p169
      %p236 = pneg %p166
      %p237 = scmp.lt.s32.totalorder %s17, 1
      %s238 = scalar_select %p237, %s17, 1
      %s239 = smul.addr %s238, 41
      %s240 = smul.addr %s239, 4
      %s241 = scalar_lea.vmem %s6, %s240
      %p242 = scmp.lt.s32.totalorder %s17, 1
      %s243 = scalar_select %p242, %s17, 1
      %s244 = smul.addr %s243, 47
      %s245 = smul.addr %s244, 4
      %s246 = scalar_lea.vmem %s0, %s245
      %p247 = scmp.lt.s32.totalorder %s17, 1
      %s248 = scalar_select %p247, %s17, 1
      %s249 = smul.addr %s248, 41
      %s250 = smul.addr %s249, 4
      %s251 = scalar_lea.vmem %s6, %s250
      %v253 = vld [vmem:[%s246] sm:$0xc]
      %v254 = vld [vmem:[%s246 + $0x4] sm:$0xf]
      %v255 = vld [vmem:[%s246 + $0x8] sm:$0xf]
      %v256 = vld [vmem:[%s246 + $0xc] sm:$0xf]
      %v257 = vld [vmem:[%s246 + $0x10] sm:$0xf]
      %v258 = vld [vmem:[%s246 + $0x14] sm:$0xf]
      %v259 = vld [vmem:[%s246 + $0x18] sm:$0xf]
      %v260 = vld [vmem:[%s246 + $0x1c] sm:$0xf]
      %v261 = vld [vmem:[%s246 + $0x20] sm:$0xf]
      %v262 = vld [vmem:[%s246 + $0x24] sm:$0xf]
      %v263 = vld [vmem:[%s246 + $0x28] sm:$0xf]
      %v264 = vld [vmem:[%s246 + $0x2c] sm:$0xf]
      %v265 = vld [vmem:[%s246 + $0x30] sm:$0xf]
      %v266 = vld [vmem:[%s246 + $0x34] sm:$0xf]
      %v267 = vld [vmem:[%s246 + $0x38] sm:$0xf]
      %v268 = vld [vmem:[%s246 + $0x3c] sm:$0xf]
      %v269 = vld [vmem:[%s246 + $0x40] sm:$0xf]
      %v270 = vld [vmem:[%s246 + $0x44] sm:$0xf]
      %v271 = vld [vmem:[%s246 + $0x48] sm:$0xf]
      %v272 = vld [vmem:[%s246 + $0x4c] sm:$0xf]
      %v273 = vld [vmem:[%s246 + $0x50] sm:$0xf]
      %v274 = vld [vmem:[%s246 + $0x54] sm:$0xf]
      %v275 = vld [vmem:[%s246 + $0x58] sm:$0xf]
      %v276 = vld [vmem:[%s246 + $0x5c] sm:$0xf]
      %v277 = vld [vmem:[%s246 + $0x60] sm:$0xf]
      %v278 = vld [vmem:[%s246 + $0x64] sm:$0xf]
      %v279 = vld [vmem:[%s246 + $0x68] sm:$0xf]
      %v280 = vld [vmem:[%s246 + $0x6c] sm:$0xf]
      %v281 = vld [vmem:[%s246 + $0x70] sm:$0xf]
      %v282 = vld [vmem:[%s246 + $0x74] sm:$0xf]
      %v283 = vld [vmem:[%s246 + $0x78] sm:$0xf]
      %v284 = vld [vmem:[%s246 + $0x7c] sm:$0xf]
      %v285 = vld [vmem:[%s246 + $0x80] sm:$0xf]
      %v286 = vld [vmem:[%s246 + $0x84] sm:$0xf]
      %v287 = vld [vmem:[%s246 + $0x88] sm:$0xf]
      %v288 = vld [vmem:[%s246 + $0x8c] sm:$0xf]
      %v289 = vld [vmem:[%s246 + $0x90] sm:$0xf]
      %v290 = vld [vmem:[%s246 + $0x94] sm:$0xf]
      %v291 = vld [vmem:[%s246 + $0x98] sm:$0xf]
      %v292 = vld [vmem:[%s246 + $0x9c] sm:$0xf]
      %v293 = vld [vmem:[%s246 + $0xa0] sm:$0xf]
      %v294 = vld [vmem:[%s246 + $0xa4] sm:$0x1]
      %v295 = vld [vmem:[%s246] sm:$0x8]
      %v296 = vld [vmem:[%s246 + $0xa4] sm:$0x3]
      %v297 = vld [vmem:[%s246 + $0x8] sm:$0x8]
      %v298 = vld [vmem:[%s246 + $0xa4] sm:$0xf]
      %v299 = vld [vmem:[%s246 + $0xa8] sm:$0xf]
      %v300 = vld [vmem:[%s246 + $0xac] sm:$0x3]
      %v301 = vld [vmem:[%s246 + $0xac] sm:$0x7]
      %v302 = vld [vmem:[%s246 + $0xac] sm:$0xf]
      %v303 = vld [vmem:[%s246 + $0xb0] sm:$0xf]
      %v304 = vld [vmem:[%s246 + $0xb4] sm:$0x7]
      %v305 = vld [vmem:[%s246 + $0x14] sm:$0xe]
      %v306 = vld [vmem:[%s246 + $0xb4] sm:$0xf]
      %v349 = vunpack.c.l.b16 %v253
      %v350 = vunpack.c.l.b16 %v254
      %v351 = vunpack.c.l.b16 %v255
      %v352 = vunpack.c.l.b16 %v256
      %v353 = vunpack.c.l.b16 %v257
      %v354 = vunpack.c.l.b16 %v258
      %v355 = vunpack.c.l.b16 %v259
      %v356 = vunpack.c.l.b16 %v260
      %v357 = vunpack.c.l.b16 %v261
      %v358 = vunpack.c.l.b16 %v262
      %v359 = vunpack.c.l.b16 %v263
      %v360 = vunpack.c.l.b16 %v264
      %v361 = vunpack.c.l.b16 %v265
      %v362 = vunpack.c.l.b16 %v266
      %v363 = vunpack.c.l.b16 %v267
      %v364 = vunpack.c.l.b16 %v268
      %v365 = vunpack.c.l.b16 %v269
      %v366 = vunpack.c.l.b16 %v270
      %v367 = vunpack.c.l.b16 %v271
      %v368 = vunpack.c.l.b16 %v272
      %v369 = vunpack.c.l.b16 %v273
      %v370 = vunpack.c.l.b16 %v274
      %v371 = vunpack.c.l.b16 %v275
      %v372 = vunpack.c.l.b16 %v276
      %v373 = vunpack.c.l.b16 %v277
      %v374 = vunpack.c.l.b16 %v278
      %v375 = vunpack.c.l.b16 %v279
      %v376 = vunpack.c.l.b16 %v280
      %v377 = vunpack.c.l.b16 %v281
      %v378 = vunpack.c.l.b16 %v282
      %v379 = vunpack.c.l.b16 %v283
      %v380 = vunpack.c.l.b16 %v284
      %v381 = vunpack.c.l.b16 %v285
      %v382 = vunpack.c.l.b16 %v286
      %v383 = vunpack.c.l.b16 %v287
      %v384 = vunpack.c.l.b16 %v288
      %v385 = vunpack.c.l.b16 %v289
      %v386 = vunpack.c.l.b16 %v290
      %v387 = vunpack.c.l.b16 %v291
      %v388 = vunpack.c.l.b16 %v292
      %v389 = vunpack.c.l.b16 %v293
      %v390 = vunpack.c.l.b16 %v294
      %v391 = vpack.c.b16 %v350, %v349
      %v392 = vpack.c.b16 %v352, %v351
      %v393 = vpack.c.b16 %v354, %v353
      %v394 = vpack.c.b16 %v356, %v355
      %v395 = vpack.c.b16 %v358, %v357
      %v396 = vpack.c.b16 %v360, %v359
      %v397 = vpack.c.b16 %v362, %v361
      %v398 = vpack.c.b16 %v364, %v363
      %v399 = vpack.c.b16 %v366, %v365
      %v400 = vpack.c.b16 %v368, %v367
      %v401 = vpack.c.b16 %v370, %v369
      %v402 = vpack.c.b16 %v372, %v371
      %v403 = vpack.c.b16 %v374, %v373
      %v404 = vpack.c.b16 %v376, %v375
      %v405 = vpack.c.b16 %v378, %v377
      %v406 = vpack.c.b16 %v380, %v379
      %v407 = vpack.c.b16 %v382, %v381
      %v408 = vpack.c.b16 %v384, %v383
      %v409 = vpack.c.b16 %v386, %v385
      %v410 = vpack.c.b16 %v388, %v387
      %v411 = vpack.c.b16 %v390, %v389
      %v413 = vunpack.c.l.b16 %v295
      %v414 = vpack.c.b16 %v350, %v413
      %vm415 = vsmask.f32 7424
      %v417 = vshrl.u32 %v414, 16
      %v419 = vshll.u32 %v414, 16
      %v421 = vrot.slane %v419, 1
      %v422 = vor.u32 %v417, %v421
      %v424 = vshll.u32 %v392, 16
      %v426 = vrot.slane %v424, 1
      %v427 = vsel %vm415, %v422, %v426
      %v428 = vshrl.u32 %v392, 16
      %v430 = vor.u32 %v428, %v426
      %v432 = vshll.u32 %v393, 16
      %v434 = vrot.slane %v432, 1
      %v435 = vsel %vm415, %v430, %v434
      %v436 = vshrl.u32 %v393, 16
      %v438 = vor.u32 %v436, %v434
      %v440 = vshll.u32 %v394, 16
      %v442 = vrot.slane %v440, 1
      %v443 = vsel %vm415, %v438, %v442
      %v444 = vshrl.u32 %v394, 16
      %v446 = vor.u32 %v444, %v442
      %v448 = vshll.u32 %v395, 16
      %v450 = vrot.slane %v448, 1
      %v451 = vsel %vm415, %v446, %v450
      %v452 = vshrl.u32 %v395, 16
      %v454 = vor.u32 %v452, %v450
      %v456 = vshll.u32 %v396, 16
      %v458 = vrot.slane %v456, 1
      %v459 = vsel %vm415, %v454, %v458
      %v460 = vshrl.u32 %v396, 16
      %v462 = vor.u32 %v460, %v458
      %v464 = vshll.u32 %v397, 16
      %v466 = vrot.slane %v464, 1
      %v467 = vsel %vm415, %v462, %v466
      %v468 = vshrl.u32 %v397, 16
      %v470 = vor.u32 %v468, %v466
      %v472 = vshll.u32 %v398, 16
      %v474 = vrot.slane %v472, 1
      %v475 = vsel %vm415, %v470, %v474
      %v476 = vshrl.u32 %v398, 16
      %v478 = vor.u32 %v476, %v474
      %v480 = vshll.u32 %v399, 16
      %v482 = vrot.slane %v480, 1
      %v483 = vsel %vm415, %v478, %v482
      %v484 = vshrl.u32 %v399, 16
      %v486 = vor.u32 %v484, %v482
      %v488 = vshll.u32 %v400, 16
      %v490 = vrot.slane %v488, 1
      %v491 = vsel %vm415, %v486, %v490
      %v492 = vshrl.u32 %v400, 16
      %v494 = vor.u32 %v492, %v490
      %v496 = vshll.u32 %v401, 16
      %v498 = vrot.slane %v496, 1
      %v499 = vsel %vm415, %v494, %v498
      %v500 = vshrl.u32 %v401, 16
      %v502 = vor.u32 %v500, %v498
      %v504 = vshll.u32 %v402, 16
      %v506 = vrot.slane %v504, 1
      %v507 = vsel %vm415, %v502, %v506
      %v508 = vshrl.u32 %v402, 16
      %v510 = vor.u32 %v508, %v506
      %v512 = vshll.u32 %v403, 16
      %v514 = vrot.slane %v512, 1
      %v515 = vsel %vm415, %v510, %v514
      %v516 = vshrl.u32 %v403, 16
      %v518 = vor.u32 %v516, %v514
      %v520 = vshll.u32 %v404, 16
      %v522 = vrot.slane %v520, 1
      %v523 = vsel %vm415, %v518, %v522
      %v524 = vshrl.u32 %v404, 16
      %v526 = vor.u32 %v524, %v522
      %v528 = vshll.u32 %v405, 16
      %v530 = vrot.slane %v528, 1
      %v531 = vsel %vm415, %v526, %v530
      %v532 = vshrl.u32 %v405, 16
      %v534 = vor.u32 %v532, %v530
      %v536 = vshll.u32 %v406, 16
      %v538 = vrot.slane %v536, 1
      %v539 = vsel %vm415, %v534, %v538
      %v540 = vshrl.u32 %v406, 16
      %v542 = vor.u32 %v540, %v538
      %v544 = vshll.u32 %v407, 16
      %v546 = vrot.slane %v544, 1
      %v547 = vsel %vm415, %v542, %v546
      %v548 = vshrl.u32 %v407, 16
      %v550 = vor.u32 %v548, %v546
      %v552 = vshll.u32 %v408, 16
      %v554 = vrot.slane %v552, 1
      %v555 = vsel %vm415, %v550, %v554
      %v556 = vshrl.u32 %v408, 16
      %v558 = vor.u32 %v556, %v554
      %v560 = vshll.u32 %v409, 16
      %v562 = vrot.slane %v560, 1
      %v563 = vsel %vm415, %v558, %v562
      %v564 = vshrl.u32 %v409, 16
      %v566 = vor.u32 %v564, %v562
      %v568 = vshll.u32 %v410, 16
      %v570 = vrot.slane %v568, 1
      %v571 = vsel %vm415, %v566, %v570
      %v572 = vshrl.u32 %v410, 16
      %v574 = vor.u32 %v572, %v570
      %v576 = vshll.u32 %v411, 16
      %v578 = vrot.slane %v576, 1
      %v579 = vsel %vm415, %v574, %v578
      %v580 = vshrl.u32 %v411, 16
      %v582 = vor.u32 %v580, %v578
      %v584 = vunpack.c.l.b16 %v296
      %v585 = vpack.c.b16 %v584, %v389
      %vm586 = vcmask 1046528
      %v587 = vrot.slane %v414, 1
      %v588 = vrot.slane %v392, 1
      %v589 = vsel %vm586, %v587, %v588
      %v590 = vrot.slane %v393, 1
      %v591 = vsel %vm586, %v588, %v590
      %v592 = vrot.slane %v394, 1
      %v593 = vsel %vm586, %v590, %v592
      %v594 = vrot.slane %v395, 1
      %v595 = vsel %vm586, %v592, %v594
      %v596 = vrot.slane %v396, 1
      %v597 = vsel %vm586, %v594, %v596
      %v598 = vrot.slane %v397, 1
      %v599 = vsel %vm586, %v596, %v598
      %v600 = vrot.slane %v398, 1
      %v601 = vsel %vm586, %v598, %v600
      %v602 = vrot.slane %v399, 1
      %v603 = vsel %vm586, %v600, %v602
      %v604 = vrot.slane %v400, 1
      %v605 = vsel %vm586, %v602, %v604
      %v606 = vrot.slane %v401, 1
      %v607 = vsel %vm586, %v604, %v606
      %v608 = vrot.slane %v402, 1
      %v609 = vsel %vm586, %v606, %v608
      %v610 = vrot.slane %v403, 1
      %v611 = vsel %vm586, %v608, %v610
      %v612 = vrot.slane %v404, 1
      %v613 = vsel %vm586, %v610, %v612
      %v614 = vrot.slane %v405, 1
      %v615 = vsel %vm586, %v612, %v614
      %v616 = vrot.slane %v406, 1
      %v617 = vsel %vm586, %v614, %v616
      %v618 = vrot.slane %v407, 1
      %v619 = vsel %vm586, %v616, %v618
      %v620 = vrot.slane %v408, 1
      %v621 = vsel %vm586, %v618, %v620
      %v622 = vrot.slane %v409, 1
      %v623 = vsel %vm586, %v620, %v622
      %v624 = vrot.slane %v410, 1
      %v625 = vsel %vm586, %v622, %v624
      %v626 = vrot.slane %v585, 1
      %v627 = vsel %vm586, %v624, %v626
      %v632 = vunpack.c.l.b16 %v297
      %v633 = vunpack.c.l.b16 %v298
      %v634 = vunpack.c.l.b16 %v299
      %v635 = vunpack.c.l.b16 %v300
      %v636 = vpack.c.b16 %v352, %v632
      %v637 = vpack.c.b16 %v633, %v389
      %v638 = vpack.c.b16 %v635, %v634
      %v639 = vrot.slane %v636, 1
      %v640 = vsel %vm586, %v639, %v590
      %v641 = vrot.slane %v637, 1
      %v642 = vsel %vm586, %v624, %v641
      %v643 = vrot.slane %v638, 1
      %v644 = vsel %vm586, %v641, %v643
      %v645 = vpack.c.b16 %v353, %v352
      %v646 = vpack.c.b16 %v355, %v354
      %v647 = vpack.c.b16 %v357, %v356
      %v648 = vpack.c.b16 %v359, %v358
      %v649 = vpack.c.b16 %v361, %v360
      %v650 = vpack.c.b16 %v363, %v362
      %v651 = vpack.c.b16 %v365, %v364
      %v652 = vpack.c.b16 %v367, %v366
      %v653 = vpack.c.b16 %v369, %v368
      %v654 = vpack.c.b16 %v371, %v370
      %v655 = vpack.c.b16 %v373, %v372
      %v656 = vpack.c.b16 %v375, %v374
      %v657 = vpack.c.b16 %v377, %v376
      %v658 = vpack.c.b16 %v379, %v378
      %v659 = vpack.c.b16 %v381, %v380
      %v660 = vpack.c.b16 %v383, %v382
      %v661 = vpack.c.b16 %v385, %v384
      %v662 = vpack.c.b16 %v387, %v386
      %v663 = vpack.c.b16 %v389, %v388
      %v664 = vpack.c.b16 %v634, %v633
      %v665 = vpack.c.b16 %v635, %v635
      %vm666 = vsmask.f32 2304
      %v668 = vshrl.u32 %v645, 16
      %v670 = vrot.slane %v668, 5
      %v671 = vshll.u32 %v645, 16
      %v673 = vrot.slane %v671, 6
      %v674 = vor.u32 %v670, %v673
      %v676 = vshrl.u32 %v646, 16
      %v678 = vrot.slane %v676, 5
      %v679 = vshll.u32 %v646, 16
      %v681 = vrot.slane %v679, 6
      %v682 = vor.u32 %v678, %v681
      %v683 = vsel %vm666, %v674, %v682
      %v685 = vshrl.u32 %v647, 16
      %v687 = vrot.slane %v685, 5
      %v688 = vshll.u32 %v647, 16
      %v690 = vrot.slane %v688, 6
      %v691 = vor.u32 %v687, %v690
      %v692 = vsel %vm666, %v682, %v691
      %v694 = vshrl.u32 %v648, 16
      %v696 = vrot.slane %v694, 5
      %v697 = vshll.u32 %v648, 16
      %v699 = vrot.slane %v697, 6
      %v700 = vor.u32 %v696, %v699
      %v701 = vsel %vm666, %v691, %v700
      %v703 = vshrl.u32 %v649, 16
      %v705 = vrot.slane %v703, 5
      %v706 = vshll.u32 %v649, 16
      %v708 = vrot.slane %v706, 6
      %v709 = vor.u32 %v705, %v708
      %v710 = vsel %vm666, %v700, %v709
      %v712 = vshrl.u32 %v650, 16
      %v714 = vrot.slane %v712, 5
      %v715 = vshll.u32 %v650, 16
      %v717 = vrot.slane %v715, 6
      %v718 = vor.u32 %v714, %v717
      %v719 = vsel %vm666, %v709, %v718
      %v721 = vshrl.u32 %v651, 16
      %v723 = vrot.slane %v721, 5
      %v724 = vshll.u32 %v651, 16
      %v726 = vrot.slane %v724, 6
      %v727 = vor.u32 %v723, %v726
      %v728 = vsel %vm666, %v718, %v727
      %v730 = vshrl.u32 %v652, 16
      %v732 = vrot.slane %v730, 5
      %v733 = vshll.u32 %v652, 16
      %v735 = vrot.slane %v733, 6
      %v736 = vor.u32 %v732, %v735
      %v737 = vsel %vm666, %v727, %v736
      %v739 = vshrl.u32 %v653, 16
      %v741 = vrot.slane %v739, 5
      %v742 = vshll.u32 %v653, 16
      %v744 = vrot.slane %v742, 6
      %v745 = vor.u32 %v741, %v744
      %v746 = vsel %vm666, %v736, %v745
      %v748 = vshrl.u32 %v654, 16
      %v750 = vrot.slane %v748, 5
      %v751 = vshll.u32 %v654, 16
      %v753 = vrot.slane %v751, 6
      %v754 = vor.u32 %v750, %v753
      %v755 = vsel %vm666, %v745, %v754
      %v757 = vshrl.u32 %v655, 16
      %v759 = vrot.slane %v757, 5
      %v760 = vshll.u32 %v655, 16
      %v762 = vrot.slane %v760, 6
      %v763 = vor.u32 %v759, %v762
      %v764 = vsel %vm666, %v754, %v763
      %v766 = vshrl.u32 %v656, 16
      %v768 = vrot.slane %v766, 5
      %v769 = vshll.u32 %v656, 16
      %v771 = vrot.slane %v769, 6
      %v772 = vor.u32 %v768, %v771
      %v773 = vsel %vm666, %v763, %v772
      %v775 = vshrl.u32 %v657, 16
      %v777 = vrot.slane %v775, 5
      %v778 = vshll.u32 %v657, 16
      %v780 = vrot.slane %v778, 6
      %v781 = vor.u32 %v777, %v780
      %v782 = vsel %vm666, %v772, %v781
      %v784 = vshrl.u32 %v658, 16
      %v786 = vrot.slane %v784, 5
      %v787 = vshll.u32 %v658, 16
      %v789 = vrot.slane %v787, 6
      %v790 = vor.u32 %v786, %v789
      %v791 = vsel %vm666, %v781, %v790
      %v793 = vshrl.u32 %v659, 16
      %v795 = vrot.slane %v793, 5
      %v796 = vshll.u32 %v659, 16
      %v798 = vrot.slane %v796, 6
      %v799 = vor.u32 %v795, %v798
      %v800 = vsel %vm666, %v790, %v799
      %v802 = vshrl.u32 %v660, 16
      %v804 = vrot.slane %v802, 5
      %v805 = vshll.u32 %v660, 16
      %v807 = vrot.slane %v805, 6
      %v808 = vor.u32 %v804, %v807
      %v809 = vsel %vm666, %v799, %v808
      %v811 = vshrl.u32 %v661, 16
      %v813 = vrot.slane %v811, 5
      %v814 = vshll.u32 %v661, 16
      %v816 = vrot.slane %v814, 6
      %v817 = vor.u32 %v813, %v816
      %v818 = vsel %vm666, %v808, %v817
      %v820 = vshrl.u32 %v662, 16
      %v822 = vrot.slane %v820, 5
      %v823 = vshll.u32 %v662, 16
      %v825 = vrot.slane %v823, 6
      %v826 = vor.u32 %v822, %v825
      %v827 = vsel %vm666, %v817, %v826
      %v829 = vshrl.u32 %v663, 16
      %v831 = vrot.slane %v829, 5
      %v832 = vshll.u32 %v663, 16
      %v834 = vrot.slane %v832, 6
      %v835 = vor.u32 %v831, %v834
      %v836 = vsel %vm666, %v826, %v835
      %v838 = vshrl.u32 %v664, 16
      %v840 = vrot.slane %v838, 5
      %v841 = vshll.u32 %v664, 16
      %v843 = vrot.slane %v841, 6
      %v844 = vor.u32 %v840, %v843
      %v845 = vsel %vm666, %v835, %v844
      %v847 = vshrl.u32 %v665, 16
      %v849 = vrot.slane %v847, 5
      %v850 = vshll.u32 %v665, 16
      %v852 = vrot.slane %v850, 6
      %v853 = vor.u32 %v849, %v852
      %v854 = vsel %vm666, %v844, %v853
      %v856 = vunpack.c.l.b16 %v301
      %v857 = vpack.c.b16 %v856, %v856
      %vm858 = vcmask 1041408
      %v859 = vrot.slane %v645, 6
      %v860 = vrot.slane %v646, 6
      %v861 = vsel %vm858, %v859, %v860
      %v862 = vrot.slane %v647, 6
      %v863 = vsel %vm858, %v860, %v862
      %v864 = vrot.slane %v648, 6
      %v865 = vsel %vm858, %v862, %v864
      %v866 = vrot.slane %v649, 6
      %v867 = vsel %vm858, %v864, %v866
      %v868 = vrot.slane %v650, 6
      %v869 = vsel %vm858, %v866, %v868
      %v870 = vrot.slane %v651, 6
      %v871 = vsel %vm858, %v868, %v870
      %v872 = vrot.slane %v652, 6
      %v873 = vsel %vm858, %v870, %v872
      %v874 = vrot.slane %v653, 6
      %v875 = vsel %vm858, %v872, %v874
      %v876 = vrot.slane %v654, 6
      %v877 = vsel %vm858, %v874, %v876
      %v878 = vrot.slane %v655, 6
      %v879 = vsel %vm858, %v876, %v878
      %v880 = vrot.slane %v656, 6
      %v881 = vsel %vm858, %v878, %v880
      %v882 = vrot.slane %v657, 6
      %v883 = vsel %vm858, %v880, %v882
      %v884 = vrot.slane %v658, 6
      %v885 = vsel %vm858, %v882, %v884
      %v886 = vrot.slane %v659, 6
      %v887 = vsel %vm858, %v884, %v886
      %v888 = vrot.slane %v660, 6
      %v889 = vsel %vm858, %v886, %v888
      %v890 = vrot.slane %v661, 6
      %v891 = vsel %vm858, %v888, %v890
      %v892 = vrot.slane %v662, 6
      %v893 = vsel %vm858, %v890, %v892
      %v894 = vrot.slane %v663, 6
      %v895 = vsel %vm858, %v892, %v894
      %v896 = vrot.slane %v664, 6
      %v897 = vsel %vm858, %v894, %v896
      %v898 = vrot.slane %v857, 6
      %v899 = vsel %vm858, %v896, %v898
      %v903 = vunpack.c.l.b16 %v302
      %v904 = vunpack.c.l.b16 %v303
      %v905 = vunpack.c.l.b16 %v304
      %v906 = vpack.c.b16 %v904, %v903
      %v907 = vpack.c.b16 %v905, %v905
      %v908 = vrot.slane %v906, 6
      %v909 = vsel %vm858, %v896, %v908
      %v910 = vrot.slane %v907, 6
      %v911 = vsel %vm858, %v908, %v910
      %v913 = vunpack.c.l.b16 %v305
      %v914 = vpack.c.b16 %v355, %v913
      %vm915 = vsmask.f32 1280
      %v917 = vshrl.u32 %v914, 16
      %v919 = vrot.slane %v917, 6
      %v920 = vshll.u32 %v914, 16
      %v922 = vrot.slane %v920, 7
      %v923 = vor.u32 %v919, %v922
      %v924 = vrot.slane %v685, 6
      %v925 = vrot.slane %v688, 7
      %v926 = vor.u32 %v924, %v925
      %v927 = vsel %vm915, %v923, %v926
      %v928 = vrot.slane %v694, 6
      %v929 = vrot.slane %v697, 7
      %v930 = vor.u32 %v928, %v929
      %v931 = vsel %vm915, %v926, %v930
      %v932 = vrot.slane %v703, 6
      %v933 = vrot.slane %v706, 7
      %v934 = vor.u32 %v932, %v933
      %v935 = vsel %vm915, %v930, %v934
      %v936 = vrot.slane %v712, 6
      %v937 = vrot.slane %v715, 7
      %v938 = vor.u32 %v936, %v937
      %v939 = vsel %vm915, %v934, %v938
      %v940 = vrot.slane %v721, 6
      %v941 = vrot.slane %v724, 7
      %v942 = vor.u32 %v940, %v941
      %v943 = vsel %vm915, %v938, %v942
      %v944 = vrot.slane %v730, 6
      %v945 = vrot.slane %v733, 7
      %v946 = vor.u32 %v944, %v945
      %v947 = vsel %vm915, %v942, %v946
      %v948 = vrot.slane %v739, 6
      %v949 = vrot.slane %v742, 7
      %v950 = vor.u32 %v948, %v949
      %v951 = vsel %vm915, %v946, %v950
      %v952 = vrot.slane %v748, 6
      %v953 = vrot.slane %v751, 7
      %v954 = vor.u32 %v952, %v953
      %v955 = vsel %vm915, %v950, %v954
      %v956 = vrot.slane %v757, 6
      %v957 = vrot.slane %v760, 7
      %v958 = vor.u32 %v956, %v957
      %v959 = vsel %vm915, %v954, %v958
      %v960 = vrot.slane %v766, 6
      %v961 = vrot.slane %v769, 7
      %v962 = vor.u32 %v960, %v961
      %v963 = vsel %vm915, %v958, %v962
      %v964 = vrot.slane %v775, 6
      %v965 = vrot.slane %v778, 7
      %v966 = vor.u32 %v964, %v965
      %v967 = vsel %vm915, %v962, %v966
      %v968 = vrot.slane %v784, 6
      %v969 = vrot.slane %v787, 7
      %v970 = vor.u32 %v968, %v969
      %v971 = vsel %vm915, %v966, %v970
      %v972 = vrot.slane %v793, 6
      %v973 = vrot.slane %v796, 7
      %v974 = vor.u32 %v972, %v973
      %v975 = vsel %vm915, %v970, %v974
      %v976 = vrot.slane %v802, 6
      %v977 = vrot.slane %v805, 7
      %v978 = vor.u32 %v976, %v977
      %v979 = vsel %vm915, %v974, %v978
      %v980 = vrot.slane %v811, 6
      %v981 = vrot.slane %v814, 7
      %v982 = vor.u32 %v980, %v981
      %v983 = vsel %vm915, %v978, %v982
      %v984 = vrot.slane %v820, 6
      %v985 = vrot.slane %v823, 7
      %v986 = vor.u32 %v984, %v985
      %v987 = vsel %vm915, %v982, %v986
      %v988 = vrot.slane %v829, 6
      %v989 = vrot.slane %v832, 7
      %v990 = vor.u32 %v988, %v989
      %v991 = vsel %vm915, %v986, %v990
      %v992 = vrot.slane %v838, 6
      %v993 = vrot.slane %v841, 7
      %v994 = vor.u32 %v992, %v993
      %v995 = vsel %vm915, %v990, %v994
      %v997 = vshrl.u32 %v906, 16
      %v999 = vrot.slane %v997, 6
      %v1000 = vshll.u32 %v906, 16
      %v1002 = vrot.slane %v1000, 7
      %v1003 = vor.u32 %v999, %v1002
      %v1004 = vsel %vm915, %v994, %v1003
      %v1006 = vshrl.u32 %v907, 16
      %v1008 = vrot.slane %v1006, 6
      %v1009 = vshll.u32 %v907, 16
      %v1011 = vrot.slane %v1009, 7
      %v1012 = vor.u32 %v1008, %v1011
      %v1013 = vsel %vm915, %v1003, %v1012
      %v1015 = vunpack.c.l.b16 %v306
      %v1016 = vpack.c.b16 %v1015, %v1015
      %vm1017 = vcmask 1040384
      %v1018 = vrot.slane %v914, 7
      %v1019 = vrot.slane %v647, 7
      %v1020 = vsel %vm1017, %v1018, %v1019
      %v1021 = vrot.slane %v648, 7
      %v1022 = vsel %vm1017, %v1019, %v1021
      %v1023 = vrot.slane %v649, 7
      %v1024 = vsel %vm1017, %v1021, %v1023
      %v1025 = vrot.slane %v650, 7
      %v1026 = vsel %vm1017, %v1023, %v1025
      %v1027 = vrot.slane %v651, 7
      %v1028 = vsel %vm1017, %v1025, %v1027
      %v1029 = vrot.slane %v652, 7
      %v1030 = vsel %vm1017, %v1027, %v1029
      %v1031 = vrot.slane %v653, 7
      %v1032 = vsel %vm1017, %v1029, %v1031
      %v1033 = vrot.slane %v654, 7
      %v1034 = vsel %vm1017, %v1031, %v1033
      %v1035 = vrot.slane %v655, 7
      %v1036 = vsel %vm1017, %v1033, %v1035
      %v1037 = vrot.slane %v656, 7
      %v1038 = vsel %vm1017, %v1035, %v1037
      %v1039 = vrot.slane %v657, 7
      %v1040 = vsel %vm1017, %v1037, %v1039
      %v1041 = vrot.slane %v658, 7
      %v1042 = vsel %vm1017, %v1039, %v1041
      %v1043 = vrot.slane %v659, 7
      %v1044 = vsel %vm1017, %v1041, %v1043
      %v1045 = vrot.slane %v660, 7
      %v1046 = vsel %vm1017, %v1043, %v1045
      %v1047 = vrot.slane %v661, 7
      %v1048 = vsel %vm1017, %v1045, %v1047
      %v1049 = vrot.slane %v662, 7
      %v1050 = vsel %vm1017, %v1047, %v1049
      %v1051 = vrot.slane %v663, 7
      %v1052 = vsel %vm1017, %v1049, %v1051
      %v1053 = vrot.slane %v664, 7
      %v1054 = vsel %vm1017, %v1051, %v1053
      %v1055 = vrot.slane %v906, 7
      %v1056 = vsel %vm1017, %v1053, %v1055
      %v1057 = vrot.slane %v1016, 7
      %v1058 = vsel %vm1017, %v1055, %v1057
      %v1059 = vld [vmem:[%s2] sm:$0xf]
      %v1060 = vld [vmem:[%s2 + $0x4] sm:$0xf]
      %v1061 = vld [vmem:[%s2 + $0x8] sm:$0xf]
      %v1062 = vld [vmem:[%s2 + $0xc] sm:$0xf]
      %v1063 = vld [vmem:[%s2 + $0x10] sm:$0xf]
      %v1064 = vld [vmem:[%s2 + $0x14] sm:$0xf]
      %v1065 = vld [vmem:[%s2 + $0x18] sm:$0xf]
      %v1066 = vld [vmem:[%s2 + $0x1c] sm:$0xf]
      %v1067 = vld [vmem:[%s2 + $0x20] sm:$0xf]
      %v1068 = vld [vmem:[%s2 + $0x24] sm:$0xf]
      %v1069 = vld [vmem:[%s2 + $0x28] sm:$0xf]
      %v1070 = vld [vmem:[%s2 + $0x2c] sm:$0xf]
      %v1071 = vld [vmem:[%s2 + $0x30] sm:$0xf]
      %v1072 = vld [vmem:[%s2 + $0x34] sm:$0xf]
      %v1073 = vld [vmem:[%s2 + $0x38] sm:$0xf]
      %v1074 = vld [vmem:[%s2 + $0x3c] sm:$0xf]
      %v1075 = vld [vmem:[%s2 + $0x40] sm:$0xf]
      %v1076 = vld [vmem:[%s2 + $0x44] sm:$0xf]
      %v1077 = vld [vmem:[%s2 + $0x48] sm:$0xf]
      %v1078 = vld [vmem:[%s2 + $0x4c] sm:$0xf]
      %v1079 = vld [vmem:[%s2 + $0x50] sm:$0xf]
      %v1080 = vld [vmem:[%s2 + $0x54] sm:$0xf]
      %v1081 = vld [vmem:[%s2 + $0x58] sm:$0xf]
      %v1082 = vld [vmem:[%s2 + $0x5c] sm:$0xf]
      %v1083 = vld [vmem:[%s2 + $0x60] sm:$0xf]
      %v1084 = vld [vmem:[%s2 + $0x64] sm:$0xf]
      %v1085 = vld [vmem:[%s2 + $0x68] sm:$0xf]
      %v1086 = vld [vmem:[%s2 + $0x6c] sm:$0xf]
      %v1087 = vld [vmem:[%s2 + $0x70] sm:$0xf]
      %v1088 = vld [vmem:[%s2 + $0x74] sm:$0xf]
      %v1089 = vld [vmem:[%s2 + $0x78] sm:$0xf]
      %v1090 = vld [vmem:[%s2 + $0x7c] sm:$0xf]
      %v1091 = vld [vmem:[%s2 + $0x80] sm:$0xf]
      %v1092 = vld [vmem:[%s2 + $0x84] sm:$0xf]
      %v1093 = vld [vmem:[%s2 + $0x88] sm:$0xf]
      %v1094 = vld [vmem:[%s2 + $0x8c] sm:$0xf]
      %v1095 = vld [vmem:[%s2 + $0x90] sm:$0xf]
      %v1096 = vld [vmem:[%s2 + $0x94] sm:$0xf]
      %v1097 = vld [vmem:[%s2 + $0x98] sm:$0xf]
      %v1098 = vld [vmem:[%s2 + $0x9c] sm:$0xf]
      %v1099 = vld [vmem:[%s2 + $0xa0] sm:$0xf]
      %v1100 = vld [vmem:[%s2 + $0xa4] sm:$0xf]
      %v1101 = vld [vmem:[%s2 + $0xa8] sm:$0xf]
      %v1102 = vld [vmem:[%s2 + $0xac] sm:$0xf]
      %v1103 = vld [vmem:[%s2 + $0xb0] sm:$0xf]
      %v1104 = vld [vmem:[%s2 + $0xb4] sm:$0xf]
      %v1105 = vld [vmem:[%s2 + $0xb8] sm:$0xf]
      %v1106 = vld [vmem:[%s2 + $0xbc] sm:$0xf]
      %v1107 = vld [vmem:[%s2 + $0xc0] sm:$0xf]
      %v1108 = vld [vmem:[%s2 + $0xc4] sm:$0xf]
      %v1109 = vld [vmem:[%s2 + $0xc8] sm:$0xf]
      %v1110 = vld [vmem:[%s2 + $0xcc] sm:$0xf]
      %v1111 = vld [vmem:[%s2 + $0xd0] sm:$0xf]
      %v1112 = vld [vmem:[%s2 + $0xd4] sm:$0xf]
      %v1113 = vld [vmem:[%s2 + $0xd8] sm:$0xf]
      %v1114 = vld [vmem:[%s2 + $0xdc] sm:$0xf]
      %v1115 = vld [vmem:[%s2 + $0xe0] sm:$0xf]
      %v1116 = vld [vmem:[%s2 + $0xe4] sm:$0xf]
      %v1117 = vld [vmem:[%s2 + $0xe8] sm:$0xf]
      %v1118 = vld [vmem:[%s2 + $0xec] sm:$0xf]
      %v1119 = vld [vmem:[%s2 + $0xf0] sm:$0xf]
      %v1120 = vld [vmem:[%s2 + $0xf4] sm:$0xf]
      %v1121 = vld [vmem:[%s2 + $0xf8] sm:$0xf]
      %v1122 = vld [vmem:[%s2 + $0xfc] sm:$0xf]
      %v1123 = vld [vmem:[%s2 + $0x100] sm:$0xf]
      %v1124 = vld [vmem:[%s2 + $0x104] sm:$0xf]
      %v1125 = vld [vmem:[%s2 + $0x108] sm:$0xf]
      %v1126 = vld [vmem:[%s2 + $0x10c] sm:$0xf]
      %v1127 = vld [vmem:[%s2 + $0x110] sm:$0xf]
      %v1128 = vld [vmem:[%s2 + $0x114] sm:$0xf]
      %v1129 = vld [vmem:[%s2 + $0x118] sm:$0xf]
      %v1130 = vld [vmem:[%s2 + $0x11c] sm:$0xf]
      %v1131 = vld [vmem:[%s2 + $0x120] sm:$0xf]
      %v1132 = vld [vmem:[%s2 + $0x124] sm:$0xf]
      %v1133 = vld [vmem:[%s2 + $0x128] sm:$0xf]
      %v1134 = vld [vmem:[%s2 + $0x12c] sm:$0xf]
      %v1135 = vld [vmem:[%s2 + $0x130] sm:$0xf]
      %v1136 = vld [vmem:[%s2 + $0x134] sm:$0xf]
      %v1137 = vld [vmem:[%s2 + $0x138] sm:$0xf]
      %v1138 = vld [vmem:[%s2 + $0x13c] sm:$0xf]
      %v1139 = vld [vmem:[%s2 + $0x140] sm:$0xf]
      %v1140 = vld [vmem:[%s2 + $0x144] sm:$0xf]
      %v1141 = vld [vmem:[%s2 + $0x148] sm:$0xf]
      %v1142 = vld [vmem:[%s2 + $0x14c] sm:$0xf]
      %v1143 = vld [vmem:[%s2 + $0x150] sm:$0xf]
      %v1144 = vld [vmem:[%s2 + $0x154] sm:$0xf]
      %v1145 = vld [vmem:[%s2 + $0x158] sm:$0xf]
      %v1146 = vld [vmem:[%s2 + $0x15c] sm:$0xf]
      %v1147 = vld [vmem:[%s2 + $0x160] sm:$0xf]
      %v1148 = vld [vmem:[%s2 + $0x164] sm:$0xf]
      %v1149 = vld [vmem:[%s2 + $0x168] sm:$0xf]
      %v1150 = vld [vmem:[%s2 + $0x16c] sm:$0xf]
      %v1151 = vld [vmem:[%s2 + $0x170] sm:$0xf]
      %v1152 = vld [vmem:[%s2 + $0x174] sm:$0xf]
      %v1153 = vld [vmem:[%s2 + $0x178] sm:$0xf]
      %v1154 = vld [vmem:[%s2 + $0x17c] sm:$0xf]
      %v1155 = vld [vmem:[%s2 + $0x180] sm:$0xf]
      %v1156 = vld [vmem:[%s2 + $0x184] sm:$0xf]
      %v1157 = vld [vmem:[%s2 + $0x188] sm:$0xf]
      %v1158 = vld [vmem:[%s2 + $0x18c] sm:$0xf]
      %v1159 = vld [vmem:[%s2 + $0x190] sm:$0xf]
      %v1160 = vld [vmem:[%s2 + $0x194] sm:$0xf]
      %v1161 = vld [vmem:[%s2 + $0x198] sm:$0xf]
      %v1162 = vld [vmem:[%s2 + $0x19c] sm:$0xf]
      %v1163 = vld [vmem:[%s2 + $0x1a0] sm:$0xf]
      %v1164 = vld [vmem:[%s2 + $0x1a4] sm:$0xf]
      %v1165 = vld [vmem:[%s2 + $0x1a8] sm:$0xf]
      %v1166 = vld [vmem:[%s2 + $0x1ac] sm:$0xf]
      %v1167 = vld [vmem:[%s2 + $0x1b0] sm:$0xf]
      %v1168 = vld [vmem:[%s2 + $0x1b4] sm:$0xf]
      %v1169 = vld [vmem:[%s2 + $0x1b8] sm:$0xf]
      %v1170 = vld [vmem:[%s2 + $0x1bc] sm:$0xf]
      %v1171 = vld [vmem:[%s2 + $0x1c0] sm:$0xf]
      %v1172 = vld [vmem:[%s2 + $0x1c4] sm:$0xf]
      %v1173 = vld [vmem:[%s2 + $0x1c8] sm:$0xf]
      %v1174 = vld [vmem:[%s2 + $0x1cc] sm:$0xf]
      %v1175 = vld [vmem:[%s2 + $0x1d0] sm:$0xf]
      %v1176 = vld [vmem:[%s2 + $0x1d4] sm:$0xf]
      %v1177 = vld [vmem:[%s2 + $0x1d8] sm:$0xf]
      %v1178 = vld [vmem:[%s2 + $0x1dc] sm:$0xf]
      %v1179 = vld [vmem:[%s2 + $0x1e0] sm:$0xf]
      %v1180 = vld [vmem:[%s2 + $0x1e4] sm:$0xf]
      %v1181 = vld [vmem:[%s2 + $0x1e8] sm:$0xf]
      %v1182 = vld [vmem:[%s2 + $0x1ec] sm:$0xf]
      %v1183 = vld [vmem:[%s2 + $0x1f0] sm:$0xf]
      %v1184 = vld [vmem:[%s2 + $0x1f4] sm:$0xf]
      %v1185 = vld [vmem:[%s2 + $0x1f8] sm:$0xf]
      %v1186 = vld [vmem:[%s2 + $0x1fc] sm:$0xf]
      %v1187 = vld [vmem:[%s2 + $0x200] sm:$0xf]
      %v1188 = vld [vmem:[%s2 + $0x204] sm:$0xf]
      %v1189 = vld [vmem:[%s2 + $0x208] sm:$0xf]
      %v1190 = vld [vmem:[%s2 + $0x20c] sm:$0xf]
      %v1191 = vld [vmem:[%s2 + $0x210] sm:$0xf]
      %v1192 = vld [vmem:[%s2 + $0x214] sm:$0xf]
      %v1193 = vld [vmem:[%s2 + $0x218] sm:$0xf]
      %v1194 = vld [vmem:[%s2 + $0x21c] sm:$0xf]
      %v1195 = vld [vmem:[%s2 + $0x220] sm:$0xf]
      %v1196 = vld [vmem:[%s2 + $0x224] sm:$0xf]
      %v1197 = vld [vmem:[%s2 + $0x228] sm:$0xf]
      %v1198 = vld [vmem:[%s2 + $0x22c] sm:$0xf]
      %v1199 = vld [vmem:[%s2 + $0x230] sm:$0xf]
      %v1200 = vld [vmem:[%s2 + $0x234] sm:$0xf]
      %v1201 = vld [vmem:[%s2 + $0x238] sm:$0xf]
      %v1202 = vld [vmem:[%s2 + $0x23c] sm:$0xf]
      %v1203 = vld [vmem:[%s3] sm:$0x1]
      %v1205 = vlaneseq
      %v1206 = vshrl.u32 %v1205, 7
      %v1207 = vsub.s32 0, %v1206
      %v1208 = vrot.slane %v1203, %v1207
      %vm1210 = vsmask.f32 5376
      %v1212 = vshrl.u32 %v391, 16
      %v1214 = vrot.slane %v1212, 2
      %v1215 = vshll.u32 %v391, 16
      %v1217 = vrot.slane %v1215, 3
      %v1218 = vor.u32 %v1214, %v1217
      %v1219 = vrot.slane %v428, 2
      %v1220 = vrot.slane %v424, 3
      %v1221 = vor.u32 %v1219, %v1220
      %v1222 = vsel %vm1210, %v1218, %v1221
      %v1224 = vshrl.u32 %v427, 16
      %v1226 = vrot.slane %v1224, 2
      %v1227 = vshll.u32 %v427, 16
      %v1229 = vrot.slane %v1227, 3
      %v1230 = vor.u32 %v1226, %v1229
      %v1232 = vshrl.u32 %v435, 16
      %v1234 = vrot.slane %v1232, 2
      %v1235 = vshll.u32 %v435, 16
      %v1237 = vrot.slane %v1235, 3
      %v1238 = vor.u32 %v1234, %v1237
      %v1239 = vsel %vm1210, %v1230, %v1238
      %v1241 = vshrl.u32 %v589, 16
      %v1243 = vrot.slane %v1241, 2
      %v1244 = vshll.u32 %v589, 16
      %v1246 = vrot.slane %v1244, 3
      %v1247 = vor.u32 %v1243, %v1246
      %v1249 = vshrl.u32 %v591, 16
      %v1251 = vrot.slane %v1249, 2
      %v1252 = vshll.u32 %v591, 16
      %v1254 = vrot.slane %v1252, 3
      %v1255 = vor.u32 %v1251, %v1254
      %v1256 = vsel %vm1210, %v1247, %v1255
      %v1258 = vshrl.u32 %v640, 16
      %v1260 = vrot.slane %v1258, 2
      %v1261 = vshll.u32 %v640, 16
      %v1263 = vrot.slane %v1261, 3
      %v1264 = vor.u32 %v1260, %v1263
      %v1266 = vshrl.u32 %v593, 16
      %v1268 = vrot.slane %v1266, 2
      %v1269 = vshll.u32 %v593, 16
      %v1271 = vrot.slane %v1269, 3
      %v1272 = vor.u32 %v1268, %v1271
      %v1273 = vsel %vm1210, %v1264, %v1272
      %v1275 = vshrl.u32 %v674, 16
      %v1277 = vrot.slane %v1275, 2
      %v1278 = vshll.u32 %v674, 16
      %v1280 = vrot.slane %v1278, 3
      %v1281 = vor.u32 %v1277, %v1280
      %v1283 = vshrl.u32 %v683, 16
      %v1285 = vrot.slane %v1283, 2
      %v1286 = vshll.u32 %v683, 16
      %v1288 = vrot.slane %v1286, 3
      %v1289 = vor.u32 %v1285, %v1288
      %v1290 = vsel %vm1210, %v1281, %v1289
      %v1292 = vshrl.u32 %v859, 16
      %v1294 = vrot.slane %v1292, 2
      %v1295 = vshll.u32 %v859, 16
      %v1297 = vrot.slane %v1295, 3
      %v1298 = vor.u32 %v1294, %v1297
      %v1300 = vshrl.u32 %v861, 16
      %v1302 = vrot.slane %v1300, 2
      %v1303 = vshll.u32 %v861, 16
      %v1305 = vrot.slane %v1303, 3
      %v1306 = vor.u32 %v1302, %v1305
      %v1307 = vsel %vm1210, %v1298, %v1306
      %v1309 = vshrl.u32 %v860, 16
      %v1311 = vrot.slane %v1309, 2
      %v1312 = vshll.u32 %v860, 16
      %v1314 = vrot.slane %v1312, 3
      %v1315 = vor.u32 %v1311, %v1314
      %v1317 = vshrl.u32 %v863, 16
      %v1319 = vrot.slane %v1317, 2
      %v1320 = vshll.u32 %v863, 16
      %v1322 = vrot.slane %v1320, 3
      %v1323 = vor.u32 %v1319, %v1322
      %v1324 = vsel %vm1210, %v1315, %v1323
      %v1326 = vshrl.u32 %v923, 16
      %v1328 = vrot.slane %v1326, 2
      %v1329 = vshll.u32 %v923, 16
      %v1331 = vrot.slane %v1329, 3
      %v1332 = vor.u32 %v1328, %v1331
      %v1334 = vshrl.u32 %v927, 16
      %v1336 = vrot.slane %v1334, 2
      %v1337 = vshll.u32 %v927, 16
      %v1339 = vrot.slane %v1337, 3
      %v1340 = vor.u32 %v1336, %v1339
      %v1341 = vsel %vm1210, %v1332, %v1340
      %v1343 = vshrl.u32 %v1018, 16
      %v1345 = vrot.slane %v1343, 2
      %v1346 = vshll.u32 %v1018, 16
      %v1348 = vrot.slane %v1346, 3
      %v1349 = vor.u32 %v1345, %v1348
      %v1351 = vshrl.u32 %v1020, 16
      %v1353 = vrot.slane %v1351, 2
      %v1354 = vshll.u32 %v1020, 16
      %v1356 = vrot.slane %v1354, 3
      %v1357 = vor.u32 %v1353, %v1356
      %v1358 = vsel %vm1210, %v1349, %v1357
      %v1359 = vrot.slane %v436, 2
      %v1360 = vrot.slane %v432, 3
      %v1361 = vor.u32 %v1359, %v1360
      %v1362 = vsel %vm1210, %v1221, %v1361
      %v1364 = vshrl.u32 %v443, 16
      %v1366 = vrot.slane %v1364, 2
      %v1367 = vshll.u32 %v443, 16
      %v1369 = vrot.slane %v1367, 3
      %v1370 = vor.u32 %v1366, %v1369
      %v1371 = vsel %vm1210, %v1238, %v1370
      %v1372 = vsel %vm1210, %v1255, %v1272
      %v1374 = vshrl.u32 %v595, 16
      %v1376 = vrot.slane %v1374, 2
      %v1377 = vshll.u32 %v595, 16
      %v1379 = vrot.slane %v1377, 3
      %v1380 = vor.u32 %v1376, %v1379
      %v1381 = vsel %vm1210, %v1272, %v1380
      %v1383 = vshrl.u32 %v692, 16
      %v1385 = vrot.slane %v1383, 2
      %v1386 = vshll.u32 %v692, 16
      %v1388 = vrot.slane %v1386, 3
      %v1389 = vor.u32 %v1385, %v1388
      %v1390 = vsel %vm1210, %v1289, %v1389
      %v1391 = vsel %vm1210, %v1306, %v1323
      %v1393 = vshrl.u32 %v865, 16
      %v1395 = vrot.slane %v1393, 2
      %v1396 = vshll.u32 %v865, 16
      %v1398 = vrot.slane %v1396, 3
      %v1399 = vor.u32 %v1395, %v1398
      %v1400 = vsel %vm1210, %v1323, %v1399
      %v1402 = vshrl.u32 %v931, 16
      %v1404 = vrot.slane %v1402, 2
      %v1405 = vshll.u32 %v931, 16
      %v1407 = vrot.slane %v1405, 3
      %v1408 = vor.u32 %v1404, %v1407
      %v1409 = vsel %vm1210, %v1340, %v1408
      %v1411 = vshrl.u32 %v1022, 16
      %v1413 = vrot.slane %v1411, 2
      %v1414 = vshll.u32 %v1022, 16
      %v1416 = vrot.slane %v1414, 3
      %v1417 = vor.u32 %v1413, %v1416
      %v1418 = vsel %vm1210, %v1357, %v1417
      %v1419 = vrot.slane %v444, 2
      %v1420 = vrot.slane %v440, 3
      %v1421 = vor.u32 %v1419, %v1420
      %v1422 = vsel %vm1210, %v1361, %v1421
      %v1424 = vshrl.u32 %v451, 16
      %v1426 = vrot.slane %v1424, 2
      %v1427 = vshll.u32 %v451, 16
      %v1429 = vrot.slane %v1427, 3
      %v1430 = vor.u32 %v1426, %v1429
      %v1431 = vsel %vm1210, %v1370, %v1430
      %v1433 = vshrl.u32 %v597, 16
      %v1435 = vrot.slane %v1433, 2
      %v1436 = vshll.u32 %v597, 16
      %v1438 = vrot.slane %v1436, 3
      %v1439 = vor.u32 %v1435, %v1438
      %v1440 = vsel %vm1210, %v1380, %v1439
      %v1442 = vshrl.u32 %v701, 16
      %v1444 = vrot.slane %v1442, 2
      %v1445 = vshll.u32 %v701, 16
      %v1447 = vrot.slane %v1445, 3
      %v1448 = vor.u32 %v1444, %v1447
      %v1449 = vsel %vm1210, %v1389, %v1448
      %v1451 = vshrl.u32 %v867, 16
      %v1453 = vrot.slane %v1451, 2
      %v1454 = vshll.u32 %v867, 16
      %v1456 = vrot.slane %v1454, 3
      %v1457 = vor.u32 %v1453, %v1456
      %v1458 = vsel %vm1210, %v1399, %v1457
      %v1460 = vshrl.u32 %v935, 16
      %v1462 = vrot.slane %v1460, 2
      %v1463 = vshll.u32 %v935, 16
      %v1465 = vrot.slane %v1463, 3
      %v1466 = vor.u32 %v1462, %v1465
      %v1467 = vsel %vm1210, %v1408, %v1466
      %v1469 = vshrl.u32 %v1024, 16
      %v1471 = vrot.slane %v1469, 2
      %v1472 = vshll.u32 %v1024, 16
      %v1474 = vrot.slane %v1472, 3
      %v1475 = vor.u32 %v1471, %v1474
      %v1476 = vsel %vm1210, %v1417, %v1475
      %v1477 = vrot.slane %v452, 2
      %v1478 = vrot.slane %v448, 3
      %v1479 = vor.u32 %v1477, %v1478
      %v1480 = vsel %vm1210, %v1421, %v1479
      %v1482 = vshrl.u32 %v459, 16
      %v1484 = vrot.slane %v1482, 2
      %v1485 = vshll.u32 %v459, 16
      %v1487 = vrot.slane %v1485, 3
      %v1488 = vor.u32 %v1484, %v1487
      %v1489 = vsel %vm1210, %v1430, %v1488
      %v1491 = vshrl.u32 %v599, 16
      %v1493 = vrot.slane %v1491, 2
      %v1494 = vshll.u32 %v599, 16
      %v1496 = vrot.slane %v1494, 3
      %v1497 = vor.u32 %v1493, %v1496
      %v1498 = vsel %vm1210, %v1439, %v1497
      %v1500 = vshrl.u32 %v710, 16
      %v1502 = vrot.slane %v1500, 2
      %v1503 = vshll.u32 %v710, 16
      %v1505 = vrot.slane %v1503, 3
      %v1506 = vor.u32 %v1502, %v1505
      %v1507 = vsel %vm1210, %v1448, %v1506
      %v1509 = vshrl.u32 %v869, 16
      %v1511 = vrot.slane %v1509, 2
      %v1512 = vshll.u32 %v869, 16
      %v1514 = vrot.slane %v1512, 3
      %v1515 = vor.u32 %v1511, %v1514
      %v1516 = vsel %vm1210, %v1457, %v1515
      %v1518 = vshrl.u32 %v939, 16
      %v1520 = vrot.slane %v1518, 2
      %v1521 = vshll.u32 %v939, 16
      %v1523 = vrot.slane %v1521, 3
      %v1524 = vor.u32 %v1520, %v1523
      %v1525 = vsel %vm1210, %v1466, %v1524
      %v1527 = vshrl.u32 %v1026, 16
      %v1529 = vrot.slane %v1527, 2
      %v1530 = vshll.u32 %v1026, 16
      %v1532 = vrot.slane %v1530, 3
      %v1533 = vor.u32 %v1529, %v1532
      %v1534 = vsel %vm1210, %v1475, %v1533
      %v1535 = vrot.slane %v460, 2
      %v1536 = vrot.slane %v456, 3
      %v1537 = vor.u32 %v1535, %v1536
      %v1538 = vsel %vm1210, %v1479, %v1537
      %v1540 = vshrl.u32 %v467, 16
      %v1542 = vrot.slane %v1540, 2
      %v1543 = vshll.u32 %v467, 16
      %v1545 = vrot.slane %v1543, 3
      %v1546 = vor.u32 %v1542, %v1545
      %v1547 = vsel %vm1210, %v1488, %v1546
      %v1549 = vshrl.u32 %v601, 16
      %v1551 = vrot.slane %v1549, 2
      %v1552 = vshll.u32 %v601, 16
      %v1554 = vrot.slane %v1552, 3
      %v1555 = vor.u32 %v1551, %v1554
      %v1556 = vsel %vm1210, %v1497, %v1555
      %v1558 = vshrl.u32 %v719, 16
      %v1560 = vrot.slane %v1558, 2
      %v1561 = vshll.u32 %v719, 16
      %v1563 = vrot.slane %v1561, 3
      %v1564 = vor.u32 %v1560, %v1563
      %v1565 = vsel %vm1210, %v1506, %v1564
      %v1567 = vshrl.u32 %v871, 16
      %v1569 = vrot.slane %v1567, 2
      %v1570 = vshll.u32 %v871, 16
      %v1572 = vrot.slane %v1570, 3
      %v1573 = vor.u32 %v1569, %v1572
      %v1574 = vsel %vm1210, %v1515, %v1573
      %v1576 = vshrl.u32 %v943, 16
      %v1578 = vrot.slane %v1576, 2
      %v1579 = vshll.u32 %v943, 16
      %v1581 = vrot.slane %v1579, 3
      %v1582 = vor.u32 %v1578, %v1581
      %v1583 = vsel %vm1210, %v1524, %v1582
      %v1585 = vshrl.u32 %v1028, 16
      %v1587 = vrot.slane %v1585, 2
      %v1588 = vshll.u32 %v1028, 16
      %v1590 = vrot.slane %v1588, 3
      %v1591 = vor.u32 %v1587, %v1590
      %v1592 = vsel %vm1210, %v1533, %v1591
      %v1593 = vrot.slane %v468, 2
      %v1594 = vrot.slane %v464, 3
      %v1595 = vor.u32 %v1593, %v1594
      %v1596 = vsel %vm1210, %v1537, %v1595
      %v1598 = vshrl.u32 %v475, 16
      %v1600 = vrot.slane %v1598, 2
      %v1601 = vshll.u32 %v475, 16
      %v1603 = vrot.slane %v1601, 3
      %v1604 = vor.u32 %v1600, %v1603
      %v1605 = vsel %vm1210, %v1546, %v1604
      %v1607 = vshrl.u32 %v603, 16
      %v1609 = vrot.slane %v1607, 2
      %v1610 = vshll.u32 %v603, 16
      %v1612 = vrot.slane %v1610, 3
      %v1613 = vor.u32 %v1609, %v1612
      %v1614 = vsel %vm1210, %v1555, %v1613
      %v1616 = vshrl.u32 %v728, 16
      %v1618 = vrot.slane %v1616, 2
      %v1619 = vshll.u32 %v728, 16
      %v1621 = vrot.slane %v1619, 3
      %v1622 = vor.u32 %v1618, %v1621
      %v1623 = vsel %vm1210, %v1564, %v1622
      %v1625 = vshrl.u32 %v873, 16
      %v1627 = vrot.slane %v1625, 2
      %v1628 = vshll.u32 %v873, 16
      %v1630 = vrot.slane %v1628, 3
      %v1631 = vor.u32 %v1627, %v1630
      %v1632 = vsel %vm1210, %v1573, %v1631
      %v1634 = vshrl.u32 %v947, 16
      %v1636 = vrot.slane %v1634, 2
      %v1637 = vshll.u32 %v947, 16
      %v1639 = vrot.slane %v1637, 3
      %v1640 = vor.u32 %v1636, %v1639
      %v1641 = vsel %vm1210, %v1582, %v1640
      %v1643 = vshrl.u32 %v1030, 16
      %v1645 = vrot.slane %v1643, 2
      %v1646 = vshll.u32 %v1030, 16
      %v1648 = vrot.slane %v1646, 3
      %v1649 = vor.u32 %v1645, %v1648
      %v1650 = vsel %vm1210, %v1591, %v1649
      %v1651 = vrot.slane %v476, 2
      %v1652 = vrot.slane %v472, 3
      %v1653 = vor.u32 %v1651, %v1652
      %v1654 = vsel %vm1210, %v1595, %v1653
      %v1656 = vshrl.u32 %v483, 16
      %v1658 = vrot.slane %v1656, 2
      %v1659 = vshll.u32 %v483, 16
      %v1661 = vrot.slane %v1659, 3
      %v1662 = vor.u32 %v1658, %v1661
      %v1663 = vsel %vm1210, %v1604, %v1662
      %v1665 = vshrl.u32 %v605, 16
      %v1667 = vrot.slane %v1665, 2
      %v1668 = vshll.u32 %v605, 16
      %v1670 = vrot.slane %v1668, 3
      %v1671 = vor.u32 %v1667, %v1670
      %v1672 = vsel %vm1210, %v1613, %v1671
      %v1674 = vshrl.u32 %v737, 16
      %v1676 = vrot.slane %v1674, 2
      %v1677 = vshll.u32 %v737, 16
      %v1679 = vrot.slane %v1677, 3
      %v1680 = vor.u32 %v1676, %v1679
      %v1681 = vsel %vm1210, %v1622, %v1680
      %v1683 = vshrl.u32 %v875, 16
      %v1685 = vrot.slane %v1683, 2
      %v1686 = vshll.u32 %v875, 16
      %v1688 = vrot.slane %v1686, 3
      %v1689 = vor.u32 %v1685, %v1688
      %v1690 = vsel %vm1210, %v1631, %v1689
      %v1692 = vshrl.u32 %v951, 16
      %v1694 = vrot.slane %v1692, 2
      %v1695 = vshll.u32 %v951, 16
      %v1697 = vrot.slane %v1695, 3
      %v1698 = vor.u32 %v1694, %v1697
      %v1699 = vsel %vm1210, %v1640, %v1698
      %v1701 = vshrl.u32 %v1032, 16
      %v1703 = vrot.slane %v1701, 2
      %v1704 = vshll.u32 %v1032, 16
      %v1706 = vrot.slane %v1704, 3
      %v1707 = vor.u32 %v1703, %v1706
      %v1708 = vsel %vm1210, %v1649, %v1707
      %v1709 = vrot.slane %v484, 2
      %v1710 = vrot.slane %v480, 3
      %v1711 = vor.u32 %v1709, %v1710
      %v1712 = vsel %vm1210, %v1653, %v1711
      %v1714 = vshrl.u32 %v491, 16
      %v1716 = vrot.slane %v1714, 2
      %v1717 = vshll.u32 %v491, 16
      %v1719 = vrot.slane %v1717, 3
      %v1720 = vor.u32 %v1716, %v1719
      %v1721 = vsel %vm1210, %v1662, %v1720
      %v1723 = vshrl.u32 %v607, 16
      %v1725 = vrot.slane %v1723, 2
      %v1726 = vshll.u32 %v607, 16
      %v1728 = vrot.slane %v1726, 3
      %v1729 = vor.u32 %v1725, %v1728
      %v1730 = vsel %vm1210, %v1671, %v1729
      %v1732 = vshrl.u32 %v746, 16
      %v1734 = vrot.slane %v1732, 2
      %v1735 = vshll.u32 %v746, 16
      %v1737 = vrot.slane %v1735, 3
      %v1738 = vor.u32 %v1734, %v1737
      %v1739 = vsel %vm1210, %v1680, %v1738
      %v1741 = vshrl.u32 %v877, 16
      %v1743 = vrot.slane %v1741, 2
      %v1744 = vshll.u32 %v877, 16
      %v1746 = vrot.slane %v1744, 3
      %v1747 = vor.u32 %v1743, %v1746
      %v1748 = vsel %vm1210, %v1689, %v1747
      %v1750 = vshrl.u32 %v955, 16
      %v1752 = vrot.slane %v1750, 2
      %v1753 = vshll.u32 %v955, 16
      %v1755 = vrot.slane %v1753, 3
      %v1756 = vor.u32 %v1752, %v1755
      %v1757 = vsel %vm1210, %v1698, %v1756
      %v1759 = vshrl.u32 %v1034, 16
      %v1761 = vrot.slane %v1759, 2
      %v1762 = vshll.u32 %v1034, 16
      %v1764 = vrot.slane %v1762, 3
      %v1765 = vor.u32 %v1761, %v1764
      %v1766 = vsel %vm1210, %v1707, %v1765
      %v1767 = vrot.slane %v492, 2
      %v1768 = vrot.slane %v488, 3
      %v1769 = vor.u32 %v1767, %v1768
      %v1770 = vsel %vm1210, %v1711, %v1769
      %v1772 = vshrl.u32 %v499, 16
      %v1774 = vrot.slane %v1772, 2
      %v1775 = vshll.u32 %v499, 16
      %v1777 = vrot.slane %v1775, 3
      %v1778 = vor.u32 %v1774, %v1777
      %v1779 = vsel %vm1210, %v1720, %v1778
      %v1781 = vshrl.u32 %v609, 16
      %v1783 = vrot.slane %v1781, 2
      %v1784 = vshll.u32 %v609, 16
      %v1786 = vrot.slane %v1784, 3
      %v1787 = vor.u32 %v1783, %v1786
      %v1788 = vsel %vm1210, %v1729, %v1787
      %v1790 = vshrl.u32 %v755, 16
      %v1792 = vrot.slane %v1790, 2
      %v1793 = vshll.u32 %v755, 16
      %v1795 = vrot.slane %v1793, 3
      %v1796 = vor.u32 %v1792, %v1795
      %v1797 = vsel %vm1210, %v1738, %v1796
      %v1799 = vshrl.u32 %v879, 16
      %v1801 = vrot.slane %v1799, 2
      %v1802 = vshll.u32 %v879, 16
      %v1804 = vrot.slane %v1802, 3
      %v1805 = vor.u32 %v1801, %v1804
      %v1806 = vsel %vm1210, %v1747, %v1805
      %v1808 = vshrl.u32 %v959, 16
      %v1810 = vrot.slane %v1808, 2
      %v1811 = vshll.u32 %v959, 16
      %v1813 = vrot.slane %v1811, 3
      %v1814 = vor.u32 %v1810, %v1813
      %v1815 = vsel %vm1210, %v1756, %v1814
      %v1817 = vshrl.u32 %v1036, 16
      %v1819 = vrot.slane %v1817, 2
      %v1820 = vshll.u32 %v1036, 16
      %v1822 = vrot.slane %v1820, 3
      %v1823 = vor.u32 %v1819, %v1822
      %v1824 = vsel %vm1210, %v1765, %v1823
      %v1825 = vrot.slane %v500, 2
      %v1826 = vrot.slane %v496, 3
      %v1827 = vor.u32 %v1825, %v1826
      %v1828 = vsel %vm1210, %v1769, %v1827
      %v1830 = vshrl.u32 %v507, 16
      %v1832 = vrot.slane %v1830, 2
      %v1833 = vshll.u32 %v507, 16
      %v1835 = vrot.slane %v1833, 3
      %v1836 = vor.u32 %v1832, %v1835
      %v1837 = vsel %vm1210, %v1778, %v1836
      %v1839 = vshrl.u32 %v611, 16
      %v1841 = vrot.slane %v1839, 2
      %v1842 = vshll.u32 %v611, 16
      %v1844 = vrot.slane %v1842, 3
      %v1845 = vor.u32 %v1841, %v1844
      %v1846 = vsel %vm1210, %v1787, %v1845
      %v1848 = vshrl.u32 %v764, 16
      %v1850 = vrot.slane %v1848, 2
      %v1851 = vshll.u32 %v764, 16
      %v1853 = vrot.slane %v1851, 3
      %v1854 = vor.u32 %v1850, %v1853
      %v1855 = vsel %vm1210, %v1796, %v1854
      %v1857 = vshrl.u32 %v881, 16
      %v1859 = vrot.slane %v1857, 2
      %v1860 = vshll.u32 %v881, 16
      %v1862 = vrot.slane %v1860, 3
      %v1863 = vor.u32 %v1859, %v1862
      %v1864 = vsel %vm1210, %v1805, %v1863
      %v1866 = vshrl.u32 %v963, 16
      %v1868 = vrot.slane %v1866, 2
      %v1869 = vshll.u32 %v963, 16
      %v1871 = vrot.slane %v1869, 3
      %v1872 = vor.u32 %v1868, %v1871
      %v1873 = vsel %vm1210, %v1814, %v1872
      %v1875 = vshrl.u32 %v1038, 16
      %v1877 = vrot.slane %v1875, 2
      %v1878 = vshll.u32 %v1038, 16
      %v1880 = vrot.slane %v1878, 3
      %v1881 = vor.u32 %v1877, %v1880
      %v1882 = vsel %vm1210, %v1823, %v1881
      %v1883 = vrot.slane %v508, 2
      %v1884 = vrot.slane %v504, 3
      %v1885 = vor.u32 %v1883, %v1884
      %v1886 = vsel %vm1210, %v1827, %v1885
      %v1888 = vshrl.u32 %v515, 16
      %v1890 = vrot.slane %v1888, 2
      %v1891 = vshll.u32 %v515, 16
      %v1893 = vrot.slane %v1891, 3
      %v1894 = vor.u32 %v1890, %v1893
      %v1895 = vsel %vm1210, %v1836, %v1894
      %v1897 = vshrl.u32 %v613, 16
      %v1899 = vrot.slane %v1897, 2
      %v1900 = vshll.u32 %v613, 16
      %v1902 = vrot.slane %v1900, 3
      %v1903 = vor.u32 %v1899, %v1902
      %v1904 = vsel %vm1210, %v1845, %v1903
      %v1906 = vshrl.u32 %v773, 16
      %v1908 = vrot.slane %v1906, 2
      %v1909 = vshll.u32 %v773, 16
      %v1911 = vrot.slane %v1909, 3
      %v1912 = vor.u32 %v1908, %v1911
      %v1913 = vsel %vm1210, %v1854, %v1912
      %v1915 = vshrl.u32 %v883, 16
      %v1917 = vrot.slane %v1915, 2
      %v1918 = vshll.u32 %v883, 16
      %v1920 = vrot.slane %v1918, 3
      %v1921 = vor.u32 %v1917, %v1920
      %v1922 = vsel %vm1210, %v1863, %v1921
      %v1924 = vshrl.u32 %v967, 16
      %v1926 = vrot.slane %v1924, 2
      %v1927 = vshll.u32 %v967, 16
      %v1929 = vrot.slane %v1927, 3
      %v1930 = vor.u32 %v1926, %v1929
      %v1931 = vsel %vm1210, %v1872, %v1930
      %v1933 = vshrl.u32 %v1040, 16
      %v1935 = vrot.slane %v1933, 2
      %v1936 = vshll.u32 %v1040, 16
      %v1938 = vrot.slane %v1936, 3
      %v1939 = vor.u32 %v1935, %v1938
      %v1940 = vsel %vm1210, %v1881, %v1939
      %v1941 = vrot.slane %v516, 2
      %v1942 = vrot.slane %v512, 3
      %v1943 = vor.u32 %v1941, %v1942
      %v1944 = vsel %vm1210, %v1885, %v1943
      %v1946 = vshrl.u32 %v523, 16
      %v1948 = vrot.slane %v1946, 2
      %v1949 = vshll.u32 %v523, 16
      %v1951 = vrot.slane %v1949, 3
      %v1952 = vor.u32 %v1948, %v1951
      %v1953 = vsel %vm1210, %v1894, %v1952
      %v1955 = vshrl.u32 %v615, 16
      %v1957 = vrot.slane %v1955, 2
      %v1958 = vshll.u32 %v615, 16
      %v1960 = vrot.slane %v1958, 3
      %v1961 = vor.u32 %v1957, %v1960
      %v1962 = vsel %vm1210, %v1903, %v1961
      %v1964 = vshrl.u32 %v782, 16
      %v1966 = vrot.slane %v1964, 2
      %v1967 = vshll.u32 %v782, 16
      %v1969 = vrot.slane %v1967, 3
      %v1970 = vor.u32 %v1966, %v1969
      %v1971 = vsel %vm1210, %v1912, %v1970
      %v1973 = vshrl.u32 %v885, 16
      %v1975 = vrot.slane %v1973, 2
      %v1976 = vshll.u32 %v885, 16
      %v1978 = vrot.slane %v1976, 3
      %v1979 = vor.u32 %v1975, %v1978
      %v1980 = vsel %vm1210, %v1921, %v1979
      %v1982 = vshrl.u32 %v971, 16
      %v1984 = vrot.slane %v1982, 2
      %v1985 = vshll.u32 %v971, 16
      %v1987 = vrot.slane %v1985, 3
      %v1988 = vor.u32 %v1984, %v1987
      %v1989 = vsel %vm1210, %v1930, %v1988
      %v1991 = vshrl.u32 %v1042, 16
      %v1993 = vrot.slane %v1991, 2
      %v1994 = vshll.u32 %v1042, 16
      %v1996 = vrot.slane %v1994, 3
      %v1997 = vor.u32 %v1993, %v1996
      %v1998 = vsel %vm1210, %v1939, %v1997
      %v1999 = vrot.slane %v524, 2
      %v2000 = vrot.slane %v520, 3
      %v2001 = vor.u32 %v1999, %v2000
      %v2002 = vsel %vm1210, %v1943, %v2001
      %v2004 = vshrl.u32 %v531, 16
      %v2006 = vrot.slane %v2004, 2
      %v2007 = vshll.u32 %v531, 16
      %v2009 = vrot.slane %v2007, 3
      %v2010 = vor.u32 %v2006, %v2009
      %v2011 = vsel %vm1210, %v1952, %v2010
      %v2013 = vshrl.u32 %v617, 16
      %v2015 = vrot.slane %v2013, 2
      %v2016 = vshll.u32 %v617, 16
      %v2018 = vrot.slane %v2016, 3
      %v2019 = vor.u32 %v2015, %v2018
      %v2020 = vsel %vm1210, %v1961, %v2019
      %v2022 = vshrl.u32 %v791, 16
      %v2024 = vrot.slane %v2022, 2
      %v2025 = vshll.u32 %v791, 16
      %v2027 = vrot.slane %v2025, 3
      %v2028 = vor.u32 %v2024, %v2027
      %v2029 = vsel %vm1210, %v1970, %v2028
      %v2031 = vshrl.u32 %v887, 16
      %v2033 = vrot.slane %v2031, 2
      %v2034 = vshll.u32 %v887, 16
      %v2036 = vrot.slane %v2034, 3
      %v2037 = vor.u32 %v2033, %v2036
      %v2038 = vsel %vm1210, %v1979, %v2037
      %v2040 = vshrl.u32 %v975, 16
      %v2042 = vrot.slane %v2040, 2
      %v2043 = vshll.u32 %v975, 16
      %v2045 = vrot.slane %v2043, 3
      %v2046 = vor.u32 %v2042, %v2045
      %v2047 = vsel %vm1210, %v1988, %v2046
      %v2049 = vshrl.u32 %v1044, 16
      %v2051 = vrot.slane %v2049, 2
      %v2052 = vshll.u32 %v1044, 16
      %v2054 = vrot.slane %v2052, 3
      %v2055 = vor.u32 %v2051, %v2054
      %v2056 = vsel %vm1210, %v1997, %v2055
      %v2057 = vrot.slane %v532, 2
      %v2058 = vrot.slane %v528, 3
      %v2059 = vor.u32 %v2057, %v2058
      %v2060 = vsel %vm1210, %v2001, %v2059
      %v2062 = vshrl.u32 %v539, 16
      %v2064 = vrot.slane %v2062, 2
      %v2065 = vshll.u32 %v539, 16
      %v2067 = vrot.slane %v2065, 3
      %v2068 = vor.u32 %v2064, %v2067
      %v2069 = vsel %vm1210, %v2010, %v2068
      %v2071 = vshrl.u32 %v619, 16
      %v2073 = vrot.slane %v2071, 2
      %v2074 = vshll.u32 %v619, 16
      %v2076 = vrot.slane %v2074, 3
      %v2077 = vor.u32 %v2073, %v2076
      %v2078 = vsel %vm1210, %v2019, %v2077
      %v2080 = vshrl.u32 %v800, 16
      %v2082 = vrot.slane %v2080, 2
      %v2083 = vshll.u32 %v800, 16
      %v2085 = vrot.slane %v2083, 3
      %v2086 = vor.u32 %v2082, %v2085
      %v2087 = vsel %vm1210, %v2028, %v2086
      %v2089 = vshrl.u32 %v889, 16
      %v2091 = vrot.slane %v2089, 2
      %v2092 = vshll.u32 %v889, 16
      %v2094 = vrot.slane %v2092, 3
      %v2095 = vor.u32 %v2091, %v2094
      %v2096 = vsel %vm1210, %v2037, %v2095
      %v2098 = vshrl.u32 %v979, 16
      %v2100 = vrot.slane %v2098, 2
      %v2101 = vshll.u32 %v979, 16
      %v2103 = vrot.slane %v2101, 3
      %v2104 = vor.u32 %v2100, %v2103
      %v2105 = vsel %vm1210, %v2046, %v2104
      %v2107 = vshrl.u32 %v1046, 16
      %v2109 = vrot.slane %v2107, 2
      %v2110 = vshll.u32 %v1046, 16
      %v2112 = vrot.slane %v2110, 3
      %v2113 = vor.u32 %v2109, %v2112
      %v2114 = vsel %vm1210, %v2055, %v2113
      %v2115 = vrot.slane %v540, 2
      %v2116 = vrot.slane %v536, 3
      %v2117 = vor.u32 %v2115, %v2116
      %v2118 = vsel %vm1210, %v2059, %v2117
      %v2120 = vshrl.u32 %v547, 16
      %v2122 = vrot.slane %v2120, 2
      %v2123 = vshll.u32 %v547, 16
      %v2125 = vrot.slane %v2123, 3
      %v2126 = vor.u32 %v2122, %v2125
      %v2127 = vsel %vm1210, %v2068, %v2126
      %v2129 = vshrl.u32 %v621, 16
      %v2131 = vrot.slane %v2129, 2
      %v2132 = vshll.u32 %v621, 16
      %v2134 = vrot.slane %v2132, 3
      %v2135 = vor.u32 %v2131, %v2134
      %v2136 = vsel %vm1210, %v2077, %v2135
      %v2138 = vshrl.u32 %v809, 16
      %v2140 = vrot.slane %v2138, 2
      %v2141 = vshll.u32 %v809, 16
      %v2143 = vrot.slane %v2141, 3
      %v2144 = vor.u32 %v2140, %v2143
      %v2145 = vsel %vm1210, %v2086, %v2144
      %v2147 = vshrl.u32 %v891, 16
      %v2149 = vrot.slane %v2147, 2
      %v2150 = vshll.u32 %v891, 16
      %v2152 = vrot.slane %v2150, 3
      %v2153 = vor.u32 %v2149, %v2152
      %v2154 = vsel %vm1210, %v2095, %v2153
      %v2156 = vshrl.u32 %v983, 16
      %v2158 = vrot.slane %v2156, 2
      %v2159 = vshll.u32 %v983, 16
      %v2161 = vrot.slane %v2159, 3
      %v2162 = vor.u32 %v2158, %v2161
      %v2163 = vsel %vm1210, %v2104, %v2162
      %v2165 = vshrl.u32 %v1048, 16
      %v2167 = vrot.slane %v2165, 2
      %v2168 = vshll.u32 %v1048, 16
      %v2170 = vrot.slane %v2168, 3
      %v2171 = vor.u32 %v2167, %v2170
      %v2172 = vsel %vm1210, %v2113, %v2171
      %v2173 = vrot.slane %v548, 2
      %v2174 = vrot.slane %v544, 3
      %v2175 = vor.u32 %v2173, %v2174
      %v2176 = vsel %vm1210, %v2117, %v2175
      %v2178 = vshrl.u32 %v555, 16
      %v2180 = vrot.slane %v2178, 2
      %v2181 = vshll.u32 %v555, 16
      %v2183 = vrot.slane %v2181, 3
      %v2184 = vor.u32 %v2180, %v2183
      %v2185 = vsel %vm1210, %v2126, %v2184
      %v2187 = vshrl.u32 %v623, 16
      %v2189 = vrot.slane %v2187, 2
      %v2190 = vshll.u32 %v623, 16
      %v2192 = vrot.slane %v2190, 3
      %v2193 = vor.u32 %v2189, %v2192
      %v2194 = vsel %vm1210, %v2135, %v2193
      %v2196 = vshrl.u32 %v818, 16
      %v2198 = vrot.slane %v2196, 2
      %v2199 = vshll.u32 %v818, 16
      %v2201 = vrot.slane %v2199, 3
      %v2202 = vor.u32 %v2198, %v2201
      %v2203 = vsel %vm1210, %v2144, %v2202
      %v2205 = vshrl.u32 %v893, 16
      %v2207 = vrot.slane %v2205, 2
      %v2208 = vshll.u32 %v893, 16
      %v2210 = vrot.slane %v2208, 3
      %v2211 = vor.u32 %v2207, %v2210
      %v2212 = vsel %vm1210, %v2153, %v2211
      %v2214 = vshrl.u32 %v987, 16
      %v2216 = vrot.slane %v2214, 2
      %v2217 = vshll.u32 %v987, 16
      %v2219 = vrot.slane %v2217, 3
      %v2220 = vor.u32 %v2216, %v2219
      %v2221 = vsel %vm1210, %v2162, %v2220
      %v2223 = vshrl.u32 %v1050, 16
      %v2225 = vrot.slane %v2223, 2
      %v2226 = vshll.u32 %v1050, 16
      %v2228 = vrot.slane %v2226, 3
      %v2229 = vor.u32 %v2225, %v2228
      %v2230 = vsel %vm1210, %v2171, %v2229
      %v2231 = vrot.slane %v556, 2
      %v2232 = vrot.slane %v552, 3
      %v2233 = vor.u32 %v2231, %v2232
      %v2234 = vsel %vm1210, %v2175, %v2233
      %v2236 = vshrl.u32 %v563, 16
      %v2238 = vrot.slane %v2236, 2
      %v2239 = vshll.u32 %v563, 16
      %v2241 = vrot.slane %v2239, 3
      %v2242 = vor.u32 %v2238, %v2241
      %v2243 = vsel %vm1210, %v2184, %v2242
      %v2245 = vshrl.u32 %v625, 16
      %v2247 = vrot.slane %v2245, 2
      %v2248 = vshll.u32 %v625, 16
      %v2250 = vrot.slane %v2248, 3
      %v2251 = vor.u32 %v2247, %v2250
      %v2252 = vsel %vm1210, %v2193, %v2251
      %v2254 = vshrl.u32 %v827, 16
      %v2256 = vrot.slane %v2254, 2
      %v2257 = vshll.u32 %v827, 16
      %v2259 = vrot.slane %v2257, 3
      %v2260 = vor.u32 %v2256, %v2259
      %v2261 = vsel %vm1210, %v2202, %v2260
      %v2263 = vshrl.u32 %v895, 16
      %v2265 = vrot.slane %v2263, 2
      %v2266 = vshll.u32 %v895, 16
      %v2268 = vrot.slane %v2266, 3
      %v2269 = vor.u32 %v2265, %v2268
      %v2270 = vsel %vm1210, %v2211, %v2269
      %v2272 = vshrl.u32 %v991, 16
      %v2274 = vrot.slane %v2272, 2
      %v2275 = vshll.u32 %v991, 16
      %v2277 = vrot.slane %v2275, 3
      %v2278 = vor.u32 %v2274, %v2277
      %v2279 = vsel %vm1210, %v2220, %v2278
      %v2281 = vshrl.u32 %v1052, 16
      %v2283 = vrot.slane %v2281, 2
      %v2284 = vshll.u32 %v1052, 16
      %v2286 = vrot.slane %v2284, 3
      %v2287 = vor.u32 %v2283, %v2286
      %v2288 = vsel %vm1210, %v2229, %v2287
      %v2289 = vrot.slane %v564, 2
      %v2290 = vrot.slane %v560, 3
      %v2291 = vor.u32 %v2289, %v2290
      %v2292 = vsel %vm1210, %v2233, %v2291
      %v2294 = vshrl.u32 %v571, 16
      %v2296 = vrot.slane %v2294, 2
      %v2297 = vshll.u32 %v571, 16
      %v2299 = vrot.slane %v2297, 3
      %v2300 = vor.u32 %v2296, %v2299
      %v2301 = vsel %vm1210, %v2242, %v2300
      %v2303 = vshrl.u32 %v642, 16
      %v2305 = vrot.slane %v2303, 2
      %v2306 = vshll.u32 %v642, 16
      %v2308 = vrot.slane %v2306, 3
      %v2309 = vor.u32 %v2305, %v2308
      %v2310 = vsel %vm1210, %v2251, %v2309
      %v2312 = vshrl.u32 %v836, 16
      %v2314 = vrot.slane %v2312, 2
      %v2315 = vshll.u32 %v836, 16
      %v2317 = vrot.slane %v2315, 3
      %v2318 = vor.u32 %v2314, %v2317
      %v2319 = vsel %vm1210, %v2260, %v2318
      %v2321 = vshrl.u32 %v897, 16
      %v2323 = vrot.slane %v2321, 2
      %v2324 = vshll.u32 %v897, 16
      %v2326 = vrot.slane %v2324, 3
      %v2327 = vor.u32 %v2323, %v2326
      %v2328 = vsel %vm1210, %v2269, %v2327
      %v2330 = vshrl.u32 %v995, 16
      %v2332 = vrot.slane %v2330, 2
      %v2333 = vshll.u32 %v995, 16
      %v2335 = vrot.slane %v2333, 3
      %v2336 = vor.u32 %v2332, %v2335
      %v2337 = vsel %vm1210, %v2278, %v2336
      %v2339 = vshrl.u32 %v1054, 16
      %v2341 = vrot.slane %v2339, 2
      %v2342 = vshll.u32 %v1054, 16
      %v2344 = vrot.slane %v2342, 3
      %v2345 = vor.u32 %v2341, %v2344
      %v2346 = vsel %vm1210, %v2287, %v2345
      %v2347 = vrot.slane %v572, 2
      %v2348 = vrot.slane %v568, 3
      %v2349 = vor.u32 %v2347, %v2348
      %v2350 = vsel %vm1210, %v2291, %v2349
      %v2352 = vshrl.u32 %v579, 16
      %v2354 = vrot.slane %v2352, 2
      %v2355 = vshll.u32 %v579, 16
      %v2357 = vrot.slane %v2355, 3
      %v2358 = vor.u32 %v2354, %v2357
      %v2359 = vsel %vm1210, %v2300, %v2358
      %v2361 = vshrl.u32 %v627, 16
      %v2363 = vrot.slane %v2361, 2
      %v2364 = vshll.u32 %v627, 16
      %v2366 = vrot.slane %v2364, 3
      %v2367 = vor.u32 %v2363, %v2366
      %v2368 = vsel %vm1210, %v2251, %v2367
      %v2370 = vshrl.u32 %v644, 16
      %v2372 = vrot.slane %v2370, 2
      %v2373 = vshll.u32 %v644, 16
      %v2375 = vrot.slane %v2373, 3
      %v2376 = vor.u32 %v2372, %v2375
      %v2377 = vsel %vm1210, %v2309, %v2376
      %v2379 = vshrl.u32 %v845, 16
      %v2381 = vrot.slane %v2379, 2
      %v2382 = vshll.u32 %v845, 16
      %v2384 = vrot.slane %v2382, 3
      %v2385 = vor.u32 %v2381, %v2384
      %v2386 = vsel %vm1210, %v2318, %v2385
      %v2388 = vshrl.u32 %v909, 16
      %v2390 = vrot.slane %v2388, 2
      %v2391 = vshll.u32 %v909, 16
      %v2393 = vrot.slane %v2391, 3
      %v2394 = vor.u32 %v2390, %v2393
      %v2395 = vsel %vm1210, %v2327, %v2394
      %v2397 = vshrl.u32 %v1004, 16
      %v2399 = vrot.slane %v2397, 2
      %v2400 = vshll.u32 %v1004, 16
      %v2402 = vrot.slane %v2400, 3
      %v2403 = vor.u32 %v2399, %v2402
      %v2404 = vsel %vm1210, %v2336, %v2403
      %v2406 = vshrl.u32 %v1056, 16
      %v2408 = vrot.slane %v2406, 2
      %v2409 = vshll.u32 %v1056, 16
      %v2411 = vrot.slane %v2409, 3
      %v2412 = vor.u32 %v2408, %v2411
      %v2413 = vsel %vm1210, %v2345, %v2412
      %v2414 = vrot.slane %v580, 2
      %v2415 = vrot.slane %v576, 3
      %v2416 = vor.u32 %v2414, %v2415
      %v2417 = vsel %vm1210, %v2349, %v2416
      %v2419 = vshrl.u32 %v582, 16
      %v2421 = vrot.slane %v2419, 2
      %v2422 = vshll.u32 %v582, 16
      %v2424 = vrot.slane %v2422, 3
      %v2425 = vor.u32 %v2421, %v2424
      %v2426 = vsel %vm1210, %v2358, %v2425
      %v2428 = vshrl.u32 %v626, 16
      %v2430 = vrot.slane %v2428, 2
      %v2431 = vshll.u32 %v626, 16
      %v2433 = vrot.slane %v2431, 3
      %v2434 = vor.u32 %v2430, %v2433
      %v2435 = vsel %vm1210, %v2367, %v2434
      %v2437 = vshrl.u32 %v643, 16
      %v2439 = vrot.slane %v2437, 2
      %v2440 = vshll.u32 %v643, 16
      %v2442 = vrot.slane %v2440, 3
      %v2443 = vor.u32 %v2439, %v2442
      %v2444 = vsel %vm1210, %v2376, %v2443
      %v2446 = vshrl.u32 %v854, 16
      %v2448 = vrot.slane %v2446, 2
      %v2449 = vshll.u32 %v854, 16
      %v2451 = vrot.slane %v2449, 3
      %v2452 = vor.u32 %v2448, %v2451
      %v2453 = vsel %vm1210, %v2385, %v2452
      %v2455 = vshrl.u32 %v899, 16
      %v2457 = vrot.slane %v2455, 2
      %v2458 = vshll.u32 %v899, 16
      %v2460 = vrot.slane %v2458, 3
      %v2461 = vor.u32 %v2457, %v2460
      %v2462 = vsel %vm1210, %v2327, %v2461
      %v2464 = vshrl.u32 %v911, 16
      %v2466 = vrot.slane %v2464, 2
      %v2467 = vshll.u32 %v911, 16
      %v2469 = vrot.slane %v2467, 3
      %v2470 = vor.u32 %v2466, %v2469
      %v2471 = vsel %vm1210, %v2394, %v2470
      %v2473 = vshrl.u32 %v1013, 16
      %v2475 = vrot.slane %v2473, 2
      %v2476 = vshll.u32 %v1013, 16
      %v2478 = vrot.slane %v2476, 3
      %v2479 = vor.u32 %v2475, %v2478
      %v2480 = vsel %vm1210, %v2403, %v2479
      %v2482 = vshrl.u32 %v1058, 16
      %v2484 = vrot.slane %v2482, 2
      %v2485 = vshll.u32 %v1058, 16
      %v2487 = vrot.slane %v2485, 3
      %v2488 = vor.u32 %v2484, %v2487
      %v2489 = vsel %vm1210, %v2412, %v2488
      %v2790 = vunpack.c.l.b16 %v1059
      %v2791 = vunpack.c.l.b16 %v1060
      %v2792 = vunpack.c.l.b16 %v1061
      %v2793 = vunpack.c.l.b16 %v1062
      %v2794 = vunpack.c.l.b16 %v1063
      %v2795 = vunpack.c.l.b16 %v1064
      %v2796 = vunpack.c.l.b16 %v1065
      %v2797 = vunpack.c.l.b16 %v1066
      %v2798 = vunpack.c.l.b16 %v1067
      %v2799 = vunpack.c.l.b16 %v1068
      %v2800 = vunpack.c.l.b16 %v1069
      %v2801 = vunpack.c.l.b16 %v1070
      %v2802 = vunpack.c.l.b16 %v1071
      %v2803 = vunpack.c.l.b16 %v1072
      %v2804 = vunpack.c.l.b16 %v1073
      %v2805 = vunpack.c.l.b16 %v1074
      %v2806 = vunpack.c.l.b16 %v1075
      %v2807 = vunpack.c.l.b16 %v1076
      %v2808 = vunpack.c.l.b16 %v1077
      %v2809 = vunpack.c.l.b16 %v1078
      %v2810 = vunpack.c.l.b16 %v1079
      %v2811 = vunpack.c.l.b16 %v1080
      %v2812 = vunpack.c.l.b16 %v1081
      %v2813 = vunpack.c.l.b16 %v1082
      %v2814 = vunpack.c.l.b16 %v1083
      %v2815 = vunpack.c.l.b16 %v1084
      %v2816 = vunpack.c.l.b16 %v1085
      %v2817 = vunpack.c.l.b16 %v1086
      %v2818 = vunpack.c.l.b16 %v1087
      %v2819 = vunpack.c.l.b16 %v1088
      %v2820 = vunpack.c.l.b16 %v1089
      %v2821 = vunpack.c.l.b16 %v1090
      %v2822 = vunpack.c.l.b16 %v1091
      %v2823 = vunpack.c.l.b16 %v1092
      %v2824 = vunpack.c.l.b16 %v1093
      %v2825 = vunpack.c.l.b16 %v1094
      %v2826 = vunpack.c.l.b16 %v1095
      %v2827 = vunpack.c.l.b16 %v1096
      %v2828 = vunpack.c.l.b16 %v1097
      %v2829 = vunpack.c.l.b16 %v1098
      %v2830 = vunpack.c.l.b16 %v1099
      %v2831 = vunpack.c.l.b16 %v1100
      %v2832 = vunpack.c.l.b16 %v1101
      %v2833 = vunpack.c.l.b16 %v1102
      %v2834 = vunpack.c.l.b16 %v1103
      %v2835 = vunpack.c.l.b16 %v1104
      %v2836 = vunpack.c.l.b16 %v1105
      %v2837 = vunpack.c.l.b16 %v1106
      %v2838 = vunpack.c.l.b16 %v1107
      %v2839 = vunpack.c.l.b16 %v1108
      %v2840 = vunpack.c.l.b16 %v1109
      %v2841 = vunpack.c.l.b16 %v1110
      %v2842 = vunpack.c.l.b16 %v1111
      %v2843 = vunpack.c.l.b16 %v1112
      %v2844 = vunpack.c.l.b16 %v1113
      %v2845 = vunpack.c.l.b16 %v1114
      %v2846 = vunpack.c.l.b16 %v1115
      %v2847 = vunpack.c.l.b16 %v1116
      %v2848 = vunpack.c.l.b16 %v1117
      %v2849 = vunpack.c.l.b16 %v1118
      %v2850 = vunpack.c.l.b16 %v1119
      %v2851 = vunpack.c.l.b16 %v1120
      %v2852 = vunpack.c.l.b16 %v1121
      %v2853 = vunpack.c.l.b16 %v1122
      %v2854 = vunpack.c.l.b16 %v1123
      %v2855 = vunpack.c.l.b16 %v1124
      %v2856 = vunpack.c.l.b16 %v1125
      %v2857 = vunpack.c.l.b16 %v1126
      %v2858 = vunpack.c.l.b16 %v1127
      %v2859 = vunpack.c.l.b16 %v1128
      %v2860 = vunpack.c.l.b16 %v1129
      %v2861 = vunpack.c.l.b16 %v1130
      %v2862 = vunpack.c.l.b16 %v1131
      %v2863 = vunpack.c.l.b16 %v1132
      %v2864 = vunpack.c.l.b16 %v1133
      %v2865 = vunpack.c.l.b16 %v1134
      %v2866 = vunpack.c.l.b16 %v1135
      %v2867 = vunpack.c.l.b16 %v1136
      %v2868 = vunpack.c.l.b16 %v1137
      %v2869 = vunpack.c.l.b16 %v1138
      %v2870 = vunpack.c.l.b16 %v1139
      %v2871 = vunpack.c.l.b16 %v1140
      %v2872 = vunpack.c.l.b16 %v1141
      %v2873 = vunpack.c.l.b16 %v1142
      %v2874 = vunpack.c.l.b16 %v1143
      %v2875 = vunpack.c.l.b16 %v1144
      %v2876 = vunpack.c.l.b16 %v1145
      %v2877 = vunpack.c.l.b16 %v1146
      %v2878 = vunpack.c.l.b16 %v1147
      %v2879 = vunpack.c.l.b16 %v1148
      %v2880 = vunpack.c.l.b16 %v1149
      %v2881 = vunpack.c.l.b16 %v1150
      %v2882 = vunpack.c.l.b16 %v1151
      %v2883 = vunpack.c.l.b16 %v1152
      %v2884 = vunpack.c.l.b16 %v1153
      %v2885 = vunpack.c.l.b16 %v1154
      %v2886 = vunpack.c.l.b16 %v1155
      %v2887 = vunpack.c.l.b16 %v1156
      %v2888 = vunpack.c.l.b16 %v1157
      %v2889 = vunpack.c.l.b16 %v1158
      %v2890 = vunpack.c.l.b16 %v1159
      %v2891 = vunpack.c.l.b16 %v1160
      %v2892 = vunpack.c.l.b16 %v1161
      %v2893 = vunpack.c.l.b16 %v1162
      %v2894 = vunpack.c.l.b16 %v1163
      %v2895 = vunpack.c.l.b16 %v1164
      %v2896 = vunpack.c.l.b16 %v1165
      %v2897 = vunpack.c.l.b16 %v1166
      %v2898 = vunpack.c.l.b16 %v1167
      %v2899 = vunpack.c.l.b16 %v1168
      %v2900 = vunpack.c.l.b16 %v1169
      %v2901 = vunpack.c.l.b16 %v1170
      %v2902 = vunpack.c.l.b16 %v1171
      %v2903 = vunpack.c.l.b16 %v1172
      %v2904 = vunpack.c.l.b16 %v1173
      %v2905 = vunpack.c.l.b16 %v1174
      %v2906 = vunpack.c.l.b16 %v1175
      %v2907 = vunpack.c.l.b16 %v1176
      %v2908 = vunpack.c.l.b16 %v1177
      %v2909 = vunpack.c.l.b16 %v1178
      %v2910 = vunpack.c.l.b16 %v1179
      %v2911 = vunpack.c.l.b16 %v1180
      %v2912 = vunpack.c.l.b16 %v1181
      %v2913 = vunpack.c.l.b16 %v1182
      %v2914 = vunpack.c.l.b16 %v1183
      %v2915 = vunpack.c.l.b16 %v1184
      %v2916 = vunpack.c.l.b16 %v1185
      %v2917 = vunpack.c.l.b16 %v1186
      %v2918 = vunpack.c.l.b16 %v1187
      %v2919 = vunpack.c.l.b16 %v1188
      %v2920 = vunpack.c.l.b16 %v1189
      %v2921 = vunpack.c.l.b16 %v1190
      %v2922 = vunpack.c.l.b16 %v1191
      %v2923 = vunpack.c.l.b16 %v1192
      %v2924 = vunpack.c.l.b16 %v1193
      %v2925 = vunpack.c.l.b16 %v1194
      %v2926 = vunpack.c.l.b16 %v1195
      %v2927 = vunpack.c.l.b16 %v1196
      %v2928 = vunpack.c.l.b16 %v1197
      %v2929 = vunpack.c.l.b16 %v1198
      %v2930 = vunpack.c.l.b16 %v1199
      %v2931 = vunpack.c.l.b16 %v1200
      %v2932 = vunpack.c.l.b16 %v1201
      %v2933 = vunpack.c.l.b16 %v1202
      %v2934 = vpack.c.b16 %v2791, %v2790
      %v2935 = vpack.c.b16 %v2793, %v2792
      %v2936 = vpack.c.b16 %v2795, %v2794
      %v2937 = vpack.c.b16 %v2797, %v2796
      %v2938 = vpack.c.b16 %v2799, %v2798
      %v2939 = vpack.c.b16 %v2801, %v2800
      %v2940 = vpack.c.b16 %v2803, %v2802
      %v2941 = vpack.c.b16 %v2805, %v2804
      %v2942 = vpack.c.b16 %v2807, %v2806
      %v2943 = vpack.c.b16 %v2809, %v2808
      %v2944 = vpack.c.b16 %v2811, %v2810
      %v2945 = vpack.c.b16 %v2813, %v2812
      %v2946 = vpack.c.b16 %v2815, %v2814
      %v2947 = vpack.c.b16 %v2817, %v2816
      %v2948 = vpack.c.b16 %v2819, %v2818
      %v2949 = vpack.c.b16 %v2821, %v2820
      %v2950 = vpack.c.b16 %v2823, %v2822
      %v2951 = vpack.c.b16 %v2825, %v2824
      %v2952 = vpack.c.b16 %v2827, %v2826
      %v2953 = vpack.c.b16 %v2829, %v2828
      %v2954 = vpack.c.b16 %v2831, %v2830
      %v2955 = vpack.c.b16 %v2833, %v2832
      %v2956 = vpack.c.b16 %v2835, %v2834
      %v2957 = vpack.c.b16 %v2837, %v2836
      %v2958 = vpack.c.b16 %v2839, %v2838
      %v2959 = vpack.c.b16 %v2841, %v2840
      %v2960 = vpack.c.b16 %v2843, %v2842
      %v2961 = vpack.c.b16 %v2845, %v2844
      %v2962 = vpack.c.b16 %v2847, %v2846
      %v2963 = vpack.c.b16 %v2849, %v2848
      %v2964 = vpack.c.b16 %v2851, %v2850
      %v2965 = vpack.c.b16 %v2853, %v2852
      %v2966 = vpack.c.b16 %v2855, %v2854
      %v2967 = vpack.c.b16 %v2857, %v2856
      %v2968 = vpack.c.b16 %v2859, %v2858
      %v2969 = vpack.c.b16 %v2861, %v2860
      %v2970 = vpack.c.b16 %v2863, %v2862
      %v2971 = vpack.c.b16 %v2865, %v2864
      %v2972 = vpack.c.b16 %v2867, %v2866
      %v2973 = vpack.c.b16 %v2869, %v2868
      %v2974 = vpack.c.b16 %v2871, %v2870
      %v2975 = vpack.c.b16 %v2873, %v2872
      %v2976 = vpack.c.b16 %v2875, %v2874
      %v2977 = vpack.c.b16 %v2877, %v2876
      %v2978 = vpack.c.b16 %v2879, %v2878
      %v2979 = vpack.c.b16 %v2881, %v2880
      %v2980 = vpack.c.b16 %v2883, %v2882
      %v2981 = vpack.c.b16 %v2885, %v2884
      %v2982 = vpack.c.b16 %v2887, %v2886
      %v2983 = vpack.c.b16 %v2889, %v2888
      %v2984 = vpack.c.b16 %v2891, %v2890
      %v2985 = vpack.c.b16 %v2893, %v2892
      %v2986 = vpack.c.b16 %v2895, %v2894
      %v2987 = vpack.c.b16 %v2897, %v2896
      %v2988 = vpack.c.b16 %v2899, %v2898
      %v2989 = vpack.c.b16 %v2901, %v2900
      %v2990 = vpack.c.b16 %v2903, %v2902
      %v2991 = vpack.c.b16 %v2905, %v2904
      %v2992 = vpack.c.b16 %v2907, %v2906
      %v2993 = vpack.c.b16 %v2909, %v2908
      %v2994 = vpack.c.b16 %v2911, %v2910
      %v2995 = vpack.c.b16 %v2913, %v2912
      %v2996 = vpack.c.b16 %v2915, %v2914
      %v2997 = vpack.c.b16 %v2917, %v2916
      %v2998 = vpack.c.b16 %v2919, %v2918
      %v2999 = vpack.c.b16 %v2921, %v2920
      %v3000 = vpack.c.b16 %v2923, %v2922
      %v3001 = vpack.c.b16 %v2925, %v2924
      %v3002 = vpack.c.b16 %v2927, %v2926
      %v3003 = vpack.c.b16 %v2929, %v2928
      %v3004 = vpack.c.b16 %v2931, %v2930
      %v3005 = vpack.c.b16 %v2933, %v2932
      %3078 = vmatprep.subr.bf16.mxu0 0
      %3079 = vmatpush1.bf16.msra.mxu0 %v2934
      %3080 = vmatprep.subr.bf16.mxu0 0
      %3081 = vmatpush1.bf16.msra.mxu0 %v2935
      %3082 = vmatprep.subr.bf16.mxu0 0
      %3083 = vmatpush1.bf16.msra.mxu0 %v2936
      %3084 = vmatprep.subr.bf16.mxu0 0
      %3085 = vmatpush1.bf16.msra.mxu0 %v2937
      %3086 = vmatprep.subr.bf16.mxu0 0
      %3087 = vmatpush1.bf16.msra.mxu0 %v2938
      %3088 = vmatprep.subr.bf16.mxu0 0
      %3089 = vmatpush1.bf16.msra.mxu0 %v2939
      %3090 = vmatprep.subr.bf16.mxu0 0
      %3091 = vmatpush1.bf16.msra.mxu0 %v2940
      %3092 = vmatprep.subr.bf16.mxu0 0
      %3093 = vmatpush1.bf16.msra.mxu0 %v2941
      %3094 = vmatprep.subr.bf16.mxu0 0
      %3095 = vmatpush1.bf16.msra.mxu0 %v2942
      %3096 = vmatprep.subr.bf16.mxu0 0
      %3097 = vmatpush1.bf16.msra.mxu0 %v2943
      %3098 = vmatprep.subr.bf16.mxu0 0
      %3099 = vmatpush1.bf16.msra.mxu0 %v2944
      %3100 = vmatprep.subr.bf16.mxu0 0
      %3101 = vmatpush1.bf16.msra.mxu0 %v2945
      %3102 = vmatprep.subr.bf16.mxu0 0
      %3103 = vmatpush1.bf16.msra.mxu0 %v2946
      %3104 = vmatprep.subr.bf16.mxu0 0
      %3105 = vmatpush1.bf16.msra.mxu0 %v2947
      %3106 = vmatprep.subr.bf16.mxu0 0
      %3107 = vmatpush1.bf16.msra.mxu0 %v2948
      %3108 = vmatprep.subr.bf16.mxu0 0
      %3109 = vmatpush1.bf16.msra.mxu0 %v2949
      %3110 = vmatprep.mubr.bf16.mxu0 %v1239
      %3111 = vmatmul.mubr.bf16.gmra.mrb[0].mxu0 %v1222
      %v3112 = vpop.f32.mrb[0].mxu0
      %v3113 = vadd.f32 %v1208, %v3112
      %v3114 = vpop.f32.mrb[0].mxu0
      %v3115 = vpop.f32.mrb[0].mxu0
      %v3116 = vadd.f32 %v1208, %v3115
      %v3117 = vpop.f32.mrb[0].mxu0
      %3118 = vmatprep.mubr.bf16.mxu0 %v1371
      %3119 = vmatmul.mubr.bf16.gmra.mrb[0].mxu0 %v1362
      %v3120 = vpop.f32.mrb[0].mxu0
      %v3121 = vadd.f32 %v1208, %v3120
      %v3122 = vpop.f32.mrb[0].mxu0
      %v3123 = vpop.f32.mrb[0].mxu0
      %v3124 = vadd.f32 %v1208, %v3123
      %v3125 = vpop.f32.mrb[0].mxu0
      %3126 = vmatprep.mubr.bf16.mxu0 %v1431
      %3127 = vmatmul.mubr.bf16.gmra.mrb[0].mxu0 %v1422
      %v3128 = vpop.f32.mrb[0].mxu0
      %v3129 = vadd.f32 %v1208, %v3128
      %v3130 = vpop.f32.mrb[0].mxu0
      %v3131 = vpop.f32.mrb[0].mxu0
      %v3132 = vadd.f32 %v1208, %v3131
      %v3133 = vpop.f32.mrb[0].mxu0
      %3134 = vmatprep.mubr.bf16.mxu0 %v1489
      %3135 = vmatmul.mubr.bf16.gmra.mrb[0].mxu0 %v1480
      %v3136 = vpop.f32.mrb[0].mxu0
      %v3137 = vadd.f32 %v1208, %v3136
      %v3138 = vpop.f32.mrb[0].mxu0
      %v3139 = vpop.f32.mrb[0].mxu0
      %v3140 = vadd.f32 %v1208, %v3139
      %v3141 = vpop.f32.mrb[0].mxu0
      %3142 = vmatprep.mubr.bf16.mxu0 %v1547
      %3143 = vmatmul.mubr.bf16.gmra.mrb[0].mxu0 %v1538
      %v3144 = vpop.f32.mrb[0].mxu0
      %v3145 = vadd.f32 %v1208, %v3144
      %v3146 = vpop.f32.mrb[0].mxu0
      %v3147 = vpop.f32.mrb[0].mxu0
      %v3148 = vadd.f32 %v1208, %v3147
      %v3149 = vpop.f32.mrb[0].mxu0
      %3150 = vmatprep.mubr.bf16.mxu0 %v1605
      %3151 = vmatmul.mubr.bf16.gmra.mrb[0].mxu0 %v1596
      %v3152 = vpop.f32.mrb[0].mxu0
      %v3153 = vadd.f32 %v1208, %v3152
      %v3154 = vpop.f32.mrb[0].mxu0
      %v3155 = vpop.f32.mrb[0].mxu0
      %v3156 = vadd.f32 %v1208, %v3155
      %v3157 = vpop.f32.mrb[0].mxu0
      %3158 = vmatprep.mubr.bf16.mxu0 %v1663
      %3159 = vmatmul.mubr.bf16.gmra.mrb[0].mxu0 %v1654
      %v3160 = vpop.f32.mrb[0].mxu0
      %v3161 = vadd.f32 %v1208, %v3160
      %v3162 = vpop.f32.mrb[0].mxu0
      %v3163 = vpop.f32.mrb[0].mxu0
      %v3164 = vadd.f32 %v1208, %v3163
      %v3165 = vpop.f32.mrb[0].mxu0
      %3166 = vmatprep.mubr.bf16.mxu0 %v1721
      %3167 = vmatmul.mubr.bf16.gmra.mrb[0].mxu0 %v1712
      %v3168 = vpop.f32.mrb[0].mxu0
      %v3169 = vadd.f32 %v1208, %v3168
      %v3170 = vpop.f32.mrb[0].mxu0
      %v3171 = vpop.f32.mrb[0].mxu0
      %v3172 = vadd.f32 %v1208, %v3171
      %v3173 = vpop.f32.mrb[0].mxu0
      %3174 = vmatprep.mubr.bf16.mxu0 %v1779
      %3175 = vmatmul.mubr.bf16.gmra.mrb[0].mxu0 %v1770
      %v3176 = vpop.f32.mrb[0].mxu0
      %v3177 = vadd.f32 %v1208, %v3176
      %v3178 = vpop.f32.mrb[0].mxu0
      %v3179 = vpop.f32.mrb[0].mxu0
      %v3180 = vadd.f32 %v1208, %v3179
      %v3181 = vpop.f32.mrb[0].mxu0
      %3182 = vmatprep.mubr.bf16.mxu0 %v1837
      %3183 = vmatmul.mubr.bf16.gmra.mrb[0].mxu0 %v1828
      %v3184 = vpop.f32.mrb[0].mxu0
      %v3185 = vadd.f32 %v1208, %v3184
      %v3186 = vpop.f32.mrb[0].mxu0
      %v3187 = vpop.f32.mrb[0].mxu0
      %v3188 = vadd.f32 %v1208, %v3187
      %v3189 = vpop.f32.mrb[0].mxu0
      %3190 = vmatprep.mubr.bf16.mxu0 %v1895
      %3191 = vmatmul.mubr.bf16.gmra.mrb[0].mxu0 %v1886
      %v3192 = vpop.f32.mrb[0].mxu0
      %v3193 = vadd.f32 %v1208, %v3192
      %v3194 = vpop.f32.mrb[0].mxu0
      %v3195 = vpop.f32.mrb[0].mxu0
      %v3196 = vadd.f32 %v1208, %v3195
      %v3197 = vpop.f32.mrb[0].mxu0
      %3198 = vmatprep.mubr.bf16.mxu0 %v1953
      %3199 = vmatmul.mubr.bf16.gmra.mrb[0].mxu0 %v1944
      %v3200 = vpop.f32.mrb[0].mxu0
      %v3201 = vadd.f32 %v1208, %v3200
      %v3202 = vpop.f32.mrb[0].mxu0
      %v3203 = vpop.f32.mrb[0].mxu0
      %v3204 = vadd.f32 %v1208, %v3203
      %v3205 = vpop.f32.mrb[0].mxu0
      %3206 = vmatprep.mubr.bf16.mxu0 %v2011
      %3207 = vmatmul.mubr.bf16.gmra.mrb[0].mxu0 %v2002
      %v3208 = vpop.f32.mrb[0].mxu0
      %v3209 = vadd.f32 %v1208, %v3208
      %v3210 = vpop.f32.mrb[0].mxu0
      %v3211 = vpop.f32.mrb[0].mxu0
      %v3212 = vadd.f32 %v1208, %v3211
      %v3213 = vpop.f32.mrb[0].mxu0
      %3214 = vmatprep.mubr.bf16.mxu0 %v2069
      %3215 = vmatmul.mubr.bf16.gmra.mrb[0].mxu0 %v2060
      %v3216 = vpop.f32.mrb[0].mxu0
      %v3217 = vadd.f32 %v1208, %v3216
      %v3218 = vpop.f32.mrb[0].mxu0
      %v3219 = vpop.f32.mrb[0].mxu0
      %v3220 = vadd.f32 %v1208, %v3219
      %v3221 = vpop.f32.mrb[0].mxu0
      %3222 = vmatprep.mubr.bf16.mxu0 %v2127
      %3223 = vmatmul.mubr.bf16.gmra.mrb[0].mxu0 %v2118
      %v3224 = vpop.f32.mrb[0].mxu0
      %v3225 = vadd.f32 %v1208, %v3224
      %v3226 = vpop.f32.mrb[0].mxu0
      %v3227 = vpop.f32.mrb[0].mxu0
      %v3228 = vadd.f32 %v1208, %v3227
      %v3229 = vpop.f32.mrb[0].mxu0
      %3230 = vmatprep.mubr.bf16.mxu0 %v2185
      %3231 = vmatmul.mubr.bf16.gmra.mrb[0].mxu0 %v2176
      %v3232 = vpop.f32.mrb[0].mxu0
      %v3233 = vadd.f32 %v1208, %v3232
      %v3234 = vpop.f32.mrb[0].mxu0
      %v3235 = vpop.f32.mrb[0].mxu0
      %v3236 = vadd.f32 %v1208, %v3235
      %v3237 = vpop.f32.mrb[0].mxu0
      %3238 = vmatprep.mubr.bf16.mxu0 %v2243
      %3239 = vmatmul.mubr.bf16.gmra.mrb[0].mxu0 %v2234
      %v3240 = vpop.f32.mrb[0].mxu0
      %v3241 = vadd.f32 %v1208, %v3240
      %v3242 = vpop.f32.mrb[0].mxu0
      %v3243 = vpop.f32.mrb[0].mxu0
      %v3244 = vadd.f32 %v1208, %v3243
      %v3245 = vpop.f32.mrb[0].mxu0
      %3246 = vmatprep.mubr.bf16.mxu0 %v2301
      %3247 = vmatmul.mubr.bf16.gmra.mrb[0].mxu0 %v2292
      %v3248 = vpop.f32.mrb[0].mxu0
      %v3249 = vadd.f32 %v1208, %v3248
      %v3250 = vpop.f32.mrb[0].mxu0
      %v3251 = vpop.f32.mrb[0].mxu0
      %v3252 = vadd.f32 %v1208, %v3251
      %v3253 = vpop.f32.mrb[0].mxu0
      %3254 = vmatprep.mubr.bf16.mxu0 %v2359
      %3255 = vmatmul.mubr.bf16.gmra.mrb[0].mxu0 %v2350
      %v3256 = vpop.f32.mrb[0].mxu0
      %v3257 = vadd.f32 %v1208, %v3256
      %v3258 = vpop.f32.mrb[0].mxu0
      %v3259 = vpop.f32.mrb[0].mxu0
      %v3260 = vadd.f32 %v1208, %v3259
      %v3261 = vpop.f32.mrb[0].mxu0
      %3262 = vmatprep.mubr.bf16.mxu0 %v2426
      %3263 = vmatmul.mubr.bf16.gmra.mrb[0].mxu0 %v2417
      %v3264 = vpop.f32.mrb[0].mxu0
      %v3265 = vadd.f32 %v1208, %v3264
      %v3266 = vpop.f32.mrb[0].mxu0
      %v3267 = vpop.f32.mrb[0].mxu0
      %v3268 = vadd.f32 %v1208, %v3267
      %v3269 = vpop.f32.mrb[0].mxu0
      %3270 = vmatprep.mubr.bf16.mxu0 %v2425
      %3271 = vmatmul.mubr.bf16.gmra.mrb[0].mxu0 %v2416
      %v3272 = vpop.f32.mrb[0].mxu0
      %v3273 = vadd.f32 %v1208, %v3272
      %v3274 = vpop.f32.mrb[0].mxu0
      %v3275 = vpop.f32.mrb[0].mxu0
      %v3276 = vpop.f32.mrb[0].mxu0
      %3277 = vdwg.mxu0
      %3278 = vmatprep.subr.bf16.mxu0 0
      %3279 = vmatpush1.bf16.msra.mxu0 %v2950
      %3280 = vmatprep.subr.bf16.mxu0 0
      %3281 = vmatpush1.bf16.msra.mxu0 %v2951
      %3282 = vmatprep.subr.bf16.mxu0 0
      %3283 = vmatpush1.bf16.msra.mxu0 %v2952
      %3284 = vmatprep.subr.bf16.mxu0 0
      %3285 = vmatpush1.bf16.msra.mxu0 %v2953
      %3286 = vmatprep.subr.bf16.mxu0 0
      %3287 = vmatpush1.bf16.msra.mxu0 %v2954
      %3288 = vmatprep.subr.bf16.mxu0 0
      %3289 = vmatpush1.bf16.msra.mxu0 %v2955
      %3290 = vmatprep.subr.bf16.mxu0 0
      %3291 = vmatpush1.bf16.msra.mxu0 %v2956
      %3292 = vmatprep.subr.bf16.mxu0 0
      %3293 = vmatpush1.bf16.msra.mxu0 %v2957
      %3294 = vmatprep.subr.bf16.mxu0 0
      %3295 = vmatpush1.bf16.msra.mxu0 %v2958
      %3296 = vmatprep.subr.bf16.mxu0 0
      %3297 = vmatpush1.bf16.msra.mxu0 %v2959
      %3298 = vmatprep.subr.bf16.mxu0 0
      %3299 = vmatpush1.bf16.msra.mxu0 %v2960
      %3300 = vmatprep.subr.bf16.mxu0 0
      %3301 = vmatpush1.bf16.msra.mxu0 %v2961
      %3302 = vmatprep.subr.bf16.mxu0 0
      %3303 = vmatpush1.bf16.msra.mxu0 %v2962
      %3304 = vmatprep.subr.bf16.mxu0 0
      %3305 = vmatpush1.bf16.msra.mxu0 %v2963
      %3306 = vmatprep.subr.bf16.mxu0 0
      %3307 = vmatpush1.bf16.msra.mxu0 %v2964
      %3308 = vmatprep.subr.bf16.mxu0 0
      %3309 = vmatpush1.bf16.msra.mxu0 %v2965
      %3310 = vmatprep.mubr.bf16.mxu0 %v1273
      %3311 = vmatmul.mubr.bf16.gmra.mrb[0].mxu0 %v1256
      %v3312 = vpop.f32.mrb[0].mxu0
      %v3313 = vadd.f32 %v3113, %v3312
      %v3314 = vpop.f32.mrb[0].mxu0
      %v3315 = vpop.f32.mrb[0].mxu0
      %v3316 = vadd.f32 %v3116, %v3315
      %v3317 = vpop.f32.mrb[0].mxu0
      %3318 = vmatprep.mubr.bf16.mxu0 %v1381
      %3319 = vmatmul.mubr.bf16.gmra.mrb[0].mxu0 %v1372
      %v3320 = vpop.f32.mrb[0].mxu0
      %v3321 = vadd.f32 %v3121, %v3320
      %v3322 = vpop.f32.mrb[0].mxu0
      %v3323 = vpop.f32.mrb[0].mxu0
      %v3324 = vadd.f32 %v3124, %v3323
      %v3325 = vpop.f32.mrb[0].mxu0
      %3326 = vmatprep.mubr.bf16.mxu0 %v1440
      %3327 = vmatmul.mubr.bf16.gmra.mrb[0].mxu0 %v1381
      %v3328 = vpop.f32.mrb[0].mxu0
      %v3329 = vadd.f32 %v3129, %v3328
      %v3330 = vpop.f32.mrb[0].mxu0
      %v3331 = vpop.f32.mrb[0].mxu0
      %v3332 = vadd.f32 %v3132, %v3331
      %v3333 = vpop.f32.mrb[0].mxu0
      %3334 = vmatprep.mubr.bf16.mxu0 %v1498
      %3335 = vmatmul.mubr.bf16.gmra.mrb[0].mxu0 %v1440
      %v3336 = vpop.f32.mrb[0].mxu0
      %v3337 = vadd.f32 %v3137, %v3336
      %v3338 = vpop.f32.mrb[0].mxu0
      %v3339 = vpop.f32.mrb[0].mxu0
      %v3340 = vadd.f32 %v3140, %v3339
      %v3341 = vpop.f32.mrb[0].mxu0
      %3342 = vmatprep.mubr.bf16.mxu0 %v1556
      %3343 = vmatmul.mubr.bf16.gmra.mrb[0].mxu0 %v1498
      %v3344 = vpop.f32.mrb[0].mxu0
      %v3345 = vadd.f32 %v3145, %v3344
      %v3346 = vpop.f32.mrb[0].mxu0
      %v3347 = vpop.f32.mrb[0].mxu0
      %v3348 = vadd.f32 %v3148, %v3347
      %v3349 = vpop.f32.mrb[0].mxu0
      %3350 = vmatprep.mubr.bf16.mxu0 %v1614
      %3351 = vmatmul.mubr.bf16.gmra.mrb[0].mxu0 %v1556
      %v3352 = vpop.f32.mrb[0].mxu0
      %v3353 = vadd.f32 %v3153, %v3352
      %v3354 = vpop.f32.mrb[0].mxu0
      %v3355 = vpop.f32.mrb[0].mxu0
      %v3356 = vadd.f32 %v3156, %v3355
      %v3357 = vpop.f32.mrb[0].mxu0
      %3358 = vmatprep.mubr.bf16.mxu0 %v1672
      %3359 = vmatmul.mubr.bf16.gmra.mrb[0].mxu0 %v1614
      %v3360 = vpop.f32.mrb[0].mxu0
      %v3361 = vadd.f32 %v3161, %v3360
      %v3362 = vpop.f32.mrb[0].mxu0
      %v3363 = vpop.f32.mrb[0].mxu0
      %v3364 = vadd.f32 %v3164, %v3363
      %v3365 = vpop.f32.mrb[0].mxu0
      %3366 = vmatprep.mubr.bf16.mxu0 %v1730
      %3367 = vmatmul.mubr.bf16.gmra.mrb[0].mxu0 %v1672
      %v3368 = vpop.f32.mrb[0].mxu0
      %v3369 = vadd.f32 %v3169, %v3368
      %v3370 = vpop.f32.mrb[0].mxu0
      %v3371 = vpop.f32.mrb[0].mxu0
      %v3372 = vadd.f32 %v3172, %v3371
      %v3373 = vpop.f32.mrb[0].mxu0
      %3374 = vmatprep.mubr.bf16.mxu0 %v1788
      %3375 = vmatmul.mubr.bf16.gmra.mrb[0].mxu0 %v1730
      %v3376 = vpop.f32.mrb[0].mxu0
      %v3377 = vadd.f32 %v3177, %v3376
      %v3378 = vpop.f32.mrb[0].mxu0
      %v3379 = vpop.f32.mrb[0].mxu0
      %v3380 = vadd.f32 %v3180, %v3379
      %v3381 = vpop.f32.mrb[0].mxu0
      %3382 = vmatprep.mubr.bf16.mxu0 %v1846
      %3383 = vmatmul.mubr.bf16.gmra.mrb[0].mxu0 %v1788
      %v3384 = vpop.f32.mrb[0].mxu0
      %v3385 = vadd.f32 %v3185, %v3384
      %v3386 = vpop.f32.mrb[0].mxu0
      %v3387 = vpop.f32.mrb[0].mxu0
      %v3388 = vadd.f32 %v3188, %v3387
      %v3389 = vpop.f32.mrb[0].mxu0
      %3390 = vmatprep.mubr.bf16.mxu0 %v1904
      %3391 = vmatmul.mubr.bf16.gmra.mrb[0].mxu0 %v1846
      %v3392 = vpop.f32.mrb[0].mxu0
      %v3393 = vadd.f32 %v3193, %v3392
      %v3394 = vpop.f32.mrb[0].mxu0
      %v3395 = vpop.f32.mrb[0].mxu0
      %v3396 = vadd.f32 %v3196, %v3395
      %v3397 = vpop.f32.mrb[0].mxu0
      %3398 = vmatprep.mubr.bf16.mxu0 %v1962
      %3399 = vmatmul.mubr.bf16.gmra.mrb[0].mxu0 %v1904
      %v3400 = vpop.f32.mrb[0].mxu0
      %v3401 = vadd.f32 %v3201, %v3400
      %v3402 = vpop.f32.mrb[0].mxu0
      %v3403 = vpop.f32.mrb[0].mxu0
      %v3404 = vadd.f32 %v3204, %v3403
      %v3405 = vpop.f32.mrb[0].mxu0
      %3406 = vmatprep.mubr.bf16.mxu0 %v2020
      %3407 = vmatmul.mubr.bf16.gmra.mrb[0].mxu0 %v1962
      %v3408 = vpop.f32.mrb[0].mxu0
      %v3409 = vadd.f32 %v3209, %v3408
      %v3410 = vpop.f32.mrb[0].mxu0
      %v3411 = vpop.f32.mrb[0].mxu0
      %v3412 = vadd.f32 %v3212, %v3411
      %v3413 = vpop.f32.mrb[0].mxu0
      %3414 = vmatprep.mubr.bf16.mxu0 %v2078
      %3415 = vmatmul.mubr.bf16.gmra.mrb[0].mxu0 %v2020
      %v3416 = vpop.f32.mrb[0].mxu0
      %v3417 = vadd.f32 %v3217, %v3416
      %v3418 = vpop.f32.mrb[0].mxu0
      %v3419 = vpop.f32.mrb[0].mxu0
      %v3420 = vadd.f32 %v3220, %v3419
      %v3421 = vpop.f32.mrb[0].mxu0
      %3422 = vmatprep.mubr.bf16.mxu0 %v2136
      %3423 = vmatmul.mubr.bf16.gmra.mrb[0].mxu0 %v2078
      %v3424 = vpop.f32.mrb[0].mxu0
      %v3425 = vadd.f32 %v3225, %v3424
      %v3426 = vpop.f32.mrb[0].mxu0
      %v3427 = vpop.f32.mrb[0].mxu0
      %v3428 = vadd.f32 %v3228, %v3427
      %v3429 = vpop.f32.mrb[0].mxu0
      %3430 = vmatprep.mubr.bf16.mxu0 %v2194
      %3431 = vmatmul.mubr.bf16.gmra.mrb[0].mxu0 %v2136
      %v3432 = vpop.f32.mrb[0].mxu0
      %v3433 = vadd.f32 %v3233, %v3432
      %v3434 = vpop.f32.mrb[0].mxu0
      %v3435 = vpop.f32.mrb[0].mxu0
      %v3436 = vadd.f32 %v3236, %v3435
      %v3437 = vpop.f32.mrb[0].mxu0
      %3438 = vmatprep.mubr.bf16.mxu0 %v2252
      %3439 = vmatmul.mubr.bf16.gmra.mrb[0].mxu0 %v2194
      %v3440 = vpop.f32.mrb[0].mxu0
      %v3441 = vadd.f32 %v3241, %v3440
      %v3442 = vpop.f32.mrb[0].mxu0
      %v3443 = vpop.f32.mrb[0].mxu0
      %v3444 = vadd.f32 %v3244, %v3443
      %v3445 = vpop.f32.mrb[0].mxu0
      %3446 = vmatprep.mubr.bf16.mxu0 %v2310
      %3447 = vmatmul.mubr.bf16.gmra.mrb[0].mxu0 %v2252
      %v3448 = vpop.f32.mrb[0].mxu0
      %v3449 = vadd.f32 %v3249, %v3448
      %v3450 = vpop.f32.mrb[0].mxu0
      %v3451 = vpop.f32.mrb[0].mxu0
      %v3452 = vadd.f32 %v3252, %v3451
      %v3453 = vpop.f32.mrb[0].mxu0
      %3454 = vmatprep.mubr.bf16.mxu0 %v2377
      %3455 = vmatmul.mubr.bf16.gmra.mrb[0].mxu0 %v2368
      %v3456 = vpop.f32.mrb[0].mxu0
      %v3457 = vadd.f32 %v3257, %v3456
      %v3458 = vpop.f32.mrb[0].mxu0
      %v3459 = vpop.f32.mrb[0].mxu0
      %v3460 = vadd.f32 %v3260, %v3459
      %v3461 = vpop.f32.mrb[0].mxu0
      %3462 = vmatprep.mubr.bf16.mxu0 %v2444
      %3463 = vmatmul.mubr.bf16.gmra.mrb[0].mxu0 %v2435
      %v3464 = vpop.f32.mrb[0].mxu0
      %v3465 = vadd.f32 %v3265, %v3464
      %v3466 = vpop.f32.mrb[0].mxu0
      %v3467 = vpop.f32.mrb[0].mxu0
      %v3468 = vadd.f32 %v3268, %v3467
      %v3469 = vpop.f32.mrb[0].mxu0
      %3470 = vmatprep.mubr.bf16.mxu0 %v2443
      %3471 = vmatmul.mubr.bf16.gmra.mrb[0].mxu0 %v2434
      %v3472 = vpop.f32.mrb[0].mxu0
      %v3473 = vadd.f32 %v3273, %v3472
      %v3474 = vpop.f32.mrb[0].mxu0
      %v3475 = vpop.f32.mrb[0].mxu0
      %v3476 = vpop.f32.mrb[0].mxu0
      %3477 = vdwg.mxu0
      %3478 = vmatprep.subr.bf16.mxu0 0
      %3479 = vmatpush1.bf16.msra.mxu0 %v2966
      %3480 = vmatprep.subr.bf16.mxu0 0
      %3481 = vmatpush1.bf16.msra.mxu0 %v2967
      %3482 = vmatprep.subr.bf16.mxu0 0
      %3483 = vmatpush1.bf16.msra.mxu0 %v2968
      %3484 = vmatprep.subr.bf16.mxu0 0
      %3485 = vmatpush1.bf16.msra.mxu0 %v2969
      %3486 = vmatprep.subr.bf16.mxu0 0
      %3487 = vmatpush1.bf16.msra.mxu0 %v2970
      %3488 = vmatprep.subr.bf16.mxu0 0
      %3489 = vmatpush1.bf16.msra.mxu0 %v2971
      %3490 = vmatprep.subr.bf16.mxu0 0
      %3491 = vmatpush1.bf16.msra.mxu0 %v2972
      %3492 = vmatprep.subr.bf16.mxu0 0
      %3493 = vmatpush1.bf16.msra.mxu0 %v2973
      %3494 = vmatprep.subr.bf16.mxu0 0
      %3495 = vmatpush1.bf16.msra.mxu0 %v2974
      %3496 = vmatprep.subr.bf16.mxu0 0
      %3497 = vmatpush1.bf16.msra.mxu0 %v2975
      %3498 = vmatprep.subr.bf16.mxu0 0
      %3499 = vmatpush1.bf16.msra.mxu0 %v2976
      %3500 = vmatprep.subr.bf16.mxu0 0
      %3501 = vmatpush1.bf16.msra.mxu0 %v2977
      %3502 = vmatprep.subr.bf16.mxu0 0
      %3503 = vmatpush1.bf16.msra.mxu0 %v2978
      %3504 = vmatprep.subr.bf16.mxu0 0
      %3505 = vmatpush1.bf16.msra.mxu0 %v2979
      %3506 = vmatprep.subr.bf16.mxu0 0
      %3507 = vmatpush1.bf16.msra.mxu0 %v2980
      %3508 = vmatprep.subr.bf16.mxu0 0
      %3509 = vmatpush1.bf16.msra.mxu0 %v2981
      %3510 = vmatprep.mubr.bf16.mxu0 %v1307
      %3511 = vmatmul.mubr.bf16.gmra.mrb[0].mxu0 %v1290
      %v3512 = vpop.f32.mrb[0].mxu0
      %v3513 = vadd.f32 %v3313, %v3512
      %v3514 = vpop.f32.mrb[0].mxu0
      %v3515 = vpop.f32.mrb[0].mxu0
      %v3516 = vadd.f32 %v3316, %v3515
      %v3517 = vpop.f32.mrb[0].mxu0
      %3518 = vmatprep.mubr.bf16.mxu0 %v1391
      %3519 = vmatmul.mubr.bf16.gmra.mrb[0].mxu0 %v1390
      %v3520 = vpop.f32.mrb[0].mxu0
      %v3521 = vadd.f32 %v3321, %v3520
      %v3522 = vpop.f32.mrb[0].mxu0
      %v3523 = vpop.f32.mrb[0].mxu0
      %v3524 = vadd.f32 %v3324, %v3523
      %v3525 = vpop.f32.mrb[0].mxu0
      %3526 = vmatprep.mubr.bf16.mxu0 %v1400
      %3527 = vmatmul.mubr.bf16.gmra.mrb[0].mxu0 %v1449
      %v3528 = vpop.f32.mrb[0].mxu0
      %v3529 = vadd.f32 %v3329, %v3528
      %v3530 = vpop.f32.mrb[0].mxu0
      %v3531 = vpop.f32.mrb[0].mxu0
      %v3532 = vadd.f32 %v3332, %v3531
      %v3533 = vpop.f32.mrb[0].mxu0
      %3534 = vmatprep.mubr.bf16.mxu0 %v1458
      %3535 = vmatmul.mubr.bf16.gmra.mrb[0].mxu0 %v1507
      %v3536 = vpop.f32.mrb[0].mxu0
      %v3537 = vadd.f32 %v3337, %v3536
      %v3538 = vpop.f32.mrb[0].mxu0
      %v3539 = vpop.f32.mrb[0].mxu0
      %v3540 = vadd.f32 %v3340, %v3539
      %v3541 = vpop.f32.mrb[0].mxu0
      %3542 = vmatprep.mubr.bf16.mxu0 %v1516
      %3543 = vmatmul.mubr.bf16.gmra.mrb[0].mxu0 %v1565
      %v3544 = vpop.f32.mrb[0].mxu0
      %v3545 = vadd.f32 %v3345, %v3544
      %v3546 = vpop.f32.mrb[0].mxu0
      %v3547 = vpop.f32.mrb[0].mxu0
      %v3548 = vadd.f32 %v3348, %v3547
      %v3549 = vpop.f32.mrb[0].mxu0
      %3550 = vmatprep.mubr.bf16.mxu0 %v1574
      %3551 = vmatmul.mubr.bf16.gmra.mrb[0].mxu0 %v1623
      %v3552 = vpop.f32.mrb[0].mxu0
      %v3553 = vadd.f32 %v3353, %v3552
      %v3554 = vpop.f32.mrb[0].mxu0
      %v3555 = vpop.f32.mrb[0].mxu0
      %v3556 = vadd.f32 %v3356, %v3555
      %v3557 = vpop.f32.mrb[0].mxu0
      %3558 = vmatprep.mubr.bf16.mxu0 %v1632
      %3559 = vmatmul.mubr.bf16.gmra.mrb[0].mxu0 %v1681
      %v3560 = vpop.f32.mrb[0].mxu0
      %v3561 = vadd.f32 %v3361, %v3560
      %v3562 = vpop.f32.mrb[0].mxu0
      %v3563 = vpop.f32.mrb[0].mxu0
      %v3564 = vadd.f32 %v3364, %v3563
      %v3565 = vpop.f32.mrb[0].mxu0
      %3566 = vmatprep.mubr.bf16.mxu0 %v1690
      %3567 = vmatmul.mubr.bf16.gmra.mrb[0].mxu0 %v1739
      %v3568 = vpop.f32.mrb[0].mxu0
      %v3569 = vadd.f32 %v3369, %v3568
      %v3570 = vpop.f32.mrb[0].mxu0
      %v3571 = vpop.f32.mrb[0].mxu0
      %v3572 = vadd.f32 %v3372, %v3571
      %v3573 = vpop.f32.mrb[0].mxu0
      %3574 = vmatprep.mubr.bf16.mxu0 %v1748
      %3575 = vmatmul.mubr.bf16.gmra.mrb[0].mxu0 %v1797
      %v3576 = vpop.f32.mrb[0].mxu0
      %v3577 = vadd.f32 %v3377, %v3576
      %v3578 = vpop.f32.mrb[0].mxu0
      %v3579 = vpop.f32.mrb[0].mxu0
      %v3580 = vadd.f32 %v3380, %v3579
      %v3581 = vpop.f32.mrb[0].mxu0
      %3582 = vmatprep.mubr.bf16.mxu0 %v1806
      %3583 = vmatmul.mubr.bf16.gmra.mrb[0].mxu0 %v1855
      %v3584 = vpop.f32.mrb[0].mxu0
      %v3585 = vadd.f32 %v3385, %v3584
      %v3586 = vpop.f32.mrb[0].mxu0
      %v3587 = vpop.f32.mrb[0].mxu0
      %v3588 = vadd.f32 %v3388, %v3587
      %v3589 = vpop.f32.mrb[0].mxu0
      %3590 = vmatprep.mubr.bf16.mxu0 %v1864
      %3591 = vmatmul.mubr.bf16.gmra.mrb[0].mxu0 %v1913
      %v3592 = vpop.f32.mrb[0].mxu0
      %v3593 = vadd.f32 %v3393, %v3592
      %v3594 = vpop.f32.mrb[0].mxu0
      %v3595 = vpop.f32.mrb[0].mxu0
      %v3596 = vadd.f32 %v3396, %v3595
      %v3597 = vpop.f32.mrb[0].mxu0
      %3598 = vmatprep.mubr.bf16.mxu0 %v1922
      %3599 = vmatmul.mubr.bf16.gmra.mrb[0].mxu0 %v1971
      %v3600 = vpop.f32.mrb[0].mxu0
      %v3601 = vadd.f32 %v3401, %v3600
      %v3602 = vpop.f32.mrb[0].mxu0
      %v3603 = vpop.f32.mrb[0].mxu0
      %v3604 = vadd.f32 %v3404, %v3603
      %v3605 = vpop.f32.mrb[0].mxu0
      %3606 = vmatprep.mubr.bf16.mxu0 %v1980
      %3607 = vmatmul.mubr.bf16.gmra.mrb[0].mxu0 %v2029
      %v3608 = vpop.f32.mrb[0].mxu0
      %v3609 = vadd.f32 %v3409, %v3608
      %v3610 = vpop.f32.mrb[0].mxu0
      %v3611 = vpop.f32.mrb[0].mxu0
      %v3612 = vadd.f32 %v3412, %v3611
      %v3613 = vpop.f32.mrb[0].mxu0
      %3614 = vmatprep.mubr.bf16.mxu0 %v2038
      %3615 = vmatmul.mubr.bf16.gmra.mrb[0].mxu0 %v2087
      %v3616 = vpop.f32.mrb[0].mxu0
      %v3617 = vadd.f32 %v3417, %v3616
      %v3618 = vpop.f32.mrb[0].mxu0
      %v3619 = vpop.f32.mrb[0].mxu0
      %v3620 = vadd.f32 %v3420, %v3619
      %v3621 = vpop.f32.mrb[0].mxu0
      %3622 = vmatprep.mubr.bf16.mxu0 %v2096
      %3623 = vmatmul.mubr.bf16.gmra.mrb[0].mxu0 %v2145
      %v3624 = vpop.f32.mrb[0].mxu0
      %v3625 = vadd.f32 %v3425, %v3624
      %v3626 = vpop.f32.mrb[0].mxu0
      %v3627 = vpop.f32.mrb[0].mxu0
      %v3628 = vadd.f32 %v3428, %v3627
      %v3629 = vpop.f32.mrb[0].mxu0
      %3630 = vmatprep.mubr.bf16.mxu0 %v2154
      %3631 = vmatmul.mubr.bf16.gmra.mrb[0].mxu0 %v2203
      %v3632 = vpop.f32.mrb[0].mxu0
      %v3633 = vadd.f32 %v3433, %v3632
      %v3634 = vpop.f32.mrb[0].mxu0
      %v3635 = vpop.f32.mrb[0].mxu0
      %v3636 = vadd.f32 %v3436, %v3635
      %v3637 = vpop.f32.mrb[0].mxu0
      %3638 = vmatprep.mubr.bf16.mxu0 %v2212
      %3639 = vmatmul.mubr.bf16.gmra.mrb[0].mxu0 %v2261
      %v3640 = vpop.f32.mrb[0].mxu0
      %v3641 = vadd.f32 %v3441, %v3640
      %v3642 = vpop.f32.mrb[0].mxu0
      %v3643 = vpop.f32.mrb[0].mxu0
      %v3644 = vadd.f32 %v3444, %v3643
      %v3645 = vpop.f32.mrb[0].mxu0
      %3646 = vmatprep.mubr.bf16.mxu0 %v2270
      %3647 = vmatmul.mubr.bf16.gmra.mrb[0].mxu0 %v2319
      %v3648 = vpop.f32.mrb[0].mxu0
      %v3649 = vadd.f32 %v3449, %v3648
      %v3650 = vpop.f32.mrb[0].mxu0
      %v3651 = vpop.f32.mrb[0].mxu0
      %v3652 = vadd.f32 %v3452, %v3651
      %v3653 = vpop.f32.mrb[0].mxu0
      %3654 = vmatprep.mubr.bf16.mxu0 %v2328
      %3655 = vmatmul.mubr.bf16.gmra.mrb[0].mxu0 %v2386
      %v3656 = vpop.f32.mrb[0].mxu0
      %v3657 = vadd.f32 %v3457, %v3656
      %v3658 = vpop.f32.mrb[0].mxu0
      %v3659 = vpop.f32.mrb[0].mxu0
      %v3660 = vadd.f32 %v3460, %v3659
      %v3661 = vpop.f32.mrb[0].mxu0
      %3662 = vmatprep.mubr.bf16.mxu0 %v2462
      %3663 = vmatmul.mubr.bf16.gmra.mrb[0].mxu0 %v2453
      %v3664 = vpop.f32.mrb[0].mxu0
      %v3665 = vadd.f32 %v3465, %v3664
      %v3666 = vpop.f32.mrb[0].mxu0
      %v3667 = vpop.f32.mrb[0].mxu0
      %v3668 = vadd.f32 %v3468, %v3667
      %v3669 = vpop.f32.mrb[0].mxu0
      %3670 = vmatprep.mubr.bf16.mxu0 %v2461
      %3671 = vmatmul.mubr.bf16.gmra.mrb[0].mxu0 %v2452
      %v3672 = vpop.f32.mrb[0].mxu0
      %v3673 = vadd.f32 %v3473, %v3672
      %v3674 = vpop.f32.mrb[0].mxu0
      %v3675 = vpop.f32.mrb[0].mxu0
      %v3676 = vpop.f32.mrb[0].mxu0
      %3677 = vdwg.mxu0
      %3678 = vmatprep.subr.bf16.mxu0 0
      %3679 = vmatpush1.bf16.msra.mxu0 %v2982
      %3680 = vmatprep.subr.bf16.mxu0 0
      %3681 = vmatpush1.bf16.msra.mxu0 %v2983
      %3682 = vmatprep.subr.bf16.mxu0 0
      %3683 = vmatpush1.bf16.msra.mxu0 %v2984
      %3684 = vmatprep.subr.bf16.mxu0 0
      %3685 = vmatpush1.bf16.msra.mxu0 %v2985
      %3686 = vmatprep.subr.bf16.mxu0 0
      %3687 = vmatpush1.bf16.msra.mxu0 %v2986
      %3688 = vmatprep.subr.bf16.mxu0 0
      %3689 = vmatpush1.bf16.msra.mxu0 %v2987
      %3690 = vmatprep.subr.bf16.mxu0 0
      %3691 = vmatpush1.bf16.msra.mxu0 %v2988
      %3692 = vmatprep.subr.bf16.mxu0 0
      %3693 = vmatpush1.bf16.msra.mxu0 %v2989
      %3694 = vmatprep.subr.bf16.mxu0 0
      %3695 = vmatpush1.bf16.msra.mxu0 %v2990
      %3696 = vmatprep.subr.bf16.mxu0 0
      %3697 = vmatpush1.bf16.msra.mxu0 %v2991
      %3698 = vmatprep.subr.bf16.mxu0 0
      %3699 = vmatpush1.bf16.msra.mxu0 %v2992
      %3700 = vmatprep.subr.bf16.mxu0 0
      %3701 = vmatpush1.bf16.msra.mxu0 %v2993
      %3702 = vmatprep.subr.bf16.mxu0 0
      %3703 = vmatpush1.bf16.msra.mxu0 %v2994
      %3704 = vmatprep.subr.bf16.mxu0 0
      %3705 = vmatpush1.bf16.msra.mxu0 %v2995
      %3706 = vmatprep.subr.bf16.mxu0 0
      %3707 = vmatpush1.bf16.msra.mxu0 %v2996
      %3708 = vmatprep.subr.bf16.mxu0 0
      %3709 = vmatpush1.bf16.msra.mxu0 %v2997
      %3710 = vmatprep.mubr.bf16.mxu0 %v1341
      %3711 = vmatmul.mubr.bf16.gmra.mrb[0].mxu0 %v1324
      %v3712 = vpop.f32.mrb[0].mxu0
      %v3713 = vadd.f32 %v3513, %v3712
      %v3714 = vpop.f32.mrb[0].mxu0
      %v3715 = vpop.f32.mrb[0].mxu0
      %v3716 = vadd.f32 %v3516, %v3715
      %v3717 = vpop.f32.mrb[0].mxu0
      %3718 = vmatprep.mubr.bf16.mxu0 %v1409
      %3719 = vmatmul.mubr.bf16.gmra.mrb[0].mxu0 %v1400
      %v3720 = vpop.f32.mrb[0].mxu0
      %v3721 = vadd.f32 %v3521, %v3720
      %v3722 = vpop.f32.mrb[0].mxu0
      %v3723 = vpop.f32.mrb[0].mxu0
      %v3724 = vadd.f32 %v3524, %v3723
      %v3725 = vpop.f32.mrb[0].mxu0
      %3726 = vmatprep.mubr.bf16.mxu0 %v1467
      %3727 = vmatmul.mubr.bf16.gmra.mrb[0].mxu0 %v1458
      %v3728 = vpop.f32.mrb[0].mxu0
      %v3729 = vadd.f32 %v3529, %v3728
      %v3730 = vpop.f32.mrb[0].mxu0
      %v3731 = vpop.f32.mrb[0].mxu0
      %v3732 = vadd.f32 %v3532, %v3731
      %v3733 = vpop.f32.mrb[0].mxu0
      %3734 = vmatprep.mubr.bf16.mxu0 %v1525
      %3735 = vmatmul.mubr.bf16.gmra.mrb[0].mxu0 %v1516
      %v3736 = vpop.f32.mrb[0].mxu0
      %v3737 = vadd.f32 %v3537, %v3736
      %v3738 = vpop.f32.mrb[0].mxu0
      %v3739 = vpop.f32.mrb[0].mxu0
      %v3740 = vadd.f32 %v3540, %v3739
      %v3741 = vpop.f32.mrb[0].mxu0
      %3742 = vmatprep.mubr.bf16.mxu0 %v1583
      %3743 = vmatmul.mubr.bf16.gmra.mrb[0].mxu0 %v1574
      %v3744 = vpop.f32.mrb[0].mxu0
      %v3745 = vadd.f32 %v3545, %v3744
      %v3746 = vpop.f32.mrb[0].mxu0
      %v3747 = vpop.f32.mrb[0].mxu0
      %v3748 = vadd.f32 %v3548, %v3747
      %v3749 = vpop.f32.mrb[0].mxu0
      %3750 = vmatprep.mubr.bf16.mxu0 %v1641
      %3751 = vmatmul.mubr.bf16.gmra.mrb[0].mxu0 %v1632
      %v3752 = vpop.f32.mrb[0].mxu0
      %v3753 = vadd.f32 %v3553, %v3752
      %v3754 = vpop.f32.mrb[0].mxu0
      %v3755 = vpop.f32.mrb[0].mxu0
      %v3756 = vadd.f32 %v3556, %v3755
      %v3757 = vpop.f32.mrb[0].mxu0
      %3758 = vmatprep.mubr.bf16.mxu0 %v1699
      %3759 = vmatmul.mubr.bf16.gmra.mrb[0].mxu0 %v1690
      %v3760 = vpop.f32.mrb[0].mxu0
      %v3761 = vadd.f32 %v3561, %v3760
      %v3762 = vpop.f32.mrb[0].mxu0
      %v3763 = vpop.f32.mrb[0].mxu0
      %v3764 = vadd.f32 %v3564, %v3763
      %v3765 = vpop.f32.mrb[0].mxu0
      %3766 = vmatprep.mubr.bf16.mxu0 %v1757
      %3767 = vmatmul.mubr.bf16.gmra.mrb[0].mxu0 %v1748
      %v3768 = vpop.f32.mrb[0].mxu0
      %v3769 = vadd.f32 %v3569, %v3768
      %v3770 = vpop.f32.mrb[0].mxu0
      %v3771 = vpop.f32.mrb[0].mxu0
      %v3772 = vadd.f32 %v3572, %v3771
      %v3773 = vpop.f32.mrb[0].mxu0
      %3774 = vmatprep.mubr.bf16.mxu0 %v1815
      %3775 = vmatmul.mubr.bf16.gmra.mrb[0].mxu0 %v1806
      %v3776 = vpop.f32.mrb[0].mxu0
      %v3777 = vadd.f32 %v3577, %v3776
      %v3778 = vpop.f32.mrb[0].mxu0
      %v3779 = vpop.f32.mrb[0].mxu0
      %v3780 = vadd.f32 %v3580, %v3779
      %v3781 = vpop.f32.mrb[0].mxu0
      %3782 = vmatprep.mubr.bf16.mxu0 %v1873
      %3783 = vmatmul.mubr.bf16.gmra.mrb[0].mxu0 %v1864
      %v3784 = vpop.f32.mrb[0].mxu0
      %v3785 = vadd.f32 %v3585, %v3784
      %v3786 = vpop.f32.mrb[0].mxu0
      %v3787 = vpop.f32.mrb[0].mxu0
      %v3788 = vadd.f32 %v3588, %v3787
      %v3789 = vpop.f32.mrb[0].mxu0
      %3790 = vmatprep.mubr.bf16.mxu0 %v1931
      %3791 = vmatmul.mubr.bf16.gmra.mrb[0].mxu0 %v1922
      %v3792 = vpop.f32.mrb[0].mxu0
      %v3793 = vadd.f32 %v3593, %v3792
      %v3794 = vpop.f32.mrb[0].mxu0
      %v3795 = vpop.f32.mrb[0].mxu0
      %v3796 = vadd.f32 %v3596, %v3795
      %v3797 = vpop.f32.mrb[0].mxu0
      %3798 = vmatprep.mubr.bf16.mxu0 %v1989
      %3799 = vmatmul.mubr.bf16.gmra.mrb[0].mxu0 %v1980
      %v3800 = vpop.f32.mrb[0].mxu0
      %v3801 = vadd.f32 %v3601, %v3800
      %v3802 = vpop.f32.mrb[0].mxu0
      %v3803 = vpop.f32.mrb[0].mxu0
      %v3804 = vadd.f32 %v3604, %v3803
      %v3805 = vpop.f32.mrb[0].mxu0
      %3806 = vmatprep.mubr.bf16.mxu0 %v2047
      %3807 = vmatmul.mubr.bf16.gmra.mrb[0].mxu0 %v2038
      %v3808 = vpop.f32.mrb[0].mxu0
      %v3809 = vadd.f32 %v3609, %v3808
      %v3810 = vpop.f32.mrb[0].mxu0
      %v3811 = vpop.f32.mrb[0].mxu0
      %v3812 = vadd.f32 %v3612, %v3811
      %v3813 = vpop.f32.mrb[0].mxu0
      %3814 = vmatprep.mubr.bf16.mxu0 %v2105
      %3815 = vmatmul.mubr.bf16.gmra.mrb[0].mxu0 %v2096
      %v3816 = vpop.f32.mrb[0].mxu0
      %v3817 = vadd.f32 %v3617, %v3816
      %v3818 = vpop.f32.mrb[0].mxu0
      %v3819 = vpop.f32.mrb[0].mxu0
      %v3820 = vadd.f32 %v3620, %v3819
      %v3821 = vpop.f32.mrb[0].mxu0
      %3822 = vmatprep.mubr.bf16.mxu0 %v2163
      %3823 = vmatmul.mubr.bf16.gmra.mrb[0].mxu0 %v2154
      %v3824 = vpop.f32.mrb[0].mxu0
      %v3825 = vadd.f32 %v3625, %v3824
      %v3826 = vpop.f32.mrb[0].mxu0
      %v3827 = vpop.f32.mrb[0].mxu0
      %v3828 = vadd.f32 %v3628, %v3827
      %v3829 = vpop.f32.mrb[0].mxu0
      %3830 = vmatprep.mubr.bf16.mxu0 %v2221
      %3831 = vmatmul.mubr.bf16.gmra.mrb[0].mxu0 %v2212
      %v3832 = vpop.f32.mrb[0].mxu0
      %v3833 = vadd.f32 %v3633, %v3832
      %v3834 = vpop.f32.mrb[0].mxu0
      %v3835 = vpop.f32.mrb[0].mxu0
      %v3836 = vadd.f32 %v3636, %v3835
      %v3837 = vpop.f32.mrb[0].mxu0
      %3838 = vmatprep.mubr.bf16.mxu0 %v2279
      %3839 = vmatmul.mubr.bf16.gmra.mrb[0].mxu0 %v2270
      %v3840 = vpop.f32.mrb[0].mxu0
      %v3841 = vadd.f32 %v3641, %v3840
      %v3842 = vpop.f32.mrb[0].mxu0
      %v3843 = vpop.f32.mrb[0].mxu0
      %v3844 = vadd.f32 %v3644, %v3843
      %v3845 = vpop.f32.mrb[0].mxu0
      %3846 = vmatprep.mubr.bf16.mxu0 %v2337
      %3847 = vmatmul.mubr.bf16.gmra.mrb[0].mxu0 %v2328
      %v3848 = vpop.f32.mrb[0].mxu0
      %v3849 = vadd.f32 %v3649, %v3848
      %v3850 = vpop.f32.mrb[0].mxu0
      %v3851 = vpop.f32.mrb[0].mxu0
      %v3852 = vadd.f32 %v3652, %v3851
      %v3853 = vpop.f32.mrb[0].mxu0
      %3854 = vmatprep.mubr.bf16.mxu0 %v2404
      %3855 = vmatmul.mubr.bf16.gmra.mrb[0].mxu0 %v2395
      %v3856 = vpop.f32.mrb[0].mxu0
      %v3857 = vadd.f32 %v3657, %v3856
      %v3858 = vpop.f32.mrb[0].mxu0
      %v3859 = vpop.f32.mrb[0].mxu0
      %v3860 = vadd.f32 %v3660, %v3859
      %v3861 = vpop.f32.mrb[0].mxu0
      %3862 = vmatprep.mubr.bf16.mxu0 %v2480
      %3863 = vmatmul.mubr.bf16.gmra.mrb[0].mxu0 %v2471
      %v3864 = vpop.f32.mrb[0].mxu0
      %v3865 = vadd.f32 %v3665, %v3864
      %v3866 = vpop.f32.mrb[0].mxu0
      %v3867 = vpop.f32.mrb[0].mxu0
      %v3868 = vadd.f32 %v3668, %v3867
      %v3869 = vpop.f32.mrb[0].mxu0
      %3870 = vmatprep.mubr.bf16.mxu0 %v2479
      %3871 = vmatmul.mubr.bf16.gmra.mrb[0].mxu0 %v2470
      %v3872 = vpop.f32.mrb[0].mxu0
      %v3873 = vadd.f32 %v3673, %v3872
      %v3874 = vpop.f32.mrb[0].mxu0
      %v3875 = vpop.f32.mrb[0].mxu0
      %v3876 = vpop.f32.mrb[0].mxu0
      %3877 = vdwg.mxu0
      %3878 = vmatprep.subr.bf16.mxu0 0
      %3879 = vmatpush1.bf16.msra.mxu0 %v2998
      %3880 = vmatprep.subr.bf16.mxu0 0
      %3881 = vmatpush1.bf16.msra.mxu0 %v2999
      %3882 = vmatprep.subr.bf16.mxu0 0
      %3883 = vmatpush1.bf16.msra.mxu0 %v3000
      %3884 = vmatprep.subr.bf16.mxu0 0
      %3885 = vmatpush1.bf16.msra.mxu0 %v3001
      %3886 = vmatprep.subr.bf16.mxu0 0
      %3887 = vmatpush1.bf16.msra.mxu0 %v3002
      %3888 = vmatprep.subr.bf16.mxu0 0
      %3889 = vmatpush1.bf16.msra.mxu0 %v3003
      %3890 = vmatprep.subr.bf16.mxu0 0
      %3891 = vmatpush1.bf16.msra.mxu0 %v3004
      %3892 = vmatprep.subr.bf16.mxu0 0
      %3893 = vmatpush1.bf16.msra.mxu0 %v3005
      %3894 = vmatprep.subr.bf16.mxu0 0
      %3895 = vmatpush1.bf16.msra.mxu0 0
      %3896 = vmatprep.subr.bf16.mxu0 0
      %3897 = vmatpush1.bf16.msra.mxu0 0
      %3898 = vmatprep.subr.bf16.mxu0 0
      %3899 = vmatpush1.bf16.msra.mxu0 0
      %3900 = vmatprep.subr.bf16.mxu0 0
      %3901 = vmatpush1.bf16.msra.mxu0 0
      %3902 = vmatprep.subr.bf16.mxu0 0
      %3903 = vmatpush1.bf16.msra.mxu0 0
      %3904 = vmatprep.subr.bf16.mxu0 0
      %3905 = vmatpush1.bf16.msra.mxu0 0
      %3906 = vmatprep.subr.bf16.mxu0 0
      %3907 = vmatpush1.bf16.msra.mxu0 0
      %3908 = vmatprep.subr.bf16.mxu0 0
      %3909 = vmatpush1.bf16.msra.mxu0 0
      %3910 = vmatprep.mubr.bf16.mxu0 0
      %3911 = vmatmul.mubr.bf16.gmra.mrb[0].mxu0 %v1358
      %v3912 = vpop.f32.mrb[0].mxu0
      %v3913 = vadd.f32 %v3713, %v3912
      %v3914 = vpop.f32.mrb[0].mxu0
      %v3915 = vpop.f32.mrb[0].mxu0
      %v3916 = vadd.f32 %v3716, %v3915
      %v3917 = vpop.f32.mrb[0].mxu0
      %3918 = vmatprep.mubr.bf16.mxu0 0
      %3919 = vmatmul.mubr.bf16.gmra.mrb[0].mxu0 %v1418
      %v3920 = vpop.f32.mrb[0].mxu0
      %v3921 = vadd.f32 %v3721, %v3920
      %v3922 = vpop.f32.mrb[0].mxu0
      %v3923 = vpop.f32.mrb[0].mxu0
      %v3924 = vadd.f32 %v3724, %v3923
      %v3925 = vpop.f32.mrb[0].mxu0
      %3926 = vmatprep.mubr.bf16.mxu0 0
      %3927 = vmatmul.mubr.bf16.gmra.mrb[0].mxu0 %v1476
      %v3928 = vpop.f32.mrb[0].mxu0
      %v3929 = vadd.f32 %v3729, %v3928
      %v3930 = vpop.f32.mrb[0].mxu0
      %v3931 = vpop.f32.mrb[0].mxu0
      %v3932 = vadd.f32 %v3732, %v3931
      %v3933 = vpop.f32.mrb[0].mxu0
      %3934 = vmatprep.mubr.bf16.mxu0 0
      %3935 = vmatmul.mubr.bf16.gmra.mrb[0].mxu0 %v1534
      %v3936 = vpop.f32.mrb[0].mxu0
      %v3937 = vadd.f32 %v3737, %v3936
      %v3938 = vpop.f32.mrb[0].mxu0
      %v3939 = vpop.f32.mrb[0].mxu0
      %v3940 = vadd.f32 %v3740, %v3939
      %v3941 = vpop.f32.mrb[0].mxu0
      %3942 = vmatprep.mubr.bf16.mxu0 0
      %3943 = vmatmul.mubr.bf16.gmra.mrb[0].mxu0 %v1592
      %v3944 = vpop.f32.mrb[0].mxu0
      %v3945 = vadd.f32 %v3745, %v3944
      %v3946 = vpop.f32.mrb[0].mxu0
      %v3947 = vpop.f32.mrb[0].mxu0
      %v3948 = vadd.f32 %v3748, %v3947
      %v3949 = vpop.f32.mrb[0].mxu0
      %3950 = vmatprep.mubr.bf16.mxu0 0
      %3951 = vmatmul.mubr.bf16.gmra.mrb[0].mxu0 %v1650
      %v3952 = vpop.f32.mrb[0].mxu0
      %v3953 = vadd.f32 %v3753, %v3952
      %v3954 = vpop.f32.mrb[0].mxu0
      %v3955 = vpop.f32.mrb[0].mxu0
      %v3956 = vadd.f32 %v3756, %v3955
      %v3957 = vpop.f32.mrb[0].mxu0
      %3958 = vmatprep.mubr.bf16.mxu0 0
      %3959 = vmatmul.mubr.bf16.gmra.mrb[0].mxu0 %v1708
      %v3960 = vpop.f32.mrb[0].mxu0
      %v3961 = vadd.f32 %v3761, %v3960
      %v3962 = vpop.f32.mrb[0].mxu0
      %v3963 = vpop.f32.mrb[0].mxu0
      %v3964 = vadd.f32 %v3764, %v3963
      %v3965 = vpop.f32.mrb[0].mxu0
      %3966 = vmatprep.mubr.bf16.mxu0 0
      %3967 = vmatmul.mubr.bf16.gmra.mrb[0].mxu0 %v1766
      %v3968 = vpop.f32.mrb[0].mxu0
      %v3969 = vadd.f32 %v3769, %v3968
      %v3970 = vpop.f32.mrb[0].mxu0
      %v3971 = vpop.f32.mrb[0].mxu0
      %v3972 = vadd.f32 %v3772, %v3971
      %v3973 = vpop.f32.mrb[0].mxu0
      %3974 = vmatprep.mubr.bf16.mxu0 0
      %3975 = vmatmul.mubr.bf16.gmra.mrb[0].mxu0 %v1824
      %v3976 = vpop.f32.mrb[0].mxu0
      %v3977 = vadd.f32 %v3777, %v3976
      %v3978 = vpop.f32.mrb[0].mxu0
      %v3979 = vpop.f32.mrb[0].mxu0
      %v3980 = vadd.f32 %v3780, %v3979
      %v3981 = vpop.f32.mrb[0].mxu0
      %3982 = vmatprep.mubr.bf16.mxu0 0
      %3983 = vmatmul.mubr.bf16.gmra.mrb[0].mxu0 %v1882
      %v3984 = vpop.f32.mrb[0].mxu0
      %v3985 = vadd.f32 %v3785, %v3984
      %v3986 = vpop.f32.mrb[0].mxu0
      %v3987 = vpop.f32.mrb[0].mxu0
      %v3988 = vadd.f32 %v3788, %v3987
      %v3989 = vpop.f32.mrb[0].mxu0
      %3990 = vmatprep.mubr.bf16.mxu0 0
      %3991 = vmatmul.mubr.bf16.gmra.mrb[0].mxu0 %v1940
      %v3992 = vpop.f32.mrb[0].mxu0
      %v3993 = vadd.f32 %v3793, %v3992
      %v3994 = vpop.f32.mrb[0].mxu0
      %v3995 = vpop.f32.mrb[0].mxu0
      %v3996 = vadd.f32 %v3796, %v3995
      %v3997 = vpop.f32.mrb[0].mxu0
      %3998 = vmatprep.mubr.bf16.mxu0 0
      %3999 = vmatmul.mubr.bf16.gmra.mrb[0].mxu0 %v1998
      %v4000 = vpop.f32.mrb[0].mxu0
      %v4001 = vadd.f32 %v3801, %v4000
      %v4002 = vpop.f32.mrb[0].mxu0
      %v4003 = vpop.f32.mrb[0].mxu0
      %v4004 = vadd.f32 %v3804, %v4003
      %v4005 = vpop.f32.mrb[0].mxu0
      %4006 = vmatprep.mubr.bf16.mxu0 0
      %4007 = vmatmul.mubr.bf16.gmra.mrb[0].mxu0 %v2056
      %v4008 = vpop.f32.mrb[0].mxu0
      %v4009 = vadd.f32 %v3809, %v4008
      %v4010 = vpop.f32.mrb[0].mxu0
      %v4011 = vpop.f32.mrb[0].mxu0
      %v4012 = vadd.f32 %v3812, %v4011
      %v4013 = vpop.f32.mrb[0].mxu0
      %4014 = vmatprep.mubr.bf16.mxu0 0
      %4015 = vmatmul.mubr.bf16.gmra.mrb[0].mxu0 %v2114
      %v4016 = vpop.f32.mrb[0].mxu0
      %v4017 = vadd.f32 %v3817, %v4016
      %v4018 = vpop.f32.mrb[0].mxu0
      %v4019 = vpop.f32.mrb[0].mxu0
      %v4020 = vadd.f32 %v3820, %v4019
      %v4021 = vpop.f32.mrb[0].mxu0
      %4022 = vmatprep.mubr.bf16.mxu0 0
      %4023 = vmatmul.mubr.bf16.gmra.mrb[0].mxu0 %v2172
      %v4024 = vpop.f32.mrb[0].mxu0
      %v4025 = vadd.f32 %v3825, %v4024
      %v4026 = vpop.f32.mrb[0].mxu0
      %v4027 = vpop.f32.mrb[0].mxu0
      %v4028 = vadd.f32 %v3828, %v4027
      %v4029 = vpop.f32.mrb[0].mxu0
      %4030 = vmatprep.mubr.bf16.mxu0 0
      %4031 = vmatmul.mubr.bf16.gmra.mrb[0].mxu0 %v2230
      %v4032 = vpop.f32.mrb[0].mxu0
      %v4033 = vadd.f32 %v3833, %v4032
      %v4034 = vpop.f32.mrb[0].mxu0
      %v4035 = vpop.f32.mrb[0].mxu0
      %v4036 = vadd.f32 %v3836, %v4035
      %v4037 = vpop.f32.mrb[0].mxu0
      %4038 = vmatprep.mubr.bf16.mxu0 0
      %4039 = vmatmul.mubr.bf16.gmra.mrb[0].mxu0 %v2288
      %v4040 = vpop.f32.mrb[0].mxu0
      %v4041 = vadd.f32 %v3841, %v4040
      %v4042 = vpop.f32.mrb[0].mxu0
      %v4043 = vpop.f32.mrb[0].mxu0
      %v4044 = vadd.f32 %v3844, %v4043
      %v4045 = vpop.f32.mrb[0].mxu0
      %4046 = vmatprep.mubr.bf16.mxu0 0
      %4047 = vmatmul.mubr.bf16.gmra.mrb[0].mxu0 %v2346
      %v4048 = vpop.f32.mrb[0].mxu0
      %v4049 = vadd.f32 %v3849, %v4048
      %v4050 = vpop.f32.mrb[0].mxu0
      %v4051 = vpop.f32.mrb[0].mxu0
      %v4052 = vadd.f32 %v3852, %v4051
      %v4053 = vpop.f32.mrb[0].mxu0
      %4054 = vmatprep.mubr.bf16.mxu0 0
      %4055 = vmatmul.mubr.bf16.gmra.mrb[0].mxu0 %v2413
      %v4056 = vpop.f32.mrb[0].mxu0
      %v4057 = vadd.f32 %v3857, %v4056
      %v4058 = vpop.f32.mrb[0].mxu0
      %v4059 = vpop.f32.mrb[0].mxu0
      %v4060 = vadd.f32 %v3860, %v4059
      %v4061 = vpop.f32.mrb[0].mxu0
      %4062 = vmatprep.mubr.bf16.mxu0 0
      %4063 = vmatmul.mubr.bf16.gmra.mrb[0].mxu0 %v2489
      %v4064 = vpop.f32.mrb[0].mxu0
      %v4065 = vadd.f32 %v3865, %v4064
      %v4066 = vpop.f32.mrb[0].mxu0
      %v4067 = vpop.f32.mrb[0].mxu0
      %v4068 = vadd.f32 %v3868, %v4067
      %v4069 = vpop.f32.mrb[0].mxu0
      %4070 = vmatprep.mubr.bf16.mxu0 0
      %4071 = vmatmul.mubr.bf16.gmra.mrb[0].mxu0 %v2488
      %v4072 = vpop.f32.mrb[0].mxu0
      %v4073 = vadd.f32 %v3873, %v4072
      %v4074 = vpop.f32.mrb[0].mxu0
      %v4075 = vpop.f32.mrb[0].mxu0
      %v4076 = vpop.f32.mrb[0].mxu0
      %4077 = vdwg.mxu0
      %v4078 = vmax.f32 %v3913, 0.0
      %v4079 = vmax.f32 %v3916, 0.0
      %v4080 = vmax.f32 %v3921, 0.0
      %v4081 = vmax.f32 %v3924, 0.0
      %v4082 = vmax.f32 %v3929, 0.0
      %v4083 = vmax.f32 %v3932, 0.0
      %v4084 = vmax.f32 %v3937, 0.0
      %v4085 = vmax.f32 %v3940, 0.0
      %v4086 = vmax.f32 %v3945, 0.0
      %v4087 = vmax.f32 %v3948, 0.0
      %v4088 = vmax.f32 %v3953, 0.0
      %v4089 = vmax.f32 %v3956, 0.0
      %v4090 = vmax.f32 %v3961, 0.0
      %v4091 = vmax.f32 %v3964, 0.0
      %v4092 = vmax.f32 %v3969, 0.0
      %v4093 = vmax.f32 %v3972, 0.0
      %v4094 = vmax.f32 %v3977, 0.0
      %v4095 = vmax.f32 %v3980, 0.0
      %v4096 = vmax.f32 %v3985, 0.0
      %v4097 = vmax.f32 %v3988, 0.0
      %v4098 = vmax.f32 %v3993, 0.0
      %v4099 = vmax.f32 %v3996, 0.0
      %v4100 = vmax.f32 %v4001, 0.0
      %v4101 = vmax.f32 %v4004, 0.0
      %v4102 = vmax.f32 %v4009, 0.0
      %v4103 = vmax.f32 %v4012, 0.0
      %v4104 = vmax.f32 %v4017, 0.0
      %v4105 = vmax.f32 %v4020, 0.0
      %v4106 = vmax.f32 %v4025, 0.0
      %v4107 = vmax.f32 %v4028, 0.0
      %v4108 = vmax.f32 %v4033, 0.0
      %v4109 = vmax.f32 %v4036, 0.0
      %v4110 = vmax.f32 %v4041, 0.0
      %v4111 = vmax.f32 %v4044, 0.0
      %v4112 = vmax.f32 %v4049, 0.0
      %v4113 = vmax.f32 %v4052, 0.0
      %v4114 = vmax.f32 %v4057, 0.0
      %v4115 = vmax.f32 %v4060, 0.0
      %v4116 = vmax.f32 %v4065, 0.0
      %v4117 = vmax.f32 %v4068, 0.0
      %v4118 = vmax.f32 %v4073, 0.0
      %v4119 = vpack.c.bf16 %v4079, %v4078
      %v4120 = vpack.c.bf16 %v4081, %v4080
      %v4121 = vpack.c.bf16 %v4083, %v4082
      %v4122 = vpack.c.bf16 %v4085, %v4084
      %v4123 = vpack.c.bf16 %v4087, %v4086
      %v4124 = vpack.c.bf16 %v4089, %v4088
      %v4125 = vpack.c.bf16 %v4091, %v4090
      %v4126 = vpack.c.bf16 %v4093, %v4092
      %v4127 = vpack.c.bf16 %v4095, %v4094
      %v4128 = vpack.c.bf16 %v4097, %v4096
      %v4129 = vpack.c.bf16 %v4099, %v4098
      %v4130 = vpack.c.bf16 %v4101, %v4100
      %v4131 = vpack.c.bf16 %v4103, %v4102
      %v4132 = vpack.c.bf16 %v4105, %v4104
      %v4133 = vpack.c.bf16 %v4107, %v4106
      %v4134 = vpack.c.bf16 %v4109, %v4108
      %v4135 = vpack.c.bf16 %v4111, %v4110
      %v4136 = vpack.c.bf16 %v4113, %v4112
      %v4137 = vpack.c.bf16 %v4115, %v4114
      %v4138 = vpack.c.bf16 %v4117, %v4116
      %v4139 = vpack.c.bf16 %v4118, %v4118
      %v4140 = vld [vmem:[%s1] sm:$0xf]
      %v4141 = vld [vmem:[%s1 + $0x4] sm:$0xf]
      %v4142 = vld [vmem:[%s1 + $0x8] sm:$0xf]
      %v4143 = vld [vmem:[%s1 + $0xc] sm:$0xf]
      %v4144 = vld [vmem:[%s1 + $0x10] sm:$0xf]
      %v4145 = vld [vmem:[%s1 + $0x14] sm:$0xf]
      %v4146 = vld [vmem:[%s1 + $0x18] sm:$0xf]
      %v4147 = vld [vmem:[%s1 + $0x1c] sm:$0xf]
      %v4148 = vld [vmem:[%s1 + $0x20] sm:$0xf]
      %v4149 = vld [vmem:[%s1 + $0x24] sm:$0xf]
      %v4150 = vld [vmem:[%s1 + $0x28] sm:$0xf]
      %v4151 = vld [vmem:[%s1 + $0x2c] sm:$0xf]
      %v4152 = vld [vmem:[%s1 + $0x30] sm:$0xf]
      %v4153 = vld [vmem:[%s1 + $0x34] sm:$0xf]
      %v4154 = vld [vmem:[%s1 + $0x38] sm:$0xf]
      %v4155 = vld [vmem:[%s1 + $0x3c] sm:$0xf]
      %v4156 = vld [vmem:[%s1 + $0x40] sm:$0xf]
      %v4157 = vld [vmem:[%s1 + $0x44] sm:$0xf]
      %v4158 = vld [vmem:[%s1 + $0x48] sm:$0xf]
      %v4159 = vld [vmem:[%s1 + $0x4c] sm:$0xf]
      %v4160 = vld [vmem:[%s1 + $0x50] sm:$0xf]
      %v4161 = vld [vmem:[%s1 + $0x54] sm:$0xf]
      %v4162 = vld [vmem:[%s1 + $0x58] sm:$0xf]
      %v4163 = vld [vmem:[%s1 + $0x5c] sm:$0xf]
      %v4164 = vld [vmem:[%s1 + $0x60] sm:$0xf]
      %v4165 = vld [vmem:[%s1 + $0x64] sm:$0xf]
      %v4166 = vld [vmem:[%s1 + $0x68] sm:$0xf]
      %v4167 = vld [vmem:[%s1 + $0x6c] sm:$0xf]
      %v4168 = vld [vmem:[%s1 + $0x70] sm:$0xf]
      %v4169 = vld [vmem:[%s1 + $0x74] sm:$0xf]
      %v4170 = vld [vmem:[%s1 + $0x78] sm:$0xf]
      %v4171 = vld [vmem:[%s1 + $0x7c] sm:$0xf]
      %v4172 = vld [vmem:[%s1 + $0x80] sm:$0xf]
      %v4173 = vld [vmem:[%s1 + $0x84] sm:$0xf]
      %v4174 = vld [vmem:[%s1 + $0x88] sm:$0xf]
      %v4175 = vld [vmem:[%s1 + $0x8c] sm:$0xf]
      %v4176 = vld [vmem:[%s1 + $0x90] sm:$0xf]
      %v4177 = vld [vmem:[%s1 + $0x94] sm:$0xf]
      %v4178 = vld [vmem:[%s1 + $0x98] sm:$0xf]
      %v4179 = vld [vmem:[%s1 + $0x9c] sm:$0xf]
      %v4180 = vld [vmem:[%s1 + $0xa0] sm:$0x3]
      %v4222 = vunpack.c.l.b16 %v4140
      %v4223 = vunpack.c.l.b16 %v4141
      %v4224 = vunpack.c.l.b16 %v4142
      %v4225 = vunpack.c.l.b16 %v4143
      %v4226 = vunpack.c.l.b16 %v4144
      %v4227 = vunpack.c.l.b16 %v4145
      %v4228 = vunpack.c.l.b16 %v4146
      %v4229 = vunpack.c.l.b16 %v4147
      %v4230 = vunpack.c.l.b16 %v4148
      %v4231 = vunpack.c.l.b16 %v4149
      %v4232 = vunpack.c.l.b16 %v4150
      %v4233 = vunpack.c.l.b16 %v4151
      %v4234 = vunpack.c.l.b16 %v4152
      %v4235 = vunpack.c.l.b16 %v4153
      %v4236 = vunpack.c.l.b16 %v4154
      %v4237 = vunpack.c.l.b16 %v4155
      %v4238 = vunpack.c.l.b16 %v4156
      %v4239 = vunpack.c.l.b16 %v4157
      %v4240 = vunpack.c.l.b16 %v4158
      %v4241 = vunpack.c.l.b16 %v4159
      %v4242 = vunpack.c.l.b16 %v4160
      %v4243 = vunpack.c.l.b16 %v4161
      %v4244 = vunpack.c.l.b16 %v4162
      %v4245 = vunpack.c.l.b16 %v4163
      %v4246 = vunpack.c.l.b16 %v4164
      %v4247 = vunpack.c.l.b16 %v4165
      %v4248 = vunpack.c.l.b16 %v4166
      %v4249 = vunpack.c.l.b16 %v4167
      %v4250 = vunpack.c.l.b16 %v4168
      %v4251 = vunpack.c.l.b16 %v4169
      %v4252 = vunpack.c.l.b16 %v4170
      %v4253 = vunpack.c.l.b16 %v4171
      %v4254 = vunpack.c.l.b16 %v4172
      %v4255 = vunpack.c.l.b16 %v4173
      %v4256 = vunpack.c.l.b16 %v4174
      %v4257 = vunpack.c.l.b16 %v4175
      %v4258 = vunpack.c.l.b16 %v4176
      %v4259 = vunpack.c.l.b16 %v4177
      %v4260 = vunpack.c.l.b16 %v4178
      %v4261 = vunpack.c.l.b16 %v4179
      %v4262 = vunpack.c.l.b16 %v4180
      %v4263 = vpack.c.b16 %v4223, %v4222
      %v4264 = vpack.c.b16 %v4225, %v4224
      %v4265 = vpack.c.b16 %v4227, %v4226
      %v4266 = vpack.c.b16 %v4229, %v4228
      %v4267 = vpack.c.b16 %v4231, %v4230
      %v4268 = vpack.c.b16 %v4233, %v4232
      %v4269 = vpack.c.b16 %v4235, %v4234
      %v4270 = vpack.c.b16 %v4237, %v4236
      %v4271 = vpack.c.b16 %v4239, %v4238
      %v4272 = vpack.c.b16 %v4241, %v4240
      %v4273 = vpack.c.b16 %v4243, %v4242
      %v4274 = vpack.c.b16 %v4245, %v4244
      %v4275 = vpack.c.b16 %v4247, %v4246
      %v4276 = vpack.c.b16 %v4249, %v4248
      %v4277 = vpack.c.b16 %v4251, %v4250
      %v4278 = vpack.c.b16 %v4253, %v4252
      %v4279 = vpack.c.b16 %v4255, %v4254
      %v4280 = vpack.c.b16 %v4257, %v4256
      %v4281 = vpack.c.b16 %v4259, %v4258
      %v4282 = vpack.c.b16 %v4261, %v4260
      %v4283 = vpack.c.b16 %v4262, %v4262
      %v4305 = vmul.bf16 %v4119, %v4263
      %v4306 = vmul.bf16 %v4120, %v4264
      %v4307 = vmul.bf16 %v4121, %v4265
      %v4308 = vmul.bf16 %v4122, %v4266
      %v4309 = vmul.bf16 %v4123, %v4267
      %v4310 = vmul.bf16 %v4124, %v4268
      %v4311 = vmul.bf16 %v4125, %v4269
      %v4312 = vmul.bf16 %v4126, %v4270
      %v4313 = vmul.bf16 %v4127, %v4271
      %v4314 = vmul.bf16 %v4128, %v4272
      %v4315 = vmul.bf16 %v4129, %v4273
      %v4316 = vmul.bf16 %v4130, %v4274
      %v4317 = vmul.bf16 %v4131, %v4275
      %v4318 = vmul.bf16 %v4132, %v4276
      %v4319 = vmul.bf16 %v4133, %v4277
      %v4320 = vmul.bf16 %v4134, %v4278
      %v4321 = vmul.bf16 %v4135, %v4279
      %v4322 = vmul.bf16 %v4136, %v4280
      %v4323 = vmul.bf16 %v4137, %v4281
      %v4324 = vmul.bf16 %v4138, %v4282
      %v4325 = vmul.bf16 %v4139, %v4283
      %4326 = vst [vmem:[#allocation2] sm:$0xf] 0
      %4327 = vst [vmem:[#allocation2 + $0x4] sm:$0xf] 0
      %4328 = vst [vmem:[#allocation2 + $0x8] sm:$0xf] 0
      %4329 = vst [vmem:[#allocation2 + $0xac] sm:$0xc] 0
      %4330 = vst [vmem:[#allocation2 + $0xb0] sm:$0xf] 0
      %4331 = vst [vmem:[#allocation2 + $0xb4] sm:$0xf] 0
      %4332 = vst [vmem:[#allocation2 + $0xb8] sm:$0x3] 0
      %v4354 = vunpack.c.l.b16 %v4305
      %v4355 = vunpack.c.h.b16 %v4305
      %v4356 = vunpack.c.l.b16 %v4306
      %v4357 = vunpack.c.h.b16 %v4306
      %v4358 = vunpack.c.l.b16 %v4307
      %v4359 = vunpack.c.h.b16 %v4307
      %v4360 = vunpack.c.l.b16 %v4308
      %v4361 = vunpack.c.h.b16 %v4308
      %v4362 = vunpack.c.l.b16 %v4309
      %v4363 = vunpack.c.h.b16 %v4309
      %v4364 = vunpack.c.l.b16 %v4310
      %v4365 = vunpack.c.h.b16 %v4310
      %v4366 = vunpack.c.l.b16 %v4311
      %v4367 = vunpack.c.h.b16 %v4311
      %v4368 = vunpack.c.l.b16 %v4312
      %v4369 = vunpack.c.h.b16 %v4312
      %v4370 = vunpack.c.l.b16 %v4313
      %v4371 = vunpack.c.h.b16 %v4313
      %v4372 = vunpack.c.l.b16 %v4314
      %v4373 = vunpack.c.h.b16 %v4314
      %v4374 = vunpack.c.l.b16 %v4315
      %v4375 = vunpack.c.h.b16 %v4315
      %v4376 = vunpack.c.l.b16 %v4316
      %v4377 = vunpack.c.h.b16 %v4316
      %v4378 = vunpack.c.l.b16 %v4317
      %v4379 = vunpack.c.h.b16 %v4317
      %v4380 = vunpack.c.l.b16 %v4318
      %v4381 = vunpack.c.h.b16 %v4318
      %v4382 = vunpack.c.l.b16 %v4319
      %v4383 = vunpack.c.h.b16 %v4319
      %v4384 = vunpack.c.l.b16 %v4320
      %v4385 = vunpack.c.h.b16 %v4320
      %v4386 = vunpack.c.l.b16 %v4321
      %v4387 = vunpack.c.h.b16 %v4321
      %v4388 = vunpack.c.l.b16 %v4322
      %v4389 = vunpack.c.h.b16 %v4322
      %v4390 = vunpack.c.l.b16 %v4323
      %v4391 = vunpack.c.h.b16 %v4323
      %v4392 = vunpack.c.l.b16 %v4324
      %v4393 = vunpack.c.h.b16 %v4324
      %v4394 = vunpack.c.l.b16 %v4325
      %v4395 = vpack.c.b16 %v4354, %v4354
      %v4396 = vpack.c.b16 %v4355, %v4355
      %v4397 = vpack.c.b16 %v4356, %v4356
      %v4398 = vpack.c.b16 %v4357, %v4357
      %v4399 = vpack.c.b16 %v4358, %v4358
      %v4400 = vpack.c.b16 %v4359, %v4359
      %v4401 = vpack.c.b16 %v4360, %v4360
      %v4402 = vpack.c.b16 %v4361, %v4361
      %v4403 = vpack.c.b16 %v4362, %v4362
      %v4404 = vpack.c.b16 %v4363, %v4363
      %v4405 = vpack.c.b16 %v4364, %v4364
      %v4406 = vpack.c.b16 %v4365, %v4365
      %v4407 = vpack.c.b16 %v4366, %v4366
      %v4408 = vpack.c.b16 %v4367, %v4367
      %v4409 = vpack.c.b16 %v4368, %v4368
      %v4410 = vpack.c.b16 %v4369, %v4369
      %v4411 = vpack.c.b16 %v4370, %v4370
      %v4412 = vpack.c.b16 %v4371, %v4371
      %v4413 = vpack.c.b16 %v4372, %v4372
      %v4414 = vpack.c.b16 %v4373, %v4373
      %v4415 = vpack.c.b16 %v4374, %v4374
      %v4416 = vpack.c.b16 %v4375, %v4375
      %v4417 = vpack.c.b16 %v4376, %v4376
      %v4418 = vpack.c.b16 %v4377, %v4377
      %v4419 = vpack.c.b16 %v4378, %v4378
      %v4420 = vpack.c.b16 %v4379, %v4379
      %v4421 = vpack.c.b16 %v4380, %v4380
      %v4422 = vpack.c.b16 %v4381, %v4381
      %v4423 = vpack.c.b16 %v4382, %v4382
      %v4424 = vpack.c.b16 %v4383, %v4383
      %v4425 = vpack.c.b16 %v4384, %v4384
      %v4426 = vpack.c.b16 %v4385, %v4385
      %v4427 = vpack.c.b16 %v4386, %v4386
      %v4428 = vpack.c.b16 %v4387, %v4387
      %v4429 = vpack.c.b16 %v4388, %v4388
      %v4430 = vpack.c.b16 %v4389, %v4389
      %v4431 = vpack.c.b16 %v4390, %v4390
      %v4432 = vpack.c.b16 %v4391, %v4391
      %v4433 = vpack.c.b16 %v4392, %v4392
      %v4434 = vpack.c.b16 %v4393, %v4393
      %v4435 = vpack.c.b16 %v4394, %v4394
      %4477 = vst [vmem:[#allocation2 + $0xc] sm:$0xf] %v4395
      %4478 = vst [vmem:[#allocation2 + $0x10] sm:$0xf] %v4396
      %4479 = vst [vmem:[#allocation2 + $0x14] sm:$0xf] %v4397
      %4480 = vst [vmem:[#allocation2 + $0x18] sm:$0xf] %v4398
      %4481 = vst [vmem:[#allocation2 + $0x1c] sm:$0xf] %v4399
      %4482 = vst [vmem:[#allocation2 + $0x20] sm:$0xf] %v4400
      %4483 = vst [vmem:[#allocation2 + $0x24] sm:$0xf] %v4401
      %4484 = vst [vmem:[#allocation2 + $0x28] sm:$0xf] %v4402
      %4485 = vst [vmem:[#allocation2 + $0x2c] sm:$0xf] %v4403
      %4486 = vst [vmem:[#allocation2 + $0x30] sm:$0xf] %v4404
      %4487 = vst [vmem:[#allocation2 + $0x34] sm:$0xf] %v4405
      %4488 = vst [vmem:[#allocation2 + $0x38] sm:$0xf] %v4406
      %4489 = vst [vmem:[#allocation2 + $0x3c] sm:$0xf] %v4407
      %4490 = vst [vmem:[#allocation2 + $0x40] sm:$0xf] %v4408
      %4491 = vst [vmem:[#allocation2 + $0x44] sm:$0xf] %v4409
      %4492 = vst [vmem:[#allocation2 + $0x48] sm:$0xf] %v4410
      %4493 = vst [vmem:[#allocation2 + $0x4c] sm:$0xf] %v4411
      %4494 = vst [vmem:[#allocation2 + $0x50] sm:$0xf] %v4412
      %4495 = vst [vmem:[#allocation2 + $0x54] sm:$0xf] %v4413
      %4496 = vst [vmem:[#allocation2 + $0x58] sm:$0xf] %v4414
      %4497 = vst [vmem:[#allocation2 + $0x5c] sm:$0xf] %v4415
      %4498 = vst [vmem:[#allocation2 + $0x60] sm:$0xf] %v4416
      %4499 = vst [vmem:[#allocation2 + $0x64] sm:$0xf] %v4417
      %4500 = vst [vmem:[#allocation2 + $0x68] sm:$0xf] %v4418
      %4501 = vst [vmem:[#allocation2 + $0x6c] sm:$0xf] %v4419
      %4502 = vst [vmem:[#allocation2 + $0x70] sm:$0xf] %v4420
      %4503 = vst [vmem:[#allocation2 + $0x74] sm:$0xf] %v4421
      %4504 = vst [vmem:[#allocation2 + $0x78] sm:$0xf] %v4422
      %4505 = vst [vmem:[#allocation2 + $0x7c] sm:$0xf] %v4423
      %4506 = vst [vmem:[#allocation2 + $0x80] sm:$0xf] %v4424
      %4507 = vst [vmem:[#allocation2 + $0x84] sm:$0xf] %v4425
      %4508 = vst [vmem:[#allocation2 + $0x88] sm:$0xf] %v4426
      %4509 = vst [vmem:[#allocation2 + $0x8c] sm:$0xf] %v4427
      %4510 = vst [vmem:[#allocation2 + $0x90] sm:$0xf] %v4428
      %4511 = vst [vmem:[#allocation2 + $0x94] sm:$0xf] %v4429
      %4512 = vst [vmem:[#allocation2 + $0x98] sm:$0xf] %v4430
      %4513 = vst [vmem:[#allocation2 + $0x9c] sm:$0xf] %v4431
      %4514 = vst [vmem:[#allocation2 + $0xa0] sm:$0xf] %v4432
      %4515 = vst [vmem:[#allocation2 + $0xa4] sm:$0xf] %v4433
      %4516 = vst [vmem:[#allocation2 + $0xa8] sm:$0xf] %v4434
      %4517 = vst [vmem:[#allocation2 + $0xac] sm:$0x3] %v4435
      %v4518 = vld [vmem:[#allocation2] sm:$0xc]
      %v4519 = vld [vmem:[#allocation2 + $0x4] sm:$0xf]
      %v4520 = vld [vmem:[#allocation2 + $0x8] sm:$0xf]
      %v4521 = vld [vmem:[#allocation2 + $0xc] sm:$0xf]
      %v4522 = vld [vmem:[#allocation2 + $0x10] sm:$0xf]
      %v4523 = vld [vmem:[#allocation2 + $0x14] sm:$0xf]
      %v4524 = vld [vmem:[#allocation2 + $0x18] sm:$0xf]
      %v4525 = vld [vmem:[#allocation2 + $0x1c] sm:$0xf]
      %v4526 = vld [vmem:[#allocation2 + $0x20] sm:$0xf]
      %v4527 = vld [vmem:[#allocation2 + $0x24] sm:$0xf]
      %v4528 = vld [vmem:[#allocation2 + $0x28] sm:$0xf]
      %v4529 = vld [vmem:[#allocation2 + $0x2c] sm:$0xf]
      %v4530 = vld [vmem:[#allocation2 + $0x30] sm:$0xf]
      %v4531 = vld [vmem:[#allocation2 + $0x34] sm:$0xf]
      %v4532 = vld [vmem:[#allocation2 + $0x38] sm:$0xf]
      %v4533 = vld [vmem:[#allocation2 + $0x3c] sm:$0xf]
      %v4534 = vld [vmem:[#allocation2 + $0x40] sm:$0xf]
      %v4535 = vld [vmem:[#allocation2 + $0x44] sm:$0xf]
      %v4536 = vld [vmem:[#allocation2 + $0x48] sm:$0xf]
      %v4537 = vld [vmem:[#allocation2 + $0x4c] sm:$0xf]
      %v4538 = vld [vmem:[#allocation2 + $0x50] sm:$0xf]
      %v4539 = vld [vmem:[#allocation2 + $0x54] sm:$0xf]
      %v4540 = vld [vmem:[#allocation2 + $0x58] sm:$0xf]
      %v4541 = vld [vmem:[#allocation2 + $0x5c] sm:$0xf]
      %v4542 = vld [vmem:[#allocation2 + $0x60] sm:$0xf]
      %v4543 = vld [vmem:[#allocation2 + $0x64] sm:$0xf]
      %v4544 = vld [vmem:[#allocation2 + $0x68] sm:$0xf]
      %v4545 = vld [vmem:[#allocation2 + $0x6c] sm:$0xf]
      %v4546 = vld [vmem:[#allocation2 + $0x70] sm:$0xf]
      %v4547 = vld [vmem:[#allocation2 + $0x74] sm:$0xf]
      %v4548 = vld [vmem:[#allocation2 + $0x78] sm:$0xf]
      %v4549 = vld [vmem:[#allocation2 + $0x7c] sm:$0xf]
      %v4550 = vld [vmem:[#allocation2 + $0x80] sm:$0xf]
      %v4551 = vld [vmem:[#allocation2 + $0x84] sm:$0xf]
      %v4552 = vld [vmem:[#allocation2 + $0x88] sm:$0xf]
      %v4553 = vld [vmem:[#allocation2 + $0x8c] sm:$0xf]
      %v4554 = vld [vmem:[#allocation2 + $0x90] sm:$0xf]
      %v4555 = vld [vmem:[#allocation2 + $0x94] sm:$0xf]
      %v4556 = vld [vmem:[#allocation2 + $0x98] sm:$0xf]
      %v4557 = vld [vmem:[#allocation2 + $0x9c] sm:$0xf]
      %v4558 = vld [vmem:[#allocation2 + $0xa0] sm:$0xf]
      %v4559 = vld [vmem:[#allocation2 + $0xa4] sm:$0x1]
      %v4560 = vld [vmem:[#allocation2] sm:$0x8]
      %v4561 = vld [vmem:[#allocation2 + $0xa4] sm:$0x3]
      %v4562 = vld [vmem:[#allocation2 + $0x8] sm:$0x8]
      %v4563 = vld [vmem:[#allocation2 + $0xa4] sm:$0xf]
      %v4564 = vld [vmem:[#allocation2 + $0xa8] sm:$0xf]
      %v4565 = vld [vmem:[#allocation2 + $0xac] sm:$0x3]
      %v4566 = vld [vmem:[#allocation2 + $0xac] sm:$0x7]
      %v4567 = vld [vmem:[#allocation2 + $0xac] sm:$0xf]
      %v4568 = vld [vmem:[#allocation2 + $0xb0] sm:$0xf]
      %v4569 = vld [vmem:[#allocation2 + $0xb4] sm:$0x7]
      %v4570 = vld [vmem:[#allocation2 + $0x14] sm:$0xe]
      %v4571 = vld [vmem:[#allocation2 + $0xb4] sm:$0xf]
      %v4614 = vunpack.c.l.b16 %v4518
      %v4615 = vunpack.c.l.b16 %v4519
      %v4616 = vunpack.c.l.b16 %v4520
      %v4617 = vunpack.c.l.b16 %v4521
      %v4618 = vunpack.c.l.b16 %v4522
      %v4619 = vunpack.c.l.b16 %v4523
      %v4620 = vunpack.c.l.b16 %v4524
      %v4621 = vunpack.c.l.b16 %v4525
      %v4622 = vunpack.c.l.b16 %v4526
      %v4623 = vunpack.c.l.b16 %v4527
      %v4624 = vunpack.c.l.b16 %v4528
      %v4625 = vunpack.c.l.b16 %v4529
      %v4626 = vunpack.c.l.b16 %v4530
      %v4627 = vunpack.c.l.b16 %v4531
      %v4628 = vunpack.c.l.b16 %v4532
      %v4629 = vunpack.c.l.b16 %v4533
      %v4630 = vunpack.c.l.b16 %v4534
      %v4631 = vunpack.c.l.b16 %v4535
      %v4632 = vunpack.c.l.b16 %v4536
      %v4633 = vunpack.c.l.b16 %v4537
      %v4634 = vunpack.c.l.b16 %v4538
      %v4635 = vunpack.c.l.b16 %v4539
      %v4636 = vunpack.c.l.b16 %v4540
      %v4637 = vunpack.c.l.b16 %v4541
      %v4638 = vunpack.c.l.b16 %v4542
      %v4639 = vunpack.c.l.b16 %v4543
      %v4640 = vunpack.c.l.b16 %v4544
      %v4641 = vunpack.c.l.b16 %v4545
      %v4642 = vunpack.c.l.b16 %v4546
      %v4643 = vunpack.c.l.b16 %v4547
      %v4644 = vunpack.c.l.b16 %v4548
      %v4645 = vunpack.c.l.b16 %v4549
      %v4646 = vunpack.c.l.b16 %v4550
      %v4647 = vunpack.c.l.b16 %v4551
      %v4648 = vunpack.c.l.b16 %v4552
      %v4649 = vunpack.c.l.b16 %v4553
      %v4650 = vunpack.c.l.b16 %v4554
      %v4651 = vunpack.c.l.b16 %v4555
      %v4652 = vunpack.c.l.b16 %v4556
      %v4653 = vunpack.c.l.b16 %v4557
      %v4654 = vunpack.c.l.b16 %v4558
      %v4655 = vunpack.c.l.b16 %v4559
      %v4656 = vpack.c.b16 %v4615, %v4614
      %v4657 = vpack.c.b16 %v4617, %v4616
      %v4658 = vpack.c.b16 %v4619, %v4618
      %v4659 = vpack.c.b16 %v4621, %v4620
      %v4660 = vpack.c.b16 %v4623, %v4622
      %v4661 = vpack.c.b16 %v4625, %v4624
      %v4662 = vpack.c.b16 %v4627, %v4626
      %v4663 = vpack.c.b16 %v4629, %v4628
      %v4664 = vpack.c.b16 %v4631, %v4630
      %v4665 = vpack.c.b16 %v4633, %v4632
      %v4666 = vpack.c.b16 %v4635, %v4634
      %v4667 = vpack.c.b16 %v4637, %v4636
      %v4668 = vpack.c.b16 %v4639, %v4638
      %v4669 = vpack.c.b16 %v4641, %v4640
      %v4670 = vpack.c.b16 %v4643, %v4642
      %v4671 = vpack.c.b16 %v4645, %v4644
      %v4672 = vpack.c.b16 %v4647, %v4646
      %v4673 = vpack.c.b16 %v4649, %v4648
      %v4674 = vpack.c.b16 %v4651, %v4650
      %v4675 = vpack.c.b16 %v4653, %v4652
      %v4676 = vpack.c.b16 %v4655, %v4654
      %v4678 = vunpack.c.l.b16 %v4560
      %v4679 = vpack.c.b16 %v4615, %v4678
      %v4681 = vshrl.u32 %v4679, 16
      %v4683 = vshll.u32 %v4679, 16
      %v4685 = vrot.slane %v4683, 1
      %v4686 = vor.u32 %v4681, %v4685
      %v4688 = vshll.u32 %v4657, 16
      %v4690 = vrot.slane %v4688, 1
      %v4691 = vsel %vm415, %v4686, %v4690
      %v4692 = vshrl.u32 %v4657, 16
      %v4694 = vor.u32 %v4692, %v4690
      %v4696 = vshll.u32 %v4658, 16
      %v4698 = vrot.slane %v4696, 1
      %v4699 = vsel %vm415, %v4694, %v4698
      %v4700 = vshrl.u32 %v4658, 16
      %v4702 = vor.u32 %v4700, %v4698
      %v4704 = vshll.u32 %v4659, 16
      %v4706 = vrot.slane %v4704, 1
      %v4707 = vsel %vm415, %v4702, %v4706
      %v4708 = vshrl.u32 %v4659, 16
      %v4710 = vor.u32 %v4708, %v4706
      %v4712 = vshll.u32 %v4660, 16
      %v4714 = vrot.slane %v4712, 1
      %v4715 = vsel %vm415, %v4710, %v4714
      %v4716 = vshrl.u32 %v4660, 16
      %v4718 = vor.u32 %v4716, %v4714
      %v4720 = vshll.u32 %v4661, 16
      %v4722 = vrot.slane %v4720, 1
      %v4723 = vsel %vm415, %v4718, %v4722
      %v4724 = vshrl.u32 %v4661, 16
      %v4726 = vor.u32 %v4724, %v4722
      %v4728 = vshll.u32 %v4662, 16
      %v4730 = vrot.slane %v4728, 1
      %v4731 = vsel %vm415, %v4726, %v4730
      %v4732 = vshrl.u32 %v4662, 16
      %v4734 = vor.u32 %v4732, %v4730
      %v4736 = vshll.u32 %v4663, 16
      %v4738 = vrot.slane %v4736, 1
      %v4739 = vsel %vm415, %v4734, %v4738
      %v4740 = vshrl.u32 %v4663, 16
      %v4742 = vor.u32 %v4740, %v4738
      %v4744 = vshll.u32 %v4664, 16
      %v4746 = vrot.slane %v4744, 1
      %v4747 = vsel %vm415, %v4742, %v4746
      %v4748 = vshrl.u32 %v4664, 16
      %v4750 = vor.u32 %v4748, %v4746
      %v4752 = vshll.u32 %v4665, 16
      %v4754 = vrot.slane %v4752, 1
      %v4755 = vsel %vm415, %v4750, %v4754
      %v4756 = vshrl.u32 %v4665, 16
      %v4758 = vor.u32 %v4756, %v4754
      %v4760 = vshll.u32 %v4666, 16
      %v4762 = vrot.slane %v4760, 1
      %v4763 = vsel %vm415, %v4758, %v4762
      %v4764 = vshrl.u32 %v4666, 16
      %v4766 = vor.u32 %v4764, %v4762
      %v4768 = vshll.u32 %v4667, 16
      %v4770 = vrot.slane %v4768, 1
      %v4771 = vsel %vm415, %v4766, %v4770
      %v4772 = vshrl.u32 %v4667, 16
      %v4774 = vor.u32 %v4772, %v4770
      %v4776 = vshll.u32 %v4668, 16
      %v4778 = vrot.slane %v4776, 1
      %v4779 = vsel %vm415, %v4774, %v4778
      %v4780 = vshrl.u32 %v4668, 16
      %v4782 = vor.u32 %v4780, %v4778
      %v4784 = vshll.u32 %v4669, 16
      %v4786 = vrot.slane %v4784, 1
      %v4787 = vsel %vm415, %v4782, %v4786
      %v4788 = vshrl.u32 %v4669, 16
      %v4790 = vor.u32 %v4788, %v4786
      %v4792 = vshll.u32 %v4670, 16
      %v4794 = vrot.slane %v4792, 1
      %v4795 = vsel %vm415, %v4790, %v4794
      %v4796 = vshrl.u32 %v4670, 16
      %v4798 = vor.u32 %v4796, %v4794
      %v4800 = vshll.u32 %v4671, 16
      %v4802 = vrot.slane %v4800, 1
      %v4803 = vsel %vm415, %v4798, %v4802
      %v4804 = vshrl.u32 %v4671, 16
      %v4806 = vor.u32 %v4804, %v4802
      %v4808 = vshll.u32 %v4672, 16
      %v4810 = vrot.slane %v4808, 1
      %v4811 = vsel %vm415, %v4806, %v4810
      %v4812 = vshrl.u32 %v4672, 16
      %v4814 = vor.u32 %v4812, %v4810
      %v4816 = vshll.u32 %v4673, 16
      %v4818 = vrot.slane %v4816, 1
      %v4819 = vsel %vm415, %v4814, %v4818
      %v4820 = vshrl.u32 %v4673, 16
      %v4822 = vor.u32 %v4820, %v4818
      %v4824 = vshll.u32 %v4674, 16
      %v4826 = vrot.slane %v4824, 1
      %v4827 = vsel %vm415, %v4822, %v4826
      %v4828 = vshrl.u32 %v4674, 16
      %v4830 = vor.u32 %v4828, %v4826
      %v4832 = vshll.u32 %v4675, 16
      %v4834 = vrot.slane %v4832, 1
      %v4835 = vsel %vm415, %v4830, %v4834
      %v4836 = vshrl.u32 %v4675, 16
      %v4838 = vor.u32 %v4836, %v4834
      %v4840 = vshll.u32 %v4676, 16
      %v4842 = vrot.slane %v4840, 1
      %v4843 = vsel %vm415, %v4838, %v4842
      %v4844 = vshrl.u32 %v4676, 16
      %v4846 = vor.u32 %v4844, %v4842
      %v4848 = vunpack.c.l.b16 %v4561
      %v4849 = vpack.c.b16 %v4848, %v4654
      %v4850 = vrot.slane %v4679, 1
      %v4851 = vrot.slane %v4657, 1
      %v4852 = vsel %vm586, %v4850, %v4851
      %v4853 = vrot.slane %v4658, 1
      %v4854 = vsel %vm586, %v4851, %v4853
      %v4855 = vrot.slane %v4659, 1
      %v4856 = vsel %vm586, %v4853, %v4855
      %v4857 = vrot.slane %v4660, 1
      %v4858 = vsel %vm586, %v4855, %v4857
      %v4859 = vrot.slane %v4661, 1
      %v4860 = vsel %vm586, %v4857, %v4859
      %v4861 = vrot.slane %v4662, 1
      %v4862 = vsel %vm586, %v4859, %v4861
      %v4863 = vrot.slane %v4663, 1
      %v4864 = vsel %vm586, %v4861, %v4863
      %v4865 = vrot.slane %v4664, 1
      %v4866 = vsel %vm586, %v4863, %v4865
      %v4867 = vrot.slane %v4665, 1
      %v4868 = vsel %vm586, %v4865, %v4867
      %v4869 = vrot.slane %v4666, 1
      %v4870 = vsel %vm586, %v4867, %v4869
      %v4871 = vrot.slane %v4667, 1
      %v4872 = vsel %vm586, %v4869, %v4871
      %v4873 = vrot.slane %v4668, 1
      %v4874 = vsel %vm586, %v4871, %v4873
      %v4875 = vrot.slane %v4669, 1
      %v4876 = vsel %vm586, %v4873, %v4875
      %v4877 = vrot.slane %v4670, 1
      %v4878 = vsel %vm586, %v4875, %v4877
      %v4879 = vrot.slane %v4671, 1
      %v4880 = vsel %vm586, %v4877, %v4879
      %v4881 = vrot.slane %v4672, 1
      %v4882 = vsel %vm586, %v4879, %v4881
      %v4883 = vrot.slane %v4673, 1
      %v4884 = vsel %vm586, %v4881, %v4883
      %v4885 = vrot.slane %v4674, 1
      %v4886 = vsel %vm586, %v4883, %v4885
      %v4887 = vrot.slane %v4675, 1
      %v4888 = vsel %vm586, %v4885, %v4887
      %v4889 = vrot.slane %v4849, 1
      %v4890 = vsel %vm586, %v4887, %v4889
      %v4895 = vunpack.c.l.b16 %v4562
      %v4896 = vunpack.c.l.b16 %v4563
      %v4897 = vunpack.c.l.b16 %v4564
      %v4898 = vunpack.c.l.b16 %v4565
      %v4899 = vpack.c.b16 %v4617, %v4895
      %v4900 = vpack.c.b16 %v4896, %v4654
      %v4901 = vpack.c.b16 %v4898, %v4897
      %v4902 = vrot.slane %v4899, 1
      %v4903 = vsel %vm586, %v4902, %v4853
      %v4904 = vrot.slane %v4900, 1
      %v4905 = vsel %vm586, %v4887, %v4904
      %v4906 = vrot.slane %v4901, 1
      %v4907 = vsel %vm586, %v4904, %v4906
      %v4908 = vpack.c.b16 %v4618, %v4617
      %v4909 = vpack.c.b16 %v4620, %v4619
      %v4910 = vpack.c.b16 %v4622, %v4621
      %v4911 = vpack.c.b16 %v4624, %v4623
      %v4912 = vpack.c.b16 %v4626, %v4625
      %v4913 = vpack.c.b16 %v4628, %v4627
      %v4914 = vpack.c.b16 %v4630, %v4629
      %v4915 = vpack.c.b16 %v4632, %v4631
      %v4916 = vpack.c.b16 %v4634, %v4633
      %v4917 = vpack.c.b16 %v4636, %v4635
      %v4918 = vpack.c.b16 %v4638, %v4637
      %v4919 = vpack.c.b16 %v4640, %v4639
      %v4920 = vpack.c.b16 %v4642, %v4641
      %v4921 = vpack.c.b16 %v4644, %v4643
      %v4922 = vpack.c.b16 %v4646, %v4645
      %v4923 = vpack.c.b16 %v4648, %v4647
      %v4924 = vpack.c.b16 %v4650, %v4649
      %v4925 = vpack.c.b16 %v4652, %v4651
      %v4926 = vpack.c.b16 %v4654, %v4653
      %v4927 = vpack.c.b16 %v4897, %v4896
      %v4928 = vpack.c.b16 %v4898, %v4898
      %v4930 = vshrl.u32 %v4908, 16
      %v4932 = vrot.slane %v4930, 5
      %v4933 = vshll.u32 %v4908, 16
      %v4935 = vrot.slane %v4933, 6
      %v4936 = vor.u32 %v4932, %v4935
      %v4938 = vshrl.u32 %v4909, 16
      %v4940 = vrot.slane %v4938, 5
      %v4941 = vshll.u32 %v4909, 16
      %v4943 = vrot.slane %v4941, 6
      %v4944 = vor.u32 %v4940, %v4943
      %v4945 = vsel %vm666, %v4936, %v4944
      %v4947 = vshrl.u32 %v4910, 16
      %v4949 = vrot.slane %v4947, 5
      %v4950 = vshll.u32 %v4910, 16
      %v4952 = vrot.slane %v4950, 6
      %v4953 = vor.u32 %v4949, %v4952
      %v4954 = vsel %vm666, %v4944, %v4953
      %v4956 = vshrl.u32 %v4911, 16
      %v4958 = vrot.slane %v4956, 5
      %v4959 = vshll.u32 %v4911, 16
      %v4961 = vrot.slane %v4959, 6
      %v4962 = vor.u32 %v4958, %v4961
      %v4963 = vsel %vm666, %v4953, %v4962
      %v4965 = vshrl.u32 %v4912, 16
      %v4967 = vrot.slane %v4965, 5
      %v4968 = vshll.u32 %v4912, 16
      %v4970 = vrot.slane %v4968, 6
      %v4971 = vor.u32 %v4967, %v4970
      %v4972 = vsel %vm666, %v4962, %v4971
      %v4974 = vshrl.u32 %v4913, 16
      %v4976 = vrot.slane %v4974, 5
      %v4977 = vshll.u32 %v4913, 16
      %v4979 = vrot.slane %v4977, 6
      %v4980 = vor.u32 %v4976, %v4979
      %v4981 = vsel %vm666, %v4971, %v4980
      %v4983 = vshrl.u32 %v4914, 16
      %v4985 = vrot.slane %v4983, 5
      %v4986 = vshll.u32 %v4914, 16
      %v4988 = vrot.slane %v4986, 6
      %v4989 = vor.u32 %v4985, %v4988
      %v4990 = vsel %vm666, %v4980, %v4989
      %v4992 = vshrl.u32 %v4915, 16
      %v4994 = vrot.slane %v4992, 5
      %v4995 = vshll.u32 %v4915, 16
      %v4997 = vrot.slane %v4995, 6
      %v4998 = vor.u32 %v4994, %v4997
      %v4999 = vsel %vm666, %v4989, %v4998
      %v5001 = vshrl.u32 %v4916, 16
      %v5003 = vrot.slane %v5001, 5
      %v5004 = vshll.u32 %v4916, 16
      %v5006 = vrot.slane %v5004, 6
      %v5007 = vor.u32 %v5003, %v5006
      %v5008 = vsel %vm666, %v4998, %v5007
      %v5010 = vshrl.u32 %v4917, 16
      %v5012 = vrot.slane %v5010, 5
      %v5013 = vshll.u32 %v4917, 16
      %v5015 = vrot.slane %v5013, 6
      %v5016 = vor.u32 %v5012, %v5015
      %v5017 = vsel %vm666, %v5007, %v5016
      %v5019 = vshrl.u32 %v4918, 16
      %v5021 = vrot.slane %v5019, 5
      %v5022 = vshll.u32 %v4918, 16
      %v5024 = vrot.slane %v5022, 6
      %v5025 = vor.u32 %v5021, %v5024
      %v5026 = vsel %vm666, %v5016, %v5025
      %v5028 = vshrl.u32 %v4919, 16
      %v5030 = vrot.slane %v5028, 5
      %v5031 = vshll.u32 %v4919, 16
      %v5033 = vrot.slane %v5031, 6
      %v5034 = vor.u32 %v5030, %v5033
      %v5035 = vsel %vm666, %v5025, %v5034
      %v5037 = vshrl.u32 %v4920, 16
      %v5039 = vrot.slane %v5037, 5
      %v5040 = vshll.u32 %v4920, 16
      %v5042 = vrot.slane %v5040, 6
      %v5043 = vor.u32 %v5039, %v5042
      %v5044 = vsel %vm666, %v5034, %v5043
      %v5046 = vshrl.u32 %v4921, 16
      %v5048 = vrot.slane %v5046, 5
      %v5049 = vshll.u32 %v4921, 16
      %v5051 = vrot.slane %v5049, 6
      %v5052 = vor.u32 %v5048, %v5051
      %v5053 = vsel %vm666, %v5043, %v5052
      %v5055 = vshrl.u32 %v4922, 16
      %v5057 = vrot.slane %v5055, 5
      %v5058 = vshll.u32 %v4922, 16
      %v5060 = vrot.slane %v5058, 6
      %v5061 = vor.u32 %v5057, %v5060
      %v5062 = vsel %vm666, %v5052, %v5061
      %v5064 = vshrl.u32 %v4923, 16
      %v5066 = vrot.slane %v5064, 5
      %v5067 = vshll.u32 %v4923, 16
      %v5069 = vrot.slane %v5067, 6
      %v5070 = vor.u32 %v5066, %v5069
      %v5071 = vsel %vm666, %v5061, %v5070
      %v5073 = vshrl.u32 %v4924, 16
      %v5075 = vrot.slane %v5073, 5
      %v5076 = vshll.u32 %v4924, 16
      %v5078 = vrot.slane %v5076, 6
      %v5079 = vor.u32 %v5075, %v5078
      %v5080 = vsel %vm666, %v5070, %v5079
      %v5082 = vshrl.u32 %v4925, 16
      %v5084 = vrot.slane %v5082, 5
      %v5085 = vshll.u32 %v4925, 16
      %v5087 = vrot.slane %v5085, 6
      %v5088 = vor.u32 %v5084, %v5087
      %v5089 = vsel %vm666, %v5079, %v5088
      %v5091 = vshrl.u32 %v4926, 16
      %v5093 = vrot.slane %v5091, 5
      %v5094 = vshll.u32 %v4926, 16
      %v5096 = vrot.slane %v5094, 6
      %v5097 = vor.u32 %v5093, %v5096
      %v5098 = vsel %vm666, %v5088, %v5097
      %v5100 = vshrl.u32 %v4927, 16
      %v5102 = vrot.slane %v5100, 5
      %v5103 = vshll.u32 %v4927, 16
      %v5105 = vrot.slane %v5103, 6
      %v5106 = vor.u32 %v5102, %v5105
      %v5107 = vsel %vm666, %v5097, %v5106
      %v5109 = vshrl.u32 %v4928, 16
      %v5111 = vrot.slane %v5109, 5
      %v5112 = vshll.u32 %v4928, 16
      %v5114 = vrot.slane %v5112, 6
      %v5115 = vor.u32 %v5111, %v5114
      %v5116 = vsel %vm666, %v5106, %v5115
      %v5118 = vunpack.c.l.b16 %v4566
      %v5119 = vpack.c.b16 %v5118, %v5118
      %v5120 = vrot.slane %v4908, 6
      %v5121 = vrot.slane %v4909, 6
      %v5122 = vsel %vm858, %v5120, %v5121
      %v5123 = vrot.slane %v4910, 6
      %v5124 = vsel %vm858, %v5121, %v5123
      %v5125 = vrot.slane %v4911, 6
      %v5126 = vsel %vm858, %v5123, %v5125
      %v5127 = vrot.slane %v4912, 6
      %v5128 = vsel %vm858, %v5125, %v5127
      %v5129 = vrot.slane %v4913, 6
      %v5130 = vsel %vm858, %v5127, %v5129
      %v5131 = vrot.slane %v4914, 6
      %v5132 = vsel %vm858, %v5129, %v5131
      %v5133 = vrot.slane %v4915, 6
      %v5134 = vsel %vm858, %v5131, %v5133
      %v5135 = vrot.slane %v4916, 6
      %v5136 = vsel %vm858, %v5133, %v5135
      %v5137 = vrot.slane %v4917, 6
      %v5138 = vsel %vm858, %v5135, %v5137
      %v5139 = vrot.slane %v4918, 6
      %v5140 = vsel %vm858, %v5137, %v5139
      %v5141 = vrot.slane %v4919, 6
      %v5142 = vsel %vm858, %v5139, %v5141
      %v5143 = vrot.slane %v4920, 6
      %v5144 = vsel %vm858, %v5141, %v5143
      %v5145 = vrot.slane %v4921, 6
      %v5146 = vsel %vm858, %v5143, %v5145
      %v5147 = vrot.slane %v4922, 6
      %v5148 = vsel %vm858, %v5145, %v5147
      %v5149 = vrot.slane %v4923, 6
      %v5150 = vsel %vm858, %v5147, %v5149
      %v5151 = vrot.slane %v4924, 6
      %v5152 = vsel %vm858, %v5149, %v5151
      %v5153 = vrot.slane %v4925, 6
      %v5154 = vsel %vm858, %v5151, %v5153
      %v5155 = vrot.slane %v4926, 6
      %v5156 = vsel %vm858, %v5153, %v5155
      %v5157 = vrot.slane %v4927, 6
      %v5158 = vsel %vm858, %v5155, %v5157
      %v5159 = vrot.slane %v5119, 6
      %v5160 = vsel %vm858, %v5157, %v5159
      %v5164 = vunpack.c.l.b16 %v4567
      %v5165 = vunpack.c.l.b16 %v4568
      %v5166 = vunpack.c.l.b16 %v4569
      %v5167 = vpack.c.b16 %v5165, %v5164
      %v5168 = vpack.c.b16 %v5166, %v5166
      %v5169 = vrot.slane %v5167, 6
      %v5170 = vsel %vm858, %v5157, %v5169
      %v5171 = vrot.slane %v5168, 6
      %v5172 = vsel %vm858, %v5169, %v5171
      %v5174 = vunpack.c.l.b16 %v4570
      %v5175 = vpack.c.b16 %v4620, %v5174
      %v5177 = vshrl.u32 %v5175, 16
      %v5179 = vrot.slane %v5177, 6
      %v5180 = vshll.u32 %v5175, 16
      %v5182 = vrot.slane %v5180, 7
      %v5183 = vor.u32 %v5179, %v5182
      %v5184 = vrot.slane %v4947, 6
      %v5185 = vrot.slane %v4950, 7
      %v5186 = vor.u32 %v5184, %v5185
      %v5187 = vsel %vm915, %v5183, %v5186
      %v5188 = vrot.slane %v4956, 6
      %v5189 = vrot.slane %v4959, 7
      %v5190 = vor.u32 %v5188, %v5189
      %v5191 = vsel %vm915, %v5186, %v5190
      %v5192 = vrot.slane %v4965, 6
      %v5193 = vrot.slane %v4968, 7
      %v5194 = vor.u32 %v5192, %v5193
      %v5195 = vsel %vm915, %v5190, %v5194
      %v5196 = vrot.slane %v4974, 6
      %v5197 = vrot.slane %v4977, 7
      %v5198 = vor.u32 %v5196, %v5197
      %v5199 = vsel %vm915, %v5194, %v5198
      %v5200 = vrot.slane %v4983, 6
      %v5201 = vrot.slane %v4986, 7
      %v5202 = vor.u32 %v5200, %v5201
      %v5203 = vsel %vm915, %v5198, %v5202
      %v5204 = vrot.slane %v4992, 6
      %v5205 = vrot.slane %v4995, 7
      %v5206 = vor.u32 %v5204, %v5205
      %v5207 = vsel %vm915, %v5202, %v5206
      %v5208 = vrot.slane %v5001, 6
      %v5209 = vrot.slane %v5004, 7
      %v5210 = vor.u32 %v5208, %v5209
      %v5211 = vsel %vm915, %v5206, %v5210
      %v5212 = vrot.slane %v5010, 6
      %v5213 = vrot.slane %v5013, 7
      %v5214 = vor.u32 %v5212, %v5213
      %v5215 = vsel %vm915, %v5210, %v5214
      %v5216 = vrot.slane %v5019, 6
      %v5217 = vrot.slane %v5022, 7
      %v5218 = vor.u32 %v5216, %v5217
      %v5219 = vsel %vm915, %v5214, %v5218
      %v5220 = vrot.slane %v5028, 6
      %v5221 = vrot.slane %v5031, 7
      %v5222 = vor.u32 %v5220, %v5221
      %v5223 = vsel %vm915, %v5218, %v5222
      %v5224 = vrot.slane %v5037, 6
      %v5225 = vrot.slane %v5040, 7
      %v5226 = vor.u32 %v5224, %v5225
      %v5227 = vsel %vm915, %v5222, %v5226
      %v5228 = vrot.slane %v5046, 6
      %v5229 = vrot.slane %v5049, 7
      %v5230 = vor.u32 %v5228, %v5229
      %v5231 = vsel %vm915, %v5226, %v5230
      %v5232 = vrot.slane %v5055, 6
      %v5233 = vrot.slane %v5058, 7
      %v5234 = vor.u32 %v5232, %v5233
      %v5235 = vsel %vm915, %v5230, %v5234
      %v5236 = vrot.slane %v5064, 6
      %v5237 = vrot.slane %v5067, 7
      %v5238 = vor.u32 %v5236, %v5237
      %v5239 = vsel %vm915, %v5234, %v5238
      %v5240 = vrot.slane %v5073, 6
      %v5241 = vrot.slane %v5076, 7
      %v5242 = vor.u32 %v5240, %v5241
      %v5243 = vsel %vm915, %v5238, %v5242
      %v5244 = vrot.slane %v5082, 6
      %v5245 = vrot.slane %v5085, 7
      %v5246 = vor.u32 %v5244, %v5245
      %v5247 = vsel %vm915, %v5242, %v5246
      %v5248 = vrot.slane %v5091, 6
      %v5249 = vrot.slane %v5094, 7
      %v5250 = vor.u32 %v5248, %v5249
      %v5251 = vsel %vm915, %v5246, %v5250
      %v5252 = vrot.slane %v5100, 6
      %v5253 = vrot.slane %v5103, 7
      %v5254 = vor.u32 %v5252, %v5253
      %v5255 = vsel %vm915, %v5250, %v5254
      %v5257 = vshrl.u32 %v5167, 16
      %v5259 = vrot.slane %v5257, 6
      %v5260 = vshll.u32 %v5167, 16
      %v5262 = vrot.slane %v5260, 7
      %v5263 = vor.u32 %v5259, %v5262
      %v5264 = vsel %vm915, %v5254, %v5263
      %v5266 = vshrl.u32 %v5168, 16
      %v5268 = vrot.slane %v5266, 6
      %v5269 = vshll.u32 %v5168, 16
      %v5271 = vrot.slane %v5269, 7
      %v5272 = vor.u32 %v5268, %v5271
      %v5273 = vsel %vm915, %v5263, %v5272
      %v5275 = vunpack.c.l.b16 %v4571
      %v5276 = vpack.c.b16 %v5275, %v5275
      %v5277 = vrot.slane %v5175, 7
      %v5278 = vrot.slane %v4910, 7
      %v5279 = vsel %vm1017, %v5277, %v5278
      %v5280 = vrot.slane %v4911, 7
      %v5281 = vsel %vm1017, %v5278, %v5280
      %v5282 = vrot.slane %v4912, 7
      %v5283 = vsel %vm1017, %v5280, %v5282
      %v5284 = vrot.slane %v4913, 7
      %v5285 = vsel %vm1017, %v5282, %v5284
      %v5286 = vrot.slane %v4914, 7
      %v5287 = vsel %vm1017, %v5284, %v5286
      %v5288 = vrot.slane %v4915, 7
      %v5289 = vsel %vm1017, %v5286, %v5288
      %v5290 = vrot.slane %v4916, 7
      %v5291 = vsel %vm1017, %v5288, %v5290
      %v5292 = vrot.slane %v4917, 7
      %v5293 = vsel %vm1017, %v5290, %v5292
      %v5294 = vrot.slane %v4918, 7
      %v5295 = vsel %vm1017, %v5292, %v5294
      %v5296 = vrot.slane %v4919, 7
      %v5297 = vsel %vm1017, %v5294, %v5296
      %v5298 = vrot.slane %v4920, 7
      %v5299 = vsel %vm1017, %v5296, %v5298
      %v5300 = vrot.slane %v4921, 7
      %v5301 = vsel %vm1017, %v5298, %v5300
      %v5302 = vrot.slane %v4922, 7
      %v5303 = vsel %vm1017, %v5300, %v5302
      %v5304 = vrot.slane %v4923, 7
      %v5305 = vsel %vm1017, %v5302, %v5304
      %v5306 = vrot.slane %v4924, 7
      %v5307 = vsel %vm1017, %v5304, %v5306
      %v5308 = vrot.slane %v4925, 7
      %v5309 = vsel %vm1017, %v5306, %v5308
      %v5310 = vrot.slane %v4926, 7
      %v5311 = vsel %vm1017, %v5308, %v5310
      %v5312 = vrot.slane %v4927, 7
      %v5313 = vsel %vm1017, %v5310, %v5312
      %v5314 = vrot.slane %v5167, 7
      %v5315 = vsel %vm1017, %v5312, %v5314
      %v5316 = vrot.slane %v5276, 7
      %v5317 = vsel %vm1017, %v5314, %v5316
      %v5318 = vld [vmem:[%s4] sm:$0xf]
      %v5319 = vld [vmem:[%s4 + $0x4] sm:$0xf]
      %v5320 = vld [vmem:[%s4 + $0x8] sm:$0xf]
      %v5321 = vld [vmem:[%s4 + $0xc] sm:$0xf]
      %v5322 = vld [vmem:[%s4 + $0x10] sm:$0xf]
      %v5323 = vld [vmem:[%s4 + $0x14] sm:$0xf]
      %v5324 = vld [vmem:[%s4 + $0x18] sm:$0xf]
      %v5325 = vld [vmem:[%s4 + $0x1c] sm:$0xf]
      %v5326 = vld [vmem:[%s4 + $0x20] sm:$0xf]
      %v5327 = vld [vmem:[%s4 + $0x24] sm:$0xf]
      %v5328 = vld [vmem:[%s4 + $0x28] sm:$0xf]
      %v5329 = vld [vmem:[%s4 + $0x2c] sm:$0xf]
      %v5330 = vld [vmem:[%s4 + $0x30] sm:$0xf]
      %v5331 = vld [vmem:[%s4 + $0x34] sm:$0xf]
      %v5332 = vld [vmem:[%s4 + $0x38] sm:$0xf]
      %v5333 = vld [vmem:[%s4 + $0x3c] sm:$0xf]
      %v5334 = vld [vmem:[%s4 + $0x40] sm:$0xf]
      %v5335 = vld [vmem:[%s4 + $0x44] sm:$0xf]
      %v5336 = vld [vmem:[%s4 + $0x48] sm:$0xf]
      %v5337 = vld [vmem:[%s4 + $0x4c] sm:$0xf]
      %v5338 = vld [vmem:[%s4 + $0x50] sm:$0xf]
      %v5339 = vld [vmem:[%s4 + $0x54] sm:$0xf]
      %v5340 = vld [vmem:[%s4 + $0x58] sm:$0xf]
      %v5341 = vld [vmem:[%s4 + $0x5c] sm:$0xf]
      %v5342 = vld [vmem:[%s4 + $0x60] sm:$0xf]
      %v5343 = vld [vmem:[%s4 + $0x64] sm:$0xf]
      %v5344 = vld [vmem:[%s4 + $0x68] sm:$0xf]
      %v5345 = vld [vmem:[%s4 + $0x6c] sm:$0xf]
      %v5346 = vld [vmem:[%s4 + $0x70] sm:$0xf]
      %v5347 = vld [vmem:[%s4 + $0x74] sm:$0xf]
      %v5348 = vld [vmem:[%s4 + $0x78] sm:$0xf]
      %v5349 = vld [vmem:[%s4 + $0x7c] sm:$0xf]
      %v5350 = vld [vmem:[%s4 + $0x80] sm:$0xf]
      %v5351 = vld [vmem:[%s4 + $0x84] sm:$0xf]
      %v5352 = vld [vmem:[%s4 + $0x88] sm:$0xf]
      %v5353 = vld [vmem:[%s4 + $0x8c] sm:$0xf]
      %v5354 = vld [vmem:[%s4 + $0x90] sm:$0xf]
      %v5355 = vld [vmem:[%s4 + $0x94] sm:$0xf]
      %v5356 = vld [vmem:[%s4 + $0x98] sm:$0xf]
      %v5357 = vld [vmem:[%s4 + $0x9c] sm:$0xf]
      %v5358 = vld [vmem:[%s4 + $0xa0] sm:$0xf]
      %v5359 = vld [vmem:[%s4 + $0xa4] sm:$0xf]
      %v5360 = vld [vmem:[%s4 + $0xa8] sm:$0xf]
      %v5361 = vld [vmem:[%s4 + $0xac] sm:$0xf]
      %v5362 = vld [vmem:[%s4 + $0xb0] sm:$0xf]
      %v5363 = vld [vmem:[%s4 + $0xb4] sm:$0xf]
      %v5364 = vld [vmem:[%s4 + $0xb8] sm:$0xf]
      %v5365 = vld [vmem:[%s4 + $0xbc] sm:$0xf]
      %v5366 = vld [vmem:[%s4 + $0xc0] sm:$0xf]
      %v5367 = vld [vmem:[%s4 + $0xc4] sm:$0xf]
      %v5368 = vld [vmem:[%s4 + $0xc8] sm:$0xf]
      %v5369 = vld [vmem:[%s4 + $0xcc] sm:$0xf]
      %v5370 = vld [vmem:[%s4 + $0xd0] sm:$0xf]
      %v5371 = vld [vmem:[%s4 + $0xd4] sm:$0xf]
      %v5372 = vld [vmem:[%s4 + $0xd8] sm:$0xf]
      %v5373 = vld [vmem:[%s4 + $0xdc] sm:$0xf]
      %v5374 = vld [vmem:[%s4 + $0xe0] sm:$0xf]
      %v5375 = vld [vmem:[%s4 + $0xe4] sm:$0xf]
      %v5376 = vld [vmem:[%s4 + $0xe8] sm:$0xf]
      %v5377 = vld [vmem:[%s4 + $0xec] sm:$0xf]
      %v5378 = vld [vmem:[%s4 + $0xf0] sm:$0xf]
      %v5379 = vld [vmem:[%s4 + $0xf4] sm:$0xf]
      %v5380 = vld [vmem:[%s4 + $0xf8] sm:$0xf]
      %v5381 = vld [vmem:[%s4 + $0xfc] sm:$0xf]
      %v5382 = vld [vmem:[%s4 + $0x100] sm:$0xf]
      %v5383 = vld [vmem:[%s4 + $0x104] sm:$0xf]
      %v5384 = vld [vmem:[%s4 + $0x108] sm:$0xf]
      %v5385 = vld [vmem:[%s4 + $0x10c] sm:$0xf]
      %v5386 = vld [vmem:[%s4 + $0x110] sm:$0xf]
      %v5387 = vld [vmem:[%s4 + $0x114] sm:$0xf]
      %v5388 = vld [vmem:[%s4 + $0x118] sm:$0xf]
      %v5389 = vld [vmem:[%s4 + $0x11c] sm:$0xf]
      %v5390 = vld [vmem:[%s4 + $0x120] sm:$0xf]
      %v5391 = vld [vmem:[%s4 + $0x124] sm:$0xf]
      %v5392 = vld [vmem:[%s4 + $0x128] sm:$0xf]
      %v5393 = vld [vmem:[%s4 + $0x12c] sm:$0xf]
      %v5394 = vld [vmem:[%s4 + $0x130] sm:$0xf]
      %v5395 = vld [vmem:[%s4 + $0x134] sm:$0xf]
      %v5396 = vld [vmem:[%s4 + $0x138] sm:$0xf]
      %v5397 = vld [vmem:[%s4 + $0x13c] sm:$0xf]
      %v5398 = vld [vmem:[%s4 + $0x140] sm:$0xf]
      %v5399 = vld [vmem:[%s4 + $0x144] sm:$0xf]
      %v5400 = vld [vmem:[%s4 + $0x148] sm:$0xf]
      %v5401 = vld [vmem:[%s4 + $0x14c] sm:$0xf]
      %v5402 = vld [vmem:[%s4 + $0x150] sm:$0xf]
      %v5403 = vld [vmem:[%s4 + $0x154] sm:$0xf]
      %v5404 = vld [vmem:[%s4 + $0x158] sm:$0xf]
      %v5405 = vld [vmem:[%s4 + $0x15c] sm:$0xf]
      %v5406 = vld [vmem:[%s4 + $0x160] sm:$0xf]
      %v5407 = vld [vmem:[%s4 + $0x164] sm:$0xf]
      %v5408 = vld [vmem:[%s4 + $0x168] sm:$0xf]
      %v5409 = vld [vmem:[%s4 + $0x16c] sm:$0xf]
      %v5410 = vld [vmem:[%s4 + $0x170] sm:$0xf]
      %v5411 = vld [vmem:[%s4 + $0x174] sm:$0xf]
      %v5412 = vld [vmem:[%s4 + $0x178] sm:$0xf]
      %v5413 = vld [vmem:[%s4 + $0x17c] sm:$0xf]
      %v5414 = vld [vmem:[%s4 + $0x180] sm:$0xf]
      %v5415 = vld [vmem:[%s4 + $0x184] sm:$0xf]
      %v5416 = vld [vmem:[%s4 + $0x188] sm:$0xf]
      %v5417 = vld [vmem:[%s4 + $0x18c] sm:$0xf]
      %v5418 = vld [vmem:[%s4 + $0x190] sm:$0xf]
      %v5419 = vld [vmem:[%s4 + $0x194] sm:$0xf]
      %v5420 = vld [vmem:[%s4 + $0x198] sm:$0xf]
      %v5421 = vld [vmem:[%s4 + $0x19c] sm:$0xf]
      %v5422 = vld [vmem:[%s4 + $0x1a0] sm:$0xf]
      %v5423 = vld [vmem:[%s4 + $0x1a4] sm:$0xf]
      %v5424 = vld [vmem:[%s4 + $0x1a8] sm:$0xf]
      %v5425 = vld [vmem:[%s4 + $0x1ac] sm:$0xf]
      %v5426 = vld [vmem:[%s4 + $0x1b0] sm:$0xf]
      %v5427 = vld [vmem:[%s4 + $0x1b4] sm:$0xf]
      %v5428 = vld [vmem:[%s4 + $0x1b8] sm:$0xf]
      %v5429 = vld [vmem:[%s4 + $0x1bc] sm:$0xf]
      %v5430 = vld [vmem:[%s4 + $0x1c0] sm:$0xf]
      %v5431 = vld [vmem:[%s4 + $0x1c4] sm:$0xf]
      %v5432 = vld [vmem:[%s4 + $0x1c8] sm:$0xf]
      %v5433 = vld [vmem:[%s4 + $0x1cc] sm:$0xf]
      %v5434 = vld [vmem:[%s4 + $0x1d0] sm:$0xf]
      %v5435 = vld [vmem:[%s4 + $0x1d4] sm:$0xf]
      %v5436 = vld [vmem:[%s4 + $0x1d8] sm:$0xf]
      %v5437 = vld [vmem:[%s4 + $0x1dc] sm:$0xf]
      %v5438 = vld [vmem:[%s4 + $0x1e0] sm:$0xf]
      %v5439 = vld [vmem:[%s4 + $0x1e4] sm:$0xf]
      %v5440 = vld [vmem:[%s4 + $0x1e8] sm:$0xf]
      %v5441 = vld [vmem:[%s4 + $0x1ec] sm:$0xf]
      %v5442 = vld [vmem:[%s4 + $0x1f0] sm:$0xf]
      %v5443 = vld [vmem:[%s4 + $0x1f4] sm:$0xf]
      %v5444 = vld [vmem:[%s4 + $0x1f8] sm:$0xf]
      %v5445 = vld [vmem:[%s4 + $0x1fc] sm:$0xf]
      %v5446 = vld [vmem:[%s4 + $0x200] sm:$0xf]
      %v5447 = vld [vmem:[%s4 + $0x204] sm:$0xf]
      %v5448 = vld [vmem:[%s4 + $0x208] sm:$0xf]
      %v5449 = vld [vmem:[%s4 + $0x20c] sm:$0xf]
      %v5450 = vld [vmem:[%s4 + $0x210] sm:$0xf]
      %v5451 = vld [vmem:[%s4 + $0x214] sm:$0xf]
      %v5452 = vld [vmem:[%s4 + $0x218] sm:$0xf]
      %v5453 = vld [vmem:[%s4 + $0x21c] sm:$0xf]
      %v5454 = vld [vmem:[%s4 + $0x220] sm:$0xf]
      %v5455 = vld [vmem:[%s4 + $0x224] sm:$0xf]
      %v5456 = vld [vmem:[%s4 + $0x228] sm:$0xf]
      %v5457 = vld [vmem:[%s4 + $0x22c] sm:$0xf]
      %v5458 = vld [vmem:[%s4 + $0x230] sm:$0xf]
      %v5459 = vld [vmem:[%s4 + $0x234] sm:$0xf]
      %v5460 = vld [vmem:[%s4 + $0x238] sm:$0xf]
      %v5461 = vld [vmem:[%s4 + $0x23c] sm:$0xf]
      %v5462 = vld [vmem:[%s5] sm:$0x1]
      %v5464 = vlaneseq
      %v5465 = vshrl.u32 %v5464, 7
      %v5466 = vsub.s32 0, %v5465
      %v5467 = vrot.slane %v5462, %v5466
      %v5470 = vshrl.u32 %v4656, 16
      %v5472 = vrot.slane %v5470, 2
      %v5473 = vshll.u32 %v4656, 16
      %v5475 = vrot.slane %v5473, 3
      %v5476 = vor.u32 %v5472, %v5475
      %v5477 = vrot.slane %v4692, 2
      %v5478 = vrot.slane %v4688, 3
      %v5479 = vor.u32 %v5477, %v5478
      %v5480 = vsel %vm1210, %v5476, %v5479
      %v5482 = vshrl.u32 %v4691, 16
      %v5484 = vrot.slane %v5482, 2
      %v5485 = vshll.u32 %v4691, 16
      %v5487 = vrot.slane %v5485, 3
      %v5488 = vor.u32 %v5484, %v5487
      %v5490 = vshrl.u32 %v4699, 16
      %v5492 = vrot.slane %v5490, 2
      %v5493 = vshll.u32 %v4699, 16
      %v5495 = vrot.slane %v5493, 3
      %v5496 = vor.u32 %v5492, %v5495
      %v5497 = vsel %vm1210, %v5488, %v5496
      %v5499 = vshrl.u32 %v4852, 16
      %v5501 = vrot.slane %v5499, 2
      %v5502 = vshll.u32 %v4852, 16
      %v5504 = vrot.slane %v5502, 3
      %v5505 = vor.u32 %v5501, %v5504
      %v5507 = vshrl.u32 %v4854, 16
      %v5509 = vrot.slane %v5507, 2
      %v5510 = vshll.u32 %v4854, 16
      %v5512 = vrot.slane %v5510, 3
      %v5513 = vor.u32 %v5509, %v5512
      %v5514 = vsel %vm1210, %v5505, %v5513
      %v5516 = vshrl.u32 %v4903, 16
      %v5518 = vrot.slane %v5516, 2
      %v5519 = vshll.u32 %v4903, 16
      %v5521 = vrot.slane %v5519, 3
      %v5522 = vor.u32 %v5518, %v5521
      %v5524 = vshrl.u32 %v4856, 16
      %v5526 = vrot.slane %v5524, 2
      %v5527 = vshll.u32 %v4856, 16
      %v5529 = vrot.slane %v5527, 3
      %v5530 = vor.u32 %v5526, %v5529
      %v5531 = vsel %vm1210, %v5522, %v5530
      %v5533 = vshrl.u32 %v4936, 16
      %v5535 = vrot.slane %v5533, 2
      %v5536 = vshll.u32 %v4936, 16
      %v5538 = vrot.slane %v5536, 3
      %v5539 = vor.u32 %v5535, %v5538
      %v5541 = vshrl.u32 %v4945, 16
      %v5543 = vrot.slane %v5541, 2
      %v5544 = vshll.u32 %v4945, 16
      %v5546 = vrot.slane %v5544, 3
      %v5547 = vor.u32 %v5543, %v5546
      %v5548 = vsel %vm1210, %v5539, %v5547
      %v5550 = vshrl.u32 %v5120, 16
      %v5552 = vrot.slane %v5550, 2
      %v5553 = vshll.u32 %v5120, 16
      %v5555 = vrot.slane %v5553, 3
      %v5556 = vor.u32 %v5552, %v5555
      %v5558 = vshrl.u32 %v5122, 16
      %v5560 = vrot.slane %v5558, 2
      %v5561 = vshll.u32 %v5122, 16
      %v5563 = vrot.slane %v5561, 3
      %v5564 = vor.u32 %v5560, %v5563
      %v5565 = vsel %vm1210, %v5556, %v5564
      %v5567 = vshrl.u32 %v5121, 16
      %v5569 = vrot.slane %v5567, 2
      %v5570 = vshll.u32 %v5121, 16
      %v5572 = vrot.slane %v5570, 3
      %v5573 = vor.u32 %v5569, %v5572
      %v5575 = vshrl.u32 %v5124, 16
      %v5577 = vrot.slane %v5575, 2
      %v5578 = vshll.u32 %v5124, 16
      %v5580 = vrot.slane %v5578, 3
      %v5581 = vor.u32 %v5577, %v5580
      %v5582 = vsel %vm1210, %v5573, %v5581
      %v5584 = vshrl.u32 %v5183, 16
      %v5586 = vrot.slane %v5584, 2
      %v5587 = vshll.u32 %v5183, 16
      %v5589 = vrot.slane %v5587, 3
      %v5590 = vor.u32 %v5586, %v5589
      %v5592 = vshrl.u32 %v5187, 16
      %v5594 = vrot.slane %v5592, 2
      %v5595 = vshll.u32 %v5187, 16
      %v5597 = vrot.slane %v5595, 3
      %v5598 = vor.u32 %v5594, %v5597
      %v5599 = vsel %vm1210, %v5590, %v5598
      %v5601 = vshrl.u32 %v5277, 16
      %v5603 = vrot.slane %v5601, 2
      %v5604 = vshll.u32 %v5277, 16
      %v5606 = vrot.slane %v5604, 3
      %v5607 = vor.u32 %v5603, %v5606
      %v5609 = vshrl.u32 %v5279, 16
      %v5611 = vrot.slane %v5609, 2
      %v5612 = vshll.u32 %v5279, 16
      %v5614 = vrot.slane %v5612, 3
      %v5615 = vor.u32 %v5611, %v5614
      %v5616 = vsel %vm1210, %v5607, %v5615
      %v5617 = vrot.slane %v4700, 2
      %v5618 = vrot.slane %v4696, 3
      %v5619 = vor.u32 %v5617, %v5618
      %v5620 = vsel %vm1210, %v5479, %v5619
      %v5622 = vshrl.u32 %v4707, 16
      %v5624 = vrot.slane %v5622, 2
      %v5625 = vshll.u32 %v4707, 16
      %v5627 = vrot.slane %v5625, 3
      %v5628 = vor.u32 %v5624, %v5627
      %v5629 = vsel %vm1210, %v5496, %v5628
      %v5630 = vsel %vm1210, %v5513, %v5530
      %v5632 = vshrl.u32 %v4858, 16
      %v5634 = vrot.slane %v5632, 2
      %v5635 = vshll.u32 %v4858, 16
      %v5637 = vrot.slane %v5635, 3
      %v5638 = vor.u32 %v5634, %v5637
      %v5639 = vsel %vm1210, %v5530, %v5638
      %v5641 = vshrl.u32 %v4954, 16
      %v5643 = vrot.slane %v5641, 2
      %v5644 = vshll.u32 %v4954, 16
      %v5646 = vrot.slane %v5644, 3
      %v5647 = vor.u32 %v5643, %v5646
      %v5648 = vsel %vm1210, %v5547, %v5647
      %v5649 = vsel %vm1210, %v5564, %v5581
      %v5651 = vshrl.u32 %v5126, 16
      %v5653 = vrot.slane %v5651, 2
      %v5654 = vshll.u32 %v5126, 16
      %v5656 = vrot.slane %v5654, 3
      %v5657 = vor.u32 %v5653, %v5656
      %v5658 = vsel %vm1210, %v5581, %v5657
      %v5660 = vshrl.u32 %v5191, 16
      %v5662 = vrot.slane %v5660, 2
      %v5663 = vshll.u32 %v5191, 16
      %v5665 = vrot.slane %v5663, 3
      %v5666 = vor.u32 %v5662, %v5665
      %v5667 = vsel %vm1210, %v5598, %v5666
      %v5669 = vshrl.u32 %v5281, 16
      %v5671 = vrot.slane %v5669, 2
      %v5672 = vshll.u32 %v5281, 16
      %v5674 = vrot.slane %v5672, 3
      %v5675 = vor.u32 %v5671, %v5674
      %v5676 = vsel %vm1210, %v5615, %v5675
      %v5677 = vrot.slane %v4708, 2
      %v5678 = vrot.slane %v4704, 3
      %v5679 = vor.u32 %v5677, %v5678
      %v5680 = vsel %vm1210, %v5619, %v5679
      %v5682 = vshrl.u32 %v4715, 16
      %v5684 = vrot.slane %v5682, 2
      %v5685 = vshll.u32 %v4715, 16
      %v5687 = vrot.slane %v5685, 3
      %v5688 = vor.u32 %v5684, %v5687
      %v5689 = vsel %vm1210, %v5628, %v5688
      %v5691 = vshrl.u32 %v4860, 16
      %v5693 = vrot.slane %v5691, 2
      %v5694 = vshll.u32 %v4860, 16
      %v5696 = vrot.slane %v5694, 3
      %v5697 = vor.u32 %v5693, %v5696
      %v5698 = vsel %vm1210, %v5638, %v5697
      %v5700 = vshrl.u32 %v4963, 16
      %v5702 = vrot.slane %v5700, 2
      %v5703 = vshll.u32 %v4963, 16
      %v5705 = vrot.slane %v5703, 3
      %v5706 = vor.u32 %v5702, %v5705
      %v5707 = vsel %vm1210, %v5647, %v5706
      %v5709 = vshrl.u32 %v5128, 16
      %v5711 = vrot.slane %v5709, 2
      %v5712 = vshll.u32 %v5128, 16
      %v5714 = vrot.slane %v5712, 3
      %v5715 = vor.u32 %v5711, %v5714
      %v5716 = vsel %vm1210, %v5657, %v5715
      %v5718 = vshrl.u32 %v5195, 16
      %v5720 = vrot.slane %v5718, 2
      %v5721 = vshll.u32 %v5195, 16
      %v5723 = vrot.slane %v5721, 3
      %v5724 = vor.u32 %v5720, %v5723
      %v5725 = vsel %vm1210, %v5666, %v5724
      %v5727 = vshrl.u32 %v5283, 16
      %v5729 = vrot.slane %v5727, 2
      %v5730 = vshll.u32 %v5283, 16
      %v5732 = vrot.slane %v5730, 3
      %v5733 = vor.u32 %v5729, %v5732
      %v5734 = vsel %vm1210, %v5675, %v5733
      %v5735 = vrot.slane %v4716, 2
      %v5736 = vrot.slane %v4712, 3
      %v5737 = vor.u32 %v5735, %v5736
      %v5738 = vsel %vm1210, %v5679, %v5737
      %v5740 = vshrl.u32 %v4723, 16
      %v5742 = vrot.slane %v5740, 2
      %v5743 = vshll.u32 %v4723, 16
      %v5745 = vrot.slane %v5743, 3
      %v5746 = vor.u32 %v5742, %v5745
      %v5747 = vsel %vm1210, %v5688, %v5746
      %v5749 = vshrl.u32 %v4862, 16
      %v5751 = vrot.slane %v5749, 2
      %v5752 = vshll.u32 %v4862, 16
      %v5754 = vrot.slane %v5752, 3
      %v5755 = vor.u32 %v5751, %v5754
      %v5756 = vsel %vm1210, %v5697, %v5755
      %v5758 = vshrl.u32 %v4972, 16
      %v5760 = vrot.slane %v5758, 2
      %v5761 = vshll.u32 %v4972, 16
      %v5763 = vrot.slane %v5761, 3
      %v5764 = vor.u32 %v5760, %v5763
      %v5765 = vsel %vm1210, %v5706, %v5764
      %v5767 = vshrl.u32 %v5130, 16
      %v5769 = vrot.slane %v5767, 2
      %v5770 = vshll.u32 %v5130, 16
      %v5772 = vrot.slane %v5770, 3
      %v5773 = vor.u32 %v5769, %v5772
      %v5774 = vsel %vm1210, %v5715, %v5773
      %v5776 = vshrl.u32 %v5199, 16
      %v5778 = vrot.slane %v5776, 2
      %v5779 = vshll.u32 %v5199, 16
      %v5781 = vrot.slane %v5779, 3
      %v5782 = vor.u32 %v5778, %v5781
      %v5783 = vsel %vm1210, %v5724, %v5782
      %v5785 = vshrl.u32 %v5285, 16
      %v5787 = vrot.slane %v5785, 2
      %v5788 = vshll.u32 %v5285, 16
      %v5790 = vrot.slane %v5788, 3
      %v5791 = vor.u32 %v5787, %v5790
      %v5792 = vsel %vm1210, %v5733, %v5791
      %v5793 = vrot.slane %v4724, 2
      %v5794 = vrot.slane %v4720, 3
      %v5795 = vor.u32 %v5793, %v5794
      %v5796 = vsel %vm1210, %v5737, %v5795
      %v5798 = vshrl.u32 %v4731, 16
      %v5800 = vrot.slane %v5798, 2
      %v5801 = vshll.u32 %v4731, 16
      %v5803 = vrot.slane %v5801, 3
      %v5804 = vor.u32 %v5800, %v5803
      %v5805 = vsel %vm1210, %v5746, %v5804
      %v5807 = vshrl.u32 %v4864, 16
      %v5809 = vrot.slane %v5807, 2
      %v5810 = vshll.u32 %v4864, 16
      %v5812 = vrot.slane %v5810, 3
      %v5813 = vor.u32 %v5809, %v5812
      %v5814 = vsel %vm1210, %v5755, %v5813
      %v5816 = vshrl.u32 %v4981, 16
      %v5818 = vrot.slane %v5816, 2
      %v5819 = vshll.u32 %v4981, 16
      %v5821 = vrot.slane %v5819, 3
      %v5822 = vor.u32 %v5818, %v5821
      %v5823 = vsel %vm1210, %v5764, %v5822
      %v5825 = vshrl.u32 %v5132, 16
      %v5827 = vrot.slane %v5825, 2
      %v5828 = vshll.u32 %v5132, 16
      %v5830 = vrot.slane %v5828, 3
      %v5831 = vor.u32 %v5827, %v5830
      %v5832 = vsel %vm1210, %v5773, %v5831
      %v5834 = vshrl.u32 %v5203, 16
      %v5836 = vrot.slane %v5834, 2
      %v5837 = vshll.u32 %v5203, 16
      %v5839 = vrot.slane %v5837, 3
      %v5840 = vor.u32 %v5836, %v5839
      %v5841 = vsel %vm1210, %v5782, %v5840
      %v5843 = vshrl.u32 %v5287, 16
      %v5845 = vrot.slane %v5843, 2
      %v5846 = vshll.u32 %v5287, 16
      %v5848 = vrot.slane %v5846, 3
      %v5849 = vor.u32 %v5845, %v5848
      %v5850 = vsel %vm1210, %v5791, %v5849
      %v5851 = vrot.slane %v4732, 2
      %v5852 = vrot.slane %v4728, 3
      %v5853 = vor.u32 %v5851, %v5852
      %v5854 = vsel %vm1210, %v5795, %v5853
      %v5856 = vshrl.u32 %v4739, 16
      %v5858 = vrot.slane %v5856, 2
      %v5859 = vshll.u32 %v4739, 16
      %v5861 = vrot.slane %v5859, 3
      %v5862 = vor.u32 %v5858, %v5861
      %v5863 = vsel %vm1210, %v5804, %v5862
      %v5865 = vshrl.u32 %v4866, 16
      %v5867 = vrot.slane %v5865, 2
      %v5868 = vshll.u32 %v4866, 16
      %v5870 = vrot.slane %v5868, 3
      %v5871 = vor.u32 %v5867, %v5870
      %v5872 = vsel %vm1210, %v5813, %v5871
      %v5874 = vshrl.u32 %v4990, 16
      %v5876 = vrot.slane %v5874, 2
      %v5877 = vshll.u32 %v4990, 16
      %v5879 = vrot.slane %v5877, 3
      %v5880 = vor.u32 %v5876, %v5879
      %v5881 = vsel %vm1210, %v5822, %v5880
      %v5883 = vshrl.u32 %v5134, 16
      %v5885 = vrot.slane %v5883, 2
      %v5886 = vshll.u32 %v5134, 16
      %v5888 = vrot.slane %v5886, 3
      %v5889 = vor.u32 %v5885, %v5888
      %v5890 = vsel %vm1210, %v5831, %v5889
      %v5892 = vshrl.u32 %v5207, 16
      %v5894 = vrot.slane %v5892, 2
      %v5895 = vshll.u32 %v5207, 16
      %v5897 = vrot.slane %v5895, 3
      %v5898 = vor.u32 %v5894, %v5897
      %v5899 = vsel %vm1210, %v5840, %v5898
      %v5901 = vshrl.u32 %v5289, 16
      %v5903 = vrot.slane %v5901, 2
      %v5904 = vshll.u32 %v5289, 16
      %v5906 = vrot.slane %v5904, 3
      %v5907 = vor.u32 %v5903, %v5906
      %v5908 = vsel %vm1210, %v5849, %v5907
      %v5909 = vrot.slane %v4740, 2
      %v5910 = vrot.slane %v4736, 3
      %v5911 = vor.u32 %v5909, %v5910
      %v5912 = vsel %vm1210, %v5853, %v5911
      %v5914 = vshrl.u32 %v4747, 16
      %v5916 = vrot.slane %v5914, 2
      %v5917 = vshll.u32 %v4747, 16
      %v5919 = vrot.slane %v5917, 3
      %v5920 = vor.u32 %v5916, %v5919
      %v5921 = vsel %vm1210, %v5862, %v5920
      %v5923 = vshrl.u32 %v4868, 16
      %v5925 = vrot.slane %v5923, 2
      %v5926 = vshll.u32 %v4868, 16
      %v5928 = vrot.slane %v5926, 3
      %v5929 = vor.u32 %v5925, %v5928
      %v5930 = vsel %vm1210, %v5871, %v5929
      %v5932 = vshrl.u32 %v4999, 16
      %v5934 = vrot.slane %v5932, 2
      %v5935 = vshll.u32 %v4999, 16
      %v5937 = vrot.slane %v5935, 3
      %v5938 = vor.u32 %v5934, %v5937
      %v5939 = vsel %vm1210, %v5880, %v5938
      %v5941 = vshrl.u32 %v5136, 16
      %v5943 = vrot.slane %v5941, 2
      %v5944 = vshll.u32 %v5136, 16
      %v5946 = vrot.slane %v5944, 3
      %v5947 = vor.u32 %v5943, %v5946
      %v5948 = vsel %vm1210, %v5889, %v5947
      %v5950 = vshrl.u32 %v5211, 16
      %v5952 = vrot.slane %v5950, 2
      %v5953 = vshll.u32 %v5211, 16
      %v5955 = vrot.slane %v5953, 3
      %v5956 = vor.u32 %v5952, %v5955
      %v5957 = vsel %vm1210, %v5898, %v5956
      %v5959 = vshrl.u32 %v5291, 16
      %v5961 = vrot.slane %v5959, 2
      %v5962 = vshll.u32 %v5291, 16
      %v5964 = vrot.slane %v5962, 3
      %v5965 = vor.u32 %v5961, %v5964
      %v5966 = vsel %vm1210, %v5907, %v5965
      %v5967 = vrot.slane %v4748, 2
      %v5968 = vrot.slane %v4744, 3
      %v5969 = vor.u32 %v5967, %v5968
      %v5970 = vsel %vm1210, %v5911, %v5969
      %v5972 = vshrl.u32 %v4755, 16
      %v5974 = vrot.slane %v5972, 2
      %v5975 = vshll.u32 %v4755, 16
      %v5977 = vrot.slane %v5975, 3
      %v5978 = vor.u32 %v5974, %v5977
      %v5979 = vsel %vm1210, %v5920, %v5978
      %v5981 = vshrl.u32 %v4870, 16
      %v5983 = vrot.slane %v5981, 2
      %v5984 = vshll.u32 %v4870, 16
      %v5986 = vrot.slane %v5984, 3
      %v5987 = vor.u32 %v5983, %v5986
      %v5988 = vsel %vm1210, %v5929, %v5987
      %v5990 = vshrl.u32 %v5008, 16
      %v5992 = vrot.slane %v5990, 2
      %v5993 = vshll.u32 %v5008, 16
      %v5995 = vrot.slane %v5993, 3
      %v5996 = vor.u32 %v5992, %v5995
      %v5997 = vsel %vm1210, %v5938, %v5996
      %v5999 = vshrl.u32 %v5138, 16
      %v6001 = vrot.slane %v5999, 2
      %v6002 = vshll.u32 %v5138, 16
      %v6004 = vrot.slane %v6002, 3
      %v6005 = vor.u32 %v6001, %v6004
      %v6006 = vsel %vm1210, %v5947, %v6005
      %v6008 = vshrl.u32 %v5215, 16
      %v6010 = vrot.slane %v6008, 2
      %v6011 = vshll.u32 %v5215, 16
      %v6013 = vrot.slane %v6011, 3
      %v6014 = vor.u32 %v6010, %v6013
      %v6015 = vsel %vm1210, %v5956, %v6014
      %v6017 = vshrl.u32 %v5293, 16
      %v6019 = vrot.slane %v6017, 2
      %v6020 = vshll.u32 %v5293, 16
      %v6022 = vrot.slane %v6020, 3
      %v6023 = vor.u32 %v6019, %v6022
      %v6024 = vsel %vm1210, %v5965, %v6023
      %v6025 = vrot.slane %v4756, 2
      %v6026 = vrot.slane %v4752, 3
      %v6027 = vor.u32 %v6025, %v6026
      %v6028 = vsel %vm1210, %v5969, %v6027
      %v6030 = vshrl.u32 %v4763, 16
      %v6032 = vrot.slane %v6030, 2
      %v6033 = vshll.u32 %v4763, 16
      %v6035 = vrot.slane %v6033, 3
      %v6036 = vor.u32 %v6032, %v6035
      %v6037 = vsel %vm1210, %v5978, %v6036
      %v6039 = vshrl.u32 %v4872, 16
      %v6041 = vrot.slane %v6039, 2
      %v6042 = vshll.u32 %v4872, 16
      %v6044 = vrot.slane %v6042, 3
      %v6045 = vor.u32 %v6041, %v6044
      %v6046 = vsel %vm1210, %v5987, %v6045
      %v6048 = vshrl.u32 %v5017, 16
      %v6050 = vrot.slane %v6048, 2
      %v6051 = vshll.u32 %v5017, 16
      %v6053 = vrot.slane %v6051, 3
      %v6054 = vor.u32 %v6050, %v6053
      %v6055 = vsel %vm1210, %v5996, %v6054
      %v6057 = vshrl.u32 %v5140, 16
      %v6059 = vrot.slane %v6057, 2
      %v6060 = vshll.u32 %v5140, 16
      %v6062 = vrot.slane %v6060, 3
      %v6063 = vor.u32 %v6059, %v6062
      %v6064 = vsel %vm1210, %v6005, %v6063
      %v6066 = vshrl.u32 %v5219, 16
      %v6068 = vrot.slane %v6066, 2
      %v6069 = vshll.u32 %v5219, 16
      %v6071 = vrot.slane %v6069, 3
      %v6072 = vor.u32 %v6068, %v6071
      %v6073 = vsel %vm1210, %v6014, %v6072
      %v6075 = vshrl.u32 %v5295, 16
      %v6077 = vrot.slane %v6075, 2
      %v6078 = vshll.u32 %v5295, 16
      %v6080 = vrot.slane %v6078, 3
      %v6081 = vor.u32 %v6077, %v6080
      %v6082 = vsel %vm1210, %v6023, %v6081
      %v6083 = vrot.slane %v4764, 2
      %v6084 = vrot.slane %v4760, 3
      %v6085 = vor.u32 %v6083, %v6084
      %v6086 = vsel %vm1210, %v6027, %v6085
      %v6088 = vshrl.u32 %v4771, 16
      %v6090 = vrot.slane %v6088, 2
      %v6091 = vshll.u32 %v4771, 16
      %v6093 = vrot.slane %v6091, 3
      %v6094 = vor.u32 %v6090, %v6093
      %v6095 = vsel %vm1210, %v6036, %v6094
      %v6097 = vshrl.u32 %v4874, 16
      %v6099 = vrot.slane %v6097, 2
      %v6100 = vshll.u32 %v4874, 16
      %v6102 = vrot.slane %v6100, 3
      %v6103 = vor.u32 %v6099, %v6102
      %v6104 = vsel %vm1210, %v6045, %v6103
      %v6106 = vshrl.u32 %v5026, 16
      %v6108 = vrot.slane %v6106, 2
      %v6109 = vshll.u32 %v5026, 16
      %v6111 = vrot.slane %v6109, 3
      %v6112 = vor.u32 %v6108, %v6111
      %v6113 = vsel %vm1210, %v6054, %v6112
      %v6115 = vshrl.u32 %v5142, 16
      %v6117 = vrot.slane %v6115, 2
      %v6118 = vshll.u32 %v5142, 16
      %v6120 = vrot.slane %v6118, 3
      %v6121 = vor.u32 %v6117, %v6120
      %v6122 = vsel %vm1210, %v6063, %v6121
      %v6124 = vshrl.u32 %v5223, 16
      %v6126 = vrot.slane %v6124, 2
      %v6127 = vshll.u32 %v5223, 16
      %v6129 = vrot.slane %v6127, 3
      %v6130 = vor.u32 %v6126, %v6129
      %v6131 = vsel %vm1210, %v6072, %v6130
      %v6133 = vshrl.u32 %v5297, 16
      %v6135 = vrot.slane %v6133, 2
      %v6136 = vshll.u32 %v5297, 16
      %v6138 = vrot.slane %v6136, 3
      %v6139 = vor.u32 %v6135, %v6138
      %v6140 = vsel %vm1210, %v6081, %v6139
      %v6141 = vrot.slane %v4772, 2
      %v6142 = vrot.slane %v4768, 3
      %v6143 = vor.u32 %v6141, %v6142
      %v6144 = vsel %vm1210, %v6085, %v6143
      %v6146 = vshrl.u32 %v4779, 16
      %v6148 = vrot.slane %v6146, 2
      %v6149 = vshll.u32 %v4779, 16
      %v6151 = vrot.slane %v6149, 3
      %v6152 = vor.u32 %v6148, %v6151
      %v6153 = vsel %vm1210, %v6094, %v6152
      %v6155 = vshrl.u32 %v4876, 16
      %v6157 = vrot.slane %v6155, 2
      %v6158 = vshll.u32 %v4876, 16
      %v6160 = vrot.slane %v6158, 3
      %v6161 = vor.u32 %v6157, %v6160
      %v6162 = vsel %vm1210, %v6103, %v6161
      %v6164 = vshrl.u32 %v5035, 16
      %v6166 = vrot.slane %v6164, 2
      %v6167 = vshll.u32 %v5035, 16
      %v6169 = vrot.slane %v6167, 3
      %v6170 = vor.u32 %v6166, %v6169
      %v6171 = vsel %vm1210, %v6112, %v6170
      %v6173 = vshrl.u32 %v5144, 16
      %v6175 = vrot.slane %v6173, 2
      %v6176 = vshll.u32 %v5144, 16
      %v6178 = vrot.slane %v6176, 3
      %v6179 = vor.u32 %v6175, %v6178
      %v6180 = vsel %vm1210, %v6121, %v6179
      %v6182 = vshrl.u32 %v5227, 16
      %v6184 = vrot.slane %v6182, 2
      %v6185 = vshll.u32 %v5227, 16
      %v6187 = vrot.slane %v6185, 3
      %v6188 = vor.u32 %v6184, %v6187
      %v6189 = vsel %vm1210, %v6130, %v6188
      %v6191 = vshrl.u32 %v5299, 16
      %v6193 = vrot.slane %v6191, 2
      %v6194 = vshll.u32 %v5299, 16
      %v6196 = vrot.slane %v6194, 3
      %v6197 = vor.u32 %v6193, %v6196
      %v6198 = vsel %vm1210, %v6139, %v6197
      %v6199 = vrot.slane %v4780, 2
      %v6200 = vrot.slane %v4776, 3
      %v6201 = vor.u32 %v6199, %v6200
      %v6202 = vsel %vm1210, %v6143, %v6201
      %v6204 = vshrl.u32 %v4787, 16
      %v6206 = vrot.slane %v6204, 2
      %v6207 = vshll.u32 %v4787, 16
      %v6209 = vrot.slane %v6207, 3
      %v6210 = vor.u32 %v6206, %v6209
      %v6211 = vsel %vm1210, %v6152, %v6210
      %v6213 = vshrl.u32 %v4878, 16
      %v6215 = vrot.slane %v6213, 2
      %v6216 = vshll.u32 %v4878, 16
      %v6218 = vrot.slane %v6216, 3
      %v6219 = vor.u32 %v6215, %v6218
      %v6220 = vsel %vm1210, %v6161, %v6219
      %v6222 = vshrl.u32 %v5044, 16
      %v6224 = vrot.slane %v6222, 2
      %v6225 = vshll.u32 %v5044, 16
      %v6227 = vrot.slane %v6225, 3
      %v6228 = vor.u32 %v6224, %v6227
      %v6229 = vsel %vm1210, %v6170, %v6228
      %v6231 = vshrl.u32 %v5146, 16
      %v6233 = vrot.slane %v6231, 2
      %v6234 = vshll.u32 %v5146, 16
      %v6236 = vrot.slane %v6234, 3
      %v6237 = vor.u32 %v6233, %v6236
      %v6238 = vsel %vm1210, %v6179, %v6237
      %v6240 = vshrl.u32 %v5231, 16
      %v6242 = vrot.slane %v6240, 2
      %v6243 = vshll.u32 %v5231, 16
      %v6245 = vrot.slane %v6243, 3
      %v6246 = vor.u32 %v6242, %v6245
      %v6247 = vsel %vm1210, %v6188, %v6246
      %v6249 = vshrl.u32 %v5301, 16
      %v6251 = vrot.slane %v6249, 2
      %v6252 = vshll.u32 %v5301, 16
      %v6254 = vrot.slane %v6252, 3
      %v6255 = vor.u32 %v6251, %v6254
      %v6256 = vsel %vm1210, %v6197, %v6255
      %v6257 = vrot.slane %v4788, 2
      %v6258 = vrot.slane %v4784, 3
      %v6259 = vor.u32 %v6257, %v6258
      %v6260 = vsel %vm1210, %v6201, %v6259
      %v6262 = vshrl.u32 %v4795, 16
      %v6264 = vrot.slane %v6262, 2
      %v6265 = vshll.u32 %v4795, 16
      %v6267 = vrot.slane %v6265, 3
      %v6268 = vor.u32 %v6264, %v6267
      %v6269 = vsel %vm1210, %v6210, %v6268
      %v6271 = vshrl.u32 %v4880, 16
      %v6273 = vrot.slane %v6271, 2
      %v6274 = vshll.u32 %v4880, 16
      %v6276 = vrot.slane %v6274, 3
      %v6277 = vor.u32 %v6273, %v6276
      %v6278 = vsel %vm1210, %v6219, %v6277
      %v6280 = vshrl.u32 %v5053, 16
      %v6282 = vrot.slane %v6280, 2
      %v6283 = vshll.u32 %v5053, 16
      %v6285 = vrot.slane %v6283, 3
      %v6286 = vor.u32 %v6282, %v6285
      %v6287 = vsel %vm1210, %v6228, %v6286
      %v6289 = vshrl.u32 %v5148, 16
      %v6291 = vrot.slane %v6289, 2
      %v6292 = vshll.u32 %v5148, 16
      %v6294 = vrot.slane %v6292, 3
      %v6295 = vor.u32 %v6291, %v6294
      %v6296 = vsel %vm1210, %v6237, %v6295
      %v6298 = vshrl.u32 %v5235, 16
      %v6300 = vrot.slane %v6298, 2
      %v6301 = vshll.u32 %v5235, 16
      %v6303 = vrot.slane %v6301, 3
      %v6304 = vor.u32 %v6300, %v6303
      %v6305 = vsel %vm1210, %v6246, %v6304
      %v6307 = vshrl.u32 %v5303, 16
      %v6309 = vrot.slane %v6307, 2
      %v6310 = vshll.u32 %v5303, 16
      %v6312 = vrot.slane %v6310, 3
      %v6313 = vor.u32 %v6309, %v6312
      %v6314 = vsel %vm1210, %v6255, %v6313
      %v6315 = vrot.slane %v4796, 2
      %v6316 = vrot.slane %v4792, 3
      %v6317 = vor.u32 %v6315, %v6316
      %v6318 = vsel %vm1210, %v6259, %v6317
      %v6320 = vshrl.u32 %v4803, 16
      %v6322 = vrot.slane %v6320, 2
      %v6323 = vshll.u32 %v4803, 16
      %v6325 = vrot.slane %v6323, 3
      %v6326 = vor.u32 %v6322, %v6325
      %v6327 = vsel %vm1210, %v6268, %v6326
      %v6329 = vshrl.u32 %v4882, 16
      %v6331 = vrot.slane %v6329, 2
      %v6332 = vshll.u32 %v4882, 16
      %v6334 = vrot.slane %v6332, 3
      %v6335 = vor.u32 %v6331, %v6334
      %v6336 = vsel %vm1210, %v6277, %v6335
      %v6338 = vshrl.u32 %v5062, 16
      %v6340 = vrot.slane %v6338, 2
      %v6341 = vshll.u32 %v5062, 16
      %v6343 = vrot.slane %v6341, 3
      %v6344 = vor.u32 %v6340, %v6343
      %v6345 = vsel %vm1210, %v6286, %v6344
      %v6347 = vshrl.u32 %v5150, 16
      %v6349 = vrot.slane %v6347, 2
      %v6350 = vshll.u32 %v5150, 16
      %v6352 = vrot.slane %v6350, 3
      %v6353 = vor.u32 %v6349, %v6352
      %v6354 = vsel %vm1210, %v6295, %v6353
      %v6356 = vshrl.u32 %v5239, 16
      %v6358 = vrot.slane %v6356, 2
      %v6359 = vshll.u32 %v5239, 16
      %v6361 = vrot.slane %v6359, 3
      %v6362 = vor.u32 %v6358, %v6361
      %v6363 = vsel %vm1210, %v6304, %v6362
      %v6365 = vshrl.u32 %v5305, 16
      %v6367 = vrot.slane %v6365, 2
      %v6368 = vshll.u32 %v5305, 16
      %v6370 = vrot.slane %v6368, 3
      %v6371 = vor.u32 %v6367, %v6370
      %v6372 = vsel %vm1210, %v6313, %v6371
      %v6373 = vrot.slane %v4804, 2
      %v6374 = vrot.slane %v4800, 3
      %v6375 = vor.u32 %v6373, %v6374
      %v6376 = vsel %vm1210, %v6317, %v6375
      %v6378 = vshrl.u32 %v4811, 16
      %v6380 = vrot.slane %v6378, 2
      %v6381 = vshll.u32 %v4811, 16
      %v6383 = vrot.slane %v6381, 3
      %v6384 = vor.u32 %v6380, %v6383
      %v6385 = vsel %vm1210, %v6326, %v6384
      %v6387 = vshrl.u32 %v4884, 16
      %v6389 = vrot.slane %v6387, 2
      %v6390 = vshll.u32 %v4884, 16
      %v6392 = vrot.slane %v6390, 3
      %v6393 = vor.u32 %v6389, %v6392
      %v6394 = vsel %vm1210, %v6335, %v6393
      %v6396 = vshrl.u32 %v5071, 16
      %v6398 = vrot.slane %v6396, 2
      %v6399 = vshll.u32 %v5071, 16
      %v6401 = vrot.slane %v6399, 3
      %v6402 = vor.u32 %v6398, %v6401
      %v6403 = vsel %vm1210, %v6344, %v6402
      %v6405 = vshrl.u32 %v5152, 16
      %v6407 = vrot.slane %v6405, 2
      %v6408 = vshll.u32 %v5152, 16
      %v6410 = vrot.slane %v6408, 3
      %v6411 = vor.u32 %v6407, %v6410
      %v6412 = vsel %vm1210, %v6353, %v6411
      %v6414 = vshrl.u32 %v5243, 16
      %v6416 = vrot.slane %v6414, 2
      %v6417 = vshll.u32 %v5243, 16
      %v6419 = vrot.slane %v6417, 3
      %v6420 = vor.u32 %v6416, %v6419
      %v6421 = vsel %vm1210, %v6362, %v6420
      %v6423 = vshrl.u32 %v5307, 16
      %v6425 = vrot.slane %v6423, 2
      %v6426 = vshll.u32 %v5307, 16
      %v6428 = vrot.slane %v6426, 3
      %v6429 = vor.u32 %v6425, %v6428
      %v6430 = vsel %vm1210, %v6371, %v6429
      %v6431 = vrot.slane %v4812, 2
      %v6432 = vrot.slane %v4808, 3
      %v6433 = vor.u32 %v6431, %v6432
      %v6434 = vsel %vm1210, %v6375, %v6433
      %v6436 = vshrl.u32 %v4819, 16
      %v6438 = vrot.slane %v6436, 2
      %v6439 = vshll.u32 %v4819, 16
      %v6441 = vrot.slane %v6439, 3
      %v6442 = vor.u32 %v6438, %v6441
      %v6443 = vsel %vm1210, %v6384, %v6442
      %v6445 = vshrl.u32 %v4886, 16
      %v6447 = vrot.slane %v6445, 2
      %v6448 = vshll.u32 %v4886, 16
      %v6450 = vrot.slane %v6448, 3
      %v6451 = vor.u32 %v6447, %v6450
      %v6452 = vsel %vm1210, %v6393, %v6451
      %v6454 = vshrl.u32 %v5080, 16
      %v6456 = vrot.slane %v6454, 2
      %v6457 = vshll.u32 %v5080, 16
      %v6459 = vrot.slane %v6457, 3
      %v6460 = vor.u32 %v6456, %v6459
      %v6461 = vsel %vm1210, %v6402, %v6460
      %v6463 = vshrl.u32 %v5154, 16
      %v6465 = vrot.slane %v6463, 2
      %v6466 = vshll.u32 %v5154, 16
      %v6468 = vrot.slane %v6466, 3
      %v6469 = vor.u32 %v6465, %v6468
      %v6470 = vsel %vm1210, %v6411, %v6469
      %v6472 = vshrl.u32 %v5247, 16
      %v6474 = vrot.slane %v6472, 2
      %v6475 = vshll.u32 %v5247, 16
      %v6477 = vrot.slane %v6475, 3
      %v6478 = vor.u32 %v6474, %v6477
      %v6479 = vsel %vm1210, %v6420, %v6478
      %v6481 = vshrl.u32 %v5309, 16
      %v6483 = vrot.slane %v6481, 2
      %v6484 = vshll.u32 %v5309, 16
      %v6486 = vrot.slane %v6484, 3
      %v6487 = vor.u32 %v6483, %v6486
      %v6488 = vsel %vm1210, %v6429, %v6487
      %v6489 = vrot.slane %v4820, 2
      %v6490 = vrot.slane %v4816, 3
      %v6491 = vor.u32 %v6489, %v6490
      %v6492 = vsel %vm1210, %v6433, %v6491
      %v6494 = vshrl.u32 %v4827, 16
      %v6496 = vrot.slane %v6494, 2
      %v6497 = vshll.u32 %v4827, 16
      %v6499 = vrot.slane %v6497, 3
      %v6500 = vor.u32 %v6496, %v6499
      %v6501 = vsel %vm1210, %v6442, %v6500
      %v6503 = vshrl.u32 %v4888, 16
      %v6505 = vrot.slane %v6503, 2
      %v6506 = vshll.u32 %v4888, 16
      %v6508 = vrot.slane %v6506, 3
      %v6509 = vor.u32 %v6505, %v6508
      %v6510 = vsel %vm1210, %v6451, %v6509
      %v6512 = vshrl.u32 %v5089, 16
      %v6514 = vrot.slane %v6512, 2
      %v6515 = vshll.u32 %v5089, 16
      %v6517 = vrot.slane %v6515, 3
      %v6518 = vor.u32 %v6514, %v6517
      %v6519 = vsel %vm1210, %v6460, %v6518
      %v6521 = vshrl.u32 %v5156, 16
      %v6523 = vrot.slane %v6521, 2
      %v6524 = vshll.u32 %v5156, 16
      %v6526 = vrot.slane %v6524, 3
      %v6527 = vor.u32 %v6523, %v6526
      %v6528 = vsel %vm1210, %v6469, %v6527
      %v6530 = vshrl.u32 %v5251, 16
      %v6532 = vrot.slane %v6530, 2
      %v6533 = vshll.u32 %v5251, 16
      %v6535 = vrot.slane %v6533, 3
      %v6536 = vor.u32 %v6532, %v6535
      %v6537 = vsel %vm1210, %v6478, %v6536
      %v6539 = vshrl.u32 %v5311, 16
      %v6541 = vrot.slane %v6539, 2
      %v6542 = vshll.u32 %v5311, 16
      %v6544 = vrot.slane %v6542, 3
      %v6545 = vor.u32 %v6541, %v6544
      %v6546 = vsel %vm1210, %v6487, %v6545
      %v6547 = vrot.slane %v4828, 2
      %v6548 = vrot.slane %v4824, 3
      %v6549 = vor.u32 %v6547, %v6548
      %v6550 = vsel %vm1210, %v6491, %v6549
      %v6552 = vshrl.u32 %v4835, 16
      %v6554 = vrot.slane %v6552, 2
      %v6555 = vshll.u32 %v4835, 16
      %v6557 = vrot.slane %v6555, 3
      %v6558 = vor.u32 %v6554, %v6557
      %v6559 = vsel %vm1210, %v6500, %v6558
      %v6561 = vshrl.u32 %v4905, 16
      %v6563 = vrot.slane %v6561, 2
      %v6564 = vshll.u32 %v4905, 16
      %v6566 = vrot.slane %v6564, 3
      %v6567 = vor.u32 %v6563, %v6566
      %v6568 = vsel %vm1210, %v6509, %v6567
      %v6570 = vshrl.u32 %v5098, 16
      %v6572 = vrot.slane %v6570, 2
      %v6573 = vshll.u32 %v5098, 16
      %v6575 = vrot.slane %v6573, 3
      %v6576 = vor.u32 %v6572, %v6575
      %v6577 = vsel %vm1210, %v6518, %v6576
      %v6579 = vshrl.u32 %v5158, 16
      %v6581 = vrot.slane %v6579, 2
      %v6582 = vshll.u32 %v5158, 16
      %v6584 = vrot.slane %v6582, 3
      %v6585 = vor.u32 %v6581, %v6584
      %v6586 = vsel %vm1210, %v6527, %v6585
      %v6588 = vshrl.u32 %v5255, 16
      %v6590 = vrot.slane %v6588, 2
      %v6591 = vshll.u32 %v5255, 16
      %v6593 = vrot.slane %v6591, 3
      %v6594 = vor.u32 %v6590, %v6593
      %v6595 = vsel %vm1210, %v6536, %v6594
      %v6597 = vshrl.u32 %v5313, 16
      %v6599 = vrot.slane %v6597, 2
      %v6600 = vshll.u32 %v5313, 16
      %v6602 = vrot.slane %v6600, 3
      %v6603 = vor.u32 %v6599, %v6602
      %v6604 = vsel %vm1210, %v6545, %v6603
      %v6605 = vrot.slane %v4836, 2
      %v6606 = vrot.slane %v4832, 3
      %v6607 = vor.u32 %v6605, %v6606
      %v6608 = vsel %vm1210, %v6549, %v6607
      %v6610 = vshrl.u32 %v4843, 16
      %v6612 = vrot.slane %v6610, 2
      %v6613 = vshll.u32 %v4843, 16
      %v6615 = vrot.slane %v6613, 3
      %v6616 = vor.u32 %v6612, %v6615
      %v6617 = vsel %vm1210, %v6558, %v6616
      %v6619 = vshrl.u32 %v4890, 16
      %v6621 = vrot.slane %v6619, 2
      %v6622 = vshll.u32 %v4890, 16
      %v6624 = vrot.slane %v6622, 3
      %v6625 = vor.u32 %v6621, %v6624
      %v6626 = vsel %vm1210, %v6509, %v6625
      %v6628 = vshrl.u32 %v4907, 16
      %v6630 = vrot.slane %v6628, 2
      %v6631 = vshll.u32 %v4907, 16
      %v6633 = vrot.slane %v6631, 3
      %v6634 = vor.u32 %v6630, %v6633
      %v6635 = vsel %vm1210, %v6567, %v6634
      %v6637 = vshrl.u32 %v5107, 16
      %v6639 = vrot.slane %v6637, 2
      %v6640 = vshll.u32 %v5107, 16
      %v6642 = vrot.slane %v6640, 3
      %v6643 = vor.u32 %v6639, %v6642
      %v6644 = vsel %vm1210, %v6576, %v6643
      %v6646 = vshrl.u32 %v5170, 16
      %v6648 = vrot.slane %v6646, 2
      %v6649 = vshll.u32 %v5170, 16
      %v6651 = vrot.slane %v6649, 3
      %v6652 = vor.u32 %v6648, %v6651
      %v6653 = vsel %vm1210, %v6585, %v6652
      %v6655 = vshrl.u32 %v5264, 16
      %v6657 = vrot.slane %v6655, 2
      %v6658 = vshll.u32 %v5264, 16
      %v6660 = vrot.slane %v6658, 3
      %v6661 = vor.u32 %v6657, %v6660
      %v6662 = vsel %vm1210, %v6594, %v6661
      %v6664 = vshrl.u32 %v5315, 16
      %v6666 = vrot.slane %v6664, 2
      %v6667 = vshll.u32 %v5315, 16
      %v6669 = vrot.slane %v6667, 3
      %v6670 = vor.u32 %v6666, %v6669
      %v6671 = vsel %vm1210, %v6603, %v6670
      %v6672 = vrot.slane %v4844, 2
      %v6673 = vrot.slane %v4840, 3
      %v6674 = vor.u32 %v6672, %v6673
      %v6675 = vsel %vm1210, %v6607, %v6674
      %v6677 = vshrl.u32 %v4846, 16
      %v6679 = vrot.slane %v6677, 2
      %v6680 = vshll.u32 %v4846, 16
      %v6682 = vrot.slane %v6680, 3
      %v6683 = vor.u32 %v6679, %v6682
      %v6684 = vsel %vm1210, %v6616, %v6683
      %v6686 = vshrl.u32 %v4889, 16
      %v6688 = vrot.slane %v6686, 2
      %v6689 = vshll.u32 %v4889, 16
      %v6691 = vrot.slane %v6689, 3
      %v6692 = vor.u32 %v6688, %v6691
      %v6693 = vsel %vm1210, %v6625, %v6692
      %v6695 = vshrl.u32 %v4906, 16
      %v6697 = vrot.slane %v6695, 2
      %v6698 = vshll.u32 %v4906, 16
      %v6700 = vrot.slane %v6698, 3
      %v6701 = vor.u32 %v6697, %v6700
      %v6702 = vsel %vm1210, %v6634, %v6701
      %v6704 = vshrl.u32 %v5116, 16
      %v6706 = vrot.slane %v6704, 2
      %v6707 = vshll.u32 %v5116, 16
      %v6709 = vrot.slane %v6707, 3
      %v6710 = vor.u32 %v6706, %v6709
      %v6711 = vsel %vm1210, %v6643, %v6710
      %v6713 = vshrl.u32 %v5160, 16
      %v6715 = vrot.slane %v6713, 2
      %v6716 = vshll.u32 %v5160, 16
      %v6718 = vrot.slane %v6716, 3
      %v6719 = vor.u32 %v6715, %v6718
      %v6720 = vsel %vm1210, %v6585, %v6719
      %v6722 = vshrl.u32 %v5172, 16
      %v6724 = vrot.slane %v6722, 2
      %v6725 = vshll.u32 %v5172, 16
      %v6727 = vrot.slane %v6725, 3
      %v6728 = vor.u32 %v6724, %v6727
      %v6729 = vsel %vm1210, %v6652, %v6728
      %v6731 = vshrl.u32 %v5273, 16
      %v6733 = vrot.slane %v6731, 2
      %v6734 = vshll.u32 %v5273, 16
      %v6736 = vrot.slane %v6734, 3
      %v6737 = vor.u32 %v6733, %v6736
      %v6738 = vsel %vm1210, %v6661, %v6737
      %v6740 = vshrl.u32 %v5317, 16
      %v6742 = vrot.slane %v6740, 2
      %v6743 = vshll.u32 %v5317, 16
      %v6745 = vrot.slane %v6743, 3
      %v6746 = vor.u32 %v6742, %v6745
      %v6747 = vsel %vm1210, %v6670, %v6746
      %v7048 = vunpack.c.l.b16 %v5318
      %v7049 = vunpack.c.l.b16 %v5319
      %v7050 = vunpack.c.l.b16 %v5320
      %v7051 = vunpack.c.l.b16 %v5321
      %v7052 = vunpack.c.l.b16 %v5322
      %v7053 = vunpack.c.l.b16 %v5323
      %v7054 = vunpack.c.l.b16 %v5324
      %v7055 = vunpack.c.l.b16 %v5325
      %v7056 = vunpack.c.l.b16 %v5326
      %v7057 = vunpack.c.l.b16 %v5327
      %v7058 = vunpack.c.l.b16 %v5328
      %v7059 = vunpack.c.l.b16 %v5329
      %v7060 = vunpack.c.l.b16 %v5330
      %v7061 = vunpack.c.l.b16 %v5331
      %v7062 = vunpack.c.l.b16 %v5332
      %v7063 = vunpack.c.l.b16 %v5333
      %v7064 = vunpack.c.l.b16 %v5334
      %v7065 = vunpack.c.l.b16 %v5335
      %v7066 = vunpack.c.l.b16 %v5336
      %v7067 = vunpack.c.l.b16 %v5337
      %v7068 = vunpack.c.l.b16 %v5338
      %v7069 = vunpack.c.l.b16 %v5339
      %v7070 = vunpack.c.l.b16 %v5340
      %v7071 = vunpack.c.l.b16 %v5341
      %v7072 = vunpack.c.l.b16 %v5342
      %v7073 = vunpack.c.l.b16 %v5343
      %v7074 = vunpack.c.l.b16 %v5344
      %v7075 = vunpack.c.l.b16 %v5345
      %v7076 = vunpack.c.l.b16 %v5346
      %v7077 = vunpack.c.l.b16 %v5347
      %v7078 = vunpack.c.l.b16 %v5348
      %v7079 = vunpack.c.l.b16 %v5349
      %v7080 = vunpack.c.l.b16 %v5350
      %v7081 = vunpack.c.l.b16 %v5351
      %v7082 = vunpack.c.l.b16 %v5352
      %v7083 = vunpack.c.l.b16 %v5353
      %v7084 = vunpack.c.l.b16 %v5354
      %v7085 = vunpack.c.l.b16 %v5355
      %v7086 = vunpack.c.l.b16 %v5356
      %v7087 = vunpack.c.l.b16 %v5357
      %v7088 = vunpack.c.l.b16 %v5358
      %v7089 = vunpack.c.l.b16 %v5359
      %v7090 = vunpack.c.l.b16 %v5360
      %v7091 = vunpack.c.l.b16 %v5361
      %v7092 = vunpack.c.l.b16 %v5362
      %v7093 = vunpack.c.l.b16 %v5363
      %v7094 = vunpack.c.l.b16 %v5364
      %v7095 = vunpack.c.l.b16 %v5365
      %v7096 = vunpack.c.l.b16 %v5366
      %v7097 = vunpack.c.l.b16 %v5367
      %v7098 = vunpack.c.l.b16 %v5368
      %v7099 = vunpack.c.l.b16 %v5369
      %v7100 = vunpack.c.l.b16 %v5370
      %v7101 = vunpack.c.l.b16 %v5371
      %v7102 = vunpack.c.l.b16 %v5372
      %v7103 = vunpack.c.l.b16 %v5373
      %v7104 = vunpack.c.l.b16 %v5374
      %v7105 = vunpack.c.l.b16 %v5375
      %v7106 = vunpack.c.l.b16 %v5376
      %v7107 = vunpack.c.l.b16 %v5377
      %v7108 = vunpack.c.l.b16 %v5378
      %v7109 = vunpack.c.l.b16 %v5379
      %v7110 = vunpack.c.l.b16 %v5380
      %v7111 = vunpack.c.l.b16 %v5381
      %v7112 = vunpack.c.l.b16 %v5382
      %v7113 = vunpack.c.l.b16 %v5383
      %v7114 = vunpack.c.l.b16 %v5384
      %v7115 = vunpack.c.l.b16 %v5385
      %v7116 = vunpack.c.l.b16 %v5386
      %v7117 = vunpack.c.l.b16 %v5387
      %v7118 = vunpack.c.l.b16 %v5388
      %v7119 = vunpack.c.l.b16 %v5389
      %v7120 = vunpack.c.l.b16 %v5390
      %v7121 = vunpack.c.l.b16 %v5391
      %v7122 = vunpack.c.l.b16 %v5392
      %v7123 = vunpack.c.l.b16 %v5393
      %v7124 = vunpack.c.l.b16 %v5394
      %v7125 = vunpack.c.l.b16 %v5395
      %v7126 = vunpack.c.l.b16 %v5396
      %v7127 = vunpack.c.l.b16 %v5397
      %v7128 = vunpack.c.l.b16 %v5398
      %v7129 = vunpack.c.l.b16 %v5399
      %v7130 = vunpack.c.l.b16 %v5400
      %v7131 = vunpack.c.l.b16 %v5401
      %v7132 = vunpack.c.l.b16 %v5402
      %v7133 = vunpack.c.l.b16 %v5403
      %v7134 = vunpack.c.l.b16 %v5404
      %v7135 = vunpack.c.l.b16 %v5405
      %v7136 = vunpack.c.l.b16 %v5406
      %v7137 = vunpack.c.l.b16 %v5407
      %v7138 = vunpack.c.l.b16 %v5408
      %v7139 = vunpack.c.l.b16 %v5409
      %v7140 = vunpack.c.l.b16 %v5410
      %v7141 = vunpack.c.l.b16 %v5411
      %v7142 = vunpack.c.l.b16 %v5412
      %v7143 = vunpack.c.l.b16 %v5413
      %v7144 = vunpack.c.l.b16 %v5414
      %v7145 = vunpack.c.l.b16 %v5415
      %v7146 = vunpack.c.l.b16 %v5416
      %v7147 = vunpack.c.l.b16 %v5417
      %v7148 = vunpack.c.l.b16 %v5418
      %v7149 = vunpack.c.l.b16 %v5419
      %v7150 = vunpack.c.l.b16 %v5420
      %v7151 = vunpack.c.l.b16 %v5421
      %v7152 = vunpack.c.l.b16 %v5422
      %v7153 = vunpack.c.l.b16 %v5423
      %v7154 = vunpack.c.l.b16 %v5424
      %v7155 = vunpack.c.l.b16 %v5425
      %v7156 = vunpack.c.l.b16 %v5426
      %v7157 = vunpack.c.l.b16 %v5427
      %v7158 = vunpack.c.l.b16 %v5428
      %v7159 = vunpack.c.l.b16 %v5429
      %v7160 = vunpack.c.l.b16 %v5430
      %v7161 = vunpack.c.l.b16 %v5431
      %v7162 = vunpack.c.l.b16 %v5432
      %v7163 = vunpack.c.l.b16 %v5433
      %v7164 = vunpack.c.l.b16 %v5434
      %v7165 = vunpack.c.l.b16 %v5435
      %v7166 = vunpack.c.l.b16 %v5436
      %v7167 = vunpack.c.l.b16 %v5437
      %v7168 = vunpack.c.l.b16 %v5438
      %v7169 = vunpack.c.l.b16 %v5439
      %v7170 = vunpack.c.l.b16 %v5440
      %v7171 = vunpack.c.l.b16 %v5441
      %v7172 = vunpack.c.l.b16 %v5442
      %v7173 = vunpack.c.l.b16 %v5443
      %v7174 = vunpack.c.l.b16 %v5444
      %v7175 = vunpack.c.l.b16 %v5445
      %v7176 = vunpack.c.l.b16 %v5446
      %v7177 = vunpack.c.l.b16 %v5447
      %v7178 = vunpack.c.l.b16 %v5448
      %v7179 = vunpack.c.l.b16 %v5449
      %v7180 = vunpack.c.l.b16 %v5450
      %v7181 = vunpack.c.l.b16 %v5451
      %v7182 = vunpack.c.l.b16 %v5452
      %v7183 = vunpack.c.l.b16 %v5453
      %v7184 = vunpack.c.l.b16 %v5454
      %v7185 = vunpack.c.l.b16 %v5455
      %v7186 = vunpack.c.l.b16 %v5456
      %v7187 = vunpack.c.l.b16 %v5457
      %v7188 = vunpack.c.l.b16 %v5458
      %v7189 = vunpack.c.l.b16 %v5459
      %v7190 = vunpack.c.l.b16 %v5460
      %v7191 = vunpack.c.l.b16 %v5461
      %v7192 = vpack.c.b16 %v7049, %v7048
      %v7193 = vpack.c.b16 %v7051, %v7050
      %v7194 = vpack.c.b16 %v7053, %v7052
      %v7195 = vpack.c.b16 %v7055, %v7054
      %v7196 = vpack.c.b16 %v7057, %v7056
      %v7197 = vpack.c.b16 %v7059, %v7058
      %v7198 = vpack.c.b16 %v7061, %v7060
      %v7199 = vpack.c.b16 %v7063, %v7062
      %v7200 = vpack.c.b16 %v7065, %v7064
      %v7201 = vpack.c.b16 %v7067, %v7066
      %v7202 = vpack.c.b16 %v7069, %v7068
      %v7203 = vpack.c.b16 %v7071, %v7070
      %v7204 = vpack.c.b16 %v7073, %v7072
      %v7205 = vpack.c.b16 %v7075, %v7074
      %v7206 = vpack.c.b16 %v7077, %v7076
      %v7207 = vpack.c.b16 %v7079, %v7078
      %v7208 = vpack.c.b16 %v7081, %v7080
      %v7209 = vpack.c.b16 %v7083, %v7082
      %v7210 = vpack.c.b16 %v7085, %v7084
      %v7211 = vpack.c.b16 %v7087, %v7086
      %v7212 = vpack.c.b16 %v7089, %v7088
      %v7213 = vpack.c.b16 %v7091, %v7090
      %v7214 = vpack.c.b16 %v7093, %v7092
      %v7215 = vpack.c.b16 %v7095, %v7094
      %v7216 = vpack.c.b16 %v7097, %v7096
      %v7217 = vpack.c.b16 %v7099, %v7098
      %v7218 = vpack.c.b16 %v7101, %v7100
      %v7219 = vpack.c.b16 %v7103, %v7102
      %v7220 = vpack.c.b16 %v7105, %v7104
      %v7221 = vpack.c.b16 %v7107, %v7106
      %v7222 = vpack.c.b16 %v7109, %v7108
      %v7223 = vpack.c.b16 %v7111, %v7110
      %v7224 = vpack.c.b16 %v7113, %v7112
      %v7225 = vpack.c.b16 %v7115, %v7114
      %v7226 = vpack.c.b16 %v7117, %v7116
      %v7227 = vpack.c.b16 %v7119, %v7118
      %v7228 = vpack.c.b16 %v7121, %v7120
      %v7229 = vpack.c.b16 %v7123, %v7122
      %v7230 = vpack.c.b16 %v7125, %v7124
      %v7231 = vpack.c.b16 %v7127, %v7126
      %v7232 = vpack.c.b16 %v7129, %v7128
      %v7233 = vpack.c.b16 %v7131, %v7130
      %v7234 = vpack.c.b16 %v7133, %v7132
      %v7235 = vpack.c.b16 %v7135, %v7134
      %v7236 = vpack.c.b16 %v7137, %v7136
      %v7237 = vpack.c.b16 %v7139, %v7138
      %v7238 = vpack.c.b16 %v7141, %v7140
      %v7239 = vpack.c.b16 %v7143, %v7142
      %v7240 = vpack.c.b16 %v7145, %v7144
      %v7241 = vpack.c.b16 %v7147, %v7146
      %v7242 = vpack.c.b16 %v7149, %v7148
      %v7243 = vpack.c.b16 %v7151, %v7150
      %v7244 = vpack.c.b16 %v7153, %v7152
      %v7245 = vpack.c.b16 %v7155, %v7154
      %v7246 = vpack.c.b16 %v7157, %v7156
      %v7247 = vpack.c.b16 %v7159, %v7158
      %v7248 = vpack.c.b16 %v7161, %v7160
      %v7249 = vpack.c.b16 %v7163, %v7162
      %v7250 = vpack.c.b16 %v7165, %v7164
      %v7251 = vpack.c.b16 %v7167, %v7166
      %v7252 = vpack.c.b16 %v7169, %v7168
      %v7253 = vpack.c.b16 %v7171, %v7170
      %v7254 = vpack.c.b16 %v7173, %v7172
      %v7255 = vpack.c.b16 %v7175, %v7174
      %v7256 = vpack.c.b16 %v7177, %v7176
      %v7257 = vpack.c.b16 %v7179, %v7178
      %v7258 = vpack.c.b16 %v7181, %v7180
      %v7259 = vpack.c.b16 %v7183, %v7182
      %v7260 = vpack.c.b16 %v7185, %v7184
      %v7261 = vpack.c.b16 %v7187, %v7186
      %v7262 = vpack.c.b16 %v7189, %v7188
      %v7263 = vpack.c.b16 %v7191, %v7190
      %7336 = vmatprep.subr.bf16.mxu0 0
      %7337 = vmatpush1.bf16.msra.mxu0 %v7192
      %7338 = vmatprep.subr.bf16.mxu0 0
      %7339 = vmatpush1.bf16.msra.mxu0 %v7193
      %7340 = vmatprep.subr.bf16.mxu0 0
      %7341 = vmatpush1.bf16.msra.mxu0 %v7194
      %7342 = vmatprep.subr.bf16.mxu0 0
      %7343 = vmatpush1.bf16.msra.mxu0 %v7195
      %7344 = vmatprep.subr.bf16.mxu0 0
      %7345 = vmatpush1.bf16.msra.mxu0 %v7196
      %7346 = vmatprep.subr.bf16.mxu0 0
      %7347 = vmatpush1.bf16.msra.mxu0 %v7197
      %7348 = vmatprep.subr.bf16.mxu0 0
      %7349 = vmatpush1.bf16.msra.mxu0 %v7198
      %7350 = vmatprep.subr.bf16.mxu0 0
      %7351 = vmatpush1.bf16.msra.mxu0 %v7199
      %7352 = vmatprep.subr.bf16.mxu0 0
      %7353 = vmatpush1.bf16.msra.mxu0 %v7200
      %7354 = vmatprep.subr.bf16.mxu0 0
      %7355 = vmatpush1.bf16.msra.mxu0 %v7201
      %7356 = vmatprep.subr.bf16.mxu0 0
      %7357 = vmatpush1.bf16.msra.mxu0 %v7202
      %7358 = vmatprep.subr.bf16.mxu0 0
      %7359 = vmatpush1.bf16.msra.mxu0 %v7203
      %7360 = vmatprep.subr.bf16.mxu0 0
      %7361 = vmatpush1.bf16.msra.mxu0 %v7204
      %7362 = vmatprep.subr.bf16.mxu0 0
      %7363 = vmatpush1.bf16.msra.mxu0 %v7205
      %7364 = vmatprep.subr.bf16.mxu0 0
      %7365 = vmatpush1.bf16.msra.mxu0 %v7206
      %7366 = vmatprep.subr.bf16.mxu0 0
      %7367 = vmatpush1.bf16.msra.mxu0 %v7207
      %7368 = vmatprep.mubr.bf16.mxu0 %v5497
      %7369 = vmatmul.mubr.bf16.gmra.mrb[0].mxu0 %v5480
      %v7370 = vpop.f32.mrb[0].mxu0
      %v7371 = vadd.f32 %v5467, %v7370
      %v7372 = vpop.f32.mrb[0].mxu0
      %v7373 = vpop.f32.mrb[0].mxu0
      %v7374 = vadd.f32 %v5467, %v7373
      %v7375 = vpop.f32.mrb[0].mxu0
      %7376 = vmatprep.mubr.bf16.mxu0 %v5629
      %7377 = vmatmul.mubr.bf16.gmra.mrb[0].mxu0 %v5620
      %v7378 = vpop.f32.mrb[0].mxu0
      %v7379 = vadd.f32 %v5467, %v7378
      %v7380 = vpop.f32.mrb[0].mxu0
      %v7381 = vpop.f32.mrb[0].mxu0
      %v7382 = vadd.f32 %v5467, %v7381
      %v7383 = vpop.f32.mrb[0].mxu0
      %7384 = vmatprep.mubr.bf16.mxu0 %v5689
      %7385 = vmatmul.mubr.bf16.gmra.mrb[0].mxu0 %v5680
      %v7386 = vpop.f32.mrb[0].mxu0
      %v7387 = vadd.f32 %v5467, %v7386
      %v7388 = vpop.f32.mrb[0].mxu0
      %v7389 = vpop.f32.mrb[0].mxu0
      %v7390 = vadd.f32 %v5467, %v7389
      %v7391 = vpop.f32.mrb[0].mxu0
      %7392 = vmatprep.mubr.bf16.mxu0 %v5747
      %7393 = vmatmul.mubr.bf16.gmra.mrb[0].mxu0 %v5738
      %v7394 = vpop.f32.mrb[0].mxu0
      %v7395 = vadd.f32 %v5467, %v7394
      %v7396 = vpop.f32.mrb[0].mxu0
      %v7397 = vpop.f32.mrb[0].mxu0
      %v7398 = vadd.f32 %v5467, %v7397
      %v7399 = vpop.f32.mrb[0].mxu0
      %7400 = vmatprep.mubr.bf16.mxu0 %v5805
      %7401 = vmatmul.mubr.bf16.gmra.mrb[0].mxu0 %v5796
      %v7402 = vpop.f32.mrb[0].mxu0
      %v7403 = vadd.f32 %v5467, %v7402
      %v7404 = vpop.f32.mrb[0].mxu0
      %v7405 = vpop.f32.mrb[0].mxu0
      %v7406 = vadd.f32 %v5467, %v7405
      %v7407 = vpop.f32.mrb[0].mxu0
      %7408 = vmatprep.mubr.bf16.mxu0 %v5863
      %7409 = vmatmul.mubr.bf16.gmra.mrb[0].mxu0 %v5854
      %v7410 = vpop.f32.mrb[0].mxu0
      %v7411 = vadd.f32 %v5467, %v7410
      %v7412 = vpop.f32.mrb[0].mxu0
      %v7413 = vpop.f32.mrb[0].mxu0
      %v7414 = vadd.f32 %v5467, %v7413
      %v7415 = vpop.f32.mrb[0].mxu0
      %7416 = vmatprep.mubr.bf16.mxu0 %v5921
      %7417 = vmatmul.mubr.bf16.gmra.mrb[0].mxu0 %v5912
      %v7418 = vpop.f32.mrb[0].mxu0
      %v7419 = vadd.f32 %v5467, %v7418
      %v7420 = vpop.f32.mrb[0].mxu0
      %v7421 = vpop.f32.mrb[0].mxu0
      %v7422 = vadd.f32 %v5467, %v7421
      %v7423 = vpop.f32.mrb[0].mxu0
      %7424 = vmatprep.mubr.bf16.mxu0 %v5979
      %7425 = vmatmul.mubr.bf16.gmra.mrb[0].mxu0 %v5970
      %v7426 = vpop.f32.mrb[0].mxu0
      %v7427 = vadd.f32 %v5467, %v7426
      %v7428 = vpop.f32.mrb[0].mxu0
      %v7429 = vpop.f32.mrb[0].mxu0
      %v7430 = vadd.f32 %v5467, %v7429
      %v7431 = vpop.f32.mrb[0].mxu0
      %7432 = vmatprep.mubr.bf16.mxu0 %v6037
      %7433 = vmatmul.mubr.bf16.gmra.mrb[0].mxu0 %v6028
      %v7434 = vpop.f32.mrb[0].mxu0
      %v7435 = vadd.f32 %v5467, %v7434
      %v7436 = vpop.f32.mrb[0].mxu0
      %v7437 = vpop.f32.mrb[0].mxu0
      %v7438 = vadd.f32 %v5467, %v7437
      %v7439 = vpop.f32.mrb[0].mxu0
      %7440 = vmatprep.mubr.bf16.mxu0 %v6095
      %7441 = vmatmul.mubr.bf16.gmra.mrb[0].mxu0 %v6086
      %v7442 = vpop.f32.mrb[0].mxu0
      %v7443 = vadd.f32 %v5467, %v7442
      %v7444 = vpop.f32.mrb[0].mxu0
      %v7445 = vpop.f32.mrb[0].mxu0
      %v7446 = vadd.f32 %v5467, %v7445
      %v7447 = vpop.f32.mrb[0].mxu0
      %7448 = vmatprep.mubr.bf16.mxu0 %v6153
      %7449 = vmatmul.mubr.bf16.gmra.mrb[0].mxu0 %v6144
      %v7450 = vpop.f32.mrb[0].mxu0
      %v7451 = vadd.f32 %v5467, %v7450
      %v7452 = vpop.f32.mrb[0].mxu0
      %v7453 = vpop.f32.mrb[0].mxu0
      %v7454 = vadd.f32 %v5467, %v7453
      %v7455 = vpop.f32.mrb[0].mxu0
      %7456 = vmatprep.mubr.bf16.mxu0 %v6211
      %7457 = vmatmul.mubr.bf16.gmra.mrb[0].mxu0 %v6202
      %v7458 = vpop.f32.mrb[0].mxu0
      %v7459 = vadd.f32 %v5467, %v7458
      %v7460 = vpop.f32.mrb[0].mxu0
      %v7461 = vpop.f32.mrb[0].mxu0
      %v7462 = vadd.f32 %v5467, %v7461
      %v7463 = vpop.f32.mrb[0].mxu0
      %7464 = vmatprep.mubr.bf16.mxu0 %v6269
      %7465 = vmatmul.mubr.bf16.gmra.mrb[0].mxu0 %v6260
      %v7466 = vpop.f32.mrb[0].mxu0
      %v7467 = vadd.f32 %v5467, %v7466
      %v7468 = vpop.f32.mrb[0].mxu0
      %v7469 = vpop.f32.mrb[0].mxu0
      %v7470 = vadd.f32 %v5467, %v7469
      %v7471 = vpop.f32.mrb[0].mxu0
      %7472 = vmatprep.mubr.bf16.mxu0 %v6327
      %7473 = vmatmul.mubr.bf16.gmra.mrb[0].mxu0 %v6318
      %v7474 = vpop.f32.mrb[0].mxu0
      %v7475 = vadd.f32 %v5467, %v7474
      %v7476 = vpop.f32.mrb[0].mxu0
      %v7477 = vpop.f32.mrb[0].mxu0
      %v7478 = vadd.f32 %v5467, %v7477
      %v7479 = vpop.f32.mrb[0].mxu0
      %7480 = vmatprep.mubr.bf16.mxu0 %v6385
      %7481 = vmatmul.mubr.bf16.gmra.mrb[0].mxu0 %v6376
      %v7482 = vpop.f32.mrb[0].mxu0
      %v7483 = vadd.f32 %v5467, %v7482
      %v7484 = vpop.f32.mrb[0].mxu0
      %v7485 = vpop.f32.mrb[0].mxu0
      %v7486 = vadd.f32 %v5467, %v7485
      %v7487 = vpop.f32.mrb[0].mxu0
      %7488 = vmatprep.mubr.bf16.mxu0 %v6443
      %7489 = vmatmul.mubr.bf16.gmra.mrb[0].mxu0 %v6434
      %v7490 = vpop.f32.mrb[0].mxu0
      %v7491 = vadd.f32 %v5467, %v7490
      %v7492 = vpop.f32.mrb[0].mxu0
      %v7493 = vpop.f32.mrb[0].mxu0
      %v7494 = vadd.f32 %v5467, %v7493
      %v7495 = vpop.f32.mrb[0].mxu0
      %7496 = vmatprep.mubr.bf16.mxu0 %v6501
      %7497 = vmatmul.mubr.bf16.gmra.mrb[0].mxu0 %v6492
      %v7498 = vpop.f32.mrb[0].mxu0
      %v7499 = vadd.f32 %v5467, %v7498
      %v7500 = vpop.f32.mrb[0].mxu0
      %v7501 = vpop.f32.mrb[0].mxu0
      %v7502 = vadd.f32 %v5467, %v7501
      %v7503 = vpop.f32.mrb[0].mxu0
      %7504 = vmatprep.mubr.bf16.mxu0 %v6559
      %7505 = vmatmul.mubr.bf16.gmra.mrb[0].mxu0 %v6550
      %v7506 = vpop.f32.mrb[0].mxu0
      %v7507 = vadd.f32 %v5467, %v7506
      %v7508 = vpop.f32.mrb[0].mxu0
      %v7509 = vpop.f32.mrb[0].mxu0
      %v7510 = vadd.f32 %v5467, %v7509
      %v7511 = vpop.f32.mrb[0].mxu0
      %7512 = vmatprep.mubr.bf16.mxu0 %v6617
      %7513 = vmatmul.mubr.bf16.gmra.mrb[0].mxu0 %v6608
      %v7514 = vpop.f32.mrb[0].mxu0
      %v7515 = vadd.f32 %v5467, %v7514
      %v7516 = vpop.f32.mrb[0].mxu0
      %v7517 = vpop.f32.mrb[0].mxu0
      %v7518 = vadd.f32 %v5467, %v7517
      %v7519 = vpop.f32.mrb[0].mxu0
      %7520 = vmatprep.mubr.bf16.mxu0 %v6684
      %7521 = vmatmul.mubr.bf16.gmra.mrb[0].mxu0 %v6675
      %v7522 = vpop.f32.mrb[0].mxu0
      %v7523 = vadd.f32 %v5467, %v7522
      %v7524 = vpop.f32.mrb[0].mxu0
      %v7525 = vpop.f32.mrb[0].mxu0
      %v7526 = vadd.f32 %v5467, %v7525
      %v7527 = vpop.f32.mrb[0].mxu0
      %7528 = vmatprep.mubr.bf16.mxu0 %v6683
      %7529 = vmatmul.mubr.bf16.gmra.mrb[0].mxu0 %v6674
      %v7530 = vpop.f32.mrb[0].mxu0
      %v7531 = vadd.f32 %v5467, %v7530
      %v7532 = vpop.f32.mrb[0].mxu0
      %v7533 = vpop.f32.mrb[0].mxu0
      %v7534 = vpop.f32.mrb[0].mxu0
      %7535 = vdwg.mxu0
      %7536 = vmatprep.subr.bf16.mxu0 0
      %7537 = vmatpush1.bf16.msra.mxu0 %v7208
      %7538 = vmatprep.subr.bf16.mxu0 0
      %7539 = vmatpush1.bf16.msra.mxu0 %v7209
      %7540 = vmatprep.subr.bf16.mxu0 0
      %7541 = vmatpush1.bf16.msra.mxu0 %v7210
      %7542 = vmatprep.subr.bf16.mxu0 0
      %7543 = vmatpush1.bf16.msra.mxu0 %v7211
      %7544 = vmatprep.subr.bf16.mxu0 0
      %7545 = vmatpush1.bf16.msra.mxu0 %v7212
      %7546 = vmatprep.subr.bf16.mxu0 0
      %7547 = vmatpush1.bf16.msra.mxu0 %v7213
      %7548 = vmatprep.subr.bf16.mxu0 0
      %7549 = vmatpush1.bf16.msra.mxu0 %v7214
      %7550 = vmatprep.subr.bf16.mxu0 0
      %7551 = vmatpush1.bf16.msra.mxu0 %v7215
      %7552 = vmatprep.subr.bf16.mxu0 0
      %7553 = vmatpush1.bf16.msra.mxu0 %v7216
      %7554 = vmatprep.subr.bf16.mxu0 0
      %7555 = vmatpush1.bf16.msra.mxu0 %v7217
      %7556 = vmatprep.subr.bf16.mxu0 0
      %7557 = vmatpush1.bf16.msra.mxu0 %v7218
      %7558 = vmatprep.subr.bf16.mxu0 0
      %7559 = vmatpush1.bf16.msra.mxu0 %v7219
      %7560 = vmatprep.subr.bf16.mxu0 0
      %7561 = vmatpush1.bf16.msra.mxu0 %v7220
      %7562 = vmatprep.subr.bf16.mxu0 0
      %7563 = vmatpush1.bf16.msra.mxu0 %v7221
      %7564 = vmatprep.subr.bf16.mxu0 0
      %7565 = vmatpush1.bf16.msra.mxu0 %v7222
      %7566 = vmatprep.subr.bf16.mxu0 0
      %7567 = vmatpush1.bf16.msra.mxu0 %v7223
      %7568 = vmatprep.mubr.bf16.mxu0 %v5531
      %7569 = vmatmul.mubr.bf16.gmra.mrb[0].mxu0 %v5514
      %v7570 = vpop.f32.mrb[0].mxu0
      %v7571 = vadd.f32 %v7371, %v7570
      %v7572 = vpop.f32.mrb[0].mxu0
      %v7573 = vpop.f32.mrb[0].mxu0
      %v7574 = vadd.f32 %v7374, %v7573
      %v7575 = vpop.f32.mrb[0].mxu0
      %7576 = vmatprep.mubr.bf16.mxu0 %v5639
      %7577 = vmatmul.mubr.bf16.gmra.mrb[0].mxu0 %v5630
      %v7578 = vpop.f32.mrb[0].mxu0
      %v7579 = vadd.f32 %v7379, %v7578
      %v7580 = vpop.f32.mrb[0].mxu0
      %v7581 = vpop.f32.mrb[0].mxu0
      %v7582 = vadd.f32 %v7382, %v7581
      %v7583 = vpop.f32.mrb[0].mxu0
      %7584 = vmatprep.mubr.bf16.mxu0 %v5698
      %7585 = vmatmul.mubr.bf16.gmra.mrb[0].mxu0 %v5639
      %v7586 = vpop.f32.mrb[0].mxu0
      %v7587 = vadd.f32 %v7387, %v7586
      %v7588 = vpop.f32.mrb[0].mxu0
      %v7589 = vpop.f32.mrb[0].mxu0
      %v7590 = vadd.f32 %v7390, %v7589
      %v7591 = vpop.f32.mrb[0].mxu0
      %7592 = vmatprep.mubr.bf16.mxu0 %v5756
      %7593 = vmatmul.mubr.bf16.gmra.mrb[0].mxu0 %v5698
      %v7594 = vpop.f32.mrb[0].mxu0
      %v7595 = vadd.f32 %v7395, %v7594
      %v7596 = vpop.f32.mrb[0].mxu0
      %v7597 = vpop.f32.mrb[0].mxu0
      %v7598 = vadd.f32 %v7398, %v7597
      %v7599 = vpop.f32.mrb[0].mxu0
      %7600 = vmatprep.mubr.bf16.mxu0 %v5814
      %7601 = vmatmul.mubr.bf16.gmra.mrb[0].mxu0 %v5756
      %v7602 = vpop.f32.mrb[0].mxu0
      %v7603 = vadd.f32 %v7403, %v7602
      %v7604 = vpop.f32.mrb[0].mxu0
      %v7605 = vpop.f32.mrb[0].mxu0
      %v7606 = vadd.f32 %v7406, %v7605
      %v7607 = vpop.f32.mrb[0].mxu0
      %7608 = vmatprep.mubr.bf16.mxu0 %v5872
      %7609 = vmatmul.mubr.bf16.gmra.mrb[0].mxu0 %v5814
      %v7610 = vpop.f32.mrb[0].mxu0
      %v7611 = vadd.f32 %v7411, %v7610
      %v7612 = vpop.f32.mrb[0].mxu0
      %v7613 = vpop.f32.mrb[0].mxu0
      %v7614 = vadd.f32 %v7414, %v7613
      %v7615 = vpop.f32.mrb[0].mxu0
      %7616 = vmatprep.mubr.bf16.mxu0 %v5930
      %7617 = vmatmul.mubr.bf16.gmra.mrb[0].mxu0 %v5872
      %v7618 = vpop.f32.mrb[0].mxu0
      %v7619 = vadd.f32 %v7419, %v7618
      %v7620 = vpop.f32.mrb[0].mxu0
      %v7621 = vpop.f32.mrb[0].mxu0
      %v7622 = vadd.f32 %v7422, %v7621
      %v7623 = vpop.f32.mrb[0].mxu0
      %7624 = vmatprep.mubr.bf16.mxu0 %v5988
      %7625 = vmatmul.mubr.bf16.gmra.mrb[0].mxu0 %v5930
      %v7626 = vpop.f32.mrb[0].mxu0
      %v7627 = vadd.f32 %v7427, %v7626
      %v7628 = vpop.f32.mrb[0].mxu0
      %v7629 = vpop.f32.mrb[0].mxu0
      %v7630 = vadd.f32 %v7430, %v7629
      %v7631 = vpop.f32.mrb[0].mxu0
      %7632 = vmatprep.mubr.bf16.mxu0 %v6046
      %7633 = vmatmul.mubr.bf16.gmra.mrb[0].mxu0 %v5988
      %v7634 = vpop.f32.mrb[0].mxu0
      %v7635 = vadd.f32 %v7435, %v7634
      %v7636 = vpop.f32.mrb[0].mxu0
      %v7637 = vpop.f32.mrb[0].mxu0
      %v7638 = vadd.f32 %v7438, %v7637
      %v7639 = vpop.f32.mrb[0].mxu0
      %7640 = vmatprep.mubr.bf16.mxu0 %v6104
      %7641 = vmatmul.mubr.bf16.gmra.mrb[0].mxu0 %v6046
      %v7642 = vpop.f32.mrb[0].mxu0
      %v7643 = vadd.f32 %v7443, %v7642
      %v7644 = vpop.f32.mrb[0].mxu0
      %v7645 = vpop.f32.mrb[0].mxu0
      %v7646 = vadd.f32 %v7446, %v7645
      %v7647 = vpop.f32.mrb[0].mxu0
      %7648 = vmatprep.mubr.bf16.mxu0 %v6162
      %7649 = vmatmul.mubr.bf16.gmra.mrb[0].mxu0 %v6104
      %v7650 = vpop.f32.mrb[0].mxu0
      %v7651 = vadd.f32 %v7451, %v7650
      %v7652 = vpop.f32.mrb[0].mxu0
      %v7653 = vpop.f32.mrb[0].mxu0
      %v7654 = vadd.f32 %v7454, %v7653
      %v7655 = vpop.f32.mrb[0].mxu0
      %7656 = vmatprep.mubr.bf16.mxu0 %v6220
      %7657 = vmatmul.mubr.bf16.gmra.mrb[0].mxu0 %v6162
      %v7658 = vpop.f32.mrb[0].mxu0
      %v7659 = vadd.f32 %v7459, %v7658
      %v7660 = vpop.f32.mrb[0].mxu0
      %v7661 = vpop.f32.mrb[0].mxu0
      %v7662 = vadd.f32 %v7462, %v7661
      %v7663 = vpop.f32.mrb[0].mxu0
      %7664 = vmatprep.mubr.bf16.mxu0 %v6278
      %7665 = vmatmul.mubr.bf16.gmra.mrb[0].mxu0 %v6220
      %v7666 = vpop.f32.mrb[0].mxu0
      %v7667 = vadd.f32 %v7467, %v7666
      %v7668 = vpop.f32.mrb[0].mxu0
      %v7669 = vpop.f32.mrb[0].mxu0
      %v7670 = vadd.f32 %v7470, %v7669
      %v7671 = vpop.f32.mrb[0].mxu0
      %7672 = vmatprep.mubr.bf16.mxu0 %v6336
      %7673 = vmatmul.mubr.bf16.gmra.mrb[0].mxu0 %v6278
      %v7674 = vpop.f32.mrb[0].mxu0
      %v7675 = vadd.f32 %v7475, %v7674
      %v7676 = vpop.f32.mrb[0].mxu0
      %v7677 = vpop.f32.mrb[0].mxu0
      %v7678 = vadd.f32 %v7478, %v7677
      %v7679 = vpop.f32.mrb[0].mxu0
      %7680 = vmatprep.mubr.bf16.mxu0 %v6394
      %7681 = vmatmul.mubr.bf16.gmra.mrb[0].mxu0 %v6336
      %v7682 = vpop.f32.mrb[0].mxu0
      %v7683 = vadd.f32 %v7483, %v7682
      %v7684 = vpop.f32.mrb[0].mxu0
      %v7685 = vpop.f32.mrb[0].mxu0
      %v7686 = vadd.f32 %v7486, %v7685
      %v7687 = vpop.f32.mrb[0].mxu0
      %7688 = vmatprep.mubr.bf16.mxu0 %v6452
      %7689 = vmatmul.mubr.bf16.gmra.mrb[0].mxu0 %v6394
      %v7690 = vpop.f32.mrb[0].mxu0
      %v7691 = vadd.f32 %v7491, %v7690
      %v7692 = vpop.f32.mrb[0].mxu0
      %v7693 = vpop.f32.mrb[0].mxu0
      %v7694 = vadd.f32 %v7494, %v7693
      %v7695 = vpop.f32.mrb[0].mxu0
      %7696 = vmatprep.mubr.bf16.mxu0 %v6510
      %7697 = vmatmul.mubr.bf16.gmra.mrb[0].mxu0 %v6452
      %v7698 = vpop.f32.mrb[0].mxu0
      %v7699 = vadd.f32 %v7499, %v7698
      %v7700 = vpop.f32.mrb[0].mxu0
      %v7701 = vpop.f32.mrb[0].mxu0
      %v7702 = vadd.f32 %v7502, %v7701
      %v7703 = vpop.f32.mrb[0].mxu0
      %7704 = vmatprep.mubr.bf16.mxu0 %v6568
      %7705 = vmatmul.mubr.bf16.gmra.mrb[0].mxu0 %v6510
      %v7706 = vpop.f32.mrb[0].mxu0
      %v7707 = vadd.f32 %v7507, %v7706
      %v7708 = vpop.f32.mrb[0].mxu0
      %v7709 = vpop.f32.mrb[0].mxu0
      %v7710 = vadd.f32 %v7510, %v7709
      %v7711 = vpop.f32.mrb[0].mxu0
      %7712 = vmatprep.mubr.bf16.mxu0 %v6635
      %7713 = vmatmul.mubr.bf16.gmra.mrb[0].mxu0 %v6626
      %v7714 = vpop.f32.mrb[0].mxu0
      %v7715 = vadd.f32 %v7515, %v7714
      %v7716 = vpop.f32.mrb[0].mxu0
      %v7717 = vpop.f32.mrb[0].mxu0
      %v7718 = vadd.f32 %v7518, %v7717
      %v7719 = vpop.f32.mrb[0].mxu0
      %7720 = vmatprep.mubr.bf16.mxu0 %v6702
      %7721 = vmatmul.mubr.bf16.gmra.mrb[0].mxu0 %v6693
      %v7722 = vpop.f32.mrb[0].mxu0
      %v7723 = vadd.f32 %v7523, %v7722
      %v7724 = vpop.f32.mrb[0].mxu0
      %v7725 = vpop.f32.mrb[0].mxu0
      %v7726 = vadd.f32 %v7526, %v7725
      %v7727 = vpop.f32.mrb[0].mxu0
      %7728 = vmatprep.mubr.bf16.mxu0 %v6701
      %7729 = vmatmul.mubr.bf16.gmra.mrb[0].mxu0 %v6692
      %v7730 = vpop.f32.mrb[0].mxu0
      %v7731 = vadd.f32 %v7531, %v7730
      %v7732 = vpop.f32.mrb[0].mxu0
      %v7733 = vpop.f32.mrb[0].mxu0
      %v7734 = vpop.f32.mrb[0].mxu0
      %7735 = vdwg.mxu0
      %7736 = vmatprep.subr.bf16.mxu0 0
      %7737 = vmatpush1.bf16.msra.mxu0 %v7224
      %7738 = vmatprep.subr.bf16.mxu0 0
      %7739 = vmatpush1.bf16.msra.mxu0 %v7225
      %7740 = vmatprep.subr.bf16.mxu0 0
      %7741 = vmatpush1.bf16.msra.mxu0 %v7226
      %7742 = vmatprep.subr.bf16.mxu0 0
      %7743 = vmatpush1.bf16.msra.mxu0 %v7227
      %7744 = vmatprep.subr.bf16.mxu0 0
      %7745 = vmatpush1.bf16.msra.mxu0 %v7228
      %7746 = vmatprep.subr.bf16.mxu0 0
      %7747 = vmatpush1.bf16.msra.mxu0 %v7229
      %7748 = vmatprep.subr.bf16.mxu0 0
      %7749 = vmatpush1.bf16.msra.mxu0 %v7230
      %7750 = vmatprep.subr.bf16.mxu0 0
      %7751 = vmatpush1.bf16.msra.mxu0 %v7231
      %7752 = vmatprep.subr.bf16.mxu0 0
      %7753 = vmatpush1.bf16.msra.mxu0 %v7232
      %7754 = vmatprep.subr.bf16.mxu0 0
      %7755 = vmatpush1.bf16.msra.mxu0 %v7233
      %7756 = vmatprep.subr.bf16.mxu0 0
      %7757 = vmatpush1.bf16.msra.mxu0 %v7234
      %7758 = vmatprep.subr.bf16.mxu0 0
      %7759 = vmatpush1.bf16.msra.mxu0 %v7235
      %7760 = vmatprep.subr.bf16.mxu0 0
      %7761 = vmatpush1.bf16.msra.mxu0 %v7236
      %7762 = vmatprep.subr.bf16.mxu0 0
      %7763 = vmatpush1.bf16.msra.mxu0 %v7237
      %7764 = vmatprep.subr.bf16.mxu0 0
      %7765 = vmatpush1.bf16.msra.mxu0 %v7238
      %7766 = vmatprep.subr.bf16.mxu0 0
      %7767 = vmatpush1.bf16.msra.mxu0 %v7239
      %7768 = vmatprep.mubr.bf16.mxu0 %v5565
      %7769 = vmatmul.mubr.bf16.gmra.mrb[0].mxu0 %v5548
      %v7770 = vpop.f32.mrb[0].mxu0
      %v7771 = vadd.f32 %v7571, %v7770
      %v7772 = vpop.f32.mrb[0].mxu0
      %v7773 = vpop.f32.mrb[0].mxu0
      %v7774 = vadd.f32 %v7574, %v7773
      %v7775 = vpop.f32.mrb[0].mxu0
      %7776 = vmatprep.mubr.bf16.mxu0 %v5649
      %7777 = vmatmul.mubr.bf16.gmra.mrb[0].mxu0 %v5648
      %v7778 = vpop.f32.mrb[0].mxu0
      %v7779 = vadd.f32 %v7579, %v7778
      %v7780 = vpop.f32.mrb[0].mxu0
      %v7781 = vpop.f32.mrb[0].mxu0
      %v7782 = vadd.f32 %v7582, %v7781
      %v7783 = vpop.f32.mrb[0].mxu0
      %7784 = vmatprep.mubr.bf16.mxu0 %v5658
      %7785 = vmatmul.mubr.bf16.gmra.mrb[0].mxu0 %v5707
      %v7786 = vpop.f32.mrb[0].mxu0
      %v7787 = vadd.f32 %v7587, %v7786
      %v7788 = vpop.f32.mrb[0].mxu0
      %v7789 = vpop.f32.mrb[0].mxu0
      %v7790 = vadd.f32 %v7590, %v7789
      %v7791 = vpop.f32.mrb[0].mxu0
      %7792 = vmatprep.mubr.bf16.mxu0 %v5716
      %7793 = vmatmul.mubr.bf16.gmra.mrb[0].mxu0 %v5765
      %v7794 = vpop.f32.mrb[0].mxu0
      %v7795 = vadd.f32 %v7595, %v7794
      %v7796 = vpop.f32.mrb[0].mxu0
      %v7797 = vpop.f32.mrb[0].mxu0
      %v7798 = vadd.f32 %v7598, %v7797
      %v7799 = vpop.f32.mrb[0].mxu0
      %7800 = vmatprep.mubr.bf16.mxu0 %v5774
      %7801 = vmatmul.mubr.bf16.gmra.mrb[0].mxu0 %v5823
      %v7802 = vpop.f32.mrb[0].mxu0
      %v7803 = vadd.f32 %v7603, %v7802
      %v7804 = vpop.f32.mrb[0].mxu0
      %v7805 = vpop.f32.mrb[0].mxu0
      %v7806 = vadd.f32 %v7606, %v7805
      %v7807 = vpop.f32.mrb[0].mxu0
      %7808 = vmatprep.mubr.bf16.mxu0 %v5832
      %7809 = vmatmul.mubr.bf16.gmra.mrb[0].mxu0 %v5881
      %v7810 = vpop.f32.mrb[0].mxu0
      %v7811 = vadd.f32 %v7611, %v7810
      %v7812 = vpop.f32.mrb[0].mxu0
      %v7813 = vpop.f32.mrb[0].mxu0
      %v7814 = vadd.f32 %v7614, %v7813
      %v7815 = vpop.f32.mrb[0].mxu0
      %7816 = vmatprep.mubr.bf16.mxu0 %v5890
      %7817 = vmatmul.mubr.bf16.gmra.mrb[0].mxu0 %v5939
      %v7818 = vpop.f32.mrb[0].mxu0
      %v7819 = vadd.f32 %v7619, %v7818
      %v7820 = vpop.f32.mrb[0].mxu0
      %v7821 = vpop.f32.mrb[0].mxu0
      %v7822 = vadd.f32 %v7622, %v7821
      %v7823 = vpop.f32.mrb[0].mxu0
      %7824 = vmatprep.mubr.bf16.mxu0 %v5948
      %7825 = vmatmul.mubr.bf16.gmra.mrb[0].mxu0 %v5997
      %v7826 = vpop.f32.mrb[0].mxu0
      %v7827 = vadd.f32 %v7627, %v7826
      %v7828 = vpop.f32.mrb[0].mxu0
      %v7829 = vpop.f32.mrb[0].mxu0
      %v7830 = vadd.f32 %v7630, %v7829
      %v7831 = vpop.f32.mrb[0].mxu0
      %7832 = vmatprep.mubr.bf16.mxu0 %v6006
      %7833 = vmatmul.mubr.bf16.gmra.mrb[0].mxu0 %v6055
      %v7834 = vpop.f32.mrb[0].mxu0
      %v7835 = vadd.f32 %v7635, %v7834
      %v7836 = vpop.f32.mrb[0].mxu0
      %v7837 = vpop.f32.mrb[0].mxu0
      %v7838 = vadd.f32 %v7638, %v7837
      %v7839 = vpop.f32.mrb[0].mxu0
      %7840 = vmatprep.mubr.bf16.mxu0 %v6064
      %7841 = vmatmul.mubr.bf16.gmra.mrb[0].mxu0 %v6113
      %v7842 = vpop.f32.mrb[0].mxu0
      %v7843 = vadd.f32 %v7643, %v7842
      %v7844 = vpop.f32.mrb[0].mxu0
      %v7845 = vpop.f32.mrb[0].mxu0
      %v7846 = vadd.f32 %v7646, %v7845
      %v7847 = vpop.f32.mrb[0].mxu0
      %7848 = vmatprep.mubr.bf16.mxu0 %v6122
      %7849 = vmatmul.mubr.bf16.gmra.mrb[0].mxu0 %v6171
      %v7850 = vpop.f32.mrb[0].mxu0
      %v7851 = vadd.f32 %v7651, %v7850
      %v7852 = vpop.f32.mrb[0].mxu0
      %v7853 = vpop.f32.mrb[0].mxu0
      %v7854 = vadd.f32 %v7654, %v7853
      %v7855 = vpop.f32.mrb[0].mxu0
      %7856 = vmatprep.mubr.bf16.mxu0 %v6180
      %7857 = vmatmul.mubr.bf16.gmra.mrb[0].mxu0 %v6229
      %v7858 = vpop.f32.mrb[0].mxu0
      %v7859 = vadd.f32 %v7659, %v7858
      %v7860 = vpop.f32.mrb[0].mxu0
      %v7861 = vpop.f32.mrb[0].mxu0
      %v7862 = vadd.f32 %v7662, %v7861
      %v7863 = vpop.f32.mrb[0].mxu0
      %7864 = vmatprep.mubr.bf16.mxu0 %v6238
      %7865 = vmatmul.mubr.bf16.gmra.mrb[0].mxu0 %v6287
      %v7866 = vpop.f32.mrb[0].mxu0
      %v7867 = vadd.f32 %v7667, %v7866
      %v7868 = vpop.f32.mrb[0].mxu0
      %v7869 = vpop.f32.mrb[0].mxu0
      %v7870 = vadd.f32 %v7670, %v7869
      %v7871 = vpop.f32.mrb[0].mxu0
      %7872 = vmatprep.mubr.bf16.mxu0 %v6296
      %7873 = vmatmul.mubr.bf16.gmra.mrb[0].mxu0 %v6345
      %v7874 = vpop.f32.mrb[0].mxu0
      %v7875 = vadd.f32 %v7675, %v7874
      %v7876 = vpop.f32.mrb[0].mxu0
      %v7877 = vpop.f32.mrb[0].mxu0
      %v7878 = vadd.f32 %v7678, %v7877
      %v7879 = vpop.f32.mrb[0].mxu0
      %7880 = vmatprep.mubr.bf16.mxu0 %v6354
      %7881 = vmatmul.mubr.bf16.gmra.mrb[0].mxu0 %v6403
      %v7882 = vpop.f32.mrb[0].mxu0
      %v7883 = vadd.f32 %v7683, %v7882
      %v7884 = vpop.f32.mrb[0].mxu0
      %v7885 = vpop.f32.mrb[0].mxu0
      %v7886 = vadd.f32 %v7686, %v7885
      %v7887 = vpop.f32.mrb[0].mxu0
      %7888 = vmatprep.mubr.bf16.mxu0 %v6412
      %7889 = vmatmul.mubr.bf16.gmra.mrb[0].mxu0 %v6461
      %v7890 = vpop.f32.mrb[0].mxu0
      %v7891 = vadd.f32 %v7691, %v7890
      %v7892 = vpop.f32.mrb[0].mxu0
      %v7893 = vpop.f32.mrb[0].mxu0
      %v7894 = vadd.f32 %v7694, %v7893
      %v7895 = vpop.f32.mrb[0].mxu0
      %7896 = vmatprep.mubr.bf16.mxu0 %v6470
      %7897 = vmatmul.mubr.bf16.gmra.mrb[0].mxu0 %v6519
      %v7898 = vpop.f32.mrb[0].mxu0
      %v7899 = vadd.f32 %v7699, %v7898
      %v7900 = vpop.f32.mrb[0].mxu0
      %v7901 = vpop.f32.mrb[0].mxu0
      %v7902 = vadd.f32 %v7702, %v7901
      %v7903 = vpop.f32.mrb[0].mxu0
      %7904 = vmatprep.mubr.bf16.mxu0 %v6528
      %7905 = vmatmul.mubr.bf16.gmra.mrb[0].mxu0 %v6577
      %v7906 = vpop.f32.mrb[0].mxu0
      %v7907 = vadd.f32 %v7707, %v7906
      %v7908 = vpop.f32.mrb[0].mxu0
      %v7909 = vpop.f32.mrb[0].mxu0
      %v7910 = vadd.f32 %v7710, %v7909
      %v7911 = vpop.f32.mrb[0].mxu0
      %7912 = vmatprep.mubr.bf16.mxu0 %v6586
      %7913 = vmatmul.mubr.bf16.gmra.mrb[0].mxu0 %v6644
      %v7914 = vpop.f32.mrb[0].mxu0
      %v7915 = vadd.f32 %v7715, %v7914
      %v7916 = vpop.f32.mrb[0].mxu0
      %v7917 = vpop.f32.mrb[0].mxu0
      %v7918 = vadd.f32 %v7718, %v7917
      %v7919 = vpop.f32.mrb[0].mxu0
      %7920 = vmatprep.mubr.bf16.mxu0 %v6720
      %7921 = vmatmul.mubr.bf16.gmra.mrb[0].mxu0 %v6711
      %v7922 = vpop.f32.mrb[0].mxu0
      %v7923 = vadd.f32 %v7723, %v7922
      %v7924 = vpop.f32.mrb[0].mxu0
      %v7925 = vpop.f32.mrb[0].mxu0
      %v7926 = vadd.f32 %v7726, %v7925
      %v7927 = vpop.f32.mrb[0].mxu0
      %7928 = vmatprep.mubr.bf16.mxu0 %v6719
      %7929 = vmatmul.mubr.bf16.gmra.mrb[0].mxu0 %v6710
      %v7930 = vpop.f32.mrb[0].mxu0
      %v7931 = vadd.f32 %v7731, %v7930
      %v7932 = vpop.f32.mrb[0].mxu0
      %v7933 = vpop.f32.mrb[0].mxu0
      %v7934 = vpop.f32.mrb[0].mxu0
      %7935 = vdwg.mxu0
      %7936 = vmatprep.subr.bf16.mxu0 0
      %7937 = vmatpush1.bf16.msra.mxu0 %v7240
      %7938 = vmatprep.subr.bf16.mxu0 0
      %7939 = vmatpush1.bf16.msra.mxu0 %v7241
      %7940 = vmatprep.subr.bf16.mxu0 0
      %7941 = vmatpush1.bf16.msra.mxu0 %v7242
      %7942 = vmatprep.subr.bf16.mxu0 0
      %7943 = vmatpush1.bf16.msra.mxu0 %v7243
      %7944 = vmatprep.subr.bf16.mxu0 0
      %7945 = vmatpush1.bf16.msra.mxu0 %v7244
      %7946 = vmatprep.subr.bf16.mxu0 0
      %7947 = vmatpush1.bf16.msra.mxu0 %v7245
      %7948 = vmatprep.subr.bf16.mxu0 0
      %7949 = vmatpush1.bf16.msra.mxu0 %v7246
      %7950 = vmatprep.subr.bf16.mxu0 0
      %7951 = vmatpush1.bf16.msra.mxu0 %v7247
      %7952 = vmatprep.subr.bf16.mxu0 0
      %7953 = vmatpush1.bf16.msra.mxu0 %v7248
      %7954 = vmatprep.subr.bf16.mxu0 0
      %7955 = vmatpush1.bf16.msra.mxu0 %v7249
      %7956 = vmatprep.subr.bf16.mxu0 0
      %7957 = vmatpush1.bf16.msra.mxu0 %v7250
      %7958 = vmatprep.subr.bf16.mxu0 0
      %7959 = vmatpush1.bf16.msra.mxu0 %v7251
      %7960 = vmatprep.subr.bf16.mxu0 0
      %7961 = vmatpush1.bf16.msra.mxu0 %v7252
      %7962 = vmatprep.subr.bf16.mxu0 0
      %7963 = vmatpush1.bf16.msra.mxu0 %v7253
      %7964 = vmatprep.subr.bf16.mxu0 0
      %7965 = vmatpush1.bf16.msra.mxu0 %v7254
      %7966 = vmatprep.subr.bf16.mxu0 0
      %7967 = vmatpush1.bf16.msra.mxu0 %v7255
      %7968 = vmatprep.mubr.bf16.mxu0 %v5599
      %7969 = vmatmul.mubr.bf16.gmra.mrb[0].mxu0 %v5582
      %v7970 = vpop.f32.mrb[0].mxu0
      %v7971 = vadd.f32 %v7771, %v7970
      %v7972 = vpop.f32.mrb[0].mxu0
      %v7973 = vpop.f32.mrb[0].mxu0
      %v7974 = vadd.f32 %v7774, %v7973
      %v7975 = vpop.f32.mrb[0].mxu0
      %7976 = vmatprep.mubr.bf16.mxu0 %v5667
      %7977 = vmatmul.mubr.bf16.gmra.mrb[0].mxu0 %v5658
      %v7978 = vpop.f32.mrb[0].mxu0
      %v7979 = vadd.f32 %v7779, %v7978
      %v7980 = vpop.f32.mrb[0].mxu0
      %v7981 = vpop.f32.mrb[0].mxu0
      %v7982 = vadd.f32 %v7782, %v7981
      %v7983 = vpop.f32.mrb[0].mxu0
      %7984 = vmatprep.mubr.bf16.mxu0 %v5725
      %7985 = vmatmul.mubr.bf16.gmra.mrb[0].mxu0 %v5716
      %v7986 = vpop.f32.mrb[0].mxu0
      %v7987 = vadd.f32 %v7787, %v7986
      %v7988 = vpop.f32.mrb[0].mxu0
      %v7989 = vpop.f32.mrb[0].mxu0
      %v7990 = vadd.f32 %v7790, %v7989
      %v7991 = vpop.f32.mrb[0].mxu0
      %7992 = vmatprep.mubr.bf16.mxu0 %v5783
      %7993 = vmatmul.mubr.bf16.gmra.mrb[0].mxu0 %v5774
      %v7994 = vpop.f32.mrb[0].mxu0
      %v7995 = vadd.f32 %v7795, %v7994
      %v7996 = vpop.f32.mrb[0].mxu0
      %v7997 = vpop.f32.mrb[0].mxu0
      %v7998 = vadd.f32 %v7798, %v7997
      %v7999 = vpop.f32.mrb[0].mxu0
      %8000 = vmatprep.mubr.bf16.mxu0 %v5841
      %8001 = vmatmul.mubr.bf16.gmra.mrb[0].mxu0 %v5832
      %v8002 = vpop.f32.mrb[0].mxu0
      %v8003 = vadd.f32 %v7803, %v8002
      %v8004 = vpop.f32.mrb[0].mxu0
      %v8005 = vpop.f32.mrb[0].mxu0
      %v8006 = vadd.f32 %v7806, %v8005
      %v8007 = vpop.f32.mrb[0].mxu0
      %8008 = vmatprep.mubr.bf16.mxu0 %v5899
      %8009 = vmatmul.mubr.bf16.gmra.mrb[0].mxu0 %v5890
      %v8010 = vpop.f32.mrb[0].mxu0
      %v8011 = vadd.f32 %v7811, %v8010
      %v8012 = vpop.f32.mrb[0].mxu0
      %v8013 = vpop.f32.mrb[0].mxu0
      %v8014 = vadd.f32 %v7814, %v8013
      %v8015 = vpop.f32.mrb[0].mxu0
      %8016 = vmatprep.mubr.bf16.mxu0 %v5957
      %8017 = vmatmul.mubr.bf16.gmra.mrb[0].mxu0 %v5948
      %v8018 = vpop.f32.mrb[0].mxu0
      %v8019 = vadd.f32 %v7819, %v8018
      %v8020 = vpop.f32.mrb[0].mxu0
      %v8021 = vpop.f32.mrb[0].mxu0
      %v8022 = vadd.f32 %v7822, %v8021
      %v8023 = vpop.f32.mrb[0].mxu0
      %8024 = vmatprep.mubr.bf16.mxu0 %v6015
      %8025 = vmatmul.mubr.bf16.gmra.mrb[0].mxu0 %v6006
      %v8026 = vpop.f32.mrb[0].mxu0
      %v8027 = vadd.f32 %v7827, %v8026
      %v8028 = vpop.f32.mrb[0].mxu0
      %v8029 = vpop.f32.mrb[0].mxu0
      %v8030 = vadd.f32 %v7830, %v8029
      %v8031 = vpop.f32.mrb[0].mxu0
      %8032 = vmatprep.mubr.bf16.mxu0 %v6073
      %8033 = vmatmul.mubr.bf16.gmra.mrb[0].mxu0 %v6064
      %v8034 = vpop.f32.mrb[0].mxu0
      %v8035 = vadd.f32 %v7835, %v8034
      %v8036 = vpop.f32.mrb[0].mxu0
      %v8037 = vpop.f32.mrb[0].mxu0
      %v8038 = vadd.f32 %v7838, %v8037
      %v8039 = vpop.f32.mrb[0].mxu0
      %8040 = vmatprep.mubr.bf16.mxu0 %v6131
      %8041 = vmatmul.mubr.bf16.gmra.mrb[0].mxu0 %v6122
      %v8042 = vpop.f32.mrb[0].mxu0
      %v8043 = vadd.f32 %v7843, %v8042
      %v8044 = vpop.f32.mrb[0].mxu0
      %v8045 = vpop.f32.mrb[0].mxu0
      %v8046 = vadd.f32 %v7846, %v8045
      %v8047 = vpop.f32.mrb[0].mxu0
      %8048 = vmatprep.mubr.bf16.mxu0 %v6189
      %8049 = vmatmul.mubr.bf16.gmra.mrb[0].mxu0 %v6180
      %v8050 = vpop.f32.mrb[0].mxu0
      %v8051 = vadd.f32 %v7851, %v8050
      %v8052 = vpop.f32.mrb[0].mxu0
      %v8053 = vpop.f32.mrb[0].mxu0
      %v8054 = vadd.f32 %v7854, %v8053
      %v8055 = vpop.f32.mrb[0].mxu0
      %8056 = vmatprep.mubr.bf16.mxu0 %v6247
      %8057 = vmatmul.mubr.bf16.gmra.mrb[0].mxu0 %v6238
      %v8058 = vpop.f32.mrb[0].mxu0
      %v8059 = vadd.f32 %v7859, %v8058
      %v8060 = vpop.f32.mrb[0].mxu0
      %v8061 = vpop.f32.mrb[0].mxu0
      %v8062 = vadd.f32 %v7862, %v8061
      %v8063 = vpop.f32.mrb[0].mxu0
      %8064 = vmatprep.mubr.bf16.mxu0 %v6305
      %8065 = vmatmul.mubr.bf16.gmra.mrb[0].mxu0 %v6296
      %v8066 = vpop.f32.mrb[0].mxu0
      %v8067 = vadd.f32 %v7867, %v8066
      %v8068 = vpop.f32.mrb[0].mxu0
      %v8069 = vpop.f32.mrb[0].mxu0
      %v8070 = vadd.f32 %v7870, %v8069
      %v8071 = vpop.f32.mrb[0].mxu0
      %8072 = vmatprep.mubr.bf16.mxu0 %v6363
      %8073 = vmatmul.mubr.bf16.gmra.mrb[0].mxu0 %v6354
      %v8074 = vpop.f32.mrb[0].mxu0
      %v8075 = vadd.f32 %v7875, %v8074
      %v8076 = vpop.f32.mrb[0].mxu0
      %v8077 = vpop.f32.mrb[0].mxu0
      %v8078 = vadd.f32 %v7878, %v8077
      %v8079 = vpop.f32.mrb[0].mxu0
      %8080 = vmatprep.mubr.bf16.mxu0 %v6421
      %8081 = vmatmul.mubr.bf16.gmra.mrb[0].mxu0 %v6412
      %v8082 = vpop.f32.mrb[0].mxu0
      %v8083 = vadd.f32 %v7883, %v8082
      %v8084 = vpop.f32.mrb[0].mxu0
      %v8085 = vpop.f32.mrb[0].mxu0
      %v8086 = vadd.f32 %v7886, %v8085
      %v8087 = vpop.f32.mrb[0].mxu0
      %8088 = vmatprep.mubr.bf16.mxu0 %v6479
      %8089 = vmatmul.mubr.bf16.gmra.mrb[0].mxu0 %v6470
      %v8090 = vpop.f32.mrb[0].mxu0
      %v8091 = vadd.f32 %v7891, %v8090
      %v8092 = vpop.f32.mrb[0].mxu0
      %v8093 = vpop.f32.mrb[0].mxu0
      %v8094 = vadd.f32 %v7894, %v8093
      %v8095 = vpop.f32.mrb[0].mxu0
      %8096 = vmatprep.mubr.bf16.mxu0 %v6537
      %8097 = vmatmul.mubr.bf16.gmra.mrb[0].mxu0 %v6528
      %v8098 = vpop.f32.mrb[0].mxu0
      %v8099 = vadd.f32 %v7899, %v8098
      %v8100 = vpop.f32.mrb[0].mxu0
      %v8101 = vpop.f32.mrb[0].mxu0
      %v8102 = vadd.f32 %v7902, %v8101
      %v8103 = vpop.f32.mrb[0].mxu0
      %8104 = vmatprep.mubr.bf16.mxu0 %v6595
      %8105 = vmatmul.mubr.bf16.gmra.mrb[0].mxu0 %v6586
      %v8106 = vpop.f32.mrb[0].mxu0
      %v8107 = vadd.f32 %v7907, %v8106
      %v8108 = vpop.f32.mrb[0].mxu0
      %v8109 = vpop.f32.mrb[0].mxu0
      %v8110 = vadd.f32 %v7910, %v8109
      %v8111 = vpop.f32.mrb[0].mxu0
      %8112 = vmatprep.mubr.bf16.mxu0 %v6662
      %8113 = vmatmul.mubr.bf16.gmra.mrb[0].mxu0 %v6653
      %v8114 = vpop.f32.mrb[0].mxu0
      %v8115 = vadd.f32 %v7915, %v8114
      %v8116 = vpop.f32.mrb[0].mxu0
      %v8117 = vpop.f32.mrb[0].mxu0
      %v8118 = vadd.f32 %v7918, %v8117
      %v8119 = vpop.f32.mrb[0].mxu0
      %8120 = vmatprep.mubr.bf16.mxu0 %v6738
      %8121 = vmatmul.mubr.bf16.gmra.mrb[0].mxu0 %v6729
      %v8122 = vpop.f32.mrb[0].mxu0
      %v8123 = vadd.f32 %v7923, %v8122
      %v8124 = vpop.f32.mrb[0].mxu0
      %v8125 = vpop.f32.mrb[0].mxu0
      %v8126 = vadd.f32 %v7926, %v8125
      %v8127 = vpop.f32.mrb[0].mxu0
      %8128 = vmatprep.mubr.bf16.mxu0 %v6737
      %8129 = vmatmul.mubr.bf16.gmra.mrb[0].mxu0 %v6728
      %v8130 = vpop.f32.mrb[0].mxu0
      %v8131 = vadd.f32 %v7931, %v8130
      %v8132 = vpop.f32.mrb[0].mxu0
      %v8133 = vpop.f32.mrb[0].mxu0
      %v8134 = vpop.f32.mrb[0].mxu0
      %8135 = vdwg.mxu0
      %8136 = vmatprep.subr.bf16.mxu0 0
      %8137 = vmatpush1.bf16.msra.mxu0 %v7256
      %8138 = vmatprep.subr.bf16.mxu0 0
      %8139 = vmatpush1.bf16.msra.mxu0 %v7257
      %8140 = vmatprep.subr.bf16.mxu0 0
      %8141 = vmatpush1.bf16.msra.mxu0 %v7258
      %8142 = vmatprep.subr.bf16.mxu0 0
      %8143 = vmatpush1.bf16.msra.mxu0 %v7259
      %8144 = vmatprep.subr.bf16.mxu0 0
      %8145 = vmatpush1.bf16.msra.mxu0 %v7260
      %8146 = vmatprep.subr.bf16.mxu0 0
      %8147 = vmatpush1.bf16.msra.mxu0 %v7261
      %8148 = vmatprep.subr.bf16.mxu0 0
      %8149 = vmatpush1.bf16.msra.mxu0 %v7262
      %8150 = vmatprep.subr.bf16.mxu0 0
      %8151 = vmatpush1.bf16.msra.mxu0 %v7263
      %8152 = vmatprep.subr.bf16.mxu0 0
      %8153 = vmatpush1.bf16.msra.mxu0 0
      %8154 = vmatprep.subr.bf16.mxu0 0
      %8155 = vmatpush1.bf16.msra.mxu0 0
      %8156 = vmatprep.subr.bf16.mxu0 0
      %8157 = vmatpush1.bf16.msra.mxu0 0
      %8158 = vmatprep.subr.bf16.mxu0 0
      %8159 = vmatpush1.bf16.msra.mxu0 0
      %8160 = vmatprep.subr.bf16.mxu0 0
      %8161 = vmatpush1.bf16.msra.mxu0 0
      %8162 = vmatprep.subr.bf16.mxu0 0
      %8163 = vmatpush1.bf16.msra.mxu0 0
      %8164 = vmatprep.subr.bf16.mxu0 0
      %8165 = vmatpush1.bf16.msra.mxu0 0
      %8166 = vmatprep.subr.bf16.mxu0 0
      %8167 = vmatpush1.bf16.msra.mxu0 0
      %8168 = vmatprep.mubr.bf16.mxu0 0
      %8169 = vmatmul.mubr.bf16.gmra.mrb[0].mxu0 %v5616
      %v8170 = vpop.f32.mrb[0].mxu0
      %v8171 = vadd.f32 %v7971, %v8170
      %v8172 = vpop.f32.mrb[0].mxu0
      %v8173 = vpop.f32.mrb[0].mxu0
      %v8174 = vadd.f32 %v7974, %v8173
      %v8175 = vpop.f32.mrb[0].mxu0
      %8176 = vmatprep.mubr.bf16.mxu0 0
      %8177 = vmatmul.mubr.bf16.gmra.mrb[0].mxu0 %v5676
      %v8178 = vpop.f32.mrb[0].mxu0
      %v8179 = vadd.f32 %v7979, %v8178
      %v8180 = vpop.f32.mrb[0].mxu0
      %v8181 = vpop.f32.mrb[0].mxu0
      %v8182 = vadd.f32 %v7982, %v8181
      %v8183 = vpop.f32.mrb[0].mxu0
      %8184 = vmatprep.mubr.bf16.mxu0 0
      %8185 = vmatmul.mubr.bf16.gmra.mrb[0].mxu0 %v5734
      %v8186 = vpop.f32.mrb[0].mxu0
      %v8187 = vadd.f32 %v7987, %v8186
      %v8188 = vpop.f32.mrb[0].mxu0
      %v8189 = vpop.f32.mrb[0].mxu0
      %v8190 = vadd.f32 %v7990, %v8189
      %v8191 = vpop.f32.mrb[0].mxu0
      %8192 = vmatprep.mubr.bf16.mxu0 0
      %8193 = vmatmul.mubr.bf16.gmra.mrb[0].mxu0 %v5792
      %v8194 = vpop.f32.mrb[0].mxu0
      %v8195 = vadd.f32 %v7995, %v8194
      %v8196 = vpop.f32.mrb[0].mxu0
      %v8197 = vpop.f32.mrb[0].mxu0
      %v8198 = vadd.f32 %v7998, %v8197
      %v8199 = vpop.f32.mrb[0].mxu0
      %8200 = vmatprep.mubr.bf16.mxu0 0
      %8201 = vmatmul.mubr.bf16.gmra.mrb[0].mxu0 %v5850
      %v8202 = vpop.f32.mrb[0].mxu0
      %v8203 = vadd.f32 %v8003, %v8202
      %v8204 = vpop.f32.mrb[0].mxu0
      %v8205 = vpop.f32.mrb[0].mxu0
      %v8206 = vadd.f32 %v8006, %v8205
      %v8207 = vpop.f32.mrb[0].mxu0
      %8208 = vmatprep.mubr.bf16.mxu0 0
      %8209 = vmatmul.mubr.bf16.gmra.mrb[0].mxu0 %v5908
      %v8210 = vpop.f32.mrb[0].mxu0
      %v8211 = vadd.f32 %v8011, %v8210
      %v8212 = vpop.f32.mrb[0].mxu0
      %v8213 = vpop.f32.mrb[0].mxu0
      %v8214 = vadd.f32 %v8014, %v8213
      %v8215 = vpop.f32.mrb[0].mxu0
      %8216 = vmatprep.mubr.bf16.mxu0 0
      %8217 = vmatmul.mubr.bf16.gmra.mrb[0].mxu0 %v5966
      %v8218 = vpop.f32.mrb[0].mxu0
      %v8219 = vadd.f32 %v8019, %v8218
      %v8220 = vpop.f32.mrb[0].mxu0
      %v8221 = vpop.f32.mrb[0].mxu0
      %v8222 = vadd.f32 %v8022, %v8221
      %v8223 = vpop.f32.mrb[0].mxu0
      %8224 = vmatprep.mubr.bf16.mxu0 0
      %8225 = vmatmul.mubr.bf16.gmra.mrb[0].mxu0 %v6024
      %v8226 = vpop.f32.mrb[0].mxu0
      %v8227 = vadd.f32 %v8027, %v8226
      %v8228 = vpop.f32.mrb[0].mxu0
      %v8229 = vpop.f32.mrb[0].mxu0
      %v8230 = vadd.f32 %v8030, %v8229
      %v8231 = vpop.f32.mrb[0].mxu0
      %8232 = vmatprep.mubr.bf16.mxu0 0
      %8233 = vmatmul.mubr.bf16.gmra.mrb[0].mxu0 %v6082
      %v8234 = vpop.f32.mrb[0].mxu0
      %v8235 = vadd.f32 %v8035, %v8234
      %v8236 = vpop.f32.mrb[0].mxu0
      %v8237 = vpop.f32.mrb[0].mxu0
      %v8238 = vadd.f32 %v8038, %v8237
      %v8239 = vpop.f32.mrb[0].mxu0
      %8240 = vmatprep.mubr.bf16.mxu0 0
      %8241 = vmatmul.mubr.bf16.gmra.mrb[0].mxu0 %v6140
      %v8242 = vpop.f32.mrb[0].mxu0
      %v8243 = vadd.f32 %v8043, %v8242
      %v8244 = vpop.f32.mrb[0].mxu0
      %v8245 = vpop.f32.mrb[0].mxu0
      %v8246 = vadd.f32 %v8046, %v8245
      %v8247 = vpop.f32.mrb[0].mxu0
      %8248 = vmatprep.mubr.bf16.mxu0 0
      %8249 = vmatmul.mubr.bf16.gmra.mrb[0].mxu0 %v6198
      %v8250 = vpop.f32.mrb[0].mxu0
      %v8251 = vadd.f32 %v8051, %v8250
      %v8252 = vpop.f32.mrb[0].mxu0
      %v8253 = vpop.f32.mrb[0].mxu0
      %v8254 = vadd.f32 %v8054, %v8253
      %v8255 = vpop.f32.mrb[0].mxu0
      %8256 = vmatprep.mubr.bf16.mxu0 0
      %8257 = vmatmul.mubr.bf16.gmra.mrb[0].mxu0 %v6256
      %v8258 = vpop.f32.mrb[0].mxu0
      %v8259 = vadd.f32 %v8059, %v8258
      %v8260 = vpop.f32.mrb[0].mxu0
      %v8261 = vpop.f32.mrb[0].mxu0
      %v8262 = vadd.f32 %v8062, %v8261
      %v8263 = vpop.f32.mrb[0].mxu0
      %8264 = vmatprep.mubr.bf16.mxu0 0
      %8265 = vmatmul.mubr.bf16.gmra.mrb[0].mxu0 %v6314
      %v8266 = vpop.f32.mrb[0].mxu0
      %v8267 = vadd.f32 %v8067, %v8266
      %v8268 = vpop.f32.mrb[0].mxu0
      %v8269 = vpop.f32.mrb[0].mxu0
      %v8270 = vadd.f32 %v8070, %v8269
      %v8271 = vpop.f32.mrb[0].mxu0
      %8272 = vmatprep.mubr.bf16.mxu0 0
      %8273 = vmatmul.mubr.bf16.gmra.mrb[0].mxu0 %v6372
      %v8274 = vpop.f32.mrb[0].mxu0
      %v8275 = vadd.f32 %v8075, %v8274
      %v8276 = vpop.f32.mrb[0].mxu0
      %v8277 = vpop.f32.mrb[0].mxu0
      %v8278 = vadd.f32 %v8078, %v8277
      %v8279 = vpop.f32.mrb[0].mxu0
      %8280 = vmatprep.mubr.bf16.mxu0 0
      %8281 = vmatmul.mubr.bf16.gmra.mrb[0].mxu0 %v6430
      %v8282 = vpop.f32.mrb[0].mxu0
      %v8283 = vadd.f32 %v8083, %v8282
      %v8284 = vpop.f32.mrb[0].mxu0
      %v8285 = vpop.f32.mrb[0].mxu0
      %v8286 = vadd.f32 %v8086, %v8285
      %v8287 = vpop.f32.mrb[0].mxu0
      %8288 = vmatprep.mubr.bf16.mxu0 0
      %8289 = vmatmul.mubr.bf16.gmra.mrb[0].mxu0 %v6488
      %v8290 = vpop.f32.mrb[0].mxu0
      %v8291 = vadd.f32 %v8091, %v8290
      %v8292 = vpop.f32.mrb[0].mxu0
      %v8293 = vpop.f32.mrb[0].mxu0
      %v8294 = vadd.f32 %v8094, %v8293
      %v8295 = vpop.f32.mrb[0].mxu0
      %8296 = vmatprep.mubr.bf16.mxu0 0
      %8297 = vmatmul.mubr.bf16.gmra.mrb[0].mxu0 %v6546
      %v8298 = vpop.f32.mrb[0].mxu0
      %v8299 = vadd.f32 %v8099, %v8298
      %v8300 = vpop.f32.mrb[0].mxu0
      %v8301 = vpop.f32.mrb[0].mxu0
      %v8302 = vadd.f32 %v8102, %v8301
      %v8303 = vpop.f32.mrb[0].mxu0
      %8304 = vmatprep.mubr.bf16.mxu0 0
      %8305 = vmatmul.mubr.bf16.gmra.mrb[0].mxu0 %v6604
      %v8306 = vpop.f32.mrb[0].mxu0
      %v8307 = vadd.f32 %v8107, %v8306
      %v8308 = vpop.f32.mrb[0].mxu0
      %v8309 = vpop.f32.mrb[0].mxu0
      %v8310 = vadd.f32 %v8110, %v8309
      %v8311 = vpop.f32.mrb[0].mxu0
      %8312 = vmatprep.mubr.bf16.mxu0 0
      %8313 = vmatmul.mubr.bf16.gmra.mrb[0].mxu0 %v6671
      %v8314 = vpop.f32.mrb[0].mxu0
      %v8315 = vadd.f32 %v8115, %v8314
      %v8316 = vpop.f32.mrb[0].mxu0
      %v8317 = vpop.f32.mrb[0].mxu0
      %v8318 = vadd.f32 %v8118, %v8317
      %v8319 = vpop.f32.mrb[0].mxu0
      %8320 = vmatprep.mubr.bf16.mxu0 0
      %8321 = vmatmul.mubr.bf16.gmra.mrb[0].mxu0 %v6747
      %v8322 = vpop.f32.mrb[0].mxu0
      %v8323 = vadd.f32 %v8123, %v8322
      %v8324 = vpop.f32.mrb[0].mxu0
      %v8325 = vpop.f32.mrb[0].mxu0
      %v8326 = vadd.f32 %v8126, %v8325
      %v8327 = vpop.f32.mrb[0].mxu0
      %8328 = vmatprep.mubr.bf16.mxu0 0
      %8329 = vmatmul.mubr.bf16.gmra.mrb[0].mxu0 %v6746
      %v8330 = vpop.f32.mrb[0].mxu0
      %v8331 = vadd.f32 %v8131, %v8330
      %v8332 = vpop.f32.mrb[0].mxu0
      %v8333 = vpop.f32.mrb[0].mxu0
      %v8334 = vpop.f32.mrb[0].mxu0
      %8335 = vdwg.mxu0
      %v8336 = vunpack.c.l.bf16 %v256
      %v8337 = vunpack.c.l.bf16 %v257
      %v8338 = vunpack.c.l.bf16 %v258
      %v8339 = vunpack.c.l.bf16 %v259
      %v8340 = vunpack.c.l.bf16 %v260
      %v8341 = vunpack.c.l.bf16 %v261
      %v8342 = vunpack.c.l.bf16 %v262
      %v8343 = vunpack.c.l.bf16 %v263
      %v8344 = vunpack.c.l.bf16 %v264
      %v8345 = vunpack.c.l.bf16 %v265
      %v8346 = vunpack.c.l.bf16 %v266
      %v8347 = vunpack.c.l.bf16 %v267
      %v8348 = vunpack.c.l.bf16 %v268
      %v8349 = vunpack.c.l.bf16 %v269
      %v8350 = vunpack.c.l.bf16 %v270
      %v8351 = vunpack.c.l.bf16 %v271
      %v8352 = vunpack.c.l.bf16 %v272
      %v8353 = vunpack.c.l.bf16 %v273
      %v8354 = vunpack.c.l.bf16 %v274
      %v8355 = vunpack.c.l.bf16 %v275
      %v8356 = vunpack.c.l.bf16 %v276
      %v8357 = vunpack.c.l.bf16 %v277
      %v8358 = vunpack.c.l.bf16 %v278
      %v8359 = vunpack.c.l.bf16 %v279
      %v8360 = vunpack.c.l.bf16 %v280
      %v8361 = vunpack.c.l.bf16 %v281
      %v8362 = vunpack.c.l.bf16 %v282
      %v8363 = vunpack.c.l.bf16 %v283
      %v8364 = vunpack.c.l.bf16 %v284
      %v8365 = vunpack.c.l.bf16 %v285
      %v8366 = vunpack.c.l.bf16 %v286
      %v8367 = vunpack.c.l.bf16 %v287
      %v8368 = vunpack.c.l.bf16 %v288
      %v8369 = vunpack.c.l.bf16 %v289
      %v8370 = vunpack.c.l.bf16 %v290
      %v8371 = vunpack.c.l.bf16 %v291
      %v8372 = vunpack.c.l.bf16 %v292
      %v8373 = vunpack.c.l.bf16 %v293
      %v8374 = vunpack.c.l.bf16 %v298
      %v8375 = vunpack.c.l.bf16 %v299
      %v8376 = vunpack.c.l.bf16 %v300
      %v8377 = vadd.f32 %v8171, %v8336
      %v8378 = vadd.f32 %v8174, %v8337
      %v8379 = vadd.f32 %v8179, %v8338
      %v8380 = vadd.f32 %v8182, %v8339
      %v8381 = vadd.f32 %v8187, %v8340
      %v8382 = vadd.f32 %v8190, %v8341
      %v8383 = vadd.f32 %v8195, %v8342
      %v8384 = vadd.f32 %v8198, %v8343
      %v8385 = vadd.f32 %v8203, %v8344
      %v8386 = vadd.f32 %v8206, %v8345
      %v8387 = vadd.f32 %v8211, %v8346
      %v8388 = vadd.f32 %v8214, %v8347
      %v8389 = vadd.f32 %v8219, %v8348
      %v8390 = vadd.f32 %v8222, %v8349
      %v8391 = vadd.f32 %v8227, %v8350
      %v8392 = vadd.f32 %v8230, %v8351
      %v8393 = vadd.f32 %v8235, %v8352
      %v8394 = vadd.f32 %v8238, %v8353
      %v8395 = vadd.f32 %v8243, %v8354
      %v8396 = vadd.f32 %v8246, %v8355
      %v8397 = vadd.f32 %v8251, %v8356
      %v8398 = vadd.f32 %v8254, %v8357
      %v8399 = vadd.f32 %v8259, %v8358
      %v8400 = vadd.f32 %v8262, %v8359
      %v8401 = vadd.f32 %v8267, %v8360
      %v8402 = vadd.f32 %v8270, %v8361
      %v8403 = vadd.f32 %v8275, %v8362
      %v8404 = vadd.f32 %v8278, %v8363
      %v8405 = vadd.f32 %v8283, %v8364
      %v8406 = vadd.f32 %v8286, %v8365
      %v8407 = vadd.f32 %v8291, %v8366
      %v8408 = vadd.f32 %v8294, %v8367
      %v8409 = vadd.f32 %v8299, %v8368
      %v8410 = vadd.f32 %v8302, %v8369
      %v8411 = vadd.f32 %v8307, %v8370
      %v8412 = vadd.f32 %v8310, %v8371
      %v8413 = vadd.f32 %v8315, %v8372
      %v8414 = vadd.f32 %v8318, %v8373
      %v8415 = vadd.f32 %v8323, %v8374
      %v8416 = vadd.f32 %v8326, %v8375
      %v8417 = vadd.f32 %v8331, %v8376
      %v8418 = vmax.f32 %v8377, 0.0
      %v8419 = vmax.f32 %v8378, 0.0
      %v8420 = vmax.f32 %v8379, 0.0
      %v8421 = vmax.f32 %v8380, 0.0
      %v8422 = vmax.f32 %v8381, 0.0
      %v8423 = vmax.f32 %v8382, 0.0
      %v8424 = vmax.f32 %v8383, 0.0
      %v8425 = vmax.f32 %v8384, 0.0
      %v8426 = vmax.f32 %v8385, 0.0
      %v8427 = vmax.f32 %v8386, 0.0
      %v8428 = vmax.f32 %v8387, 0.0
      %v8429 = vmax.f32 %v8388, 0.0
      %v8430 = vmax.f32 %v8389, 0.0
      %v8431 = vmax.f32 %v8390, 0.0
      %v8432 = vmax.f32 %v8391, 0.0
      %v8433 = vmax.f32 %v8392, 0.0
      %v8434 = vmax.f32 %v8393, 0.0
      %v8435 = vmax.f32 %v8394, 0.0
      %v8436 = vmax.f32 %v8395, 0.0
      %v8437 = vmax.f32 %v8396, 0.0
      %v8438 = vmax.f32 %v8397, 0.0
      %v8439 = vmax.f32 %v8398, 0.0
      %v8440 = vmax.f32 %v8399, 0.0
      %v8441 = vmax.f32 %v8400, 0.0
      %v8442 = vmax.f32 %v8401, 0.0
      %v8443 = vmax.f32 %v8402, 0.0
      %v8444 = vmax.f32 %v8403, 0.0
      %v8445 = vmax.f32 %v8404, 0.0
      %v8446 = vmax.f32 %v8405, 0.0
      %v8447 = vmax.f32 %v8406, 0.0
      %v8448 = vmax.f32 %v8407, 0.0
      %v8449 = vmax.f32 %v8408, 0.0
      %v8450 = vmax.f32 %v8409, 0.0
      %v8451 = vmax.f32 %v8410, 0.0
      %v8452 = vmax.f32 %v8411, 0.0
      %v8453 = vmax.f32 %v8412, 0.0
      %v8454 = vmax.f32 %v8413, 0.0
      %v8455 = vmax.f32 %v8414, 0.0
      %v8456 = vmax.f32 %v8415, 0.0
      %v8457 = vmax.f32 %v8416, 0.0
      %v8458 = vmax.f32 %v8417, 0.0
      %v8459 = vpack.c.bf16 %v8419, %v8418
      %v8460 = vpack.c.bf16 %v8421, %v8420
      %v8461 = vpack.c.bf16 %v8423, %v8422
      %v8462 = vpack.c.bf16 %v8425, %v8424
      %v8463 = vpack.c.bf16 %v8427, %v8426
      %v8464 = vpack.c.bf16 %v8429, %v8428
      %v8465 = vpack.c.bf16 %v8431, %v8430
      %v8466 = vpack.c.bf16 %v8433, %v8432
      %v8467 = vpack.c.bf16 %v8435, %v8434
      %v8468 = vpack.c.bf16 %v8437, %v8436
      %v8469 = vpack.c.bf16 %v8439, %v8438
      %v8470 = vpack.c.bf16 %v8441, %v8440
      %v8471 = vpack.c.bf16 %v8443, %v8442
      %v8472 = vpack.c.bf16 %v8445, %v8444
      %v8473 = vpack.c.bf16 %v8447, %v8446
      %v8474 = vpack.c.bf16 %v8449, %v8448
      %v8475 = vpack.c.bf16 %v8451, %v8450
      %v8476 = vpack.c.bf16 %v8453, %v8452
      %v8477 = vpack.c.bf16 %v8455, %v8454
      %v8478 = vpack.c.bf16 %v8457, %v8456
      %v8479 = vpack.c.bf16 %v8458, %v8458
      %v8501 = vunpack.c.l.b16 %v8459
      %v8502 = vunpack.c.h.b16 %v8459
      %v8503 = vunpack.c.l.b16 %v8460
      %v8504 = vunpack.c.h.b16 %v8460
      %v8505 = vunpack.c.l.b16 %v8461
      %v8506 = vunpack.c.h.b16 %v8461
      %v8507 = vunpack.c.l.b16 %v8462
      %v8508 = vunpack.c.h.b16 %v8462
      %v8509 = vunpack.c.l.b16 %v8463
      %v8510 = vunpack.c.h.b16 %v8463
      %v8511 = vunpack.c.l.b16 %v8464
      %v8512 = vunpack.c.h.b16 %v8464
      %v8513 = vunpack.c.l.b16 %v8465
      %v8514 = vunpack.c.h.b16 %v8465
      %v8515 = vunpack.c.l.b16 %v8466
      %v8516 = vunpack.c.h.b16 %v8466
      %v8517 = vunpack.c.l.b16 %v8467
      %v8518 = vunpack.c.h.b16 %v8467
      %v8519 = vunpack.c.l.b16 %v8468
      %v8520 = vunpack.c.h.b16 %v8468
      %v8521 = vunpack.c.l.b16 %v8469
      %v8522 = vunpack.c.h.b16 %v8469
      %v8523 = vunpack.c.l.b16 %v8470
      %v8524 = vunpack.c.h.b16 %v8470
      %v8525 = vunpack.c.l.b16 %v8471
      %v8526 = vunpack.c.h.b16 %v8471
      %v8527 = vunpack.c.l.b16 %v8472
      %v8528 = vunpack.c.h.b16 %v8472
      %v8529 = vunpack.c.l.b16 %v8473
      %v8530 = vunpack.c.h.b16 %v8473
      %v8531 = vunpack.c.l.b16 %v8474
      %v8532 = vunpack.c.h.b16 %v8474
      %v8533 = vunpack.c.l.b16 %v8475
      %v8534 = vunpack.c.h.b16 %v8475
      %v8535 = vunpack.c.l.b16 %v8476
      %v8536 = vunpack.c.h.b16 %v8476
      %v8537 = vunpack.c.l.b16 %v8477
      %v8538 = vunpack.c.h.b16 %v8477
      %v8539 = vunpack.c.l.b16 %v8478
      %v8540 = vunpack.c.h.b16 %v8478
      %v8541 = vunpack.c.l.b16 %v8479
      %v8542 = vpack.c.b16 %v8501, %v8501
      %v8543 = vpack.c.b16 %v8502, %v8502
      %v8544 = vpack.c.b16 %v8503, %v8503
      %v8545 = vpack.c.b16 %v8504, %v8504
      %v8546 = vpack.c.b16 %v8505, %v8505
      %v8547 = vpack.c.b16 %v8506, %v8506
      %v8548 = vpack.c.b16 %v8507, %v8507
      %v8549 = vpack.c.b16 %v8508, %v8508
      %v8550 = vpack.c.b16 %v8509, %v8509
      %v8551 = vpack.c.b16 %v8510, %v8510
      %v8552 = vpack.c.b16 %v8511, %v8511
      %v8553 = vpack.c.b16 %v8512, %v8512
      %v8554 = vpack.c.b16 %v8513, %v8513
      %v8555 = vpack.c.b16 %v8514, %v8514
      %v8556 = vpack.c.b16 %v8515, %v8515
      %v8557 = vpack.c.b16 %v8516, %v8516
      %v8558 = vpack.c.b16 %v8517, %v8517
      %v8559 = vpack.c.b16 %v8518, %v8518
      %v8560 = vpack.c.b16 %v8519, %v8519
      %v8561 = vpack.c.b16 %v8520, %v8520
      %v8562 = vpack.c.b16 %v8521, %v8521
      %v8563 = vpack.c.b16 %v8522, %v8522
      %v8564 = vpack.c.b16 %v8523, %v8523
      %v8565 = vpack.c.b16 %v8524, %v8524
      %v8566 = vpack.c.b16 %v8525, %v8525
      %v8567 = vpack.c.b16 %v8526, %v8526
      %v8568 = vpack.c.b16 %v8527, %v8527
      %v8569 = vpack.c.b16 %v8528, %v8528
      %v8570 = vpack.c.b16 %v8529, %v8529
      %v8571 = vpack.c.b16 %v8530, %v8530
      %v8572 = vpack.c.b16 %v8531, %v8531
      %v8573 = vpack.c.b16 %v8532, %v8532
      %v8574 = vpack.c.b16 %v8533, %v8533
      %v8575 = vpack.c.b16 %v8534, %v8534
      %v8576 = vpack.c.b16 %v8535, %v8535
      %v8577 = vpack.c.b16 %v8536, %v8536
      %v8578 = vpack.c.b16 %v8537, %v8537
      %v8579 = vpack.c.b16 %v8538, %v8538
      %v8580 = vpack.c.b16 %v8539, %v8539
      %v8581 = vpack.c.b16 %v8540, %v8540
      %v8582 = vpack.c.b16 %v8541, %v8541
      %8624 = vst [vmem:[%s251] sm:$0xf] %v8542
      %8625 = vst [vmem:[%s251 + $0x4] sm:$0xf] %v8543
      %8626 = vst [vmem:[%s251 + $0x8] sm:$0xf] %v8544
      %8627 = vst [vmem:[%s251 + $0xc] sm:$0xf] %v8545
      %8628 = vst [vmem:[%s251 + $0x10] sm:$0xf] %v8546
      %8629 = vst [vmem:[%s251 + $0x14] sm:$0xf] %v8547
      %8630 = vst [vmem:[%s251 + $0x18] sm:$0xf] %v8548
      %8631 = vst [vmem:[%s251 + $0x1c] sm:$0xf] %v8549
      %8632 = vst [vmem:[%s251 + $0x20] sm:$0xf] %v8550
      %8633 = vst [vmem:[%s251 + $0x24] sm:$0xf] %v8551
      %8634 = vst [vmem:[%s251 + $0x28] sm:$0xf] %v8552
      %8635 = vst [vmem:[%s251 + $0x2c] sm:$0xf] %v8553
      %8636 = vst [vmem:[%s251 + $0x30] sm:$0xf] %v8554
      %8637 = vst [vmem:[%s251 + $0x34] sm:$0xf] %v8555
      %8638 = vst [vmem:[%s251 + $0x38] sm:$0xf] %v8556
      %8639 = vst [vmem:[%s251 + $0x3c] sm:$0xf] %v8557
      %8640 = vst [vmem:[%s251 + $0x40] sm:$0xf] %v8558
      %8641 = vst [vmem:[%s251 + $0x44] sm:$0xf] %v8559
      %8642 = vst [vmem:[%s251 + $0x48] sm:$0xf] %v8560
      %8643 = vst [vmem:[%s251 + $0x4c] sm:$0xf] %v8561
      %8644 = vst [vmem:[%s251 + $0x50] sm:$0xf] %v8562
      %8645 = vst [vmem:[%s251 + $0x54] sm:$0xf] %v8563
      %8646 = vst [vmem:[%s251 + $0x58] sm:$0xf] %v8564
      %8647 = vst [vmem:[%s251 + $0x5c] sm:$0xf] %v8565
      %8648 = vst [vmem:[%s251 + $0x60] sm:$0xf] %v8566
      %8649 = vst [vmem:[%s251 + $0x64] sm:$0xf] %v8567
      %8650 = vst [vmem:[%s251 + $0x68] sm:$0xf] %v8568
      %8651 = vst [vmem:[%s251 + $0x6c] sm:$0xf] %v8569
      %8652 = vst [vmem:[%s251 + $0x70] sm:$0xf] %v8570
      %8653 = vst [vmem:[%s251 + $0x74] sm:$0xf] %v8571
      %8654 = vst [vmem:[%s251 + $0x78] sm:$0xf] %v8572
      %8655 = vst [vmem:[%s251 + $0x7c] sm:$0xf] %v8573
      %8656 = vst [vmem:[%s251 + $0x80] sm:$0xf] %v8574
      %8657 = vst [vmem:[%s251 + $0x84] sm:$0xf] %v8575
      %8658 = vst [vmem:[%s251 + $0x88] sm:$0xf] %v8576
      %8659 = vst [vmem:[%s251 + $0x8c] sm:$0xf] %v8577
      %8660 = vst [vmem:[%s251 + $0x90] sm:$0xf] %v8578
      %8661 = vst [vmem:[%s251 + $0x94] sm:$0xf] %v8579
      %8662 = vst [vmem:[%s251 + $0x98] sm:$0xf] %v8580
      %8663 = vst [vmem:[%s251 + $0x9c] sm:$0xf] %v8581
      %8664 = vst [vmem:[%s251 + $0xa0] sm:$0x3] %v8582
      %p8665 = scmp.lt.s32.totalorder %s17, 1
      %s8666 = scalar_select %p8665, %s17, 1
      %s8667 = smul.addr %s8666, 41
      %s8668 = smul.addr %s8667, 4
      %s8669 = scalar_lea.vmem %s6, %s8668
      // Predicated region
      $region45: #{basic_block_pallas.1} parent=43 // pred_check
        %p8670 = pneg %p166
      $region46: #{basic_block_pallas.1} parent=43 // pred_check_branch
        %8672 = sbr.rel (%p8670) target = $region48
      $region47: #{basic_block_pallas.1} parent=43 // pred_region
        _
      $region48: #{basic_block_pallas.1} parent=43 // pred_fallthru
        _
    $region44: #{basic_block_pallas.1} parent=5 // pred_fallthru
      _
    %p8673 = scmp.le.s32.totalorder 2, %s12
    // Predicated region
    $region49: #{basic_block_pallas.1} parent=5 // pred_check
      %p8674 = pneg %p8673
    $region50: #{basic_block_pallas.1} parent=5 // pred_check_branch
      %8676 = sbr.rel (%p8674) target = $region52
    $region51: #{basic_block_pallas.1} parent=5 // pred_region
      %s8677 = ssub.s32 %s12, 2
      // Predicated region
      $region53: #{basic_block_pallas.1} parent=51 // pred_check
        %p8678 = pneg %p172
      $region54: #{basic_block_pallas.1} parent=51 // pred_check_branch
        %8680 = sbr.rel (%p8678) target = $region56
      $region55: #{basic_block_pallas.1} parent=51 // pred_region
        %p8681 = scmp.lt.s32.totalorder %s18, 1
        %s8682 = scalar_select %p8681, %s18, 1
        %s8683 = smul.addr %s8682, 41
        %s8684 = smul.addr %s8683, 4
        %s8685 = scalar_lea.vmem %s6, %s8684
      $region56: #{basic_block_pallas.1} parent=51 // pred_fallthru
        _
    $region52: #{basic_block_pallas.1} parent=5 // pred_fallthru
      _
  $region6: #{basic_block_pallas.1} parent=0 // loop_footer
    %s16 = sadd.s32 1, %s12
  $region7: #{basic_block_pallas.1} parent=0 // loop_footer_branch
    %11 = sbr.rel target = $region3
  $region8: #{basic_block_pallas.1} parent=0 // loop_exit
    _

</llo_original>
